<compile_context>
chip_gen: v6e
topology: v6e:2x2x1
jax: 0.10.0
libtpu: 0.0.40
codegen_flags: <defaults>
</compile_context>

<pallas_src>
import functools

import jax
import jax.numpy as jnp
from jax.experimental import pallas as pl
from jax.experimental.pallas import tpu as pltpu


# ----------------------------------------------------------------------------
# Fused-chain Pallas kernel: NB images per grid step, several conv layers.
# ----------------------------------------------------------------------------
def _chain_kernel(*refs, chain, Hout, Wout, NB):
    """refs = [x_ref,
               w_0, shift_0, ..., w_{L-1}, shift_{L-1},
               o_ref,
               pbuf for every stride-1 layer (in layer order)]

    chain[i] = dict(K, S, pad, cin, cout, relu)
      * layer 0 with S == 2 reads parity-decimated, pre-padded planes from
        x_ref (NB, 4, Hps, Wps, Cin); every other layer is stride-1 and goes
        through a zero-bordered VMEM scratch buffer pbuf (Hp, Wp, Cin).
    """
    L = len(chain)
    x_ref = refs[0]
    o_ref = refs[1 + 2 * L]
    pbufs = refs[2 + 2 * L:]
    M = Hout * Wout

    # Zero ONLY the pad-wide border of each padded scratch, once per grid
    # step.  The interior is fully overwritten before every read and the
    # border is never written, so this is all the zero-fill a "same"
    # convolution needs (no full-buffer memset).
    pb = 0
    for i, lyr in enumerate(chain):
        if i == 0 and lyr["S"] == 2:
            continue
        pad, cin = lyr["pad"], lyr["cin"]
        Hp, Wp = Hout + 2 * pad, Wout + 2 * pad
        pbuf = pbufs[pb]
        pb += 1
        zrow = jnp.zeros((pad, Wp, cin), pbuf.dtype)
        zcol = jnp.zeros((Hout, pad, cin), pbuf.dtype)
        pbuf[0:pad, :, :] = zrow
        pbuf[Hp - pad:Hp, :, :] = zrow
        pbuf[pad:pad + Hout, 0:pad, :] = zcol
        pbuf[pad:pad + Hout, Wp - pad:Wp, :] = zcol

    # Conv chain, NB images per grid step (static loop).
    for b in range(NB):
        act = None            # f32 (Hout, Wout, C) activation feeding layer i>0
        pb = 0
        for i, lyr in enumerate(chain):
            w_ref = refs[1 + 2 * i]      # (K*K, cin, cout) bf16, BN scale folded
            sh_ref = refs[2 + 2 * i]     # (1, cout)        f32  folded shift
            K, S, pad = lyr["K"], lyr["S"], lyr["pad"]
            cin, cout = lyr["cin"], lyr["cout"]

            acc = None                   # f32 (M, cout) accumulator
            if i == 0 and S == 2:
                # Stride-2 head: taps come from the 4 parity planes, so every
                # slice below is static and stride-free.
                for dy in range(K):
                    for dx in range(K):
                        p = (dy % 2) * 2 + (dx % 2)
                        tap = x_ref[b, p, dy // 2:dy // 2 + Hout,
                                    dx // 2:dx // 2 + Wout, :]
                        lhs = tap.astype(jnp.bfloat16).reshape(M, cin)
                        d = jnp.dot(lhs, w_ref[dy * K + dx],
                                    preferred_element_type=jnp.float32)
                        acc = d if acc is None else acc + d
            else:
                # Stride-1 layer: write the activation into the interior of
                # the zero-bordered scratch, then take K*K shifted windows.
                pbuf = pbufs[pb]
                pb += 1
                src = x_ref[b] if i == 0 else act
                pbuf[pad:pad + Hout, pad:pad + Wout, :] = src.astype(pbuf.dtype)
                for dy in range(K):
                    for dx in range(K):
                        tap = pbuf[dy:dy + Hout, dx:dx + Wout, :]
                        lhs = tap.astype(jnp.bfloat16).reshape(M, cin)
                        d = jnp.dot(lhs, w_ref[dy * K + dx],
                                    preferred_element_type=jnp.float32)
                        acc = d if acc is None else acc + d

            out = acc + sh_ref[...]                     # folded BN/bias (f32)
            if lyr["relu"]:
                out = jnp.maximum(out, 0.0)

            if i + 1 < L:
                act = out.reshape(Hout, Wout, cout)     # stays in VMEM (f32)
            else:
                o_ref[b] = out.astype(o_ref.dtype)      # 2D store, no reshape


# ----------------------------------------------------------------------------
# Host-side helpers
# ----------------------------------------------------------------------------
def _parity_planes(x_nhwc, pad, stride):
    """Zero-pad + decimate into stride*stride parity planes so every stride-2
    conv tap in the kernel is a static, stride-free slice."""
    N, H, W, C = x_nhwc.shape
    S = stride
    Hp, Wp = H + 2 * pad, W + 2 * pad
    Hpp = -(-Hp // S) * S
    Wpp = -(-Wp // S) * S
    xp = jnp.pad(x_nhwc, ((0, 0), (pad, pad + Hpp - Hp),
                          (pad, pad + Wpp - Wp), (0, 0)))
    return (xp.reshape(N, Hpp // S, S, Wpp // S, S, C)
              .transpose(0, 2, 4, 1, 3, 5)
              .reshape(N, S * S, Hpp // S, Wpp // S, C))


def _vmem_limit_bytes():
    """Generation-aware scoped-VMEM budget."""
    try:
        cap = int(pltpu.get_tpu_info().vmem_capacity_bytes)
    except Exception:
        cap = None
    if cap is not None and cap <= (64 << 20):
        return 48 << 20      # v7x-class: 64 MiB/TC total -> leave headroom
    return 64 << 20          # v5e/v6e: 128 MiB physical, default scoped 16/32


def _images_per_step(N, Hout, Wout):
    """Fold several tiny images into one grid step (~0.35us/step overhead);
    for real MVS image sizes this returns 1 so the batch stays parallel."""
    target = max(1, 2048 // max(1, Hout * Wout))
    nb = min(N, target)
    while N % nb:
        nb -= 1
    return nb


def run_chain(x_nhwc, layers, out_dtype):
    """Run one fused chain of Conv(+BN+ReLU) layers as a single pallas_call."""
    N, H, W, C0 = x_nhwc.shape
    head = layers[0]
    K0, S0, p0 = head["K"], head["S"], head["pad"]
    Hout = (H + 2 * p0 - K0) // S0 + 1
    Wout = (W + 2 * p0 - K0) // S0 + 1
    NB = _images_per_step(N, Hout, Wout)

    if S0 == 2:
        xin = _parity_planes(x_nhwc, p0, S0)
        _, P, Hps, Wps, _ = xin.shape
        x_spec = pl.BlockSpec((NB, P, Hps, Wps, C0), lambda g: (g, 0, 0, 0, 0))
    else:
        xin = x_nhwc
        x_spec = pl.BlockSpec((NB, H, W, C0), lambda g: (g, 0, 0, 0))

    operands = [xin]
    in_specs = [x_spec]
    scratch = []
    chain_cfg = []
    for i, lyr in enumerate(layers):
        K, S, cin, cout = lyr["K"], lyr["S"], lyr["cin"], lyr["cout"]
        operands += [lyr["w_taps"], lyr["shift"]]
        in_specs += [pl.BlockSpec((K * K, cin, cout), lambda g: (0, 0, 0)),
                     pl.BlockSpec((1, cout), lambda g: (0, 0))]
        if not (i == 0 and S == 2):
            pad = lyr["pad"]
            # TODO(synk): bf16 pbuf once unaligned packed stores are verified.
            scratch.append(pltpu.VMEM((Hout + 2 * pad, Wout + 2 * pad, cin),
                                      jnp.float32))
        chain_cfg.append(dict(K=K, S=S, pad=lyr["pad"], cin=cin, cout=cout,
                              relu=lyr["relu"]))

    Cl = layers[-1]["cout"]
    kernel = functools.partial(_chain_kernel, chain=tuple(chain_cfg),
                               Hout=Hout, Wout=Wout, NB=NB)
    out = pl.pallas_call(
        kernel,
        out_shape=jax.ShapeDtypeStruct((N, Hout * Wout, Cl), out_dtype),
        grid=(N // NB,),
        in_specs=in_specs,
        out_specs=pl.BlockSpec((NB, Hout * Wout, Cl), lambda g: (g, 0, 0)),
        scratch_shapes=scratch,
        compiler_params=pltpu.CompilerParams(
            dimension_semantics=("parallel",),
            vmem_limit_bytes=_vmem_limit_bytes()),
    )(*operands)
    return out.reshape(N, Hout, Wout, Cl)


# ----------------------------------------------------------------------------
# FeatureNet forward (NCHW in / NCHW out, like the PyTorch module)
# ----------------------------------------------------------------------------
CHAIN_SPLITS = [(0, 2), (2, 5), (5, 9)]   # conv0-1 | conv2-4 | conv5-last


def feature_net(x_nchw, params):
    y = jnp.transpose(x_nchw.astype(jnp.float32), (0, 2, 3, 1))   # NCHW -> NHWC
    last = len(CHAIN_SPLITS) - 1
    for ci, (a, b) in enumerate(CHAIN_SPLITS):
        out_dtype = jnp.float32 if ci == last else jnp.bfloat16
        y = run_chain(y, params[a:b], out_dtype)
    return jnp.transpose(y, (0, 3, 1, 2))                         # NHWC -> NCHW


# ----------------------------------------------------------------------------
# Deterministic synthetic parameters (shapes from FeatureNet.__init__)
# ----------------------------------------------------------------------------
def init_params(key):
    eps = 1e-5
    # (cin, cout, K, stride, pad, has_bn_relu)
    cfg = [
        (3, 8, 3, 1, 1, True),    # conv0
        (8, 8, 3, 1, 1, True),    # conv1
        (8, 16, 5, 2, 2, True),   # conv2
        (16, 16, 3, 1, 1, True),  # conv3
        (16, 16, 3, 1, 1, True),  # conv4
        (16, 32, 5, 2, 2, True),  # conv5
        (32, 32, 3, 1, 1, True),  # conv6
        (32, 32, 3, 1, 1, True),  # conv7
        (32, 32, 3, 1, 1, False), # last_conv (no BN, no ReLU)
    ]
    params = []
    for i, (cin, cout, k, s, p, has_bn) in enumerate(cfg):
        lkey = jax.random.fold_in(key, i)
        k1, k2, k3, k4, k5, k6 = jax.random.split(lkey, 6)
        w = jax.random.normal(k1, (k, k, cin, cout), jnp.float32)
        w = w / jnp.sqrt(float(k * k * cin))
        b = 0.05 * jax.random.normal(k2, (cout,), jnp.float32)
        if has_bn:
            gamma = 1.0 + 0.1 * jax.random.normal(k3, (cout,), jnp.float32)
            beta = 0.1 * jax.random.normal(k4, (cout,), jnp.float32)
            rmean = 0.1 * jax.random.normal(k5, (cout,), jnp.float32)
            rvar = 1.0 + 0.1 * jnp.abs(jax.random.normal(k6, (cout,), jnp.float32))
            scale = gamma / jnp.sqrt(rvar + eps)
            shift = (b - rmean) * scale + beta
            relu = True
        else:
            scale = jnp.ones((cout,), jnp.float32)
            shift = b
            relu = False
        # Fold the per-channel BN scale into the weights (f32 math, then bf16).
        w_taps = (w.reshape(k * k, cin, cout) *
                  scale[None, None, :]).astype(jnp.bfloat16)
        params.append(dict(
            w_hwio=w, scale=scale,                      # f32, reference path
            w_taps=w_taps,                              # (K*K, cin, cout) bf16
            shift=shift.reshape(1, cout),               # (1, cout) f32
            K=k, S=s, pad=p, relu=relu, cin=cin, cout=cout))
    return params


# ----------------------------------------------------------------------------
# Pure-JAX reference (lax.conv, full f32) for a correctness check
# ----------------------------------------------------------------------------
def ref_forward(x_nhwc, params):
    y = x_nhwc.astype(jnp.float32)
    for layer in params:
        y = jax.lax.conv_general_dilated(
            y, layer["w_hwio"],
            window_strides=(layer["S"], layer["S"]),
            padding=[(layer["pad"], layer["pad"]), (layer["pad"], layer["pad"])],
            dimension_numbers=("NHWC", "HWIO", "NHWC"))
        y = y * layer["scale"] + layer["shift"].reshape(-1)
        if layer["relu"]:
            y = jnp.maximum(y, 0.0)
    return y


if __name__ == "__main__":
    key = jax.random.PRNGKey(0)
    # PyTorch input convention: NCHW, 3 input channels.
    x = jax.random.normal(key, (2, 3, 16, 16), jnp.float32)

    params = init_params(jax.random.PRNGKey(1))

    out = jax.block_until_ready(feature_net(x, params))
    assert out.shape == (2, 32, 4, 4), out.shape
    assert out.dtype == jnp.float32

    ref = jnp.transpose(ref_forward(jnp.transpose(x, (0, 2, 3, 1)), params),
                        (0, 3, 1, 2))
    err = float(jnp.max(jnp.abs(out - ref)))
    # bf16 matmul operands + bf16 inter-chain activations => bf16-level
    # tolerance vs the full-f32 reference.
    assert jnp.allclose(out, ref, atol=5e-2, rtol=5e-2), err

    print("KERNEL_OK")
</pallas_src>

<mosaic_0001>
module attributes {stable_mosaic.version = 11 : i64} {
  func.func @_chain_kernel(%arg0: i32, %arg1: memref<2x16x16x3xf32, #tpu.memory_space<vmem>>, %arg2: memref<9x3x8xbf16, #tpu.memory_space<vmem>>, %arg3: memref<1x8xf32, #tpu.memory_space<vmem>>, %arg4: memref<9x8x8xbf16, #tpu.memory_space<vmem>>, %arg5: memref<1x8xf32, #tpu.memory_space<vmem>>, %arg6: memref<2x256x8xbf16, #tpu.memory_space<vmem>>, %arg7: memref<18x18x3xf32, #tpu.memory_space<vmem>>, %arg8: memref<18x18x8xf32, #tpu.memory_space<vmem>>) attributes {dimension_semantics = [#tpu.dimension_semantics<parallel>], iteration_bounds = array<i64: 1>, scalar_prefetch = 0 : i64, scratch_operands = 2 : i64, tpu.core_type = #tpu.core_type<tc>, window_params = [{transform_indices = @transform_0, window_bounds = array<i64: 2, 16, 16, 3>}, {pipeline_mode = #tpu.pipeline_mode<synchronous>, transform_indices = @transform_1, window_bounds = array<i64: 9, 3, 8>}, {pipeline_mode = #tpu.pipeline_mode<synchronous>, transform_indices = @transform_2, window_bounds = array<i64: 1, 8>}, {pipeline_mode = #tpu.pipeline_mode<synchronous>, transform_indices = @transform_3, window_bounds = array<i64: 9, 8, 8>}, {pipeline_mode = #tpu.pipeline_mode<synchronous>, transform_indices = @transform_4, window_bounds = array<i64: 1, 8>}, {transform_indices = @transform_5, window_bounds = array<i64: 2, 256, 8>}]} {
    %cst = arith.constant 0.000000e+00 : f32
    %0 = vector.broadcast %cst : f32 to vector<1x18x3xf32>
    %cst_0 = arith.constant 0.000000e+00 : f32
    %1 = vector.broadcast %cst_0 : f32 to vector<16x1x3xf32>
    %c0 = arith.constant 0 : index
    %c0_1 = arith.constant 0 : index
    %c0_2 = arith.constant 0 : index
    %2 = vector.load %arg7[%c0, %c0_1, %c0_2] : memref<18x18x3xf32, #tpu.memory_space<vmem>>, vector<1x18x3xf32>
    tpu.vector_store %arg7[%c0, %c0_1, %c0_2], %0 {strides = array<i32>} : memref<18x18x3xf32, #tpu.memory_space<vmem>>, vector<1x18x3xf32>,
    %c17 = arith.constant 17 : index
    %c0_3 = arith.constant 0 : index
    %c0_4 = arith.constant 0 : index
    %3 = vector.load %arg7[%c17, %c0_3, %c0_4] : memref<18x18x3xf32, #tpu.memory_space<vmem>>, vector<1x18x3xf32>
    tpu.vector_store %arg7[%c17, %c0_3, %c0_4], %0 {strides = array<i32>} : memref<18x18x3xf32, #tpu.memory_space<vmem>>, vector<1x18x3xf32>,
    %c1 = arith.constant 1 : index
    %c0_5 = arith.constant 0 : index
    %c0_6 = arith.constant 0 : index
    %4 = vector.load %arg7[%c1, %c0_5, %c0_6] : memref<18x18x3xf32, #tpu.memory_space<vmem>>, vector<16x1x3xf32>
    tpu.vector_store %arg7[%c1, %c0_5, %c0_6], %1 {strides = array<i32>} : memref<18x18x3xf32, #tpu.memory_space<vmem>>, vector<16x1x3xf32>,
    %c1_7 = arith.constant 1 : index
    %c17_8 = arith.constant 17 : index
    %c0_9 = arith.constant 0 : index
    %5 = vector.load %arg7[%c1_7, %c17_8, %c0_9] : memref<18x18x3xf32, #tpu.memory_space<vmem>>, vector<16x1x3xf32>
    tpu.vector_store %arg7[%c1_7, %c17_8, %c0_9], %1 {strides = array<i32>} : memref<18x18x3xf32, #tpu.memory_space<vmem>>, vector<16x1x3xf32>,
    %cst_10 = arith.constant 0.000000e+00 : f32
    %6 = vector.broadcast %cst_10 : f32 to vector<1x18x8xf32>
    %cst_11 = arith.constant 0.000000e+00 : f32
    %7 = vector.broadcast %cst_11 : f32 to vector<16x1x8xf32>
    %c0_12 = arith.constant 0 : index
    %c0_13 = arith.constant 0 : index
    %c0_14 = arith.constant 0 : index
    %8 = vector.load %arg8[%c0_12, %c0_13, %c0_14] : memref<18x18x8xf32, #tpu.memory_space<vmem>>, vector<1x18x8xf32>
    tpu.vector_store %arg8[%c0_12, %c0_13, %c0_14], %6 {strides = array<i32>} : memref<18x18x8xf32, #tpu.memory_space<vmem>>, vector<1x18x8xf32>,
    %c17_15 = arith.constant 17 : index
    %c0_16 = arith.constant 0 : index
    %c0_17 = arith.constant 0 : index
    %9 = vector.load %arg8[%c17_15, %c0_16, %c0_17] : memref<18x18x8xf32, #tpu.memory_space<vmem>>, vector<1x18x8xf32>
    tpu.vector_store %arg8[%c17_15, %c0_16, %c0_17], %6 {strides = array<i32>} : memref<18x18x8xf32, #tpu.memory_space<vmem>>, vector<1x18x8xf32>,
    %c1_18 = arith.constant 1 : index
    %c0_19 = arith.constant 0 : index
    %c0_20 = arith.constant 0 : index
    %10 = vector.load %arg8[%c1_18, %c0_19, %c0_20] : memref<18x18x8xf32, #tpu.memory_space<vmem>>, vector<16x1x8xf32>
    tpu.vector_store %arg8[%c1_18, %c0_19, %c0_20], %7 {strides = array<i32>} : memref<18x18x8xf32, #tpu.memory_space<vmem>>, vector<16x1x8xf32>,
    %c1_21 = arith.constant 1 : index
    %c17_22 = arith.constant 17 : index
    %c0_23 = arith.constant 0 : index
    %11 = vector.load %arg8[%c1_21, %c17_22, %c0_23] : memref<18x18x8xf32, #tpu.memory_space<vmem>>, vector<16x1x8xf32>
    tpu.vector_store %arg8[%c1_21, %c17_22, %c0_23], %7 {strides = array<i32>} : memref<18x18x8xf32, #tpu.memory_space<vmem>>, vector<16x1x8xf32>,
    %c0_24 = arith.constant 0 : index
    %c0_25 = arith.constant 0 : index
    %c0_26 = arith.constant 0 : index
    %c0_27 = arith.constant 0 : index
    %12 = vector.load %arg1[%c0_24, %c0_25, %c0_26, %c0_27] : memref<2x16x16x3xf32, #tpu.memory_space<vmem>>, vector<1x16x16x3xf32>
    %13 = vector.shape_cast %12 : vector<1x16x16x3xf32> to vector<16x16x3xf32>
    %c1_28 = arith.constant 1 : index
    %c1_29 = arith.constant 1 : index
    %c0_30 = arith.constant 0 : index
    %14 = vector.load %arg7[%c1_28, %c1_29, %c0_30] : memref<18x18x3xf32, #tpu.memory_space<vmem>>, vector<16x16x3xf32>
    tpu.vector_store %arg7[%c1_28, %c1_29, %c0_30], %13 {strides = array<i32>} : memref<18x18x3xf32, #tpu.memory_space<vmem>>, vector<16x16x3xf32>,
    %c0_31 = arith.constant 0 : index
    %c0_32 = arith.constant 0 : index
    %c0_33 = arith.constant 0 : index
    %15 = vector.load %arg7[%c0_31, %c0_32, %c0_33] : memref<18x18x3xf32, #tpu.memory_space<vmem>>, vector<16x16x3xf32>
    %16 = arith.truncf %15 : vector<16x16x3xf32> to vector<16x16x3xbf16>
    %17 = vector.shape_cast %16 : vector<16x16x3xbf16> to vector<256x3xbf16>
    %c0_34 = arith.constant 0 : index
    %c0_35 = arith.constant 0 : index
    %c0_36 = arith.constant 0 : index
    %18 = vector.load %arg2[%c0_34, %c0_35, %c0_36] : memref<9x3x8xbf16, #tpu.memory_space<vmem>>, vector<1x3x8xbf16>
    %19 = vector.shape_cast %18 : vector<1x3x8xbf16> to vector<3x8xbf16>
    %cst_37 = arith.constant dense<0.000000e+00> : vector<256x8xf32>
    %20 = tpu.matmul %17, %19, %cst_37 {dimension_numbers = #tpu.dot_dimension_numbers<[1], [0], [0], [1], [0, 0, 1, 1], [], []>} : vector<256x3xbf16>, vector<3x8xbf16>, vector<256x8xf32> -> vector<256x8xf32>
    %c0_38 = arith.constant 0 : index
    %c1_39 = arith.constant 1 : index
    %c0_40 = arith.constant 0 : index
    %21 = vector.load %arg7[%c0_38, %c1_39, %c0_40] : memref<18x18x3xf32, #tpu.memory_space<vmem>>, vector<16x16x3xf32>
    %22 = arith.truncf %21 : vector<16x16x3xf32> to vector<16x16x3xbf16>
    %23 = vector.shape_cast %22 : vector<16x16x3xbf16> to vector<256x3xbf16>
    %c1_41 = arith.constant 1 : index
    %c0_42 = arith.constant 0 : index
    %c0_43 = arith.constant 0 : index
    %24 = vector.load %arg2[%c1_41, %c0_42, %c0_43] : memref<9x3x8xbf16, #tpu.memory_space<vmem>>, vector<1x3x8xbf16>
    %25 = vector.shape_cast %24 : vector<1x3x8xbf16> to vector<3x8xbf16>
    %cst_44 = arith.constant dense<0.000000e+00> : vector<256x8xf32>
    %26 = tpu.matmul %23, %25, %cst_44 {dimension_numbers = #tpu.dot_dimension_numbers<[1], [0], [0], [1], [0, 0, 1, 1], [], []>} : vector<256x3xbf16>, vector<3x8xbf16>, vector<256x8xf32> -> vector<256x8xf32>
    %27 = arith.addf %20, %26 : vector<256x8xf32>
    %c0_45 = arith.constant 0 : index
    %c2 = arith.constant 2 : index
    %c0_46 = arith.constant 0 : index
    %28 = vector.load %arg7[%c0_45, %c2, %c0_46] : memref<18x18x3xf32, #tpu.memory_space<vmem>>, vector<16x16x3xf32>
    %29 = arith.truncf %28 : vector<16x16x3xf32> to vector<16x16x3xbf16>
    %30 = vector.shape_cast %29 : vector<16x16x3xbf16> to vector<256x3xbf16>
    %c2_47 = arith.constant 2 : index
    %c0_48 = arith.constant 0 : index
    %c0_49 = arith.constant 0 : index
    %31 = vector.load %arg2[%c2_47, %c0_48, %c0_49] : memref<9x3x8xbf16, #tpu.memory_space<vmem>>, vector<1x3x8xbf16>
    %32 = vector.shape_cast %31 : vector<1x3x8xbf16> to vector<3x8xbf16>
    %cst_50 = arith.constant dense<0.000000e+00> : vector<256x8xf32>
    %33 = tpu.matmul %30, %32, %cst_50 {dimension_numbers = #tpu.dot_dimension_numbers<[1], [0], [0], [1], [0, 0, 1, 1], [], []>} : vector<256x3xbf16>, vector<3x8xbf16>, vector<256x8xf32> -> vector<256x8xf32>
    %34 = arith.addf %27, %33 : vector<256x8xf32>
    %c1_51 = arith.constant 1 : index
    %c0_52 = arith.constant 0 : index
    %c0_53 = arith.constant 0 : index
    %35 = vector.load %arg7[%c1_51, %c0_52, %c0_53] : memref<18x18x3xf32, #tpu.memory_space<vmem>>, vector<16x16x3xf32>
    %36 = arith.truncf %35 : vector<16x16x3xf32> to vector<16x16x3xbf16>
    %37 = vector.shape_cast %36 : vector<16x16x3xbf16> to vector<256x3xbf16>
    %c3 = arith.constant 3 : index
    %c0_54 = arith.constant 0 : index
    %c0_55 = arith.constant 0 : index
    %38 = vector.load %arg2[%c3, %c0_54, %c0_55] : memref<9x3x8xbf16, #tpu.memory_space<vmem>>, vector<1x3x8xbf16>
    %39 = vector.shape_cast %38 : vector<1x3x8xbf16> to vector<3x8xbf16>
    %cst_56 = arith.constant dense<0.000000e+00> : vector<256x8xf32>
    %40 = tpu.matmul %37, %39, %cst_56 {dimension_numbers = #tpu.dot_dimension_numbers<[1], [0], [0], [1], [0, 0, 1, 1], [], []>} : vector<256x3xbf16>, vector<3x8xbf16>, vector<256x8xf32> -> vector<256x8xf32>
    %41 = arith.addf %34, %40 : vector<256x8xf32>
    %c1_57 = arith.constant 1 : index
    %c1_58 = arith.constant 1 : index
    %c0_59 = arith.constant 0 : index
    %42 = vector.load %arg7[%c1_57, %c1_58, %c0_59] : memref<18x18x3xf32, #tpu.memory_space<vmem>>, vector<16x16x3xf32>
    %43 = arith.truncf %42 : vector<16x16x3xf32> to vector<16x16x3xbf16>
    %44 = vector.shape_cast %43 : vector<16x16x3xbf16> to vector<256x3xbf16>
    %c4 = arith.constant 4 : index
    %c0_60 = arith.constant 0 : index
    %c0_61 = arith.constant 0 : index
    %45 = vector.load %arg2[%c4, %c0_60, %c0_61] : memref<9x3x8xbf16, #tpu.memory_space<vmem>>, vector<1x3x8xbf16>
    %46 = vector.shape_cast %45 : vector<1x3x8xbf16> to vector<3x8xbf16>
    %cst_62 = arith.constant dense<0.000000e+00> : vector<256x8xf32>
    %47 = tpu.matmul %44, %46, %cst_62 {dimension_numbers = #tpu.dot_dimension_numbers<[1], [0], [0], [1], [0, 0, 1, 1], [], []>} : vector<256x3xbf16>, vector<3x8xbf16>, vector<256x8xf32> -> vector<256x8xf32>
    %48 = arith.addf %41, %47 : vector<256x8xf32>
    %c1_63 = arith.constant 1 : index
    %c2_64 = arith.constant 2 : index
    %c0_65 = arith.constant 0 : index
    %49 = vector.load %arg7[%c1_63, %c2_64, %c0_65] : memref<18x18x3xf32, #tpu.memory_space<vmem>>, vector<16x16x3xf32>
    %50 = arith.truncf %49 : vector<16x16x3xf32> to vector<16x16x3xbf16>
    %51 = vector.shape_cast %50 : vector<16x16x3xbf16> to vector<256x3xbf16>
    %c5 = arith.constant 5 : index
    %c0_66 = arith.constant 0 : index
    %c0_67 = arith.constant 0 : index
    %52 = vector.load %arg2[%c5, %c0_66, %c0_67] : memref<9x3x8xbf16, #tpu.memory_space<vmem>>, vector<1x3x8xbf16>
    %53 = vector.shape_cast %52 : vector<1x3x8xbf16> to vector<3x8xbf16>
    %cst_68 = arith.constant dense<0.000000e+00> : vector<256x8xf32>
    %54 = tpu.matmul %51, %53, %cst_68 {dimension_numbers = #tpu.dot_dimension_numbers<[1], [0], [0], [1], [0, 0, 1, 1], [], []>} : vector<256x3xbf16>, vector<3x8xbf16>, vector<256x8xf32> -> vector<256x8xf32>
    %55 = arith.addf %48, %54 : vector<256x8xf32>
    %c2_69 = arith.constant 2 : index
    %c0_70 = arith.constant 0 : index
    %c0_71 = arith.constant 0 : index
    %56 = vector.load %arg7[%c2_69, %c0_70, %c0_71] : memref<18x18x3xf32, #tpu.memory_space<vmem>>, vector<16x16x3xf32>
    %57 = arith.truncf %56 : vector<16x16x3xf32> to vector<16x16x3xbf16>
    %58 = vector.shape_cast %57 : vector<16x16x3xbf16> to vector<256x3xbf16>
    %c6 = arith.constant 6 : index
    %c0_72 = arith.constant 0 : index
    %c0_73 = arith.constant 0 : index
    %59 = vector.load %arg2[%c6, %c0_72, %c0_73] : memref<9x3x8xbf16, #tpu.memory_space<vmem>>, vector<1x3x8xbf16>
    %60 = vector.shape_cast %59 : vector<1x3x8xbf16> to vector<3x8xbf16>
    %cst_74 = arith.constant dense<0.000000e+00> : vector<256x8xf32>
    %61 = tpu.matmul %58, %60, %cst_74 {dimension_numbers = #tpu.dot_dimension_numbers<[1], [0], [0], [1], [0, 0, 1, 1], [], []>} : vector<256x3xbf16>, vector<3x8xbf16>, vector<256x8xf32> -> vector<256x8xf32>
    %62 = arith.addf %55, %61 : vector<256x8xf32>
    %c2_75 = arith.constant 2 : index
    %c1_76 = arith.constant 1 : index
    %c0_77 = arith.constant 0 : index
    %63 = vector.load %arg7[%c2_75, %c1_76, %c0_77] : memref<18x18x3xf32, #tpu.memory_space<vmem>>, vector<16x16x3xf32>
    %64 = arith.truncf %63 : vector<16x16x3xf32> to vector<16x16x3xbf16>
    %65 = vector.shape_cast %64 : vector<16x16x3xbf16> to vector<256x3xbf16>
    %c7 = arith.constant 7 : index
    %c0_78 = arith.constant 0 : index
    %c0_79 = arith.constant 0 : index
    %66 = vector.load %arg2[%c7, %c0_78, %c0_79] : memref<9x3x8xbf16, #tpu.memory_space<vmem>>, vector<1x3x8xbf16>
    %67 = vector.shape_cast %66 : vector<1x3x8xbf16> to vector<3x8xbf16>
    %cst_80 = arith.constant dense<0.000000e+00> : vector<256x8xf32>
    %68 = tpu.matmul %65, %67, %cst_80 {dimension_numbers = #tpu.dot_dimension_numbers<[1], [0], [0], [1], [0, 0, 1, 1], [], []>} : vector<256x3xbf16>, vector<3x8xbf16>, vector<256x8xf32> -> vector<256x8xf32>
    %69 = arith.addf %62, %68 : vector<256x8xf32>
    %c2_81 = arith.constant 2 : index
    %c2_82 = arith.constant 2 : index
    %c0_83 = arith.constant 0 : index
    %70 = vector.load %arg7[%c2_81, %c2_82, %c0_83] : memref<18x18x3xf32, #tpu.memory_space<vmem>>, vector<16x16x3xf32>
    %71 = arith.truncf %70 : vector<16x16x3xf32> to vector<16x16x3xbf16>
    %72 = vector.shape_cast %71 : vector<16x16x3xbf16> to vector<256x3xbf16>
    %c8 = arith.constant 8 : index
    %c0_84 = arith.constant 0 : index
    %c0_85 = arith.constant 0 : index
    %73 = vector.load %arg2[%c8, %c0_84, %c0_85] : memref<9x3x8xbf16, #tpu.memory_space<vmem>>, vector<1x3x8xbf16>
    %74 = vector.shape_cast %73 : vector<1x3x8xbf16> to vector<3x8xbf16>
    %cst_86 = arith.constant dense<0.000000e+00> : vector<256x8xf32>
    %75 = tpu.matmul %72, %74, %cst_86 {dimension_numbers = #tpu.dot_dimension_numbers<[1], [0], [0], [1], [0, 0, 1, 1], [], []>} : vector<256x3xbf16>, vector<3x8xbf16>, vector<256x8xf32> -> vector<256x8xf32>
    %76 = arith.addf %69, %75 : vector<256x8xf32>
    %c0_87 = arith.constant 0 : index
    %c0_88 = arith.constant 0 : index
    %77 = vector.load %arg3[%c0_87, %c0_88] : memref<1x8xf32, #tpu.memory_space<vmem>>, vector<1x8xf32>
    %78 = vector.broadcast %77 : vector<1x8xf32> to vector<256x8xf32>
    %79 = arith.addf %76, %78 : vector<256x8xf32>
    %cst_89 = arith.constant 0.000000e+00 : f32
    %80 = vector.broadcast %cst_89 : f32 to vector<256x8xf32>
    %81 = arith.maximumf %79, %80 : vector<256x8xf32>
    %82 = vector.shape_cast %81 : vector<256x8xf32> to vector<16x16x8xf32>
    %c1_90 = arith.constant 1 : index
    %c1_91 = arith.constant 1 : index
    %c0_92 = arith.constant 0 : index
    %83 = vector.load %arg8[%c1_90, %c1_91, %c0_92] : memref<18x18x8xf32, #tpu.memory_space<vmem>>, vector<16x16x8xf32>
    tpu.vector_store %arg8[%c1_90, %c1_91, %c0_92], %82 {strides = array<i32>} : memref<18x18x8xf32, #tpu.memory_space<vmem>>, vector<16x16x8xf32>,
    %c0_93 = arith.constant 0 : index
    %c0_94 = arith.constant 0 : index
    %c0_95 = arith.constant 0 : index
    %84 = vector.load %arg8[%c0_93, %c0_94, %c0_95] : memref<18x18x8xf32, #tpu.memory_space<vmem>>, vector<16x16x8xf32>
    %85 = arith.truncf %84 : vector<16x16x8xf32> to vector<16x16x8xbf16>
    %86 = vector.shape_cast %85 : vector<16x16x8xbf16> to vector<256x8xbf16>
    %c0_96 = arith.constant 0 : index
    %c0_97 = arith.constant 0 : index
    %c0_98 = arith.constant 0 : index
    %87 = vector.load %arg4[%c0_96, %c0_97, %c0_98] : memref<9x8x8xbf16, #tpu.memory_space<vmem>>, vector<1x8x8xbf16>
    %88 = vector.shape_cast %87 : vector<1x8x8xbf16> to vector<8x8xbf16>
    %cst_99 = arith.constant dense<0.000000e+00> : vector<256x8xf32>
    %89 = tpu.matmul %86, %88, %cst_99 {dimension_numbers = #tpu.dot_dimension_numbers<[1], [0], [0], [1], [0, 0, 1, 1], [], []>} : vector<256x8xbf16>, vector<8x8xbf16>, vector<256x8xf32> -> vector<256x8xf32>
    %c0_100 = arith.constant 0 : index
    %c1_101 = arith.constant 1 : index
    %c0_102 = arith.constant 0 : index
    %90 = vector.load %arg8[%c0_100, %c1_101, %c0_102] : memref<18x18x8xf32, #tpu.memory_space<vmem>>, vector<16x16x8xf32>
    %91 = arith.truncf %90 : vector<16x16x8xf32> to vector<16x16x8xbf16>
    %92 = vector.shape_cast %91 : vector<16x16x8xbf16> to vector<256x8xbf16>
    %c1_103 = arith.constant 1 : index
    %c0_104 = arith.constant 0 : index
    %c0_105 = arith.constant 0 : index
    %93 = vector.load %arg4[%c1_103, %c0_104, %c0_105] : memref<9x8x8xbf16, #tpu.memory_space<vmem>>, vector<1x8x8xbf16>
    %94 = vector.shape_cast %93 : vector<1x8x8xbf16> to vector<8x8xbf16>
    %cst_106 = arith.constant dense<0.000000e+00> : vector<256x8xf32>
    %95 = tpu.matmul %92, %94, %cst_106 {dimension_numbers = #tpu.dot_dimension_numbers<[1], [0], [0], [1], [0, 0, 1, 1], [], []>} : vector<256x8xbf16>, vector<8x8xbf16>, vector<256x8xf32> -> vector<256x8xf32>
    %96 = arith.addf %89, %95 : vector<256x8xf32>
    %c0_107 = arith.constant 0 : index
    %c2_108 = arith.constant 2 : index
    %c0_109 = arith.constant 0 : index
    %97 = vector.load %arg8[%c0_107, %c2_108, %c0_109] : memref<18x18x8xf32, #tpu.memory_space<vmem>>, vector<16x16x8xf32>
    %98 = arith.truncf %97 : vector<16x16x8xf32> to vector<16x16x8xbf16>
    %99 = vector.shape_cast %98 : vector<16x16x8xbf16> to vector<256x8xbf16>
    %c2_110 = arith.constant 2 : index
    %c0_111 = arith.constant 0 : index
    %c0_112 = arith.constant 0 : index
    %100 = vector.load %arg4[%c2_110, %c0_111, %c0_112] : memref<9x8x8xbf16, #tpu.memory_space<vmem>>, vector<1x8x8xbf16>
    %101 = vector.shape_cast %100 : vector<1x8x8xbf16> to vector<8x8xbf16>
    %cst_113 = arith.constant dense<0.000000e+00> : vector<256x8xf32>
    %102 = tpu.matmul %99, %101, %cst_113 {dimension_numbers = #tpu.dot_dimension_numbers<[1], [0], [0], [1], [0, 0, 1, 1], [], []>} : vector<256x8xbf16>, vector<8x8xbf16>, vector<256x8xf32> -> vector<256x8xf32>
    %103 = arith.addf %96, %102 : vector<256x8xf32>
    %c1_114 = arith.constant 1 : index
    %c0_115 = arith.constant 0 : index
    %c0_116 = arith.constant 0 : index
    %104 = vector.load %arg8[%c1_114, %c0_115, %c0_116] : memref<18x18x8xf32, #tpu.memory_space<vmem>>, vector<16x16x8xf32>
    %105 = arith.truncf %104 : vector<16x16x8xf32> to vector<16x16x8xbf16>
    %106 = vector.shape_cast %105 : vector<16x16x8xbf16> to vector<256x8xbf16>
    %c3_117 = arith.constant 3 : index
    %c0_118 = arith.constant 0 : index
    %c0_119 = arith.constant 0 : index
    %107 = vector.load %arg4[%c3_117, %c0_118, %c0_119] : memref<9x8x8xbf16, #tpu.memory_space<vmem>>, vector<1x8x8xbf16>
    %108 = vector.shape_cast %107 : vector<1x8x8xbf16> to vector<8x8xbf16>
    %cst_120 = arith.constant dense<0.000000e+00> : vector<256x8xf32>
    %109 = tpu.matmul %106, %108, %cst_120 {dimension_numbers = #tpu.dot_dimension_numbers<[1], [0], [0], [1], [0, 0, 1, 1], [], []>} : vector<256x8xbf16>, vector<8x8xbf16>, vector<256x8xf32> -> vector<256x8xf32>
    %110 = arith.addf %103, %109 : vector<256x8xf32>
    %c1_121 = arith.constant 1 : index
    %c1_122 = arith.constant 1 : index
    %c0_123 = arith.constant 0 : index
    %111 = vector.load %arg8[%c1_121, %c1_122, %c0_123] : memref<18x18x8xf32, #tpu.memory_space<vmem>>, vector<16x16x8xf32>
    %112 = arith.truncf %111 : vector<16x16x8xf32> to vector<16x16x8xbf16>
    %113 = vector.shape_cast %112 : vector<16x16x8xbf16> to vector<256x8xbf16>
    %c4_124 = arith.constant 4 : index
    %c0_125 = arith.constant 0 : index
    %c0_126 = arith.constant 0 : index
    %114 = vector.load %arg4[%c4_124, %c0_125, %c0_126] : memref<9x8x8xbf16, #tpu.memory_space<vmem>>, vector<1x8x8xbf16>
    %115 = vector.shape_cast %114 : vector<1x8x8xbf16> to vector<8x8xbf16>
    %cst_127 = arith.constant dense<0.000000e+00> : vector<256x8xf32>
    %116 = tpu.matmul %113, %115, %cst_127 {dimension_numbers = #tpu.dot_dimension_numbers<[1], [0], [0], [1], [0, 0, 1, 1], [], []>} : vector<256x8xbf16>, vector<8x8xbf16>, vector<256x8xf32> -> vector<256x8xf32>
    %117 = arith.addf %110, %116 : vector<256x8xf32>
    %c1_128 = arith.constant 1 : index
    %c2_129 = arith.constant 2 : index
    %c0_130 = arith.constant 0 : index
    %118 = vector.load %arg8[%c1_128, %c2_129, %c0_130] : memref<18x18x8xf32, #tpu.memory_space<vmem>>, vector<16x16x8xf32>
    %119 = arith.truncf %118 : vector<16x16x8xf32> to vector<16x16x8xbf16>
    %120 = vector.shape_cast %119 : vector<16x16x8xbf16> to vector<256x8xbf16>
    %c5_131 = arith.constant 5 : index
    %c0_132 = arith.constant 0 : index
    %c0_133 = arith.constant 0 : index
    %121 = vector.load %arg4[%c5_131, %c0_132, %c0_133] : memref<9x8x8xbf16, #tpu.memory_space<vmem>>, vector<1x8x8xbf16>
    %122 = vector.shape_cast %121 : vector<1x8x8xbf16> to vector<8x8xbf16>
    %cst_134 = arith.constant dense<0.000000e+00> : vector<256x8xf32>
    %123 = tpu.matmul %120, %122, %cst_134 {dimension_numbers = #tpu.dot_dimension_numbers<[1], [0], [0], [1], [0, 0, 1, 1], [], []>} : vector<256x8xbf16>, vector<8x8xbf16>, vector<256x8xf32> -> vector<256x8xf32>
    %124 = arith.addf %117, %123 : vector<256x8xf32>
    %c2_135 = arith.constant 2 : index
    %c0_136 = arith.constant 0 : index
    %c0_137 = arith.constant 0 : index
    %125 = vector.load %arg8[%c2_135, %c0_136, %c0_137] : memref<18x18x8xf32, #tpu.memory_space<vmem>>, vector<16x16x8xf32>
    %126 = arith.truncf %125 : vector<16x16x8xf32> to vector<16x16x8xbf16>
    %127 = vector.shape_cast %126 : vector<16x16x8xbf16> to vector<256x8xbf16>
    %c6_138 = arith.constant 6 : index
    %c0_139 = arith.constant 0 : index
    %c0_140 = arith.constant 0 : index
    %128 = vector.load %arg4[%c6_138, %c0_139, %c0_140] : memref<9x8x8xbf16, #tpu.memory_space<vmem>>, vector<1x8x8xbf16>
    %129 = vector.shape_cast %128 : vector<1x8x8xbf16> to vector<8x8xbf16>
    %cst_141 = arith.constant dense<0.000000e+00> : vector<256x8xf32>
    %130 = tpu.matmul %127, %129, %cst_141 {dimension_numbers = #tpu.dot_dimension_numbers<[1], [0], [0], [1], [0, 0, 1, 1], [], []>} : vector<256x8xbf16>, vector<8x8xbf16>, vector<256x8xf32> -> vector<256x8xf32>
    %131 = arith.addf %124, %130 : vector<256x8xf32>
    %c2_142 = arith.constant 2 : index
    %c1_143 = arith.constant 1 : index
    %c0_144 = arith.constant 0 : index
    %132 = vector.load %arg8[%c2_142, %c1_143, %c0_144] : memref<18x18x8xf32, #tpu.memory_space<vmem>>, vector<16x16x8xf32>
    %133 = arith.truncf %132 : vector<16x16x8xf32> to vector<16x16x8xbf16>
    %134 = vector.shape_cast %133 : vector<16x16x8xbf16> to vector<256x8xbf16>
    %c7_145 = arith.constant 7 : index
    %c0_146 = arith.constant 0 : index
    %c0_147 = arith.constant 0 : index
    %135 = vector.load %arg4[%c7_145, %c0_146, %c0_147] : memref<9x8x8xbf16, #tpu.memory_space<vmem>>, vector<1x8x8xbf16>
    %136 = vector.shape_cast %135 : vector<1x8x8xbf16> to vector<8x8xbf16>
    %cst_148 = arith.constant dense<0.000000e+00> : vector<256x8xf32>
    %137 = tpu.matmul %134, %136, %cst_148 {dimension_numbers = #tpu.dot_dimension_numbers<[1], [0], [0], [1], [0, 0, 1, 1], [], []>} : vector<256x8xbf16>, vector<8x8xbf16>, vector<256x8xf32> -> vector<256x8xf32>
    %138 = arith.addf %131, %137 : vector<256x8xf32>
    %c2_149 = arith.constant 2 : index
    %c2_150 = arith.constant 2 : index
    %c0_151 = arith.constant 0 : index
    %139 = vector.load %arg8[%c2_149, %c2_150, %c0_151] : memref<18x18x8xf32, #tpu.memory_space<vmem>>, vector<16x16x8xf32>
    %140 = arith.truncf %139 : vector<16x16x8xf32> to vector<16x16x8xbf16>
    %141 = vector.shape_cast %140 : vector<16x16x8xbf16> to vector<256x8xbf16>
    %c8_152 = arith.constant 8 : index
    %c0_153 = arith.constant 0 : index
    %c0_154 = arith.constant 0 : index
    %142 = vector.load %arg4[%c8_152, %c0_153, %c0_154] : memref<9x8x8xbf16, #tpu.memory_space<vmem>>, vector<1x8x8xbf16>
    %143 = vector.shape_cast %142 : vector<1x8x8xbf16> to vector<8x8xbf16>
    %cst_155 = arith.constant dense<0.000000e+00> : vector<256x8xf32>
    %144 = tpu.matmul %141, %143, %cst_155 {dimension_numbers = #tpu.dot_dimension_numbers<[1], [0], [0], [1], [0, 0, 1, 1], [], []>} : vector<256x8xbf16>, vector<8x8xbf16>, vector<256x8xf32> -> vector<256x8xf32>
    %145 = arith.addf %138, %144 : vector<256x8xf32>
    %c0_156 = arith.constant 0 : index
    %c0_157 = arith.constant 0 : index
    %146 = vector.load %arg5[%c0_156, %c0_157] : memref<1x8xf32, #tpu.memory_space<vmem>>, vector<1x8xf32>
    %147 = vector.broadcast %146 : vector<1x8xf32> to vector<256x8xf32>
    %148 = arith.addf %145, %147 : vector<256x8xf32>
    %cst_158 = arith.constant 0.000000e+00 : f32
    %149 = vector.broadcast %cst_158 : f32 to vector<256x8xf32>
    %150 = arith.maximumf %148, %149 : vector<256x8xf32>
    %151 = arith.truncf %150 : vector<256x8xf32> to vector<256x8xbf16>
    %c0_159 = arith.constant 0 : index
    %c0_160 = arith.constant 0 : index
    %c0_161 = arith.constant 0 : index
    %152 = vector.load %arg6[%c0_159, %c0_160, %c0_161] : memref<2x256x8xbf16, #tpu.memory_space<vmem>>, vector<1x256x8xbf16>
    %153 = vector.shape_cast %152 : vector<1x256x8xbf16> to vector<256x8xbf16>
    %154 = vector.shape_cast %151 : vector<256x8xbf16> to vector<1x256x8xbf16>
    tpu.vector_store %arg6[%c0_159, %c0_160, %c0_161], %154 {strides = array<i32>} : memref<2x256x8xbf16, #tpu.memory_space<vmem>>, vector<1x256x8xbf16>,
    %c1_162 = arith.constant 1 : index
    %c0_163 = arith.constant 0 : index
    %c0_164 = arith.constant 0 : index
    %c0_165 = arith.constant 0 : index
    %155 = vector.load %arg1[%c1_162, %c0_163, %c0_164, %c0_165] : memref<2x16x16x3xf32, #tpu.memory_space<vmem>>, vector<1x16x16x3xf32>
    %156 = vector.shape_cast %155 : vector<1x16x16x3xf32> to vector<16x16x3xf32>
    %c1_166 = arith.constant 1 : index
    %c1_167 = arith.constant 1 : index
    %c0_168 = arith.constant 0 : index
    %157 = vector.load %arg7[%c1_166, %c1_167, %c0_168] : memref<18x18x3xf32, #tpu.memory_space<vmem>>, vector<16x16x3xf32>
    tpu.vector_store %arg7[%c1_166, %c1_167, %c0_168], %156 {strides = array<i32>} : memref<18x18x3xf32, #tpu.memory_space<vmem>>, vector<16x16x3xf32>,
    %c0_169 = arith.constant 0 : index
    %c0_170 = arith.constant 0 : index
    %c0_171 = arith.constant 0 : index
    %158 = vector.load %arg7[%c0_169, %c0_170, %c0_171] : memref<18x18x3xf32, #tpu.memory_space<vmem>>, vector<16x16x3xf32>
    %159 = arith.truncf %158 : vector<16x16x3xf32> to vector<16x16x3xbf16>
    %160 = vector.shape_cast %159 : vector<16x16x3xbf16> to vector<256x3xbf16>
    %c0_172 = arith.constant 0 : index
    %c0_173 = arith.constant 0 : index
    %c0_174 = arith.constant 0 : index
    %161 = vector.load %arg2[%c0_172, %c0_173, %c0_174] : memref<9x3x8xbf16, #tpu.memory_space<vmem>>, vector<1x3x8xbf16>
    %162 = vector.shape_cast %161 : vector<1x3x8xbf16> to vector<3x8xbf16>
    %cst_175 = arith.constant dense<0.000000e+00> : vector<256x8xf32>
    %163 = tpu.matmul %160, %162, %cst_175 {dimension_numbers = #tpu.dot_dimension_numbers<[1], [0], [0], [1], [0, 0, 1, 1], [], []>} : vector<256x3xbf16>, vector<3x8xbf16>, vector<256x8xf32> -> vector<256x8xf32>
    %c0_176 = arith.constant 0 : index
    %c1_177 = arith.constant 1 : index
    %c0_178 = arith.constant 0 : index
    %164 = vector.load %arg7[%c0_176, %c1_177, %c0_178] : memref<18x18x3xf32, #tpu.memory_space<vmem>>, vector<16x16x3xf32>
    %165 = arith.truncf %164 : vector<16x16x3xf32> to vector<16x16x3xbf16>
    %166 = vector.shape_cast %165 : vector<16x16x3xbf16> to vector<256x3xbf16>
    %c1_179 = arith.constant 1 : index
    %c0_180 = arith.constant 0 : index
    %c0_181 = arith.constant 0 : index
    %167 = vector.load %arg2[%c1_179, %c0_180, %c0_181] : memref<9x3x8xbf16, #tpu.memory_space<vmem>>, vector<1x3x8xbf16>
    %168 = vector.shape_cast %167 : vector<1x3x8xbf16> to vector<3x8xbf16>
    %cst_182 = arith.constant dense<0.000000e+00> : vector<256x8xf32>
    %169 = tpu.matmul %166, %168, %cst_182 {dimension_numbers = #tpu.dot_dimension_numbers<[1], [0], [0], [1], [0, 0, 1, 1], [], []>} : vector<256x3xbf16>, vector<3x8xbf16>, vector<256x8xf32> -> vector<256x8xf32>
    %170 = arith.addf %163, %169 : vector<256x8xf32>
    %c0_183 = arith.constant 0 : index
    %c2_184 = arith.constant 2 : index
    %c0_185 = arith.constant 0 : index
    %171 = vector.load %arg7[%c0_183, %c2_184, %c0_185] : memref<18x18x3xf32, #tpu.memory_space<vmem>>, vector<16x16x3xf32>
    %172 = arith.truncf %171 : vector<16x16x3xf32> to vector<16x16x3xbf16>
    %173 = vector.shape_cast %172 : vector<16x16x3xbf16> to vector<256x3xbf16>
    %c2_186 = arith.constant 2 : index
    %c0_187 = arith.constant 0 : index
    %c0_188 = arith.constant 0 : index
    %174 = vector.load %arg2[%c2_186, %c0_187, %c0_188] : memref<9x3x8xbf16, #tpu.memory_space<vmem>>, vector<1x3x8xbf16>
    %175 = vector.shape_cast %174 : vector<1x3x8xbf16> to vector<3x8xbf16>
    %cst_189 = arith.constant dense<0.000000e+00> : vector<256x8xf32>
    %176 = tpu.matmul %173, %175, %cst_189 {dimension_numbers = #tpu.dot_dimension_numbers<[1], [0], [0], [1], [0, 0, 1, 1], [], []>} : vector<256x3xbf16>, vector<3x8xbf16>, vector<256x8xf32> -> vector<256x8xf32>
    %177 = arith.addf %170, %176 : vector<256x8xf32>
    %c1_190 = arith.constant 1 : index
    %c0_191 = arith.constant 0 : index
    %c0_192 = arith.constant 0 : index
    %178 = vector.load %arg7[%c1_190, %c0_191, %c0_192] : memref<18x18x3xf32, #tpu.memory_space<vmem>>, vector<16x16x3xf32>
    %179 = arith.truncf %178 : vector<16x16x3xf32> to vector<16x16x3xbf16>
    %180 = vector.shape_cast %179 : vector<16x16x3xbf16> to vector<256x3xbf16>
    %c3_193 = arith.constant 3 : index
    %c0_194 = arith.constant 0 : index
    %c0_195 = arith.constant 0 : index
    %181 = vector.load %arg2[%c3_193, %c0_194, %c0_195] : memref<9x3x8xbf16, #tpu.memory_space<vmem>>, vector<1x3x8xbf16>
    %182 = vector.shape_cast %181 : vector<1x3x8xbf16> to vector<3x8xbf16>
    %cst_196 = arith.constant dense<0.000000e+00> : vector<256x8xf32>
    %183 = tpu.matmul %180, %182, %cst_196 {dimension_numbers = #tpu.dot_dimension_numbers<[1], [0], [0], [1], [0, 0, 1, 1], [], []>} : vector<256x3xbf16>, vector<3x8xbf16>, vector<256x8xf32> -> vector<256x8xf32>
    %184 = arith.addf %177, %183 : vector<256x8xf32>
    %c1_197 = arith.constant 1 : index
    %c1_198 = arith.constant 1 : index
    %c0_199 = arith.constant 0 : index
    %185 = vector.load %arg7[%c1_197, %c1_198, %c0_199] : memref<18x18x3xf32, #tpu.memory_space<vmem>>, vector<16x16x3xf32>
    %186 = arith.truncf %185 : vector<16x16x3xf32> to vector<16x16x3xbf16>
    %187 = vector.shape_cast %186 : vector<16x16x3xbf16> to vector<256x3xbf16>
    %c4_200 = arith.constant 4 : index
    %c0_201 = arith.constant 0 : index
    %c0_202 = arith.constant 0 : index
    %188 = vector.load %arg2[%c4_200, %c0_201, %c0_202] : memref<9x3x8xbf16, #tpu.memory_space<vmem>>, vector<1x3x8xbf16>
    %189 = vector.shape_cast %188 : vector<1x3x8xbf16> to vector<3x8xbf16>
    %cst_203 = arith.constant dense<0.000000e+00> : vector<256x8xf32>
    %190 = tpu.matmul %187, %189, %cst_203 {dimension_numbers = #tpu.dot_dimension_numbers<[1], [0], [0], [1], [0, 0, 1, 1], [], []>} : vector<256x3xbf16>, vector<3x8xbf16>, vector<256x8xf32> -> vector<256x8xf32>
    %191 = arith.addf %184, %190 : vector<256x8xf32>
    %c1_204 = arith.constant 1 : index
    %c2_205 = arith.constant 2 : index
    %c0_206 = arith.constant 0 : index
    %192 = vector.load %arg7[%c1_204, %c2_205, %c0_206] : memref<18x18x3xf32, #tpu.memory_space<vmem>>, vector<16x16x3xf32>
    %193 = arith.truncf %192 : vector<16x16x3xf32> to vector<16x16x3xbf16>
    %194 = vector.shape_cast %193 : vector<16x16x3xbf16> to vector<256x3xbf16>
    %c5_207 = arith.constant 5 : index
    %c0_208 = arith.constant 0 : index
    %c0_209 = arith.constant 0 : index
    %195 = vector.load %arg2[%c5_207, %c0_208, %c0_209] : memref<9x3x8xbf16, #tpu.memory_space<vmem>>, vector<1x3x8xbf16>
    %196 = vector.shape_cast %195 : vector<1x3x8xbf16> to vector<3x8xbf16>
    %cst_210 = arith.constant dense<0.000000e+00> : vector<256x8xf32>
    %197 = tpu.matmul %194, %196, %cst_210 {dimension_numbers = #tpu.dot_dimension_numbers<[1], [0], [0], [1], [0, 0, 1, 1], [], []>} : vector<256x3xbf16>, vector<3x8xbf16>, vector<256x8xf32> -> vector<256x8xf32>
    %198 = arith.addf %191, %197 : vector<256x8xf32>
    %c2_211 = arith.constant 2 : index
    %c0_212 = arith.constant 0 : index
    %c0_213 = arith.constant 0 : index
    %199 = vector.load %arg7[%c2_211, %c0_212, %c0_213] : memref<18x18x3xf32, #tpu.memory_space<vmem>>, vector<16x16x3xf32>
    %200 = arith.truncf %199 : vector<16x16x3xf32> to vector<16x16x3xbf16>
    %201 = vector.shape_cast %200 : vector<16x16x3xbf16> to vector<256x3xbf16>
    %c6_214 = arith.constant 6 : index
    %c0_215 = arith.constant 0 : index
    %c0_216 = arith.constant 0 : index
    %202 = vector.load %arg2[%c6_214, %c0_215, %c0_216] : memref<9x3x8xbf16, #tpu.memory_space<vmem>>, vector<1x3x8xbf16>
    %203 = vector.shape_cast %202 : vector<1x3x8xbf16> to vector<3x8xbf16>
    %cst_217 = arith.constant dense<0.000000e+00> : vector<256x8xf32>
    %204 = tpu.matmul %201, %203, %cst_217 {dimension_numbers = #tpu.dot_dimension_numbers<[1], [0], [0], [1], [0, 0, 1, 1], [], []>} : vector<256x3xbf16>, vector<3x8xbf16>, vector<256x8xf32> -> vector<256x8xf32>
    %205 = arith.addf %198, %204 : vector<256x8xf32>
    %c2_218 = arith.constant 2 : index
    %c1_219 = arith.constant 1 : index
    %c0_220 = arith.constant 0 : index
    %206 = vector.load %arg7[%c2_218, %c1_219, %c0_220] : memref<18x18x3xf32, #tpu.memory_space<vmem>>, vector<16x16x3xf32>
    %207 = arith.truncf %206 : vector<16x16x3xf32> to vector<16x16x3xbf16>
    %208 = vector.shape_cast %207 : vector<16x16x3xbf16> to vector<256x3xbf16>
    %c7_221 = arith.constant 7 : index
    %c0_222 = arith.constant 0 : index
    %c0_223 = arith.constant 0 : index
    %209 = vector.load %arg2[%c7_221, %c0_222, %c0_223] : memref<9x3x8xbf16, #tpu.memory_space<vmem>>, vector<1x3x8xbf16>
    %210 = vector.shape_cast %209 : vector<1x3x8xbf16> to vector<3x8xbf16>
    %cst_224 = arith.constant dense<0.000000e+00> : vector<256x8xf32>
    %211 = tpu.matmul %208, %210, %cst_224 {dimension_numbers = #tpu.dot_dimension_numbers<[1], [0], [0], [1], [0, 0, 1, 1], [], []>} : vector<256x3xbf16>, vector<3x8xbf16>, vector<256x8xf32> -> vector<256x8xf32>
    %212 = arith.addf %205, %211 : vector<256x8xf32>
    %c2_225 = arith.constant 2 : index
    %c2_226 = arith.constant 2 : index
    %c0_227 = arith.constant 0 : index
    %213 = vector.load %arg7[%c2_225, %c2_226, %c0_227] : memref<18x18x3xf32, #tpu.memory_space<vmem>>, vector<16x16x3xf32>
    %214 = arith.truncf %213 : vector<16x16x3xf32> to vector<16x16x3xbf16>
    %215 = vector.shape_cast %214 : vector<16x16x3xbf16> to vector<256x3xbf16>
    %c8_228 = arith.constant 8 : index
    %c0_229 = arith.constant 0 : index
    %c0_230 = arith.constant 0 : index
    %216 = vector.load %arg2[%c8_228, %c0_229, %c0_230] : memref<9x3x8xbf16, #tpu.memory_space<vmem>>, vector<1x3x8xbf16>
    %217 = vector.shape_cast %216 : vector<1x3x8xbf16> to vector<3x8xbf16>
    %cst_231 = arith.constant dense<0.000000e+00> : vector<256x8xf32>
    %218 = tpu.matmul %215, %217, %cst_231 {dimension_numbers = #tpu.dot_dimension_numbers<[1], [0], [0], [1], [0, 0, 1, 1], [], []>} : vector<256x3xbf16>, vector<3x8xbf16>, vector<256x8xf32> -> vector<256x8xf32>
    %219 = arith.addf %212, %218 : vector<256x8xf32>
    %c0_232 = arith.constant 0 : index
    %c0_233 = arith.constant 0 : index
    %220 = vector.load %arg3[%c0_232, %c0_233] : memref<1x8xf32, #tpu.memory_space<vmem>>, vector<1x8xf32>
    %221 = vector.broadcast %220 : vector<1x8xf32> to vector<256x8xf32>
    %222 = arith.addf %219, %221 : vector<256x8xf32>
    %cst_234 = arith.constant 0.000000e+00 : f32
    %223 = vector.broadcast %cst_234 : f32 to vector<256x8xf32>
    %224 = arith.maximumf %222, %223 : vector<256x8xf32>
    %225 = vector.shape_cast %224 : vector<256x8xf32> to vector<16x16x8xf32>
    %c1_235 = arith.constant 1 : index
    %c1_236 = arith.constant 1 : index
    %c0_237 = arith.constant 0 : index
    %226 = vector.load %arg8[%c1_235, %c1_236, %c0_237] : memref<18x18x8xf32, #tpu.memory_space<vmem>>, vector<16x16x8xf32>
    tpu.vector_store %arg8[%c1_235, %c1_236, %c0_237], %225 {strides = array<i32>} : memref<18x18x8xf32, #tpu.memory_space<vmem>>, vector<16x16x8xf32>,
    %c0_238 = arith.constant 0 : index
    %c0_239 = arith.constant 0 : index
    %c0_240 = arith.constant 0 : index
    %227 = vector.load %arg8[%c0_238, %c0_239, %c0_240] : memref<18x18x8xf32, #tpu.memory_space<vmem>>, vector<16x16x8xf32>
    %228 = arith.truncf %227 : vector<16x16x8xf32> to vector<16x16x8xbf16>
    %229 = vector.shape_cast %228 : vector<16x16x8xbf16> to vector<256x8xbf16>
    %c0_241 = arith.constant 0 : index
    %c0_242 = arith.constant 0 : index
    %c0_243 = arith.constant 0 : index
    %230 = vector.load %arg4[%c0_241, %c0_242, %c0_243] : memref<9x8x8xbf16, #tpu.memory_space<vmem>>, vector<1x8x8xbf16>
    %231 = vector.shape_cast %230 : vector<1x8x8xbf16> to vector<8x8xbf16>
    %cst_244 = arith.constant dense<0.000000e+00> : vector<256x8xf32>
    %232 = tpu.matmul %229, %231, %cst_244 {dimension_numbers = #tpu.dot_dimension_numbers<[1], [0], [0], [1], [0, 0, 1, 1], [], []>} : vector<256x8xbf16>, vector<8x8xbf16>, vector<256x8xf32> -> vector<256x8xf32>
    %c0_245 = arith.constant 0 : index
    %c1_246 = arith.constant 1 : index
    %c0_247 = arith.constant 0 : index
    %233 = vector.load %arg8[%c0_245, %c1_246, %c0_247] : memref<18x18x8xf32, #tpu.memory_space<vmem>>, vector<16x16x8xf32>
    %234 = arith.truncf %233 : vector<16x16x8xf32> to vector<16x16x8xbf16>
    %235 = vector.shape_cast %234 : vector<16x16x8xbf16> to vector<256x8xbf16>
    %c1_248 = arith.constant 1 : index
    %c0_249 = arith.constant 0 : index
    %c0_250 = arith.constant 0 : index
    %236 = vector.load %arg4[%c1_248, %c0_249, %c0_250] : memref<9x8x8xbf16, #tpu.memory_space<vmem>>, vector<1x8x8xbf16>
    %237 = vector.shape_cast %236 : vector<1x8x8xbf16> to vector<8x8xbf16>
    %cst_251 = arith.constant dense<0.000000e+00> : vector<256x8xf32>
    %238 = tpu.matmul %235, %237, %cst_251 {dimension_numbers = #tpu.dot_dimension_numbers<[1], [0], [0], [1], [0, 0, 1, 1], [], []>} : vector<256x8xbf16>, vector<8x8xbf16>, vector<256x8xf32> -> vector<256x8xf32>
    %239 = arith.addf %232, %238 : vector<256x8xf32>
    %c0_252 = arith.constant 0 : index
    %c2_253 = arith.constant 2 : index
    %c0_254 = arith.constant 0 : index
    %240 = vector.load %arg8[%c0_252, %c2_253, %c0_254] : memref<18x18x8xf32, #tpu.memory_space<vmem>>, vector<16x16x8xf32>
    %241 = arith.truncf %240 : vector<16x16x8xf32> to vector<16x16x8xbf16>
    %242 = vector.shape_cast %241 : vector<16x16x8xbf16> to vector<256x8xbf16>
    %c2_255 = arith.constant 2 : index
    %c0_256 = arith.constant 0 : index
    %c0_257 = arith.constant 0 : index
    %243 = vector.load %arg4[%c2_255, %c0_256, %c0_257] : memref<9x8x8xbf16, #tpu.memory_space<vmem>>, vector<1x8x8xbf16>
    %244 = vector.shape_cast %243 : vector<1x8x8xbf16> to vector<8x8xbf16>
    %cst_258 = arith.constant dense<0.000000e+00> : vector<256x8xf32>
    %245 = tpu.matmul %242, %244, %cst_258 {dimension_numbers = #tpu.dot_dimension_numbers<[1], [0], [0], [1], [0, 0, 1, 1], [], []>} : vector<256x8xbf16>, vector<8x8xbf16>, vector<256x8xf32> -> vector<256x8xf32>
    %246 = arith.addf %239, %245 : vector<256x8xf32>
    %c1_259 = arith.constant 1 : index
    %c0_260 = arith.constant 0 : index
    %c0_261 = arith.constant 0 : index
    %247 = vector.load %arg8[%c1_259, %c0_260, %c0_261] : memref<18x18x8xf32, #tpu.memory_space<vmem>>, vector<16x16x8xf32>
    %248 = arith.truncf %247 : vector<16x16x8xf32> to vector<16x16x8xbf16>
    %249 = vector.shape_cast %248 : vector<16x16x8xbf16> to vector<256x8xbf16>
    %c3_262 = arith.constant 3 : index
    %c0_263 = arith.constant 0 : index
    %c0_264 = arith.constant 0 : index
    %250 = vector.load %arg4[%c3_262, %c0_263, %c0_264] : memref<9x8x8xbf16, #tpu.memory_space<vmem>>, vector<1x8x8xbf16>
    %251 = vector.shape_cast %250 : vector<1x8x8xbf16> to vector<8x8xbf16>
    %cst_265 = arith.constant dense<0.000000e+00> : vector<256x8xf32>
    %252 = tpu.matmul %249, %251, %cst_265 {dimension_numbers = #tpu.dot_dimension_numbers<[1], [0], [0], [1], [0, 0, 1, 1], [], []>} : vector<256x8xbf16>, vector<8x8xbf16>, vector<256x8xf32> -> vector<256x8xf32>
    %253 = arith.addf %246, %252 : vector<256x8xf32>
    %c1_266 = arith.constant 1 : index
    %c1_267 = arith.constant 1 : index
    %c0_268 = arith.constant 0 : index
    %254 = vector.load %arg8[%c1_266, %c1_267, %c0_268] : memref<18x18x8xf32, #tpu.memory_space<vmem>>, vector<16x16x8xf32>
    %255 = arith.truncf %254 : vector<16x16x8xf32> to vector<16x16x8xbf16>
    %256 = vector.shape_cast %255 : vector<16x16x8xbf16> to vector<256x8xbf16>
    %c4_269 = arith.constant 4 : index
    %c0_270 = arith.constant 0 : index
    %c0_271 = arith.constant 0 : index
    %257 = vector.load %arg4[%c4_269, %c0_270, %c0_271] : memref<9x8x8xbf16, #tpu.memory_space<vmem>>, vector<1x8x8xbf16>
    %258 = vector.shape_cast %257 : vector<1x8x8xbf16> to vector<8x8xbf16>
    %cst_272 = arith.constant dense<0.000000e+00> : vector<256x8xf32>
    %259 = tpu.matmul %256, %258, %cst_272 {dimension_numbers = #tpu.dot_dimension_numbers<[1], [0], [0], [1], [0, 0, 1, 1], [], []>} : vector<256x8xbf16>, vector<8x8xbf16>, vector<256x8xf32> -> vector<256x8xf32>
    %260 = arith.addf %253, %259 : vector<256x8xf32>
    %c1_273 = arith.constant 1 : index
    %c2_274 = arith.constant 2 : index
    %c0_275 = arith.constant 0 : index
    %261 = vector.load %arg8[%c1_273, %c2_274, %c0_275] : memref<18x18x8xf32, #tpu.memory_space<vmem>>, vector<16x16x8xf32>
    %262 = arith.truncf %261 : vector<16x16x8xf32> to vector<16x16x8xbf16>
    %263 = vector.shape_cast %262 : vector<16x16x8xbf16> to vector<256x8xbf16>
    %c5_276 = arith.constant 5 : index
    %c0_277 = arith.constant 0 : index
    %c0_278 = arith.constant 0 : index
    %264 = vector.load %arg4[%c5_276, %c0_277, %c0_278] : memref<9x8x8xbf16, #tpu.memory_space<vmem>>, vector<1x8x8xbf16>
    %265 = vector.shape_cast %264 : vector<1x8x8xbf16> to vector<8x8xbf16>
    %cst_279 = arith.constant dense<0.000000e+00> : vector<256x8xf32>
    %266 = tpu.matmul %263, %265, %cst_279 {dimension_numbers = #tpu.dot_dimension_numbers<[1], [0], [0], [1], [0, 0, 1, 1], [], []>} : vector<256x8xbf16>, vector<8x8xbf16>, vector<256x8xf32> -> vector<256x8xf32>
    %267 = arith.addf %260, %266 : vector<256x8xf32>
    %c2_280 = arith.constant 2 : index
    %c0_281 = arith.constant 0 : index
    %c0_282 = arith.constant 0 : index
    %268 = vector.load %arg8[%c2_280, %c0_281, %c0_282] : memref<18x18x8xf32, #tpu.memory_space<vmem>>, vector<16x16x8xf32>
    %269 = arith.truncf %268 : vector<16x16x8xf32> to vector<16x16x8xbf16>
    %270 = vector.shape_cast %269 : vector<16x16x8xbf16> to vector<256x8xbf16>
    %c6_283 = arith.constant 6 : index
    %c0_284 = arith.constant 0 : index
    %c0_285 = arith.constant 0 : index
    %271 = vector.load %arg4[%c6_283, %c0_284, %c0_285] : memref<9x8x8xbf16, #tpu.memory_space<vmem>>, vector<1x8x8xbf16>
    %272 = vector.shape_cast %271 : vector<1x8x8xbf16> to vector<8x8xbf16>
    %cst_286 = arith.constant dense<0.000000e+00> : vector<256x8xf32>
    %273 = tpu.matmul %270, %272, %cst_286 {dimension_numbers = #tpu.dot_dimension_numbers<[1], [0], [0], [1], [0, 0, 1, 1], [], []>} : vector<256x8xbf16>, vector<8x8xbf16>, vector<256x8xf32> -> vector<256x8xf32>
    %274 = arith.addf %267, %273 : vector<256x8xf32>
    %c2_287 = arith.constant 2 : index
    %c1_288 = arith.constant 1 : index
    %c0_289 = arith.constant 0 : index
    %275 = vector.load %arg8[%c2_287, %c1_288, %c0_289] : memref<18x18x8xf32, #tpu.memory_space<vmem>>, vector<16x16x8xf32>
    %276 = arith.truncf %275 : vector<16x16x8xf32> to vector<16x16x8xbf16>
    %277 = vector.shape_cast %276 : vector<16x16x8xbf16> to vector<256x8xbf16>
    %c7_290 = arith.constant 7 : index
    %c0_291 = arith.constant 0 : index
    %c0_292 = arith.constant 0 : index
    %278 = vector.load %arg4[%c7_290, %c0_291, %c0_292] : memref<9x8x8xbf16, #tpu.memory_space<vmem>>, vector<1x8x8xbf16>
    %279 = vector.shape_cast %278 : vector<1x8x8xbf16> to vector<8x8xbf16>
    %cst_293 = arith.constant dense<0.000000e+00> : vector<256x8xf32>
    %280 = tpu.matmul %277, %279, %cst_293 {dimension_numbers = #tpu.dot_dimension_numbers<[1], [0], [0], [1], [0, 0, 1, 1], [], []>} : vector<256x8xbf16>, vector<8x8xbf16>, vector<256x8xf32> -> vector<256x8xf32>
    %281 = arith.addf %274, %280 : vector<256x8xf32>
    %c2_294 = arith.constant 2 : index
    %c2_295 = arith.constant 2 : index
    %c0_296 = arith.constant 0 : index
    %282 = vector.load %arg8[%c2_294, %c2_295, %c0_296] : memref<18x18x8xf32, #tpu.memory_space<vmem>>, vector<16x16x8xf32>
    %283 = arith.truncf %282 : vector<16x16x8xf32> to vector<16x16x8xbf16>
    %284 = vector.shape_cast %283 : vector<16x16x8xbf16> to vector<256x8xbf16>
    %c8_297 = arith.constant 8 : index
    %c0_298 = arith.constant 0 : index
    %c0_299 = arith.constant 0 : index
    %285 = vector.load %arg4[%c8_297, %c0_298, %c0_299] : memref<9x8x8xbf16, #tpu.memory_space<vmem>>, vector<1x8x8xbf16>
    %286 = vector.shape_cast %285 : vector<1x8x8xbf16> to vector<8x8xbf16>
    %cst_300 = arith.constant dense<0.000000e+00> : vector<256x8xf32>
    %287 = tpu.matmul %284, %286, %cst_300 {dimension_numbers = #tpu.dot_dimension_numbers<[1], [0], [0], [1], [0, 0, 1, 1], [], []>} : vector<256x8xbf16>, vector<8x8xbf16>, vector<256x8xf32> -> vector<256x8xf32>
    %288 = arith.addf %281, %287 : vector<256x8xf32>
    %c0_301 = arith.constant 0 : index
    %c0_302 = arith.constant 0 : index
    %289 = vector.load %arg5[%c0_301, %c0_302] : memref<1x8xf32, #tpu.memory_space<vmem>>, vector<1x8xf32>
    %290 = vector.broadcast %289 : vector<1x8xf32> to vector<256x8xf32>
    %291 = arith.addf %288, %290 : vector<256x8xf32>
    %cst_303 = arith.constant 0.000000e+00 : f32
    %292 = vector.broadcast %cst_303 : f32 to vector<256x8xf32>
    %293 = arith.maximumf %291, %292 : vector<256x8xf32>
    %294 = arith.truncf %293 : vector<256x8xf32> to vector<256x8xbf16>
    %c1_304 = arith.constant 1 : index
    %c0_305 = arith.constant 0 : index
    %c0_306 = arith.constant 0 : index
    %295 = vector.load %arg6[%c1_304, %c0_305, %c0_306] : memref<2x256x8xbf16, #tpu.memory_space<vmem>>, vector<1x256x8xbf16>
    %296 = vector.shape_cast %295 : vector<1x256x8xbf16> to vector<256x8xbf16>
    %297 = vector.shape_cast %294 : vector<256x8xbf16> to vector<1x256x8xbf16>
    tpu.vector_store %arg6[%c1_304, %c0_305, %c0_306], %297 {strides = array<i32>} : memref<2x256x8xbf16, #tpu.memory_space<vmem>>, vector<1x256x8xbf16>,
    return
  }
  func.func @transform_0(%arg0: i32) -> (i32, i32, i32, i32) {
    %c0_i32 = arith.constant 0 : i32
    %c0_i32_0 = arith.constant 0 : i32
    %c0_i32_1 = arith.constant 0 : i32
    %c0_i32_2 = arith.constant 0 : i32
    return %arg0, %c0_i32, %c0_i32_0, %c0_i32_1 : i32, i32, i32, i32
  }
  func.func @transform_1(%arg0: i32) -> (i32, i32, i32) {
    %c0_i32 = arith.constant 0 : i32
    %c0_i32_0 = arith.constant 0 : i32
    %c0_i32_1 = arith.constant 0 : i32
    %c0_i32_2 = arith.constant 0 : i32
    return %c0_i32, %c0_i32_0, %c0_i32_1 : i32, i32, i32
  }
  func.func @transform_2(%arg0: i32) -> (i32, i32) {
    %c0_i32 = arith.constant 0 : i32
    %c0_i32_0 = arith.constant 0 : i32
    %c0_i32_1 = arith.constant 0 : i32
    return %c0_i32, %c0_i32_0 : i32, i32
  }
  func.func @transform_3(%arg0: i32) -> (i32, i32, i32) {
    %c0_i32 = arith.constant 0 : i32
    %c0_i32_0 = arith.constant 0 : i32
    %c0_i32_1 = arith.constant 0 : i32
    %c0_i32_2 = arith.constant 0 : i32
    return %c0_i32, %c0_i32_0, %c0_i32_1 : i32, i32, i32
  }
  func.func @transform_4(%arg0: i32) -> (i32, i32) {
    %c0_i32 = arith.constant 0 : i32
    %c0_i32_0 = arith.constant 0 : i32
    %c0_i32_1 = arith.constant 0 : i32
    return %c0_i32, %c0_i32_0 : i32, i32
  }
  func.func @transform_5(%arg0: i32) -> (i32, i32, i32) {
    %c0_i32 = arith.constant 0 : i32
    %c0_i32_0 = arith.constant 0 : i32
    %c0_i32_1 = arith.constant 0 : i32
    return %arg0, %c0_i32, %c0_i32_0 : i32, i32, i32
  }
}

</mosaic_0001>

<llo_original>
// kernel: tpu_custom_call.1
$region0: #{tpu_custom_call.1}
  #allocation0 [shape = 'u32[]', space=smem, size = 0x4, offset = 0x4, fixed_abs, tag = 'smem constant byte address 0x4 - core index']
  #allocation1 [shape = 'u32[144,128]{1,0:T(1,128)}', space=vmem, size = 0x12000, scoped, tag = 'internal scratch']
  #allocation2 [shape = 'f32[18,18,3]{2,1,0:T(8,128)}', space=vmem, size = 0x36000, scoped, tag = 'scratch operand']
  #allocation3 [shape = 'f32[18,18,8]{2,1,0:T(8,128)}', space=vmem, size = 0x36000, scoped, tag = 'scratch operand']
  %s0 = inlined_call_operand.vmem [shape: f32[2,16,16,3], index: 0, kind: input, shape index: {}]
  %s1 = inlined_call_operand.vmem [shape: bf16[9,3,8], index: 1, kind: input, shape index: {}]
  %s2 = inlined_call_operand.vmem [shape: f32[1,8], index: 2, kind: input, shape index: {}]
  %s3 = inlined_call_operand.vmem [shape: bf16[9,8,8], index: 3, kind: input, shape index: {}]
  %s4 = inlined_call_operand.vmem [shape: f32[1,8], index: 4, kind: input, shape index: {}]
  %s5 = inlined_call_operand.vmem [shape: bf16[2,256,8], index: 5, kind: output, shape index: {}]
  %s6 = sld [smem:[#allocation0]]
  $region30: #{tpu_custom_call.1} parent=0
    _
  %s8 = ssub.s32 1, %s6
  %s9 = scalar_select 0, %s8, %s6
  // Predicated region
  $region2: #{tpu_custom_call.1} parent=0 // pred_check
    _
  $region3: #{tpu_custom_call.1} parent=0 // pred_check_branch
    %11 = sbr.rel (0) target = $region5
  $region4: #{tpu_custom_call.1} parent=0 // pred_region
    _
  $region5: #{tpu_custom_call.1} parent=0 // pred_fallthru
    _
  // Predicated region
  $region6: #{tpu_custom_call.1} parent=0 // pred_check
    _
  $region7: #{tpu_custom_call.1} parent=0 // pred_check_branch
    %13 = sbr.rel (0) target = $region9
  $region8: #{tpu_custom_call.1} parent=0 // pred_region
    _
  $region9: #{tpu_custom_call.1} parent=0 // pred_fallthru
    _
  // Predicated region
  $region10: #{tpu_custom_call.1} parent=0 // pred_check
    _
  $region11: #{tpu_custom_call.1} parent=0 // pred_check_branch
    %15 = sbr.rel (0) target = $region13
  $region12: #{tpu_custom_call.1} parent=0 // pred_region
    _
  $region13: #{tpu_custom_call.1} parent=0 // pred_fallthru
    _
  // Predicated region
  $region14: #{tpu_custom_call.1} parent=0 // pred_check
    _
  $region15: #{tpu_custom_call.1} parent=0 // pred_check_branch
    %17 = sbr.rel (0) target = $region17
  $region16: #{tpu_custom_call.1} parent=0 // pred_region
    _
  $region17: #{tpu_custom_call.1} parent=0 // pred_fallthru
    _
  // Predicated region
  $region18: #{tpu_custom_call.1} parent=0 // pred_check
    _
  $region19: #{tpu_custom_call.1} parent=0 // pred_check_branch
    %19 = sbr.rel (0) target = $region21
  $region20: #{tpu_custom_call.1} parent=0 // pred_region
    _
  $region21: #{tpu_custom_call.1} parent=0 // pred_fallthru
    _
  %vm21 = vcmask 23552
  %22 = vst.msk [vmem:[#allocation2] sm:$0xff] %vm21, 0.0
  %23 = vst.msk [vmem:[#allocation2 + $0x8] sm:$0xff] %vm21, 0.0
  %vm24 = vcmask 17408
  %25 = vst.msk [vmem:[#allocation2 + $0x10] sm:$0x3] %vm24, 0.0
  %s26 = scalar_lea.vmem [#allocation2], 408
  %27 = vst.msk [vmem:[%s26] sm:$0xff] %vm21, 0.0
  %28 = vst.msk [vmem:[%s26 + $0x8] sm:$0xff] %vm21, 0.0
  %29 = vst.msk [vmem:[%s26 + $0x10] sm:$0x3] %vm24, 0.0
  %s30 = scalar_lea.vmem [#allocation2], 24
  %vm31 = vcmask 16384
  %32 = vst.msk [vmem:[%s30] sm:$0x1] %vm31, 0.0
  %33 = vst.msk [vmem:[%s30 + $0x18] sm:$0x1] %vm31, 0.0
  %34 = vst.msk [vmem:[%s30 + $0x30] sm:$0x1] %vm31, 0.0
  %35 = vst.msk [vmem:[%s30 + $0x48] sm:$0x1] %vm31, 0.0
  %36 = vst.msk [vmem:[%s30 + $0x60] sm:$0x1] %vm31, 0.0
  %37 = vst.msk [vmem:[%s30 + $0x78] sm:$0x1] %vm31, 0.0
  %38 = vst.msk [vmem:[%s30 + $0x90] sm:$0x1] %vm31, 0.0
  %39 = vst.msk [vmem:[%s30 + $0xa8] sm:$0x1] %vm31, 0.0
  %40 = vst.msk [vmem:[%s30 + $0xc0] sm:$0x1] %vm31, 0.0
  %41 = vst.msk [vmem:[%s30 + $0xd8] sm:$0x1] %vm31, 0.0
  %42 = vst.msk [vmem:[%s30 + $0xf0] sm:$0x1] %vm31, 0.0
  %43 = vst.msk [vmem:[%s30 + $0x108] sm:$0x1] %vm31, 0.0
  %44 = vst.msk [vmem:[%s30 + $0x120] sm:$0x1] %vm31, 0.0
  %45 = vst.msk [vmem:[%s30 + $0x138] sm:$0x1] %vm31, 0.0
  %46 = vst.msk [vmem:[%s30 + $0x150] sm:$0x1] %vm31, 0.0
  %47 = vst.msk [vmem:[%s30 + $0x168] sm:$0x1] %vm31, 0.0
  %48 = vst.msk [vmem:[%s30 + $0x11] sm:$0x1] %vm31, 0.0
  %49 = vst.msk [vmem:[%s30 + $0x29] sm:$0x1] %vm31, 0.0
  %50 = vst.msk [vmem:[%s30 + $0x41] sm:$0x1] %vm31, 0.0
  %51 = vst.msk [vmem:[%s30 + $0x59] sm:$0x1] %vm31, 0.0
  %52 = vst.msk [vmem:[%s30 + $0x71] sm:$0x1] %vm31, 0.0
  %53 = vst.msk [vmem:[%s30 + $0x89] sm:$0x1] %vm31, 0.0
  %54 = vst.msk [vmem:[%s30 + $0xa1] sm:$0x1] %vm31, 0.0
  %55 = vst.msk [vmem:[%s30 + $0xb9] sm:$0x1] %vm31, 0.0
  %56 = vst.msk [vmem:[%s30 + $0xd1] sm:$0x1] %vm31, 0.0
  %57 = vst.msk [vmem:[%s30 + $0xe9] sm:$0x1] %vm31, 0.0
  %58 = vst.msk [vmem:[%s30 + $0x101] sm:$0x1] %vm31, 0.0
  %59 = vst.msk [vmem:[%s30 + $0x119] sm:$0x1] %vm31, 0.0
  %60 = vst.msk [vmem:[%s30 + $0x131] sm:$0x1] %vm31, 0.0
  %61 = vst.msk [vmem:[%s30 + $0x149] sm:$0x1] %vm31, 0.0
  %62 = vst.msk [vmem:[%s30 + $0x161] sm:$0x1] %vm31, 0.0
  %63 = vst.msk [vmem:[%s30 + $0x179] sm:$0x1] %vm31, 0.0
  %vm64 = vcmask 64512
  %65 = vst.msk [vmem:[#allocation3] sm:$0xff] %vm64, 0.0
  %66 = vst.msk [vmem:[#allocation3 + $0x8] sm:$0xff] %vm64, 0.0
  %vm67 = vcmask 58368
  %68 = vst.msk [vmem:[#allocation3 + $0x10] sm:$0x3] %vm67, 0.0
  %s69 = scalar_lea.vmem [#allocation3], 408
  %70 = vst.msk [vmem:[%s69] sm:$0xff] %vm64, 0.0
  %71 = vst.msk [vmem:[%s69 + $0x8] sm:$0xff] %vm64, 0.0
  %72 = vst.msk [vmem:[%s69 + $0x10] sm:$0x3] %vm67, 0.0
  %s73 = scalar_lea.vmem [#allocation3], 24
  %vm74 = vcmask 57344
  %75 = vst.msk [vmem:[%s73] sm:$0x1] %vm74, 0.0
  %76 = vst.msk [vmem:[%s73 + $0x18] sm:$0x1] %vm74, 0.0
  %77 = vst.msk [vmem:[%s73 + $0x30] sm:$0x1] %vm74, 0.0
  %78 = vst.msk [vmem:[%s73 + $0x48] sm:$0x1] %vm74, 0.0
  %79 = vst.msk [vmem:[%s73 + $0x60] sm:$0x1] %vm74, 0.0
  %80 = vst.msk [vmem:[%s73 + $0x78] sm:$0x1] %vm74, 0.0
  %81 = vst.msk [vmem:[%s73 + $0x90] sm:$0x1] %vm74, 0.0
  %82 = vst.msk [vmem:[%s73 + $0xa8] sm:$0x1] %vm74, 0.0
  %83 = vst.msk [vmem:[%s73 + $0xc0] sm:$0x1] %vm74, 0.0
  %84 = vst.msk [vmem:[%s73 + $0xd8] sm:$0x1] %vm74, 0.0
  %85 = vst.msk [vmem:[%s73 + $0xf0] sm:$0x1] %vm74, 0.0
  %86 = vst.msk [vmem:[%s73 + $0x108] sm:$0x1] %vm74, 0.0
  %87 = vst.msk [vmem:[%s73 + $0x120] sm:$0x1] %vm74, 0.0
  %88 = vst.msk [vmem:[%s73 + $0x138] sm:$0x1] %vm74, 0.0
  %89 = vst.msk [vmem:[%s73 + $0x150] sm:$0x1] %vm74, 0.0
  %90 = vst.msk [vmem:[%s73 + $0x168] sm:$0x1] %vm74, 0.0
  %91 = vst.msk [vmem:[%s73 + $0x11] sm:$0x1] %vm74, 0.0
  %92 = vst.msk [vmem:[%s73 + $0x29] sm:$0x1] %vm74, 0.0
  %93 = vst.msk [vmem:[%s73 + $0x41] sm:$0x1] %vm74, 0.0
  %94 = vst.msk [vmem:[%s73 + $0x59] sm:$0x1] %vm74, 0.0
  %95 = vst.msk [vmem:[%s73 + $0x71] sm:$0x1] %vm74, 0.0
  %96 = vst.msk [vmem:[%s73 + $0x89] sm:$0x1] %vm74, 0.0
  %97 = vst.msk [vmem:[%s73 + $0xa1] sm:$0x1] %vm74, 0.0
  %98 = vst.msk [vmem:[%s73 + $0xb9] sm:$0x1] %vm74, 0.0
  %99 = vst.msk [vmem:[%s73 + $0xd1] sm:$0x1] %vm74, 0.0
  %100 = vst.msk [vmem:[%s73 + $0xe9] sm:$0x1] %vm74, 0.0
  %101 = vst.msk [vmem:[%s73 + $0x101] sm:$0x1] %vm74, 0.0
  %102 = vst.msk [vmem:[%s73 + $0x119] sm:$0x1] %vm74, 0.0
  %103 = vst.msk [vmem:[%s73 + $0x131] sm:$0x1] %vm74, 0.0
  %104 = vst.msk [vmem:[%s73 + $0x149] sm:$0x1] %vm74, 0.0
  %105 = vst.msk [vmem:[%s73 + $0x161] sm:$0x1] %vm74, 0.0
  %106 = vst.msk [vmem:[%s73 + $0x179] sm:$0x1] %vm74, 0.0
  %v107 = vld [vmem:[%s0] sm:$0xff]
  %v108 = vld [vmem:[%s0 + $0x8] sm:$0xff]
  %v109 = vld [vmem:[%s0 + $0x10] sm:$0xff]
  %v110 = vld [vmem:[%s0 + $0x18] sm:$0xff]
  %v111 = vld [vmem:[%s0 + $0x20] sm:$0xff]
  %v112 = vld [vmem:[%s0 + $0x28] sm:$0xff]
  %v113 = vld [vmem:[%s0 + $0x30] sm:$0xff]
  %v114 = vld [vmem:[%s0 + $0x38] sm:$0xff]
  %v115 = vld [vmem:[%s0 + $0x40] sm:$0xff]
  %v116 = vld [vmem:[%s0 + $0x48] sm:$0xff]
  %v117 = vld [vmem:[%s0 + $0x50] sm:$0xff]
  %v118 = vld [vmem:[%s0 + $0x58] sm:$0xff]
  %v119 = vld [vmem:[%s0 + $0x60] sm:$0xff]
  %v120 = vld [vmem:[%s0 + $0x68] sm:$0xff]
  %v121 = vld [vmem:[%s0 + $0x70] sm:$0xff]
  %v122 = vld [vmem:[%s0 + $0x78] sm:$0xff]
  %v123 = vld [vmem:[%s0 + $0x80] sm:$0xff]
  %v124 = vld [vmem:[%s0 + $0x88] sm:$0xff]
  %v125 = vld [vmem:[%s0 + $0x90] sm:$0xff]
  %v126 = vld [vmem:[%s0 + $0x98] sm:$0xff]
  %v127 = vld [vmem:[%s0 + $0xa0] sm:$0xff]
  %v128 = vld [vmem:[%s0 + $0xa8] sm:$0xff]
  %v129 = vld [vmem:[%s0 + $0xb0] sm:$0xff]
  %v130 = vld [vmem:[%s0 + $0xb8] sm:$0xff]
  %v131 = vld [vmem:[%s0 + $0xc0] sm:$0xff]
  %v132 = vld [vmem:[%s0 + $0xc8] sm:$0xff]
  %v133 = vld [vmem:[%s0 + $0xd0] sm:$0xff]
  %v134 = vld [vmem:[%s0 + $0xd8] sm:$0xff]
  %v135 = vld [vmem:[%s0 + $0xe0] sm:$0xff]
  %v136 = vld [vmem:[%s0 + $0xe8] sm:$0xff]
  %v137 = vld [vmem:[%s0 + $0xf0] sm:$0xff]
  %v138 = vld [vmem:[%s0 + $0xf8] sm:$0xff]
  %139 = vst.msk [vmem:[%s30 + $0x1] sm:$0xff] %vm21, %v107
  %140 = vst.msk [vmem:[%s30 + $0x9] sm:$0xff] %vm21, %v108
  %141 = vst.msk [vmem:[%s30 + $0x19] sm:$0xff] %vm21, %v109
  %142 = vst.msk [vmem:[%s30 + $0x21] sm:$0xff] %vm21, %v110
  %143 = vst.msk [vmem:[%s30 + $0x31] sm:$0xff] %vm21, %v111
  %144 = vst.msk [vmem:[%s30 + $0x39] sm:$0xff] %vm21, %v112
  %145 = vst.msk [vmem:[%s30 + $0x49] sm:$0xff] %vm21, %v113
  %146 = vst.msk [vmem:[%s30 + $0x51] sm:$0xff] %vm21, %v114
  %147 = vst.msk [vmem:[%s30 + $0x61] sm:$0xff] %vm21, %v115
  %148 = vst.msk [vmem:[%s30 + $0x69] sm:$0xff] %vm21, %v116
  %149 = vst.msk [vmem:[%s30 + $0x79] sm:$0xff] %vm21, %v117
  %150 = vst.msk [vmem:[%s30 + $0x81] sm:$0xff] %vm21, %v118
  %151 = vst.msk [vmem:[%s30 + $0x91] sm:$0xff] %vm21, %v119
  %152 = vst.msk [vmem:[%s30 + $0x99] sm:$0xff] %vm21, %v120
  %153 = vst.msk [vmem:[%s30 + $0xa9] sm:$0xff] %vm21, %v121
  %154 = vst.msk [vmem:[%s30 + $0xb1] sm:$0xff] %vm21, %v122
  %155 = vst.msk [vmem:[%s30 + $0xc1] sm:$0xff] %vm21, %v123
  %156 = vst.msk [vmem:[%s30 + $0xc9] sm:$0xff] %vm21, %v124
  %157 = vst.msk [vmem:[%s30 + $0xd9] sm:$0xff] %vm21, %v125
  %158 = vst.msk [vmem:[%s30 + $0xe1] sm:$0xff] %vm21, %v126
  %159 = vst.msk [vmem:[%s30 + $0xf1] sm:$0xff] %vm21, %v127
  %160 = vst.msk [vmem:[%s30 + $0xf9] sm:$0xff] %vm21, %v128
  %161 = vst.msk [vmem:[%s30 + $0x109] sm:$0xff] %vm21, %v129
  %162 = vst.msk [vmem:[%s30 + $0x111] sm:$0xff] %vm21, %v130
  %163 = vst.msk [vmem:[%s30 + $0x121] sm:$0xff] %vm21, %v131
  %164 = vst.msk [vmem:[%s30 + $0x129] sm:$0xff] %vm21, %v132
  %165 = vst.msk [vmem:[%s30 + $0x139] sm:$0xff] %vm21, %v133
  %166 = vst.msk [vmem:[%s30 + $0x141] sm:$0xff] %vm21, %v134
  %167 = vst.msk [vmem:[%s30 + $0x151] sm:$0xff] %vm21, %v135
  %168 = vst.msk [vmem:[%s30 + $0x159] sm:$0xff] %vm21, %v136
  %169 = vst.msk [vmem:[%s30 + $0x169] sm:$0xff] %vm21, %v137
  %170 = vst.msk [vmem:[%s30 + $0x171] sm:$0xff] %vm21, %v138
  %v171 = vld [vmem:[#allocation2] sm:$0xff]
  %v172 = vld [vmem:[#allocation2 + $0x8] sm:$0xff]
  %v173 = vld [vmem:[#allocation2 + $0x18] sm:$0xff]
  %v174 = vld [vmem:[#allocation2 + $0x20] sm:$0xff]
  %v175 = vld [vmem:[#allocation2 + $0x30] sm:$0xff]
  %v176 = vld [vmem:[#allocation2 + $0x38] sm:$0xff]
  %v177 = vld [vmem:[#allocation2 + $0x48] sm:$0xff]
  %v178 = vld [vmem:[#allocation2 + $0x50] sm:$0xff]
  %v179 = vld [vmem:[#allocation2 + $0x60] sm:$0xff]
  %v180 = vld [vmem:[#allocation2 + $0x68] sm:$0xff]
  %v181 = vld [vmem:[#allocation2 + $0x78] sm:$0xff]
  %v182 = vld [vmem:[#allocation2 + $0x80] sm:$0xff]
  %v183 = vld [vmem:[#allocation2 + $0x90] sm:$0xff]
  %v184 = vld [vmem:[#allocation2 + $0x98] sm:$0xff]
  %v185 = vld [vmem:[#allocation2 + $0xa8] sm:$0xff]
  %v186 = vld [vmem:[#allocation2 + $0xb0] sm:$0xff]
  %v187 = vld [vmem:[#allocation2 + $0xc0] sm:$0xff]
  %v188 = vld [vmem:[#allocation2 + $0xc8] sm:$0xff]
  %v189 = vld [vmem:[#allocation2 + $0xd8] sm:$0xff]
  %v190 = vld [vmem:[#allocation2 + $0xe0] sm:$0xff]
  %v191 = vld [vmem:[#allocation2 + $0xf0] sm:$0xff]
  %v192 = vld [vmem:[#allocation2 + $0xf8] sm:$0xff]
  %v193 = vld [vmem:[#allocation2 + $0x108] sm:$0xff]
  %v194 = vld [vmem:[#allocation2 + $0x110] sm:$0xff]
  %v195 = vld [vmem:[#allocation2 + $0x120] sm:$0xff]
  %v196 = vld [vmem:[#allocation2 + $0x128] sm:$0xff]
  %v197 = vld [vmem:[#allocation2 + $0x138] sm:$0xff]
  %v198 = vld [vmem:[#allocation2 + $0x140] sm:$0xff]
  %v199 = vld [vmem:[#allocation2 + $0x150] sm:$0xff]
  %v200 = vld [vmem:[#allocation2 + $0x158] sm:$0xff]
  %v201 = vld [vmem:[#allocation2 + $0x168] sm:$0xff]
  %v202 = vld [vmem:[#allocation2 + $0x170] sm:$0xff]
  %v203 = vpack.c.bf16 %v172, %v171
  %v204 = vpack.c.bf16 %v174, %v173
  %v205 = vpack.c.bf16 %v176, %v175
  %v206 = vpack.c.bf16 %v178, %v177
  %v207 = vpack.c.bf16 %v180, %v179
  %v208 = vpack.c.bf16 %v182, %v181
  %v209 = vpack.c.bf16 %v184, %v183
  %v210 = vpack.c.bf16 %v186, %v185
  %v211 = vpack.c.bf16 %v188, %v187
  %v212 = vpack.c.bf16 %v190, %v189
  %v213 = vpack.c.bf16 %v192, %v191
  %v214 = vpack.c.bf16 %v194, %v193
  %v215 = vpack.c.bf16 %v196, %v195
  %v216 = vpack.c.bf16 %v198, %v197
  %v217 = vpack.c.bf16 %v200, %v199
  %v218 = vpack.c.bf16 %v202, %v201
  %v219 = vld [vmem:[%s1] sm:$0x3]
  %v220 = vld [vmem:[#allocation2 + $0x1] sm:$0xff]
  %v221 = vld [vmem:[#allocation2 + $0x9] sm:$0xff]
  %v222 = vld [vmem:[#allocation2 + $0x19] sm:$0xff]
  %v223 = vld [vmem:[#allocation2 + $0x21] sm:$0xff]
  %v224 = vld [vmem:[#allocation2 + $0x31] sm:$0xff]
  %v225 = vld [vmem:[#allocation2 + $0x39] sm:$0xff]
  %v226 = vld [vmem:[#allocation2 + $0x49] sm:$0xff]
  %v227 = vld [vmem:[#allocation2 + $0x51] sm:$0xff]
  %v228 = vld [vmem:[#allocation2 + $0x61] sm:$0xff]
  %v229 = vld [vmem:[#allocation2 + $0x69] sm:$0xff]
  %v230 = vld [vmem:[#allocation2 + $0x79] sm:$0xff]
  %v231 = vld [vmem:[#allocation2 + $0x81] sm:$0xff]
  %v232 = vld [vmem:[#allocation2 + $0x91] sm:$0xff]
  %v233 = vld [vmem:[#allocation2 + $0x99] sm:$0xff]
  %v234 = vld [vmem:[#allocation2 + $0xa9] sm:$0xff]
  %v235 = vld [vmem:[#allocation2 + $0xb1] sm:$0xff]
  %v236 = vld [vmem:[#allocation2 + $0xc1] sm:$0xff]
  %v237 = vld [vmem:[#allocation2 + $0xc9] sm:$0xff]
  %v238 = vld [vmem:[#allocation2 + $0xd9] sm:$0xff]
  %v239 = vld [vmem:[#allocation2 + $0xe1] sm:$0xff]
  %v240 = vld [vmem:[#allocation2 + $0xf1] sm:$0xff]
  %v241 = vld [vmem:[#allocation2 + $0xf9] sm:$0xff]
  %v242 = vld [vmem:[#allocation2 + $0x109] sm:$0xff]
  %v243 = vld [vmem:[#allocation2 + $0x111] sm:$0xff]
  %v244 = vld [vmem:[#allocation2 + $0x121] sm:$0xff]
  %v245 = vld [vmem:[#allocation2 + $0x129] sm:$0xff]
  %v246 = vld [vmem:[#allocation2 + $0x139] sm:$0xff]
  %v247 = vld [vmem:[#allocation2 + $0x141] sm:$0xff]
  %v248 = vld [vmem:[#allocation2 + $0x151] sm:$0xff]
  %v249 = vld [vmem:[#allocation2 + $0x159] sm:$0xff]
  %v250 = vld [vmem:[#allocation2 + $0x169] sm:$0xff]
  %v251 = vld [vmem:[#allocation2 + $0x171] sm:$0xff]
  %v252 = vpack.c.bf16 %v221, %v220
  %v253 = vpack.c.bf16 %v223, %v222
  %v254 = vpack.c.bf16 %v225, %v224
  %v255 = vpack.c.bf16 %v227, %v226
  %v256 = vpack.c.bf16 %v229, %v228
  %v257 = vpack.c.bf16 %v231, %v230
  %v258 = vpack.c.bf16 %v233, %v232
  %v259 = vpack.c.bf16 %v235, %v234
  %v260 = vpack.c.bf16 %v237, %v236
  %v261 = vpack.c.bf16 %v239, %v238
  %v262 = vpack.c.bf16 %v241, %v240
  %v263 = vpack.c.bf16 %v243, %v242
  %v264 = vpack.c.bf16 %v245, %v244
  %v265 = vpack.c.bf16 %v247, %v246
  %v266 = vpack.c.bf16 %v249, %v248
  %v267 = vpack.c.bf16 %v251, %v250
  %s268 = scalar_lea.vmem %s1, 2
  %v269 = vld [vmem:[%s268] sm:$0x3]
  %v271 = vsel %vm21, %v252, 0
  %v274 = vsel %vm21, %v253, 0
  %v277 = vsel %vm21, %v254, 0
  %v280 = vsel %vm21, %v255, 0
  %v283 = vsel %vm21, %v256, 0
  %v286 = vsel %vm21, %v257, 0
  %v289 = vsel %vm21, %v258, 0
  %v292 = vsel %vm21, %v259, 0
  %v295 = vsel %vm21, %v260, 0
  %v298 = vsel %vm21, %v261, 0
  %v301 = vsel %vm21, %v262, 0
  %v304 = vsel %vm21, %v263, 0
  %v307 = vsel %vm21, %v264, 0
  %v310 = vsel %vm21, %v265, 0
  %v313 = vsel %vm21, %v266, 0
  %v316 = vsel %vm21, %v267, 0
  %vm318 = vcmask 1040384
  %vm319 = vcmask 1041408
  %v320 = vsel %vm318, 4294967295, 65535
  %v321 = vsel %vm319, %v320, 0
  %v323 = vand.u32 %v269, %v321
  %325 = vmatprep.subr.bf16.mxu0 0
  %326 = vmatpush1.bf16.msra.mxu0 0
  %327 = vmatprep.subr.bf16.mxu0 0
  %328 = vmatpush1.bf16.msra.mxu0 0
  %329 = vmatprep.subr.bf16.mxu0 0
  %330 = vmatpush1.bf16.msra.mxu0 0
  %331 = vmatprep.subr.bf16.mxu0 0
  %332 = vmatpush1.bf16.msra.mxu0 0
  %333 = vmatprep.subr.bf16.mxu0 0
  %334 = vmatpush1.bf16.msra.mxu0 0
  %335 = vmatprep.subr.bf16.mxu0 0
  %336 = vmatpush1.bf16.msra.mxu0 0
  %337 = vmatprep.subr.bf16.mxu0 0
  %338 = vmatpush1.bf16.msra.mxu0 0
  %339 = vmatprep.subr.bf16.mxu0 0
  %340 = vmatpush1.bf16.msra.mxu0 %v323
  %341 = vmatprep.subr.bf16.mxu0 0
  %342 = vmatpush2.bf16.msra.mxu0 0
  %343 = vmatprep.subr.bf16.mxu0 0
  %344 = vmatpush2.bf16.msra.mxu0 0
  %345 = vmatprep.subr.bf16.mxu0 0
  %346 = vmatpush2.bf16.msra.mxu0 0
  %347 = vmatprep.subr.bf16.mxu0 0
  %348 = vmatpush2.bf16.msra.mxu0 0
  %349 = vmatprep.subr.bf16.mxu0 0
  %350 = vmatpush2.bf16.msra.mxu0 0
  %351 = vmatprep.subr.bf16.mxu0 0
  %352 = vmatpush2.bf16.msra.mxu0 0
  %353 = vmatprep.subr.bf16.mxu0 0
  %354 = vmatpush2.bf16.msra.mxu0 0
  %355 = vmatprep.subr.bf16.mxu0 0
  %356 = vmatpush2.bf16.msra.mxu0 0
  %357 = vmatprep.mubr.bf16.mxu0 0
  %358 = vmatmul.mubr.bf16.gmra.mxu0 %v271
  %v359 = vpop.f32.mrf.mxu0
  %v360 = vadd.f32 0.0, %v359
  %v361 = vpop.f32.mrf.mxu0
  %v362 = vpop.f32.mrf.mxu0
  %v363 = vadd.f32 0.0, %v362
  %v364 = vpop.f32.mrf.mxu0
  %365 = vmatprep.mubr.bf16.mxu0 0
  %366 = vmatmul.mubr.bf16.gmra.mxu0 %v274
  %v367 = vpop.f32.mrf.mxu0
  %v368 = vadd.f32 0.0, %v367
  %v369 = vpop.f32.mrf.mxu0
  %v370 = vpop.f32.mrf.mxu0
  %v371 = vadd.f32 0.0, %v370
  %v372 = vpop.f32.mrf.mxu0
  %373 = vmatprep.mubr.bf16.mxu0 0
  %374 = vmatmul.mubr.bf16.gmra.mxu0 %v277
  %v375 = vpop.f32.mrf.mxu0
  %v376 = vadd.f32 0.0, %v375
  %v377 = vpop.f32.mrf.mxu0
  %v378 = vpop.f32.mrf.mxu0
  %v379 = vadd.f32 0.0, %v378
  %v380 = vpop.f32.mrf.mxu0
  %381 = vmatprep.mubr.bf16.mxu0 0
  %382 = vmatmul.mubr.bf16.gmra.mxu0 %v280
  %v383 = vpop.f32.mrf.mxu0
  %v384 = vadd.f32 0.0, %v383
  %v385 = vpop.f32.mrf.mxu0
  %v386 = vpop.f32.mrf.mxu0
  %v387 = vadd.f32 0.0, %v386
  %v388 = vpop.f32.mrf.mxu0
  %389 = vmatprep.mubr.bf16.mxu0 0
  %390 = vmatmul.mubr.bf16.gmra.mxu0 %v283
  %v391 = vpop.f32.mrf.mxu0
  %v392 = vadd.f32 0.0, %v391
  %v393 = vpop.f32.mrf.mxu0
  %v394 = vpop.f32.mrf.mxu0
  %v395 = vadd.f32 0.0, %v394
  %v396 = vpop.f32.mrf.mxu0
  %397 = vmatprep.mubr.bf16.mxu0 0
  %398 = vmatmul.mubr.bf16.gmra.mxu0 %v286
  %v399 = vpop.f32.mrf.mxu0
  %v400 = vadd.f32 0.0, %v399
  %v401 = vpop.f32.mrf.mxu0
  %v402 = vpop.f32.mrf.mxu0
  %v403 = vadd.f32 0.0, %v402
  %v404 = vpop.f32.mrf.mxu0
  %405 = vmatprep.mubr.bf16.mxu0 0
  %406 = vmatmul.mubr.bf16.gmra.mxu0 %v289
  %v407 = vpop.f32.mrf.mxu0
  %v408 = vadd.f32 0.0, %v407
  %v409 = vpop.f32.mrf.mxu0
  %v410 = vpop.f32.mrf.mxu0
  %v411 = vadd.f32 0.0, %v410
  %v412 = vpop.f32.mrf.mxu0
  %413 = vmatprep.mubr.bf16.mxu0 0
  %414 = vmatmul.mubr.bf16.gmra.mxu0 %v292
  %v415 = vpop.f32.mrf.mxu0
  %v416 = vadd.f32 0.0, %v415
  %v417 = vpop.f32.mrf.mxu0
  %v418 = vpop.f32.mrf.mxu0
  %v419 = vadd.f32 0.0, %v418
  %v420 = vpop.f32.mrf.mxu0
  %421 = vmatprep.mubr.bf16.mxu0 0
  %422 = vmatmul.mubr.bf16.gmra.mxu0 %v295
  %v423 = vpop.f32.mrf.mxu0
  %v424 = vadd.f32 0.0, %v423
  %v425 = vpop.f32.mrf.mxu0
  %v426 = vpop.f32.mrf.mxu0
  %v427 = vadd.f32 0.0, %v426
  %v428 = vpop.f32.mrf.mxu0
  %429 = vmatprep.mubr.bf16.mxu0 0
  %430 = vmatmul.mubr.bf16.gmra.mxu0 %v298
  %v431 = vpop.f32.mrf.mxu0
  %v432 = vadd.f32 0.0, %v431
  %v433 = vpop.f32.mrf.mxu0
  %v434 = vpop.f32.mrf.mxu0
  %v435 = vadd.f32 0.0, %v434
  %v436 = vpop.f32.mrf.mxu0
  %437 = vmatprep.mubr.bf16.mxu0 0
  %438 = vmatmul.mubr.bf16.gmra.mxu0 %v301
  %v439 = vpop.f32.mrf.mxu0
  %v440 = vadd.f32 0.0, %v439
  %v441 = vpop.f32.mrf.mxu0
  %v442 = vpop.f32.mrf.mxu0
  %v443 = vadd.f32 0.0, %v442
  %v444 = vpop.f32.mrf.mxu0
  %445 = vmatprep.mubr.bf16.mxu0 0
  %446 = vmatmul.mubr.bf16.gmra.mxu0 %v304
  %v447 = vpop.f32.mrf.mxu0
  %v448 = vadd.f32 0.0, %v447
  %v449 = vpop.f32.mrf.mxu0
  %v450 = vpop.f32.mrf.mxu0
  %v451 = vadd.f32 0.0, %v450
  %v452 = vpop.f32.mrf.mxu0
  %453 = vmatprep.mubr.bf16.mxu0 0
  %454 = vmatmul.mubr.bf16.gmra.mxu0 %v307
  %v455 = vpop.f32.mrf.mxu0
  %v456 = vadd.f32 0.0, %v455
  %v457 = vpop.f32.mrf.mxu0
  %v458 = vpop.f32.mrf.mxu0
  %v459 = vadd.f32 0.0, %v458
  %v460 = vpop.f32.mrf.mxu0
  %461 = vmatprep.mubr.bf16.mxu0 0
  %462 = vmatmul.mubr.bf16.gmra.mxu0 %v310
  %v463 = vpop.f32.mrf.mxu0
  %v464 = vadd.f32 0.0, %v463
  %v465 = vpop.f32.mrf.mxu0
  %v466 = vpop.f32.mrf.mxu0
  %v467 = vadd.f32 0.0, %v466
  %v468 = vpop.f32.mrf.mxu0
  %469 = vmatprep.mubr.bf16.mxu0 0
  %470 = vmatmul.mubr.bf16.gmra.mxu0 %v313
  %v471 = vpop.f32.mrf.mxu0
  %v472 = vadd.f32 0.0, %v471
  %v473 = vpop.f32.mrf.mxu0
  %v474 = vpop.f32.mrf.mxu0
  %v475 = vadd.f32 0.0, %v474
  %v476 = vpop.f32.mrf.mxu0
  %477 = vmatprep.mubr.bf16.mxu0 0
  %478 = vmatmul.mubr.bf16.gmra.mxu0 %v316
  %v479 = vpop.f32.mrf.mxu0
  %v480 = vadd.f32 0.0, %v479
  %v481 = vpop.f32.mrf.mxu0
  %v482 = vpop.f32.mrf.mxu0
  %v483 = vadd.f32 0.0, %v482
  %v484 = vpop.f32.mrf.mxu0
  %485 = vdwg.mxu0
  %v487 = vsel %vm21, %v203, 0
  %v490 = vsel %vm21, %v204, 0
  %v493 = vsel %vm21, %v205, 0
  %v496 = vsel %vm21, %v206, 0
  %v499 = vsel %vm21, %v207, 0
  %v502 = vsel %vm21, %v208, 0
  %v505 = vsel %vm21, %v209, 0
  %v508 = vsel %vm21, %v210, 0
  %v511 = vsel %vm21, %v211, 0
  %v514 = vsel %vm21, %v212, 0
  %v517 = vsel %vm21, %v213, 0
  %v520 = vsel %vm21, %v214, 0
  %v523 = vsel %vm21, %v215, 0
  %v526 = vsel %vm21, %v216, 0
  %v529 = vsel %vm21, %v217, 0
  %v532 = vsel %vm21, %v218, 0
  %v535 = vand.u32 %v219, %v321
  %537 = vmatprep.subr.bf16.mxu0 0
  %538 = vmatpush1.bf16.msra.mxu0 0
  %539 = vmatprep.subr.bf16.mxu0 0
  %540 = vmatpush1.bf16.msra.mxu0 0
  %541 = vmatprep.subr.bf16.mxu0 0
  %542 = vmatpush1.bf16.msra.mxu0 0
  %543 = vmatprep.subr.bf16.mxu0 0
  %544 = vmatpush1.bf16.msra.mxu0 0
  %545 = vmatprep.subr.bf16.mxu0 0
  %546 = vmatpush1.bf16.msra.mxu0 0
  %547 = vmatprep.subr.bf16.mxu0 0
  %548 = vmatpush1.bf16.msra.mxu0 0
  %549 = vmatprep.subr.bf16.mxu0 0
  %550 = vmatpush1.bf16.msra.mxu0 0
  %551 = vmatprep.subr.bf16.mxu0 0
  %552 = vmatpush1.bf16.msra.mxu0 %v535
  %553 = vmatprep.subr.bf16.mxu0 0
  %554 = vmatpush2.bf16.msra.mxu0 0
  %555 = vmatprep.subr.bf16.mxu0 0
  %556 = vmatpush2.bf16.msra.mxu0 0
  %557 = vmatprep.subr.bf16.mxu0 0
  %558 = vmatpush2.bf16.msra.mxu0 0
  %559 = vmatprep.subr.bf16.mxu0 0
  %560 = vmatpush2.bf16.msra.mxu0 0
  %561 = vmatprep.subr.bf16.mxu0 0
  %562 = vmatpush2.bf16.msra.mxu0 0
  %563 = vmatprep.subr.bf16.mxu0 0
  %564 = vmatpush2.bf16.msra.mxu0 0
  %565 = vmatprep.subr.bf16.mxu0 0
  %566 = vmatpush2.bf16.msra.mxu0 0
  %567 = vmatprep.subr.bf16.mxu0 0
  %568 = vmatpush2.bf16.msra.mxu0 0
  %569 = vmatprep.mubr.bf16.mxu0 0
  %570 = vmatmul.mubr.bf16.gmra.mxu0 %v487
  %v571 = vpop.f32.mrf.mxu0
  %v572 = vadd.f32 %v360, %v571
  %v573 = vpop.f32.mrf.mxu0
  %v574 = vpop.f32.mrf.mxu0
  %v575 = vadd.f32 %v363, %v574
  %v576 = vpop.f32.mrf.mxu0
  %577 = vmatprep.mubr.bf16.mxu0 0
  %578 = vmatmul.mubr.bf16.gmra.mxu0 %v490
  %v579 = vpop.f32.mrf.mxu0
  %v580 = vadd.f32 %v368, %v579
  %v581 = vpop.f32.mrf.mxu0
  %v582 = vpop.f32.mrf.mxu0
  %v583 = vadd.f32 %v371, %v582
  %v584 = vpop.f32.mrf.mxu0
  %585 = vmatprep.mubr.bf16.mxu0 0
  %586 = vmatmul.mubr.bf16.gmra.mxu0 %v493
  %v587 = vpop.f32.mrf.mxu0
  %v588 = vadd.f32 %v376, %v587
  %v589 = vpop.f32.mrf.mxu0
  %v590 = vpop.f32.mrf.mxu0
  %v591 = vadd.f32 %v379, %v590
  %v592 = vpop.f32.mrf.mxu0
  %593 = vmatprep.mubr.bf16.mxu0 0
  %594 = vmatmul.mubr.bf16.gmra.mxu0 %v496
  %v595 = vpop.f32.mrf.mxu0
  %v596 = vadd.f32 %v384, %v595
  %v597 = vpop.f32.mrf.mxu0
  %v598 = vpop.f32.mrf.mxu0
  %v599 = vadd.f32 %v387, %v598
  %v600 = vpop.f32.mrf.mxu0
  %601 = vmatprep.mubr.bf16.mxu0 0
  %602 = vmatmul.mubr.bf16.gmra.mxu0 %v499
  %v603 = vpop.f32.mrf.mxu0
  %v604 = vadd.f32 %v392, %v603
  %v605 = vpop.f32.mrf.mxu0
  %v606 = vpop.f32.mrf.mxu0
  %v607 = vadd.f32 %v395, %v606
  %v608 = vpop.f32.mrf.mxu0
  %609 = vmatprep.mubr.bf16.mxu0 0
  %610 = vmatmul.mubr.bf16.gmra.mxu0 %v502
  %v611 = vpop.f32.mrf.mxu0
  %v612 = vadd.f32 %v400, %v611
  %v613 = vpop.f32.mrf.mxu0
  %v614 = vpop.f32.mrf.mxu0
  %v615 = vadd.f32 %v403, %v614
  %v616 = vpop.f32.mrf.mxu0
  %617 = vmatprep.mubr.bf16.mxu0 0
  %618 = vmatmul.mubr.bf16.gmra.mxu0 %v505
  %v619 = vpop.f32.mrf.mxu0
  %v620 = vadd.f32 %v408, %v619
  %v621 = vpop.f32.mrf.mxu0
  %v622 = vpop.f32.mrf.mxu0
  %v623 = vadd.f32 %v411, %v622
  %v624 = vpop.f32.mrf.mxu0
  %625 = vmatprep.mubr.bf16.mxu0 0
  %626 = vmatmul.mubr.bf16.gmra.mxu0 %v508
  %v627 = vpop.f32.mrf.mxu0
  %v628 = vadd.f32 %v416, %v627
  %v629 = vpop.f32.mrf.mxu0
  %v630 = vpop.f32.mrf.mxu0
  %v631 = vadd.f32 %v419, %v630
  %v632 = vpop.f32.mrf.mxu0
  %633 = vmatprep.mubr.bf16.mxu0 0
  %634 = vmatmul.mubr.bf16.gmra.mxu0 %v511
  %v635 = vpop.f32.mrf.mxu0
  %v636 = vadd.f32 %v424, %v635
  %v637 = vpop.f32.mrf.mxu0
  %v638 = vpop.f32.mrf.mxu0
  %v639 = vadd.f32 %v427, %v638
  %v640 = vpop.f32.mrf.mxu0
  %641 = vmatprep.mubr.bf16.mxu0 0
  %642 = vmatmul.mubr.bf16.gmra.mxu0 %v514
  %v643 = vpop.f32.mrf.mxu0
  %v644 = vadd.f32 %v432, %v643
  %v645 = vpop.f32.mrf.mxu0
  %v646 = vpop.f32.mrf.mxu0
  %v647 = vadd.f32 %v435, %v646
  %v648 = vpop.f32.mrf.mxu0
  %649 = vmatprep.mubr.bf16.mxu0 0
  %650 = vmatmul.mubr.bf16.gmra.mxu0 %v517
  %v651 = vpop.f32.mrf.mxu0
  %v652 = vadd.f32 %v440, %v651
  %v653 = vpop.f32.mrf.mxu0
  %v654 = vpop.f32.mrf.mxu0
  %v655 = vadd.f32 %v443, %v654
  %v656 = vpop.f32.mrf.mxu0
  %657 = vmatprep.mubr.bf16.mxu0 0
  %658 = vmatmul.mubr.bf16.gmra.mxu0 %v520
  %v659 = vpop.f32.mrf.mxu0
  %v660 = vadd.f32 %v448, %v659
  %v661 = vpop.f32.mrf.mxu0
  %v662 = vpop.f32.mrf.mxu0
  %v663 = vadd.f32 %v451, %v662
  %v664 = vpop.f32.mrf.mxu0
  %665 = vmatprep.mubr.bf16.mxu0 0
  %666 = vmatmul.mubr.bf16.gmra.mxu0 %v523
  %v667 = vpop.f32.mrf.mxu0
  %v668 = vadd.f32 %v456, %v667
  %v669 = vpop.f32.mrf.mxu0
  %v670 = vpop.f32.mrf.mxu0
  %v671 = vadd.f32 %v459, %v670
  %v672 = vpop.f32.mrf.mxu0
  %673 = vmatprep.mubr.bf16.mxu0 0
  %674 = vmatmul.mubr.bf16.gmra.mxu0 %v526
  %v675 = vpop.f32.mrf.mxu0
  %v676 = vadd.f32 %v464, %v675
  %v677 = vpop.f32.mrf.mxu0
  %v678 = vpop.f32.mrf.mxu0
  %v679 = vadd.f32 %v467, %v678
  %v680 = vpop.f32.mrf.mxu0
  %681 = vmatprep.mubr.bf16.mxu0 0
  %682 = vmatmul.mubr.bf16.gmra.mxu0 %v529
  %v683 = vpop.f32.mrf.mxu0
  %v684 = vadd.f32 %v472, %v683
  %v685 = vpop.f32.mrf.mxu0
  %v686 = vpop.f32.mrf.mxu0
  %v687 = vadd.f32 %v475, %v686
  %v688 = vpop.f32.mrf.mxu0
  %689 = vmatprep.mubr.bf16.mxu0 0
  %690 = vmatmul.mubr.bf16.gmra.mxu0 %v532
  %v691 = vpop.f32.mrf.mxu0
  %v692 = vadd.f32 %v480, %v691
  %v693 = vpop.f32.mrf.mxu0
  %v694 = vpop.f32.mrf.mxu0
  %v695 = vadd.f32 %v483, %v694
  %v696 = vpop.f32.mrf.mxu0
  %697 = vdwg.mxu0
  %v698 = vld [vmem:[#allocation2 + $0x2] sm:$0xff]
  %v699 = vld [vmem:[#allocation2 + $0xa] sm:$0xff]
  %v700 = vld [vmem:[#allocation2 + $0x1a] sm:$0xff]
  %v701 = vld [vmem:[#allocation2 + $0x22] sm:$0xff]
  %v702 = vld [vmem:[#allocation2 + $0x32] sm:$0xff]
  %v703 = vld [vmem:[#allocation2 + $0x3a] sm:$0xff]
  %v704 = vld [vmem:[#allocation2 + $0x4a] sm:$0xff]
  %v705 = vld [vmem:[#allocation2 + $0x52] sm:$0xff]
  %v706 = vld [vmem:[#allocation2 + $0x62] sm:$0xff]
  %v707 = vld [vmem:[#allocation2 + $0x6a] sm:$0xff]
  %v708 = vld [vmem:[#allocation2 + $0x7a] sm:$0xff]
  %v709 = vld [vmem:[#allocation2 + $0x82] sm:$0xff]
  %v710 = vld [vmem:[#allocation2 + $0x92] sm:$0xff]
  %v711 = vld [vmem:[#allocation2 + $0x9a] sm:$0xff]
  %v712 = vld [vmem:[#allocation2 + $0xaa] sm:$0xff]
  %v713 = vld [vmem:[#allocation2 + $0xb2] sm:$0xff]
  %v714 = vld [vmem:[#allocation2 + $0xc2] sm:$0xff]
  %v715 = vld [vmem:[#allocation2 + $0xca] sm:$0xff]
  %v716 = vld [vmem:[#allocation2 + $0xda] sm:$0xff]
  %v717 = vld [vmem:[#allocation2 + $0xe2] sm:$0xff]
  %v718 = vld [vmem:[#allocation2 + $0xf2] sm:$0xff]
  %v719 = vld [vmem:[#allocation2 + $0xfa] sm:$0xff]
  %v720 = vld [vmem:[#allocation2 + $0x10a] sm:$0xff]
  %v721 = vld [vmem:[#allocation2 + $0x112] sm:$0xff]
  %v722 = vld [vmem:[#allocation2 + $0x122] sm:$0xff]
  %v723 = vld [vmem:[#allocation2 + $0x12a] sm:$0xff]
  %v724 = vld [vmem:[#allocation2 + $0x13a] sm:$0xff]
  %v725 = vld [vmem:[#allocation2 + $0x142] sm:$0xff]
  %v726 = vld [vmem:[#allocation2 + $0x152] sm:$0xff]
  %v727 = vld [vmem:[#allocation2 + $0x15a] sm:$0xff]
  %v728 = vld [vmem:[#allocation2 + $0x16a] sm:$0xff]
  %v729 = vld [vmem:[#allocation2 + $0x172] sm:$0xff]
  %v730 = vpack.c.bf16 %v699, %v698
  %v731 = vpack.c.bf16 %v701, %v700
  %v732 = vpack.c.bf16 %v703, %v702
  %v733 = vpack.c.bf16 %v705, %v704
  %v734 = vpack.c.bf16 %v707, %v706
  %v735 = vpack.c.bf16 %v709, %v708
  %v736 = vpack.c.bf16 %v711, %v710
  %v737 = vpack.c.bf16 %v713, %v712
  %v738 = vpack.c.bf16 %v715, %v714
  %v739 = vpack.c.bf16 %v717, %v716
  %v740 = vpack.c.bf16 %v719, %v718
  %v741 = vpack.c.bf16 %v721, %v720
  %v742 = vpack.c.bf16 %v723, %v722
  %v743 = vpack.c.bf16 %v725, %v724
  %v744 = vpack.c.bf16 %v727, %v726
  %v745 = vpack.c.bf16 %v729, %v728
  %s746 = scalar_lea.vmem %s1, 4
  %v747 = vld [vmem:[%s746] sm:$0x3]
  %v749 = vsel %vm21, %v730, 0
  %v752 = vsel %vm21, %v731, 0
  %v755 = vsel %vm21, %v732, 0
  %v758 = vsel %vm21, %v733, 0
  %v761 = vsel %vm21, %v734, 0
  %v764 = vsel %vm21, %v735, 0
  %v767 = vsel %vm21, %v736, 0
  %v770 = vsel %vm21, %v737, 0
  %v773 = vsel %vm21, %v738, 0
  %v776 = vsel %vm21, %v739, 0
  %v779 = vsel %vm21, %v740, 0
  %v782 = vsel %vm21, %v741, 0
  %v785 = vsel %vm21, %v742, 0
  %v788 = vsel %vm21, %v743, 0
  %v791 = vsel %vm21, %v744, 0
  %v794 = vsel %vm21, %v745, 0
  %v797 = vand.u32 %v747, %v321
  %799 = vmatprep.subr.bf16.mxu0 0
  %800 = vmatpush1.bf16.msra.mxu0 0
  %801 = vmatprep.subr.bf16.mxu0 0
  %802 = vmatpush1.bf16.msra.mxu0 0
  %803 = vmatprep.subr.bf16.mxu0 0
  %804 = vmatpush1.bf16.msra.mxu0 0
  %805 = vmatprep.subr.bf16.mxu0 0
  %806 = vmatpush1.bf16.msra.mxu0 0
  %807 = vmatprep.subr.bf16.mxu0 0
  %808 = vmatpush1.bf16.msra.mxu0 0
  %809 = vmatprep.subr.bf16.mxu0 0
  %810 = vmatpush1.bf16.msra.mxu0 0
  %811 = vmatprep.subr.bf16.mxu0 0
  %812 = vmatpush1.bf16.msra.mxu0 0
  %813 = vmatprep.subr.bf16.mxu0 0
  %814 = vmatpush1.bf16.msra.mxu0 %v797
  %815 = vmatprep.subr.bf16.mxu0 0
  %816 = vmatpush2.bf16.msra.mxu0 0
  %817 = vmatprep.subr.bf16.mxu0 0
  %818 = vmatpush2.bf16.msra.mxu0 0
  %819 = vmatprep.subr.bf16.mxu0 0
  %820 = vmatpush2.bf16.msra.mxu0 0
  %821 = vmatprep.subr.bf16.mxu0 0
  %822 = vmatpush2.bf16.msra.mxu0 0
  %823 = vmatprep.subr.bf16.mxu0 0
  %824 = vmatpush2.bf16.msra.mxu0 0
  %825 = vmatprep.subr.bf16.mxu0 0
  %826 = vmatpush2.bf16.msra.mxu0 0
  %827 = vmatprep.subr.bf16.mxu0 0
  %828 = vmatpush2.bf16.msra.mxu0 0
  %829 = vmatprep.subr.bf16.mxu0 0
  %830 = vmatpush2.bf16.msra.mxu0 0
  %831 = vmatprep.mubr.bf16.mxu0 0
  %832 = vmatmul.mubr.bf16.gmra.mxu0 %v749
  %v833 = vpop.f32.mrf.mxu0
  %v834 = vadd.f32 0.0, %v833
  %v835 = vpop.f32.mrf.mxu0
  %v836 = vpop.f32.mrf.mxu0
  %v837 = vadd.f32 0.0, %v836
  %v838 = vpop.f32.mrf.mxu0
  %839 = vmatprep.mubr.bf16.mxu0 0
  %840 = vmatmul.mubr.bf16.gmra.mxu0 %v752
  %v841 = vpop.f32.mrf.mxu0
  %v842 = vadd.f32 0.0, %v841
  %v843 = vpop.f32.mrf.mxu0
  %v844 = vpop.f32.mrf.mxu0
  %v845 = vadd.f32 0.0, %v844
  %v846 = vpop.f32.mrf.mxu0
  %847 = vmatprep.mubr.bf16.mxu0 0
  %848 = vmatmul.mubr.bf16.gmra.mxu0 %v755
  %v849 = vpop.f32.mrf.mxu0
  %v850 = vadd.f32 0.0, %v849
  %v851 = vpop.f32.mrf.mxu0
  %v852 = vpop.f32.mrf.mxu0
  %v853 = vadd.f32 0.0, %v852
  %v854 = vpop.f32.mrf.mxu0
  %855 = vmatprep.mubr.bf16.mxu0 0
  %856 = vmatmul.mubr.bf16.gmra.mxu0 %v758
  %v857 = vpop.f32.mrf.mxu0
  %v858 = vadd.f32 0.0, %v857
  %v859 = vpop.f32.mrf.mxu0
  %v860 = vpop.f32.mrf.mxu0
  %v861 = vadd.f32 0.0, %v860
  %v862 = vpop.f32.mrf.mxu0
  %863 = vmatprep.mubr.bf16.mxu0 0
  %864 = vmatmul.mubr.bf16.gmra.mxu0 %v761
  %v865 = vpop.f32.mrf.mxu0
  %v866 = vadd.f32 0.0, %v865
  %v867 = vpop.f32.mrf.mxu0
  %v868 = vpop.f32.mrf.mxu0
  %v869 = vadd.f32 0.0, %v868
  %v870 = vpop.f32.mrf.mxu0
  %871 = vmatprep.mubr.bf16.mxu0 0
  %872 = vmatmul.mubr.bf16.gmra.mxu0 %v764
  %v873 = vpop.f32.mrf.mxu0
  %v874 = vadd.f32 0.0, %v873
  %v875 = vpop.f32.mrf.mxu0
  %v876 = vpop.f32.mrf.mxu0
  %v877 = vadd.f32 0.0, %v876
  %v878 = vpop.f32.mrf.mxu0
  %879 = vmatprep.mubr.bf16.mxu0 0
  %880 = vmatmul.mubr.bf16.gmra.mxu0 %v767
  %v881 = vpop.f32.mrf.mxu0
  %v882 = vadd.f32 0.0, %v881
  %v883 = vpop.f32.mrf.mxu0
  %v884 = vpop.f32.mrf.mxu0
  %v885 = vadd.f32 0.0, %v884
  %v886 = vpop.f32.mrf.mxu0
  %887 = vmatprep.mubr.bf16.mxu0 0
  %888 = vmatmul.mubr.bf16.gmra.mxu0 %v770
  %v889 = vpop.f32.mrf.mxu0
  %v890 = vadd.f32 0.0, %v889
  %v891 = vpop.f32.mrf.mxu0
  %v892 = vpop.f32.mrf.mxu0
  %v893 = vadd.f32 0.0, %v892
  %v894 = vpop.f32.mrf.mxu0
  %895 = vmatprep.mubr.bf16.mxu0 0
  %896 = vmatmul.mubr.bf16.gmra.mxu0 %v773
  %v897 = vpop.f32.mrf.mxu0
  %v898 = vadd.f32 0.0, %v897
  %v899 = vpop.f32.mrf.mxu0
  %v900 = vpop.f32.mrf.mxu0
  %v901 = vadd.f32 0.0, %v900
  %v902 = vpop.f32.mrf.mxu0
  %903 = vmatprep.mubr.bf16.mxu0 0
  %904 = vmatmul.mubr.bf16.gmra.mxu0 %v776
  %v905 = vpop.f32.mrf.mxu0
  %v906 = vadd.f32 0.0, %v905
  %v907 = vpop.f32.mrf.mxu0
  %v908 = vpop.f32.mrf.mxu0
  %v909 = vadd.f32 0.0, %v908
  %v910 = vpop.f32.mrf.mxu0
  %911 = vmatprep.mubr.bf16.mxu0 0
  %912 = vmatmul.mubr.bf16.gmra.mxu0 %v779
  %v913 = vpop.f32.mrf.mxu0
  %v914 = vadd.f32 0.0, %v913
  %v915 = vpop.f32.mrf.mxu0
  %v916 = vpop.f32.mrf.mxu0
  %v917 = vadd.f32 0.0, %v916
  %v918 = vpop.f32.mrf.mxu0
  %919 = vmatprep.mubr.bf16.mxu0 0
  %920 = vmatmul.mubr.bf16.gmra.mxu0 %v782
  %v921 = vpop.f32.mrf.mxu0
  %v922 = vadd.f32 0.0, %v921
  %v923 = vpop.f32.mrf.mxu0
  %v924 = vpop.f32.mrf.mxu0
  %v925 = vadd.f32 0.0, %v924
  %v926 = vpop.f32.mrf.mxu0
  %927 = vmatprep.mubr.bf16.mxu0 0
  %928 = vmatmul.mubr.bf16.gmra.mxu0 %v785
  %v929 = vpop.f32.mrf.mxu0
  %v930 = vadd.f32 0.0, %v929
  %v931 = vpop.f32.mrf.mxu0
  %v932 = vpop.f32.mrf.mxu0
  %v933 = vadd.f32 0.0, %v932
  %v934 = vpop.f32.mrf.mxu0
  %935 = vmatprep.mubr.bf16.mxu0 0
  %936 = vmatmul.mubr.bf16.gmra.mxu0 %v788
  %v937 = vpop.f32.mrf.mxu0
  %v938 = vadd.f32 0.0, %v937
  %v939 = vpop.f32.mrf.mxu0
  %v940 = vpop.f32.mrf.mxu0
  %v941 = vadd.f32 0.0, %v940
  %v942 = vpop.f32.mrf.mxu0
  %943 = vmatprep.mubr.bf16.mxu0 0
  %944 = vmatmul.mubr.bf16.gmra.mxu0 %v791
  %v945 = vpop.f32.mrf.mxu0
  %v946 = vadd.f32 0.0, %v945
  %v947 = vpop.f32.mrf.mxu0
  %v948 = vpop.f32.mrf.mxu0
  %v949 = vadd.f32 0.0, %v948
  %v950 = vpop.f32.mrf.mxu0
  %951 = vmatprep.mubr.bf16.mxu0 0
  %952 = vmatmul.mubr.bf16.gmra.mxu0 %v794
  %v953 = vpop.f32.mrf.mxu0
  %v954 = vadd.f32 0.0, %v953
  %v955 = vpop.f32.mrf.mxu0
  %v956 = vpop.f32.mrf.mxu0
  %v957 = vadd.f32 0.0, %v956
  %v958 = vpop.f32.mrf.mxu0
  %959 = vdwg.mxu0
  %v960 = vadd.f32 %v572, %v834
  %v961 = vadd.f32 %v575, %v837
  %v962 = vadd.f32 %v580, %v842
  %v963 = vadd.f32 %v583, %v845
  %v964 = vadd.f32 %v588, %v850
  %v965 = vadd.f32 %v591, %v853
  %v966 = vadd.f32 %v596, %v858
  %v967 = vadd.f32 %v599, %v861
  %v968 = vadd.f32 %v604, %v866
  %v969 = vadd.f32 %v607, %v869
  %v970 = vadd.f32 %v612, %v874
  %v971 = vadd.f32 %v615, %v877
  %v972 = vadd.f32 %v620, %v882
  %v973 = vadd.f32 %v623, %v885
  %v974 = vadd.f32 %v628, %v890
  %v975 = vadd.f32 %v631, %v893
  %v976 = vadd.f32 %v636, %v898
  %v977 = vadd.f32 %v639, %v901
  %v978 = vadd.f32 %v644, %v906
  %v979 = vadd.f32 %v647, %v909
  %v980 = vadd.f32 %v652, %v914
  %v981 = vadd.f32 %v655, %v917
  %v982 = vadd.f32 %v660, %v922
  %v983 = vadd.f32 %v663, %v925
  %v984 = vadd.f32 %v668, %v930
  %v985 = vadd.f32 %v671, %v933
  %v986 = vadd.f32 %v676, %v938
  %v987 = vadd.f32 %v679, %v941
  %v988 = vadd.f32 %v684, %v946
  %v989 = vadd.f32 %v687, %v949
  %v990 = vadd.f32 %v692, %v954
  %v991 = vadd.f32 %v695, %v957
  %v992 = vld [vmem:[%s30] sm:$0xff]
  %v993 = vld [vmem:[%s30 + $0x8] sm:$0xff]
  %v994 = vld [vmem:[%s30 + $0x18] sm:$0xff]
  %v995 = vld [vmem:[%s30 + $0x20] sm:$0xff]
  %v996 = vld [vmem:[%s30 + $0x30] sm:$0xff]
  %v997 = vld [vmem:[%s30 + $0x38] sm:$0xff]
  %v998 = vld [vmem:[%s30 + $0x48] sm:$0xff]
  %v999 = vld [vmem:[%s30 + $0x50] sm:$0xff]
  %v1000 = vld [vmem:[%s30 + $0x60] sm:$0xff]
  %v1001 = vld [vmem:[%s30 + $0x68] sm:$0xff]
  %v1002 = vld [vmem:[%s30 + $0x78] sm:$0xff]
  %v1003 = vld [vmem:[%s30 + $0x80] sm:$0xff]
  %v1004 = vld [vmem:[%s30 + $0x90] sm:$0xff]
  %v1005 = vld [vmem:[%s30 + $0x98] sm:$0xff]
  %v1006 = vld [vmem:[%s30 + $0xa8] sm:$0xff]
  %v1007 = vld [vmem:[%s30 + $0xb0] sm:$0xff]
  %v1008 = vld [vmem:[%s30 + $0xc0] sm:$0xff]
  %v1009 = vld [vmem:[%s30 + $0xc8] sm:$0xff]
  %v1010 = vld [vmem:[%s30 + $0xd8] sm:$0xff]
  %v1011 = vld [vmem:[%s30 + $0xe0] sm:$0xff]
  %v1012 = vld [vmem:[%s30 + $0xf0] sm:$0xff]
  %v1013 = vld [vmem:[%s30 + $0xf8] sm:$0xff]
  %v1014 = vld [vmem:[%s30 + $0x108] sm:$0xff]
  %v1015 = vld [vmem:[%s30 + $0x110] sm:$0xff]
  %v1016 = vld [vmem:[%s30 + $0x120] sm:$0xff]
  %v1017 = vld [vmem:[%s30 + $0x128] sm:$0xff]
  %v1018 = vld [vmem:[%s30 + $0x138] sm:$0xff]
  %v1019 = vld [vmem:[%s30 + $0x140] sm:$0xff]
  %v1020 = vld [vmem:[%s30 + $0x150] sm:$0xff]
  %v1021 = vld [vmem:[%s30 + $0x158] sm:$0xff]
  %v1022 = vld [vmem:[%s30 + $0x168] sm:$0xff]
  %v1023 = vld [vmem:[%s30 + $0x170] sm:$0xff]
  %v1024 = vpack.c.bf16 %v993, %v992
  %v1025 = vpack.c.bf16 %v995, %v994
  %v1026 = vpack.c.bf16 %v997, %v996
  %v1027 = vpack.c.bf16 %v999, %v998
  %v1028 = vpack.c.bf16 %v1001, %v1000
  %v1029 = vpack.c.bf16 %v1003, %v1002
  %v1030 = vpack.c.bf16 %v1005, %v1004
  %v1031 = vpack.c.bf16 %v1007, %v1006
  %v1032 = vpack.c.bf16 %v1009, %v1008
  %v1033 = vpack.c.bf16 %v1011, %v1010
  %v1034 = vpack.c.bf16 %v1013, %v1012
  %v1035 = vpack.c.bf16 %v1015, %v1014
  %v1036 = vpack.c.bf16 %v1017, %v1016
  %v1037 = vpack.c.bf16 %v1019, %v1018
  %v1038 = vpack.c.bf16 %v1021, %v1020
  %v1039 = vpack.c.bf16 %v1023, %v1022
  %s1040 = scalar_lea.vmem %s1, 6
  %v1041 = vld [vmem:[%s1040] sm:$0x3]
  %v1043 = vsel %vm21, %v1024, 0
  %v1046 = vsel %vm21, %v1025, 0
  %v1049 = vsel %vm21, %v1026, 0
  %v1052 = vsel %vm21, %v1027, 0
  %v1055 = vsel %vm21, %v1028, 0
  %v1058 = vsel %vm21, %v1029, 0
  %v1061 = vsel %vm21, %v1030, 0
  %v1064 = vsel %vm21, %v1031, 0
  %v1067 = vsel %vm21, %v1032, 0
  %v1070 = vsel %vm21, %v1033, 0
  %v1073 = vsel %vm21, %v1034, 0
  %v1076 = vsel %vm21, %v1035, 0
  %v1079 = vsel %vm21, %v1036, 0
  %v1082 = vsel %vm21, %v1037, 0
  %v1085 = vsel %vm21, %v1038, 0
  %v1088 = vsel %vm21, %v1039, 0
  %v1091 = vand.u32 %v1041, %v321
  %1093 = vmatprep.subr.bf16.mxu0 0
  %1094 = vmatpush1.bf16.msra.mxu0 0
  %1095 = vmatprep.subr.bf16.mxu0 0
  %1096 = vmatpush1.bf16.msra.mxu0 0
  %1097 = vmatprep.subr.bf16.mxu0 0
  %1098 = vmatpush1.bf16.msra.mxu0 0
  %1099 = vmatprep.subr.bf16.mxu0 0
  %1100 = vmatpush1.bf16.msra.mxu0 0
  %1101 = vmatprep.subr.bf16.mxu0 0
  %1102 = vmatpush1.bf16.msra.mxu0 0
  %1103 = vmatprep.subr.bf16.mxu0 0
  %1104 = vmatpush1.bf16.msra.mxu0 0
  %1105 = vmatprep.subr.bf16.mxu0 0
  %1106 = vmatpush1.bf16.msra.mxu0 0
  %1107 = vmatprep.subr.bf16.mxu0 0
  %1108 = vmatpush1.bf16.msra.mxu0 %v1091
  %1109 = vmatprep.subr.bf16.mxu0 0
  %1110 = vmatpush2.bf16.msra.mxu0 0
  %1111 = vmatprep.subr.bf16.mxu0 0
  %1112 = vmatpush2.bf16.msra.mxu0 0
  %1113 = vmatprep.subr.bf16.mxu0 0
  %1114 = vmatpush2.bf16.msra.mxu0 0
  %1115 = vmatprep.subr.bf16.mxu0 0
  %1116 = vmatpush2.bf16.msra.mxu0 0
  %1117 = vmatprep.subr.bf16.mxu0 0
  %1118 = vmatpush2.bf16.msra.mxu0 0
  %1119 = vmatprep.subr.bf16.mxu0 0
  %1120 = vmatpush2.bf16.msra.mxu0 0
  %1121 = vmatprep.subr.bf16.mxu0 0
  %1122 = vmatpush2.bf16.msra.mxu0 0
  %1123 = vmatprep.subr.bf16.mxu0 0
  %1124 = vmatpush2.bf16.msra.mxu0 0
  %1125 = vmatprep.mubr.bf16.mxu0 0
  %1126 = vmatmul.mubr.bf16.gmra.mxu0 %v1043
  %v1127 = vpop.f32.mrf.mxu0
  %v1128 = vadd.f32 0.0, %v1127
  %v1129 = vpop.f32.mrf.mxu0
  %v1130 = vpop.f32.mrf.mxu0
  %v1131 = vadd.f32 0.0, %v1130
  %v1132 = vpop.f32.mrf.mxu0
  %1133 = vmatprep.mubr.bf16.mxu0 0
  %1134 = vmatmul.mubr.bf16.gmra.mxu0 %v1046
  %v1135 = vpop.f32.mrf.mxu0
  %v1136 = vadd.f32 0.0, %v1135
  %v1137 = vpop.f32.mrf.mxu0
  %v1138 = vpop.f32.mrf.mxu0
  %v1139 = vadd.f32 0.0, %v1138
  %v1140 = vpop.f32.mrf.mxu0
  %1141 = vmatprep.mubr.bf16.mxu0 0
  %1142 = vmatmul.mubr.bf16.gmra.mxu0 %v1049
  %v1143 = vpop.f32.mrf.mxu0
  %v1144 = vadd.f32 0.0, %v1143
  %v1145 = vpop.f32.mrf.mxu0
  %v1146 = vpop.f32.mrf.mxu0
  %v1147 = vadd.f32 0.0, %v1146
  %v1148 = vpop.f32.mrf.mxu0
  %1149 = vmatprep.mubr.bf16.mxu0 0
  %1150 = vmatmul.mubr.bf16.gmra.mxu0 %v1052
  %v1151 = vpop.f32.mrf.mxu0
  %v1152 = vadd.f32 0.0, %v1151
  %v1153 = vpop.f32.mrf.mxu0
  %v1154 = vpop.f32.mrf.mxu0
  %v1155 = vadd.f32 0.0, %v1154
  %v1156 = vpop.f32.mrf.mxu0
  %1157 = vmatprep.mubr.bf16.mxu0 0
  %1158 = vmatmul.mubr.bf16.gmra.mxu0 %v1055
  %v1159 = vpop.f32.mrf.mxu0
  %v1160 = vadd.f32 0.0, %v1159
  %v1161 = vpop.f32.mrf.mxu0
  %v1162 = vpop.f32.mrf.mxu0
  %v1163 = vadd.f32 0.0, %v1162
  %v1164 = vpop.f32.mrf.mxu0
  %1165 = vmatprep.mubr.bf16.mxu0 0
  %1166 = vmatmul.mubr.bf16.gmra.mxu0 %v1058
  %v1167 = vpop.f32.mrf.mxu0
  %v1168 = vadd.f32 0.0, %v1167
  %v1169 = vpop.f32.mrf.mxu0
  %v1170 = vpop.f32.mrf.mxu0
  %v1171 = vadd.f32 0.0, %v1170
  %v1172 = vpop.f32.mrf.mxu0
  %1173 = vmatprep.mubr.bf16.mxu0 0
  %1174 = vmatmul.mubr.bf16.gmra.mxu0 %v1061
  %v1175 = vpop.f32.mrf.mxu0
  %v1176 = vadd.f32 0.0, %v1175
  %v1177 = vpop.f32.mrf.mxu0
  %v1178 = vpop.f32.mrf.mxu0
  %v1179 = vadd.f32 0.0, %v1178
  %v1180 = vpop.f32.mrf.mxu0
  %1181 = vmatprep.mubr.bf16.mxu0 0
  %1182 = vmatmul.mubr.bf16.gmra.mxu0 %v1064
  %v1183 = vpop.f32.mrf.mxu0
  %v1184 = vadd.f32 0.0, %v1183
  %v1185 = vpop.f32.mrf.mxu0
  %v1186 = vpop.f32.mrf.mxu0
  %v1187 = vadd.f32 0.0, %v1186
  %v1188 = vpop.f32.mrf.mxu0
  %1189 = vmatprep.mubr.bf16.mxu0 0
  %1190 = vmatmul.mubr.bf16.gmra.mxu0 %v1067
  %v1191 = vpop.f32.mrf.mxu0
  %v1192 = vadd.f32 0.0, %v1191
  %v1193 = vpop.f32.mrf.mxu0
  %v1194 = vpop.f32.mrf.mxu0
  %v1195 = vadd.f32 0.0, %v1194
  %v1196 = vpop.f32.mrf.mxu0
  %1197 = vmatprep.mubr.bf16.mxu0 0
  %1198 = vmatmul.mubr.bf16.gmra.mxu0 %v1070
  %v1199 = vpop.f32.mrf.mxu0
  %v1200 = vadd.f32 0.0, %v1199
  %v1201 = vpop.f32.mrf.mxu0
  %v1202 = vpop.f32.mrf.mxu0
  %v1203 = vadd.f32 0.0, %v1202
  %v1204 = vpop.f32.mrf.mxu0
  %1205 = vmatprep.mubr.bf16.mxu0 0
  %1206 = vmatmul.mubr.bf16.gmra.mxu0 %v1073
  %v1207 = vpop.f32.mrf.mxu0
  %v1208 = vadd.f32 0.0, %v1207
  %v1209 = vpop.f32.mrf.mxu0
  %v1210 = vpop.f32.mrf.mxu0
  %v1211 = vadd.f32 0.0, %v1210
  %v1212 = vpop.f32.mrf.mxu0
  %1213 = vmatprep.mubr.bf16.mxu0 0
  %1214 = vmatmul.mubr.bf16.gmra.mxu0 %v1076
  %v1215 = vpop.f32.mrf.mxu0
  %v1216 = vadd.f32 0.0, %v1215
  %v1217 = vpop.f32.mrf.mxu0
  %v1218 = vpop.f32.mrf.mxu0
  %v1219 = vadd.f32 0.0, %v1218
  %v1220 = vpop.f32.mrf.mxu0
  %1221 = vmatprep.mubr.bf16.mxu0 0
  %1222 = vmatmul.mubr.bf16.gmra.mxu0 %v1079
  %v1223 = vpop.f32.mrf.mxu0
  %v1224 = vadd.f32 0.0, %v1223
  %v1225 = vpop.f32.mrf.mxu0
  %v1226 = vpop.f32.mrf.mxu0
  %v1227 = vadd.f32 0.0, %v1226
  %v1228 = vpop.f32.mrf.mxu0
  %1229 = vmatprep.mubr.bf16.mxu0 0
  %1230 = vmatmul.mubr.bf16.gmra.mxu0 %v1082
  %v1231 = vpop.f32.mrf.mxu0
  %v1232 = vadd.f32 0.0, %v1231
  %v1233 = vpop.f32.mrf.mxu0
  %v1234 = vpop.f32.mrf.mxu0
  %v1235 = vadd.f32 0.0, %v1234
  %v1236 = vpop.f32.mrf.mxu0
  %1237 = vmatprep.mubr.bf16.mxu0 0
  %1238 = vmatmul.mubr.bf16.gmra.mxu0 %v1085
  %v1239 = vpop.f32.mrf.mxu0
  %v1240 = vadd.f32 0.0, %v1239
  %v1241 = vpop.f32.mrf.mxu0
  %v1242 = vpop.f32.mrf.mxu0
  %v1243 = vadd.f32 0.0, %v1242
  %v1244 = vpop.f32.mrf.mxu0
  %1245 = vmatprep.mubr.bf16.mxu0 0
  %1246 = vmatmul.mubr.bf16.gmra.mxu0 %v1088
  %v1247 = vpop.f32.mrf.mxu0
  %v1248 = vadd.f32 0.0, %v1247
  %v1249 = vpop.f32.mrf.mxu0
  %v1250 = vpop.f32.mrf.mxu0
  %v1251 = vadd.f32 0.0, %v1250
  %v1252 = vpop.f32.mrf.mxu0
  %1253 = vdwg.mxu0
  %v1254 = vadd.f32 %v960, %v1128
  %v1255 = vadd.f32 %v961, %v1131
  %v1256 = vadd.f32 %v962, %v1136
  %v1257 = vadd.f32 %v963, %v1139
  %v1258 = vadd.f32 %v964, %v1144
  %v1259 = vadd.f32 %v965, %v1147
  %v1260 = vadd.f32 %v966, %v1152
  %v1261 = vadd.f32 %v967, %v1155
  %v1262 = vadd.f32 %v968, %v1160
  %v1263 = vadd.f32 %v969, %v1163
  %v1264 = vadd.f32 %v970, %v1168
  %v1265 = vadd.f32 %v971, %v1171
  %v1266 = vadd.f32 %v972, %v1176
  %v1267 = vadd.f32 %v973, %v1179
  %v1268 = vadd.f32 %v974, %v1184
  %v1269 = vadd.f32 %v975, %v1187
  %v1270 = vadd.f32 %v976, %v1192
  %v1271 = vadd.f32 %v977, %v1195
  %v1272 = vadd.f32 %v978, %v1200
  %v1273 = vadd.f32 %v979, %v1203
  %v1274 = vadd.f32 %v980, %v1208
  %v1275 = vadd.f32 %v981, %v1211
  %v1276 = vadd.f32 %v982, %v1216
  %v1277 = vadd.f32 %v983, %v1219
  %v1278 = vadd.f32 %v984, %v1224
  %v1279 = vadd.f32 %v985, %v1227
  %v1280 = vadd.f32 %v986, %v1232
  %v1281 = vadd.f32 %v987, %v1235
  %v1282 = vadd.f32 %v988, %v1240
  %v1283 = vadd.f32 %v989, %v1243
  %v1284 = vadd.f32 %v990, %v1248
  %v1285 = vadd.f32 %v991, %v1251
  %v1286 = vld [vmem:[%s30 + $0x1] sm:$0xff]
  %v1287 = vld [vmem:[%s30 + $0x9] sm:$0xff]
  %v1288 = vld [vmem:[%s30 + $0x19] sm:$0xff]
  %v1289 = vld [vmem:[%s30 + $0x21] sm:$0xff]
  %v1290 = vld [vmem:[%s30 + $0x31] sm:$0xff]
  %v1291 = vld [vmem:[%s30 + $0x39] sm:$0xff]
  %v1292 = vld [vmem:[%s30 + $0x49] sm:$0xff]
  %v1293 = vld [vmem:[%s30 + $0x51] sm:$0xff]
  %v1294 = vld [vmem:[%s30 + $0x61] sm:$0xff]
  %v1295 = vld [vmem:[%s30 + $0x69] sm:$0xff]
  %v1296 = vld [vmem:[%s30 + $0x79] sm:$0xff]
  %v1297 = vld [vmem:[%s30 + $0x81] sm:$0xff]
  %v1298 = vld [vmem:[%s30 + $0x91] sm:$0xff]
  %v1299 = vld [vmem:[%s30 + $0x99] sm:$0xff]
  %v1300 = vld [vmem:[%s30 + $0xa9] sm:$0xff]
  %v1301 = vld [vmem:[%s30 + $0xb1] sm:$0xff]
  %v1302 = vld [vmem:[%s30 + $0xc1] sm:$0xff]
  %v1303 = vld [vmem:[%s30 + $0xc9] sm:$0xff]
  %v1304 = vld [vmem:[%s30 + $0xd9] sm:$0xff]
  %v1305 = vld [vmem:[%s30 + $0xe1] sm:$0xff]
  %v1306 = vld [vmem:[%s30 + $0xf1] sm:$0xff]
  %v1307 = vld [vmem:[%s30 + $0xf9] sm:$0xff]
  %v1308 = vld [vmem:[%s30 + $0x109] sm:$0xff]
  %v1309 = vld [vmem:[%s30 + $0x111] sm:$0xff]
  %v1310 = vld [vmem:[%s30 + $0x121] sm:$0xff]
  %v1311 = vld [vmem:[%s30 + $0x129] sm:$0xff]
  %v1312 = vld [vmem:[%s30 + $0x139] sm:$0xff]
  %v1313 = vld [vmem:[%s30 + $0x141] sm:$0xff]
  %v1314 = vld [vmem:[%s30 + $0x151] sm:$0xff]
  %v1315 = vld [vmem:[%s30 + $0x159] sm:$0xff]
  %v1316 = vld [vmem:[%s30 + $0x169] sm:$0xff]
  %v1317 = vld [vmem:[%s30 + $0x171] sm:$0xff]
  %v1318 = vpack.c.bf16 %v1287, %v1286
  %v1319 = vpack.c.bf16 %v1289, %v1288
  %v1320 = vpack.c.bf16 %v1291, %v1290
  %v1321 = vpack.c.bf16 %v1293, %v1292
  %v1322 = vpack.c.bf16 %v1295, %v1294
  %v1323 = vpack.c.bf16 %v1297, %v1296
  %v1324 = vpack.c.bf16 %v1299, %v1298
  %v1325 = vpack.c.bf16 %v1301, %v1300
  %v1326 = vpack.c.bf16 %v1303, %v1302
  %v1327 = vpack.c.bf16 %v1305, %v1304
  %v1328 = vpack.c.bf16 %v1307, %v1306
  %v1329 = vpack.c.bf16 %v1309, %v1308
  %v1330 = vpack.c.bf16 %v1311, %v1310
  %v1331 = vpack.c.bf16 %v1313, %v1312
  %v1332 = vpack.c.bf16 %v1315, %v1314
  %v1333 = vpack.c.bf16 %v1317, %v1316
  %s1334 = scalar_lea.vmem %s1, 8
  %v1335 = vld [vmem:[%s1334] sm:$0x3]
  %v1337 = vsel %vm21, %v1318, 0
  %v1340 = vsel %vm21, %v1319, 0
  %v1343 = vsel %vm21, %v1320, 0
  %v1346 = vsel %vm21, %v1321, 0
  %v1349 = vsel %vm21, %v1322, 0
  %v1352 = vsel %vm21, %v1323, 0
  %v1355 = vsel %vm21, %v1324, 0
  %v1358 = vsel %vm21, %v1325, 0
  %v1361 = vsel %vm21, %v1326, 0
  %v1364 = vsel %vm21, %v1327, 0
  %v1367 = vsel %vm21, %v1328, 0
  %v1370 = vsel %vm21, %v1329, 0
  %v1373 = vsel %vm21, %v1330, 0
  %v1376 = vsel %vm21, %v1331, 0
  %v1379 = vsel %vm21, %v1332, 0
  %v1382 = vsel %vm21, %v1333, 0
  %v1385 = vand.u32 %v1335, %v321
  %1387 = vmatprep.subr.bf16.mxu0 0
  %1388 = vmatpush1.bf16.msra.mxu0 0
  %1389 = vmatprep.subr.bf16.mxu0 0
  %1390 = vmatpush1.bf16.msra.mxu0 0
  %1391 = vmatprep.subr.bf16.mxu0 0
  %1392 = vmatpush1.bf16.msra.mxu0 0
  %1393 = vmatprep.subr.bf16.mxu0 0
  %1394 = vmatpush1.bf16.msra.mxu0 0
  %1395 = vmatprep.subr.bf16.mxu0 0
  %1396 = vmatpush1.bf16.msra.mxu0 0
  %1397 = vmatprep.subr.bf16.mxu0 0
  %1398 = vmatpush1.bf16.msra.mxu0 0
  %1399 = vmatprep.subr.bf16.mxu0 0
  %1400 = vmatpush1.bf16.msra.mxu0 0
  %1401 = vmatprep.subr.bf16.mxu0 0
  %1402 = vmatpush1.bf16.msra.mxu0 %v1385
  %1403 = vmatprep.subr.bf16.mxu0 0
  %1404 = vmatpush2.bf16.msra.mxu0 0
  %1405 = vmatprep.subr.bf16.mxu0 0
  %1406 = vmatpush2.bf16.msra.mxu0 0
  %1407 = vmatprep.subr.bf16.mxu0 0
  %1408 = vmatpush2.bf16.msra.mxu0 0
  %1409 = vmatprep.subr.bf16.mxu0 0
  %1410 = vmatpush2.bf16.msra.mxu0 0
  %1411 = vmatprep.subr.bf16.mxu0 0
  %1412 = vmatpush2.bf16.msra.mxu0 0
  %1413 = vmatprep.subr.bf16.mxu0 0
  %1414 = vmatpush2.bf16.msra.mxu0 0
  %1415 = vmatprep.subr.bf16.mxu0 0
  %1416 = vmatpush2.bf16.msra.mxu0 0
  %1417 = vmatprep.subr.bf16.mxu0 0
  %1418 = vmatpush2.bf16.msra.mxu0 0
  %1419 = vmatprep.mubr.bf16.mxu0 0
  %1420 = vmatmul.mubr.bf16.gmra.mxu0 %v1337
  %v1421 = vpop.f32.mrf.mxu0
  %v1422 = vadd.f32 0.0, %v1421
  %v1423 = vpop.f32.mrf.mxu0
  %v1424 = vpop.f32.mrf.mxu0
  %v1425 = vadd.f32 0.0, %v1424
  %v1426 = vpop.f32.mrf.mxu0
  %1427 = vmatprep.mubr.bf16.mxu0 0
  %1428 = vmatmul.mubr.bf16.gmra.mxu0 %v1340
  %v1429 = vpop.f32.mrf.mxu0
  %v1430 = vadd.f32 0.0, %v1429
  %v1431 = vpop.f32.mrf.mxu0
  %v1432 = vpop.f32.mrf.mxu0
  %v1433 = vadd.f32 0.0, %v1432
  %v1434 = vpop.f32.mrf.mxu0
  %1435 = vmatprep.mubr.bf16.mxu0 0
  %1436 = vmatmul.mubr.bf16.gmra.mxu0 %v1343
  %v1437 = vpop.f32.mrf.mxu0
  %v1438 = vadd.f32 0.0, %v1437
  %v1439 = vpop.f32.mrf.mxu0
  %v1440 = vpop.f32.mrf.mxu0
  %v1441 = vadd.f32 0.0, %v1440
  %v1442 = vpop.f32.mrf.mxu0
  %1443 = vmatprep.mubr.bf16.mxu0 0
  %1444 = vmatmul.mubr.bf16.gmra.mxu0 %v1346
  %v1445 = vpop.f32.mrf.mxu0
  %v1446 = vadd.f32 0.0, %v1445
  %v1447 = vpop.f32.mrf.mxu0
  %v1448 = vpop.f32.mrf.mxu0
  %v1449 = vadd.f32 0.0, %v1448
  %v1450 = vpop.f32.mrf.mxu0
  %1451 = vmatprep.mubr.bf16.mxu0 0
  %1452 = vmatmul.mubr.bf16.gmra.mxu0 %v1349
  %v1453 = vpop.f32.mrf.mxu0
  %v1454 = vadd.f32 0.0, %v1453
  %v1455 = vpop.f32.mrf.mxu0
  %v1456 = vpop.f32.mrf.mxu0
  %v1457 = vadd.f32 0.0, %v1456
  %v1458 = vpop.f32.mrf.mxu0
  %1459 = vmatprep.mubr.bf16.mxu0 0
  %1460 = vmatmul.mubr.bf16.gmra.mxu0 %v1352
  %v1461 = vpop.f32.mrf.mxu0
  %v1462 = vadd.f32 0.0, %v1461
  %v1463 = vpop.f32.mrf.mxu0
  %v1464 = vpop.f32.mrf.mxu0
  %v1465 = vadd.f32 0.0, %v1464
  %v1466 = vpop.f32.mrf.mxu0
  %1467 = vmatprep.mubr.bf16.mxu0 0
  %1468 = vmatmul.mubr.bf16.gmra.mxu0 %v1355
  %v1469 = vpop.f32.mrf.mxu0
  %v1470 = vadd.f32 0.0, %v1469
  %v1471 = vpop.f32.mrf.mxu0
  %v1472 = vpop.f32.mrf.mxu0
  %v1473 = vadd.f32 0.0, %v1472
  %v1474 = vpop.f32.mrf.mxu0
  %1475 = vmatprep.mubr.bf16.mxu0 0
  %1476 = vmatmul.mubr.bf16.gmra.mxu0 %v1358
  %v1477 = vpop.f32.mrf.mxu0
  %v1478 = vadd.f32 0.0, %v1477
  %v1479 = vpop.f32.mrf.mxu0
  %v1480 = vpop.f32.mrf.mxu0
  %v1481 = vadd.f32 0.0, %v1480
  %v1482 = vpop.f32.mrf.mxu0
  %1483 = vmatprep.mubr.bf16.mxu0 0
  %1484 = vmatmul.mubr.bf16.gmra.mxu0 %v1361
  %v1485 = vpop.f32.mrf.mxu0
  %v1486 = vadd.f32 0.0, %v1485
  %v1487 = vpop.f32.mrf.mxu0
  %v1488 = vpop.f32.mrf.mxu0
  %v1489 = vadd.f32 0.0, %v1488
  %v1490 = vpop.f32.mrf.mxu0
  %1491 = vmatprep.mubr.bf16.mxu0 0
  %1492 = vmatmul.mubr.bf16.gmra.mxu0 %v1364
  %v1493 = vpop.f32.mrf.mxu0
  %v1494 = vadd.f32 0.0, %v1493
  %v1495 = vpop.f32.mrf.mxu0
  %v1496 = vpop.f32.mrf.mxu0
  %v1497 = vadd.f32 0.0, %v1496
  %v1498 = vpop.f32.mrf.mxu0
  %1499 = vmatprep.mubr.bf16.mxu0 0
  %1500 = vmatmul.mubr.bf16.gmra.mxu0 %v1367
  %v1501 = vpop.f32.mrf.mxu0
  %v1502 = vadd.f32 0.0, %v1501
  %v1503 = vpop.f32.mrf.mxu0
  %v1504 = vpop.f32.mrf.mxu0
  %v1505 = vadd.f32 0.0, %v1504
  %v1506 = vpop.f32.mrf.mxu0
  %1507 = vmatprep.mubr.bf16.mxu0 0
  %1508 = vmatmul.mubr.bf16.gmra.mxu0 %v1370
  %v1509 = vpop.f32.mrf.mxu0
  %v1510 = vadd.f32 0.0, %v1509
  %v1511 = vpop.f32.mrf.mxu0
  %v1512 = vpop.f32.mrf.mxu0
  %v1513 = vadd.f32 0.0, %v1512
  %v1514 = vpop.f32.mrf.mxu0
  %1515 = vmatprep.mubr.bf16.mxu0 0
  %1516 = vmatmul.mubr.bf16.gmra.mxu0 %v1373
  %v1517 = vpop.f32.mrf.mxu0
  %v1518 = vadd.f32 0.0, %v1517
  %v1519 = vpop.f32.mrf.mxu0
  %v1520 = vpop.f32.mrf.mxu0
  %v1521 = vadd.f32 0.0, %v1520
  %v1522 = vpop.f32.mrf.mxu0
  %1523 = vmatprep.mubr.bf16.mxu0 0
  %1524 = vmatmul.mubr.bf16.gmra.mxu0 %v1376
  %v1525 = vpop.f32.mrf.mxu0
  %v1526 = vadd.f32 0.0, %v1525
  %v1527 = vpop.f32.mrf.mxu0
  %v1528 = vpop.f32.mrf.mxu0
  %v1529 = vadd.f32 0.0, %v1528
  %v1530 = vpop.f32.mrf.mxu0
  %1531 = vmatprep.mubr.bf16.mxu0 0
  %1532 = vmatmul.mubr.bf16.gmra.mxu0 %v1379
  %v1533 = vpop.f32.mrf.mxu0
  %v1534 = vadd.f32 0.0, %v1533
  %v1535 = vpop.f32.mrf.mxu0
  %v1536 = vpop.f32.mrf.mxu0
  %v1537 = vadd.f32 0.0, %v1536
  %v1538 = vpop.f32.mrf.mxu0
  %1539 = vmatprep.mubr.bf16.mxu0 0
  %1540 = vmatmul.mubr.bf16.gmra.mxu0 %v1382
  %v1541 = vpop.f32.mrf.mxu0
  %v1542 = vadd.f32 0.0, %v1541
  %v1543 = vpop.f32.mrf.mxu0
  %v1544 = vpop.f32.mrf.mxu0
  %v1545 = vadd.f32 0.0, %v1544
  %v1546 = vpop.f32.mrf.mxu0
  %1547 = vdwg.mxu0
  %v1548 = vadd.f32 %v1254, %v1422
  %v1549 = vadd.f32 %v1255, %v1425
  %v1550 = vadd.f32 %v1256, %v1430
  %v1551 = vadd.f32 %v1257, %v1433
  %v1552 = vadd.f32 %v1258, %v1438
  %v1553 = vadd.f32 %v1259, %v1441
  %v1554 = vadd.f32 %v1260, %v1446
  %v1555 = vadd.f32 %v1261, %v1449
  %v1556 = vadd.f32 %v1262, %v1454
  %v1557 = vadd.f32 %v1263, %v1457
  %v1558 = vadd.f32 %v1264, %v1462
  %v1559 = vadd.f32 %v1265, %v1465
  %v1560 = vadd.f32 %v1266, %v1470
  %v1561 = vadd.f32 %v1267, %v1473
  %v1562 = vadd.f32 %v1268, %v1478
  %v1563 = vadd.f32 %v1269, %v1481
  %v1564 = vadd.f32 %v1270, %v1486
  %v1565 = vadd.f32 %v1271, %v1489
  %v1566 = vadd.f32 %v1272, %v1494
  %v1567 = vadd.f32 %v1273, %v1497
  %v1568 = vadd.f32 %v1274, %v1502
  %v1569 = vadd.f32 %v1275, %v1505
  %v1570 = vadd.f32 %v1276, %v1510
  %v1571 = vadd.f32 %v1277, %v1513
  %v1572 = vadd.f32 %v1278, %v1518
  %v1573 = vadd.f32 %v1279, %v1521
  %v1574 = vadd.f32 %v1280, %v1526
  %v1575 = vadd.f32 %v1281, %v1529
  %v1576 = vadd.f32 %v1282, %v1534
  %v1577 = vadd.f32 %v1283, %v1537
  %v1578 = vadd.f32 %v1284, %v1542
  %v1579 = vadd.f32 %v1285, %v1545
  %v1580 = vld [vmem:[%s30 + $0x2] sm:$0xff]
  %v1581 = vld [vmem:[%s30 + $0xa] sm:$0xff]
  %v1582 = vld [vmem:[%s30 + $0x1a] sm:$0xff]
  %v1583 = vld [vmem:[%s30 + $0x22] sm:$0xff]
  %v1584 = vld [vmem:[%s30 + $0x32] sm:$0xff]
  %v1585 = vld [vmem:[%s30 + $0x3a] sm:$0xff]
  %v1586 = vld [vmem:[%s30 + $0x4a] sm:$0xff]
  %v1587 = vld [vmem:[%s30 + $0x52] sm:$0xff]
  %v1588 = vld [vmem:[%s30 + $0x62] sm:$0xff]
  %v1589 = vld [vmem:[%s30 + $0x6a] sm:$0xff]
  %v1590 = vld [vmem:[%s30 + $0x7a] sm:$0xff]
  %v1591 = vld [vmem:[%s30 + $0x82] sm:$0xff]
  %v1592 = vld [vmem:[%s30 + $0x92] sm:$0xff]
  %v1593 = vld [vmem:[%s30 + $0x9a] sm:$0xff]
  %v1594 = vld [vmem:[%s30 + $0xaa] sm:$0xff]
  %v1595 = vld [vmem:[%s30 + $0xb2] sm:$0xff]
  %v1596 = vld [vmem:[%s30 + $0xc2] sm:$0xff]
  %v1597 = vld [vmem:[%s30 + $0xca] sm:$0xff]
  %v1598 = vld [vmem:[%s30 + $0xda] sm:$0xff]
  %v1599 = vld [vmem:[%s30 + $0xe2] sm:$0xff]
  %v1600 = vld [vmem:[%s30 + $0xf2] sm:$0xff]
  %v1601 = vld [vmem:[%s30 + $0xfa] sm:$0xff]
  %v1602 = vld [vmem:[%s30 + $0x10a] sm:$0xff]
  %v1603 = vld [vmem:[%s30 + $0x112] sm:$0xff]
  %v1604 = vld [vmem:[%s30 + $0x122] sm:$0xff]
  %v1605 = vld [vmem:[%s30 + $0x12a] sm:$0xff]
  %v1606 = vld [vmem:[%s30 + $0x13a] sm:$0xff]
  %v1607 = vld [vmem:[%s30 + $0x142] sm:$0xff]
  %v1608 = vld [vmem:[%s30 + $0x152] sm:$0xff]
  %v1609 = vld [vmem:[%s30 + $0x15a] sm:$0xff]
  %v1610 = vld [vmem:[%s30 + $0x16a] sm:$0xff]
  %v1611 = vld [vmem:[%s30 + $0x172] sm:$0xff]
  %v1612 = vpack.c.bf16 %v1581, %v1580
  %v1613 = vpack.c.bf16 %v1583, %v1582
  %v1614 = vpack.c.bf16 %v1585, %v1584
  %v1615 = vpack.c.bf16 %v1587, %v1586
  %v1616 = vpack.c.bf16 %v1589, %v1588
  %v1617 = vpack.c.bf16 %v1591, %v1590
  %v1618 = vpack.c.bf16 %v1593, %v1592
  %v1619 = vpack.c.bf16 %v1595, %v1594
  %v1620 = vpack.c.bf16 %v1597, %v1596
  %v1621 = vpack.c.bf16 %v1599, %v1598
  %v1622 = vpack.c.bf16 %v1601, %v1600
  %v1623 = vpack.c.bf16 %v1603, %v1602
  %v1624 = vpack.c.bf16 %v1605, %v1604
  %v1625 = vpack.c.bf16 %v1607, %v1606
  %v1626 = vpack.c.bf16 %v1609, %v1608
  %v1627 = vpack.c.bf16 %v1611, %v1610
  %s1628 = scalar_lea.vmem %s1, 10
  %v1629 = vld [vmem:[%s1628] sm:$0x3]
  %v1631 = vsel %vm21, %v1612, 0
  %v1634 = vsel %vm21, %v1613, 0
  %v1637 = vsel %vm21, %v1614, 0
  %v1640 = vsel %vm21, %v1615, 0
  %v1643 = vsel %vm21, %v1616, 0
  %v1646 = vsel %vm21, %v1617, 0
  %v1649 = vsel %vm21, %v1618, 0
  %v1652 = vsel %vm21, %v1619, 0
  %v1655 = vsel %vm21, %v1620, 0
  %v1658 = vsel %vm21, %v1621, 0
  %v1661 = vsel %vm21, %v1622, 0
  %v1664 = vsel %vm21, %v1623, 0
  %v1667 = vsel %vm21, %v1624, 0
  %v1670 = vsel %vm21, %v1625, 0
  %v1673 = vsel %vm21, %v1626, 0
  %v1676 = vsel %vm21, %v1627, 0
  %v1679 = vand.u32 %v1629, %v321
  %1681 = vmatprep.subr.bf16.mxu0 0
  %1682 = vmatpush1.bf16.msra.mxu0 0
  %1683 = vmatprep.subr.bf16.mxu0 0
  %1684 = vmatpush1.bf16.msra.mxu0 0
  %1685 = vmatprep.subr.bf16.mxu0 0
  %1686 = vmatpush1.bf16.msra.mxu0 0
  %1687 = vmatprep.subr.bf16.mxu0 0
  %1688 = vmatpush1.bf16.msra.mxu0 0
  %1689 = vmatprep.subr.bf16.mxu0 0
  %1690 = vmatpush1.bf16.msra.mxu0 0
  %1691 = vmatprep.subr.bf16.mxu0 0
  %1692 = vmatpush1.bf16.msra.mxu0 0
  %1693 = vmatprep.subr.bf16.mxu0 0
  %1694 = vmatpush1.bf16.msra.mxu0 0
  %1695 = vmatprep.subr.bf16.mxu0 0
  %1696 = vmatpush1.bf16.msra.mxu0 %v1679
  %1697 = vmatprep.subr.bf16.mxu0 0
  %1698 = vmatpush2.bf16.msra.mxu0 0
  %1699 = vmatprep.subr.bf16.mxu0 0
  %1700 = vmatpush2.bf16.msra.mxu0 0
  %1701 = vmatprep.subr.bf16.mxu0 0
  %1702 = vmatpush2.bf16.msra.mxu0 0
  %1703 = vmatprep.subr.bf16.mxu0 0
  %1704 = vmatpush2.bf16.msra.mxu0 0
  %1705 = vmatprep.subr.bf16.mxu0 0
  %1706 = vmatpush2.bf16.msra.mxu0 0
  %1707 = vmatprep.subr.bf16.mxu0 0
  %1708 = vmatpush2.bf16.msra.mxu0 0
  %1709 = vmatprep.subr.bf16.mxu0 0
  %1710 = vmatpush2.bf16.msra.mxu0 0
  %1711 = vmatprep.subr.bf16.mxu0 0
  %1712 = vmatpush2.bf16.msra.mxu0 0
  %1713 = vmatprep.mubr.bf16.mxu0 0
  %1714 = vmatmul.mubr.bf16.gmra.mxu0 %v1631
  %v1715 = vpop.f32.mrf.mxu0
  %v1716 = vadd.f32 0.0, %v1715
  %v1717 = vpop.f32.mrf.mxu0
  %v1718 = vpop.f32.mrf.mxu0
  %v1719 = vadd.f32 0.0, %v1718
  %v1720 = vpop.f32.mrf.mxu0
  %1721 = vmatprep.mubr.bf16.mxu0 0
  %1722 = vmatmul.mubr.bf16.gmra.mxu0 %v1634
  %v1723 = vpop.f32.mrf.mxu0
  %v1724 = vadd.f32 0.0, %v1723
  %v1725 = vpop.f32.mrf.mxu0
  %v1726 = vpop.f32.mrf.mxu0
  %v1727 = vadd.f32 0.0, %v1726
  %v1728 = vpop.f32.mrf.mxu0
  %1729 = vmatprep.mubr.bf16.mxu0 0
  %1730 = vmatmul.mubr.bf16.gmra.mxu0 %v1637
  %v1731 = vpop.f32.mrf.mxu0
  %v1732 = vadd.f32 0.0, %v1731
  %v1733 = vpop.f32.mrf.mxu0
  %v1734 = vpop.f32.mrf.mxu0
  %v1735 = vadd.f32 0.0, %v1734
  %v1736 = vpop.f32.mrf.mxu0
  %1737 = vmatprep.mubr.bf16.mxu0 0
  %1738 = vmatmul.mubr.bf16.gmra.mxu0 %v1640
  %v1739 = vpop.f32.mrf.mxu0
  %v1740 = vadd.f32 0.0, %v1739
  %v1741 = vpop.f32.mrf.mxu0
  %v1742 = vpop.f32.mrf.mxu0
  %v1743 = vadd.f32 0.0, %v1742
  %v1744 = vpop.f32.mrf.mxu0
  %1745 = vmatprep.mubr.bf16.mxu0 0
  %1746 = vmatmul.mubr.bf16.gmra.mxu0 %v1643
  %v1747 = vpop.f32.mrf.mxu0
  %v1748 = vadd.f32 0.0, %v1747
  %v1749 = vpop.f32.mrf.mxu0
  %v1750 = vpop.f32.mrf.mxu0
  %v1751 = vadd.f32 0.0, %v1750
  %v1752 = vpop.f32.mrf.mxu0
  %1753 = vmatprep.mubr.bf16.mxu0 0
  %1754 = vmatmul.mubr.bf16.gmra.mxu0 %v1646
  %v1755 = vpop.f32.mrf.mxu0
  %v1756 = vadd.f32 0.0, %v1755
  %v1757 = vpop.f32.mrf.mxu0
  %v1758 = vpop.f32.mrf.mxu0
  %v1759 = vadd.f32 0.0, %v1758
  %v1760 = vpop.f32.mrf.mxu0
  %1761 = vmatprep.mubr.bf16.mxu0 0
  %1762 = vmatmul.mubr.bf16.gmra.mxu0 %v1649
  %v1763 = vpop.f32.mrf.mxu0
  %v1764 = vadd.f32 0.0, %v1763
  %v1765 = vpop.f32.mrf.mxu0
  %v1766 = vpop.f32.mrf.mxu0
  %v1767 = vadd.f32 0.0, %v1766
  %v1768 = vpop.f32.mrf.mxu0
  %1769 = vmatprep.mubr.bf16.mxu0 0
  %1770 = vmatmul.mubr.bf16.gmra.mxu0 %v1652
  %v1771 = vpop.f32.mrf.mxu0
  %v1772 = vadd.f32 0.0, %v1771
  %v1773 = vpop.f32.mrf.mxu0
  %v1774 = vpop.f32.mrf.mxu0
  %v1775 = vadd.f32 0.0, %v1774
  %v1776 = vpop.f32.mrf.mxu0
  %1777 = vmatprep.mubr.bf16.mxu0 0
  %1778 = vmatmul.mubr.bf16.gmra.mxu0 %v1655
  %v1779 = vpop.f32.mrf.mxu0
  %v1780 = vadd.f32 0.0, %v1779
  %v1781 = vpop.f32.mrf.mxu0
  %v1782 = vpop.f32.mrf.mxu0
  %v1783 = vadd.f32 0.0, %v1782
  %v1784 = vpop.f32.mrf.mxu0
  %1785 = vmatprep.mubr.bf16.mxu0 0
  %1786 = vmatmul.mubr.bf16.gmra.mxu0 %v1658
  %v1787 = vpop.f32.mrf.mxu0
  %v1788 = vadd.f32 0.0, %v1787
  %v1789 = vpop.f32.mrf.mxu0
  %v1790 = vpop.f32.mrf.mxu0
  %v1791 = vadd.f32 0.0, %v1790
  %v1792 = vpop.f32.mrf.mxu0
  %1793 = vmatprep.mubr.bf16.mxu0 0
  %1794 = vmatmul.mubr.bf16.gmra.mxu0 %v1661
  %v1795 = vpop.f32.mrf.mxu0
  %v1796 = vadd.f32 0.0, %v1795
  %v1797 = vpop.f32.mrf.mxu0
  %v1798 = vpop.f32.mrf.mxu0
  %v1799 = vadd.f32 0.0, %v1798
  %v1800 = vpop.f32.mrf.mxu0
  %1801 = vmatprep.mubr.bf16.mxu0 0
  %1802 = vmatmul.mubr.bf16.gmra.mxu0 %v1664
  %v1803 = vpop.f32.mrf.mxu0
  %v1804 = vadd.f32 0.0, %v1803
  %v1805 = vpop.f32.mrf.mxu0
  %v1806 = vpop.f32.mrf.mxu0
  %v1807 = vadd.f32 0.0, %v1806
  %v1808 = vpop.f32.mrf.mxu0
  %1809 = vmatprep.mubr.bf16.mxu0 0
  %1810 = vmatmul.mubr.bf16.gmra.mxu0 %v1667
  %v1811 = vpop.f32.mrf.mxu0
  %v1812 = vadd.f32 0.0, %v1811
  %v1813 = vpop.f32.mrf.mxu0
  %v1814 = vpop.f32.mrf.mxu0
  %v1815 = vadd.f32 0.0, %v1814
  %v1816 = vpop.f32.mrf.mxu0
  %1817 = vmatprep.mubr.bf16.mxu0 0
  %1818 = vmatmul.mubr.bf16.gmra.mxu0 %v1670
  %v1819 = vpop.f32.mrf.mxu0
  %v1820 = vadd.f32 0.0, %v1819
  %v1821 = vpop.f32.mrf.mxu0
  %v1822 = vpop.f32.mrf.mxu0
  %v1823 = vadd.f32 0.0, %v1822
  %v1824 = vpop.f32.mrf.mxu0
  %1825 = vmatprep.mubr.bf16.mxu0 0
  %1826 = vmatmul.mubr.bf16.gmra.mxu0 %v1673
  %v1827 = vpop.f32.mrf.mxu0
  %v1828 = vadd.f32 0.0, %v1827
  %v1829 = vpop.f32.mrf.mxu0
  %v1830 = vpop.f32.mrf.mxu0
  %v1831 = vadd.f32 0.0, %v1830
  %v1832 = vpop.f32.mrf.mxu0
  %1833 = vmatprep.mubr.bf16.mxu0 0
  %1834 = vmatmul.mubr.bf16.gmra.mxu0 %v1676
  %v1835 = vpop.f32.mrf.mxu0
  %v1836 = vadd.f32 0.0, %v1835
  %v1837 = vpop.f32.mrf.mxu0
  %v1838 = vpop.f32.mrf.mxu0
  %v1839 = vadd.f32 0.0, %v1838
  %v1840 = vpop.f32.mrf.mxu0
  %1841 = vdwg.mxu0
  %v1842 = vadd.f32 %v1548, %v1716
  %v1843 = vadd.f32 %v1549, %v1719
  %v1844 = vadd.f32 %v1550, %v1724
  %v1845 = vadd.f32 %v1551, %v1727
  %v1846 = vadd.f32 %v1552, %v1732
  %v1847 = vadd.f32 %v1553, %v1735
  %v1848 = vadd.f32 %v1554, %v1740
  %v1849 = vadd.f32 %v1555, %v1743
  %v1850 = vadd.f32 %v1556, %v1748
  %v1851 = vadd.f32 %v1557, %v1751
  %v1852 = vadd.f32 %v1558, %v1756
  %v1853 = vadd.f32 %v1559, %v1759
  %v1854 = vadd.f32 %v1560, %v1764
  %v1855 = vadd.f32 %v1561, %v1767
  %v1856 = vadd.f32 %v1562, %v1772
  %v1857 = vadd.f32 %v1563, %v1775
  %v1858 = vadd.f32 %v1564, %v1780
  %v1859 = vadd.f32 %v1565, %v1783
  %v1860 = vadd.f32 %v1566, %v1788
  %v1861 = vadd.f32 %v1567, %v1791
  %v1862 = vadd.f32 %v1568, %v1796
  %v1863 = vadd.f32 %v1569, %v1799
  %v1864 = vadd.f32 %v1570, %v1804
  %v1865 = vadd.f32 %v1571, %v1807
  %v1866 = vadd.f32 %v1572, %v1812
  %v1867 = vadd.f32 %v1573, %v1815
  %v1868 = vadd.f32 %v1574, %v1820
  %v1869 = vadd.f32 %v1575, %v1823
  %v1870 = vadd.f32 %v1576, %v1828
  %v1871 = vadd.f32 %v1577, %v1831
  %v1872 = vadd.f32 %v1578, %v1836
  %v1873 = vadd.f32 %v1579, %v1839
  %s1874 = scalar_lea.vmem [#allocation2], 48
  %v1875 = vld [vmem:[%s1874] sm:$0xff]
  %v1876 = vld [vmem:[%s1874 + $0x8] sm:$0xff]
  %v1877 = vld [vmem:[%s1874 + $0x18] sm:$0xff]
  %v1878 = vld [vmem:[%s1874 + $0x20] sm:$0xff]
  %v1879 = vld [vmem:[%s1874 + $0x30] sm:$0xff]
  %v1880 = vld [vmem:[%s1874 + $0x38] sm:$0xff]
  %v1881 = vld [vmem:[%s1874 + $0x48] sm:$0xff]
  %v1882 = vld [vmem:[%s1874 + $0x50] sm:$0xff]
  %v1883 = vld [vmem:[%s1874 + $0x60] sm:$0xff]
  %v1884 = vld [vmem:[%s1874 + $0x68] sm:$0xff]
  %v1885 = vld [vmem:[%s1874 + $0x78] sm:$0xff]
  %v1886 = vld [vmem:[%s1874 + $0x80] sm:$0xff]
  %v1887 = vld [vmem:[%s1874 + $0x90] sm:$0xff]
  %v1888 = vld [vmem:[%s1874 + $0x98] sm:$0xff]
  %v1889 = vld [vmem:[%s1874 + $0xa8] sm:$0xff]
  %v1890 = vld [vmem:[%s1874 + $0xb0] sm:$0xff]
  %v1891 = vld [vmem:[%s1874 + $0xc0] sm:$0xff]
  %v1892 = vld [vmem:[%s1874 + $0xc8] sm:$0xff]
  %v1893 = vld [vmem:[%s1874 + $0xd8] sm:$0xff]
  %v1894 = vld [vmem:[%s1874 + $0xe0] sm:$0xff]
  %v1895 = vld [vmem:[%s1874 + $0xf0] sm:$0xff]
  %v1896 = vld [vmem:[%s1874 + $0xf8] sm:$0xff]
  %v1897 = vld [vmem:[%s1874 + $0x108] sm:$0xff]
  %v1898 = vld [vmem:[%s1874 + $0x110] sm:$0xff]
  %v1899 = vld [vmem:[%s1874 + $0x120] sm:$0xff]
  %v1900 = vld [vmem:[%s1874 + $0x128] sm:$0xff]
  %v1901 = vld [vmem:[%s1874 + $0x138] sm:$0xff]
  %v1902 = vld [vmem:[%s1874 + $0x140] sm:$0xff]
  %v1903 = vld [vmem:[%s1874 + $0x150] sm:$0xff]
  %v1904 = vld [vmem:[%s1874 + $0x158] sm:$0xff]
  %v1905 = vld [vmem:[%s1874 + $0x168] sm:$0xff]
  %v1906 = vld [vmem:[%s1874 + $0x170] sm:$0xff]
  %v1907 = vpack.c.bf16 %v1876, %v1875
  %v1908 = vpack.c.bf16 %v1878, %v1877
  %v1909 = vpack.c.bf16 %v1880, %v1879
  %v1910 = vpack.c.bf16 %v1882, %v1881
  %v1911 = vpack.c.bf16 %v1884, %v1883
  %v1912 = vpack.c.bf16 %v1886, %v1885
  %v1913 = vpack.c.bf16 %v1888, %v1887
  %v1914 = vpack.c.bf16 %v1890, %v1889
  %v1915 = vpack.c.bf16 %v1892, %v1891
  %v1916 = vpack.c.bf16 %v1894, %v1893
  %v1917 = vpack.c.bf16 %v1896, %v1895
  %v1918 = vpack.c.bf16 %v1898, %v1897
  %v1919 = vpack.c.bf16 %v1900, %v1899
  %v1920 = vpack.c.bf16 %v1902, %v1901
  %v1921 = vpack.c.bf16 %v1904, %v1903
  %v1922 = vpack.c.bf16 %v1906, %v1905
  %s1923 = scalar_lea.vmem %s1, 12
  %v1924 = vld [vmem:[%s1923] sm:$0x3]
  %v1926 = vsel %vm21, %v1907, 0
  %v1929 = vsel %vm21, %v1908, 0
  %v1932 = vsel %vm21, %v1909, 0
  %v1935 = vsel %vm21, %v1910, 0
  %v1938 = vsel %vm21, %v1911, 0
  %v1941 = vsel %vm21, %v1912, 0
  %v1944 = vsel %vm21, %v1913, 0
  %v1947 = vsel %vm21, %v1914, 0
  %v1950 = vsel %vm21, %v1915, 0
  %v1953 = vsel %vm21, %v1916, 0
  %v1956 = vsel %vm21, %v1917, 0
  %v1959 = vsel %vm21, %v1918, 0
  %v1962 = vsel %vm21, %v1919, 0
  %v1965 = vsel %vm21, %v1920, 0
  %v1968 = vsel %vm21, %v1921, 0
  %v1971 = vsel %vm21, %v1922, 0
  %v1974 = vand.u32 %v1924, %v321
  %1976 = vmatprep.subr.bf16.mxu0 0
  %1977 = vmatpush1.bf16.msra.mxu0 0
  %1978 = vmatprep.subr.bf16.mxu0 0
  %1979 = vmatpush1.bf16.msra.mxu0 0
  %1980 = vmatprep.subr.bf16.mxu0 0
  %1981 = vmatpush1.bf16.msra.mxu0 0
  %1982 = vmatprep.subr.bf16.mxu0 0
  %1983 = vmatpush1.bf16.msra.mxu0 0
  %1984 = vmatprep.subr.bf16.mxu0 0
  %1985 = vmatpush1.bf16.msra.mxu0 0
  %1986 = vmatprep.subr.bf16.mxu0 0
  %1987 = vmatpush1.bf16.msra.mxu0 0
  %1988 = vmatprep.subr.bf16.mxu0 0
  %1989 = vmatpush1.bf16.msra.mxu0 0
  %1990 = vmatprep.subr.bf16.mxu0 0
  %1991 = vmatpush1.bf16.msra.mxu0 %v1974
  %1992 = vmatprep.subr.bf16.mxu0 0
  %1993 = vmatpush2.bf16.msra.mxu0 0
  %1994 = vmatprep.subr.bf16.mxu0 0
  %1995 = vmatpush2.bf16.msra.mxu0 0
  %1996 = vmatprep.subr.bf16.mxu0 0
  %1997 = vmatpush2.bf16.msra.mxu0 0
  %1998 = vmatprep.subr.bf16.mxu0 0
  %1999 = vmatpush2.bf16.msra.mxu0 0
  %2000 = vmatprep.subr.bf16.mxu0 0
  %2001 = vmatpush2.bf16.msra.mxu0 0
  %2002 = vmatprep.subr.bf16.mxu0 0
  %2003 = vmatpush2.bf16.msra.mxu0 0
  %2004 = vmatprep.subr.bf16.mxu0 0
  %2005 = vmatpush2.bf16.msra.mxu0 0
  %2006 = vmatprep.subr.bf16.mxu0 0
  %2007 = vmatpush2.bf16.msra.mxu0 0
  %2008 = vmatprep.mubr.bf16.mxu0 0
  %2009 = vmatmul.mubr.bf16.gmra.mxu0 %v1926
  %v2010 = vpop.f32.mrf.mxu0
  %v2011 = vadd.f32 0.0, %v2010
  %v2012 = vpop.f32.mrf.mxu0
  %v2013 = vpop.f32.mrf.mxu0
  %v2014 = vadd.f32 0.0, %v2013
  %v2015 = vpop.f32.mrf.mxu0
  %2016 = vmatprep.mubr.bf16.mxu0 0
  %2017 = vmatmul.mubr.bf16.gmra.mxu0 %v1929
  %v2018 = vpop.f32.mrf.mxu0
  %v2019 = vadd.f32 0.0, %v2018
  %v2020 = vpop.f32.mrf.mxu0
  %v2021 = vpop.f32.mrf.mxu0
  %v2022 = vadd.f32 0.0, %v2021
  %v2023 = vpop.f32.mrf.mxu0
  %2024 = vmatprep.mubr.bf16.mxu0 0
  %2025 = vmatmul.mubr.bf16.gmra.mxu0 %v1932
  %v2026 = vpop.f32.mrf.mxu0
  %v2027 = vadd.f32 0.0, %v2026
  %v2028 = vpop.f32.mrf.mxu0
  %v2029 = vpop.f32.mrf.mxu0
  %v2030 = vadd.f32 0.0, %v2029
  %v2031 = vpop.f32.mrf.mxu0
  %2032 = vmatprep.mubr.bf16.mxu0 0
  %2033 = vmatmul.mubr.bf16.gmra.mxu0 %v1935
  %v2034 = vpop.f32.mrf.mxu0
  %v2035 = vadd.f32 0.0, %v2034
  %v2036 = vpop.f32.mrf.mxu0
  %v2037 = vpop.f32.mrf.mxu0
  %v2038 = vadd.f32 0.0, %v2037
  %v2039 = vpop.f32.mrf.mxu0
  %2040 = vmatprep.mubr.bf16.mxu0 0
  %2041 = vmatmul.mubr.bf16.gmra.mxu0 %v1938
  %v2042 = vpop.f32.mrf.mxu0
  %v2043 = vadd.f32 0.0, %v2042
  %v2044 = vpop.f32.mrf.mxu0
  %v2045 = vpop.f32.mrf.mxu0
  %v2046 = vadd.f32 0.0, %v2045
  %v2047 = vpop.f32.mrf.mxu0
  %2048 = vmatprep.mubr.bf16.mxu0 0
  %2049 = vmatmul.mubr.bf16.gmra.mxu0 %v1941
  %v2050 = vpop.f32.mrf.mxu0
  %v2051 = vadd.f32 0.0, %v2050
  %v2052 = vpop.f32.mrf.mxu0
  %v2053 = vpop.f32.mrf.mxu0
  %v2054 = vadd.f32 0.0, %v2053
  %v2055 = vpop.f32.mrf.mxu0
  %2056 = vmatprep.mubr.bf16.mxu0 0
  %2057 = vmatmul.mubr.bf16.gmra.mxu0 %v1944
  %v2058 = vpop.f32.mrf.mxu0
  %v2059 = vadd.f32 0.0, %v2058
  %v2060 = vpop.f32.mrf.mxu0
  %v2061 = vpop.f32.mrf.mxu0
  %v2062 = vadd.f32 0.0, %v2061
  %v2063 = vpop.f32.mrf.mxu0
  %2064 = vmatprep.mubr.bf16.mxu0 0
  %2065 = vmatmul.mubr.bf16.gmra.mxu0 %v1947
  %v2066 = vpop.f32.mrf.mxu0
  %v2067 = vadd.f32 0.0, %v2066
  %v2068 = vpop.f32.mrf.mxu0
  %v2069 = vpop.f32.mrf.mxu0
  %v2070 = vadd.f32 0.0, %v2069
  %v2071 = vpop.f32.mrf.mxu0
  %2072 = vmatprep.mubr.bf16.mxu0 0
  %2073 = vmatmul.mubr.bf16.gmra.mxu0 %v1950
  %v2074 = vpop.f32.mrf.mxu0
  %v2075 = vadd.f32 0.0, %v2074
  %v2076 = vpop.f32.mrf.mxu0
  %v2077 = vpop.f32.mrf.mxu0
  %v2078 = vadd.f32 0.0, %v2077
  %v2079 = vpop.f32.mrf.mxu0
  %2080 = vmatprep.mubr.bf16.mxu0 0
  %2081 = vmatmul.mubr.bf16.gmra.mxu0 %v1953
  %v2082 = vpop.f32.mrf.mxu0
  %v2083 = vadd.f32 0.0, %v2082
  %v2084 = vpop.f32.mrf.mxu0
  %v2085 = vpop.f32.mrf.mxu0
  %v2086 = vadd.f32 0.0, %v2085
  %v2087 = vpop.f32.mrf.mxu0
  %2088 = vmatprep.mubr.bf16.mxu0 0
  %2089 = vmatmul.mubr.bf16.gmra.mxu0 %v1956
  %v2090 = vpop.f32.mrf.mxu0
  %v2091 = vadd.f32 0.0, %v2090
  %v2092 = vpop.f32.mrf.mxu0
  %v2093 = vpop.f32.mrf.mxu0
  %v2094 = vadd.f32 0.0, %v2093
  %v2095 = vpop.f32.mrf.mxu0
  %2096 = vmatprep.mubr.bf16.mxu0 0
  %2097 = vmatmul.mubr.bf16.gmra.mxu0 %v1959
  %v2098 = vpop.f32.mrf.mxu0
  %v2099 = vadd.f32 0.0, %v2098
  %v2100 = vpop.f32.mrf.mxu0
  %v2101 = vpop.f32.mrf.mxu0
  %v2102 = vadd.f32 0.0, %v2101
  %v2103 = vpop.f32.mrf.mxu0
  %2104 = vmatprep.mubr.bf16.mxu0 0
  %2105 = vmatmul.mubr.bf16.gmra.mxu0 %v1962
  %v2106 = vpop.f32.mrf.mxu0
  %v2107 = vadd.f32 0.0, %v2106
  %v2108 = vpop.f32.mrf.mxu0
  %v2109 = vpop.f32.mrf.mxu0
  %v2110 = vadd.f32 0.0, %v2109
  %v2111 = vpop.f32.mrf.mxu0
  %2112 = vmatprep.mubr.bf16.mxu0 0
  %2113 = vmatmul.mubr.bf16.gmra.mxu0 %v1965
  %v2114 = vpop.f32.mrf.mxu0
  %v2115 = vadd.f32 0.0, %v2114
  %v2116 = vpop.f32.mrf.mxu0
  %v2117 = vpop.f32.mrf.mxu0
  %v2118 = vadd.f32 0.0, %v2117
  %v2119 = vpop.f32.mrf.mxu0
  %2120 = vmatprep.mubr.bf16.mxu0 0
  %2121 = vmatmul.mubr.bf16.gmra.mxu0 %v1968
  %v2122 = vpop.f32.mrf.mxu0
  %v2123 = vadd.f32 0.0, %v2122
  %v2124 = vpop.f32.mrf.mxu0
  %v2125 = vpop.f32.mrf.mxu0
  %v2126 = vadd.f32 0.0, %v2125
  %v2127 = vpop.f32.mrf.mxu0
  %2128 = vmatprep.mubr.bf16.mxu0 0
  %2129 = vmatmul.mubr.bf16.gmra.mxu0 %v1971
  %v2130 = vpop.f32.mrf.mxu0
  %v2131 = vadd.f32 0.0, %v2130
  %v2132 = vpop.f32.mrf.mxu0
  %v2133 = vpop.f32.mrf.mxu0
  %v2134 = vadd.f32 0.0, %v2133
  %v2135 = vpop.f32.mrf.mxu0
  %2136 = vdwg.mxu0
  %v2137 = vadd.f32 %v1842, %v2011
  %v2138 = vadd.f32 %v1843, %v2014
  %v2139 = vadd.f32 %v1844, %v2019
  %v2140 = vadd.f32 %v1845, %v2022
  %v2141 = vadd.f32 %v1846, %v2027
  %v2142 = vadd.f32 %v1847, %v2030
  %v2143 = vadd.f32 %v1848, %v2035
  %v2144 = vadd.f32 %v1849, %v2038
  %v2145 = vadd.f32 %v1850, %v2043
  %v2146 = vadd.f32 %v1851, %v2046
  %v2147 = vadd.f32 %v1852, %v2051
  %v2148 = vadd.f32 %v1853, %v2054
  %v2149 = vadd.f32 %v1854, %v2059
  %v2150 = vadd.f32 %v1855, %v2062
  %v2151 = vadd.f32 %v1856, %v2067
  %v2152 = vadd.f32 %v1857, %v2070
  %v2153 = vadd.f32 %v1858, %v2075
  %v2154 = vadd.f32 %v1859, %v2078
  %v2155 = vadd.f32 %v1860, %v2083
  %v2156 = vadd.f32 %v1861, %v2086
  %v2157 = vadd.f32 %v1862, %v2091
  %v2158 = vadd.f32 %v1863, %v2094
  %v2159 = vadd.f32 %v1864, %v2099
  %v2160 = vadd.f32 %v1865, %v2102
  %v2161 = vadd.f32 %v1866, %v2107
  %v2162 = vadd.f32 %v1867, %v2110
  %v2163 = vadd.f32 %v1868, %v2115
  %v2164 = vadd.f32 %v1869, %v2118
  %v2165 = vadd.f32 %v1870, %v2123
  %v2166 = vadd.f32 %v1871, %v2126
  %v2167 = vadd.f32 %v1872, %v2131
  %v2168 = vadd.f32 %v1873, %v2134
  %v2169 = vld [vmem:[%s1874 + $0x1] sm:$0xff]
  %v2170 = vld [vmem:[%s1874 + $0x9] sm:$0xff]
  %v2171 = vld [vmem:[%s1874 + $0x19] sm:$0xff]
  %v2172 = vld [vmem:[%s1874 + $0x21] sm:$0xff]
  %v2173 = vld [vmem:[%s1874 + $0x31] sm:$0xff]
  %v2174 = vld [vmem:[%s1874 + $0x39] sm:$0xff]
  %v2175 = vld [vmem:[%s1874 + $0x49] sm:$0xff]
  %v2176 = vld [vmem:[%s1874 + $0x51] sm:$0xff]
  %v2177 = vld [vmem:[%s1874 + $0x61] sm:$0xff]
  %v2178 = vld [vmem:[%s1874 + $0x69] sm:$0xff]
  %v2179 = vld [vmem:[%s1874 + $0x79] sm:$0xff]
  %v2180 = vld [vmem:[%s1874 + $0x81] sm:$0xff]
  %v2181 = vld [vmem:[%s1874 + $0x91] sm:$0xff]
  %v2182 = vld [vmem:[%s1874 + $0x99] sm:$0xff]
  %v2183 = vld [vmem:[%s1874 + $0xa9] sm:$0xff]
  %v2184 = vld [vmem:[%s1874 + $0xb1] sm:$0xff]
  %v2185 = vld [vmem:[%s1874 + $0xc1] sm:$0xff]
  %v2186 = vld [vmem:[%s1874 + $0xc9] sm:$0xff]
  %v2187 = vld [vmem:[%s1874 + $0xd9] sm:$0xff]
  %v2188 = vld [vmem:[%s1874 + $0xe1] sm:$0xff]
  %v2189 = vld [vmem:[%s1874 + $0xf1] sm:$0xff]
  %v2190 = vld [vmem:[%s1874 + $0xf9] sm:$0xff]
  %v2191 = vld [vmem:[%s1874 + $0x109] sm:$0xff]
  %v2192 = vld [vmem:[%s1874 + $0x111] sm:$0xff]
  %v2193 = vld [vmem:[%s1874 + $0x121] sm:$0xff]
  %v2194 = vld [vmem:[%s1874 + $0x129] sm:$0xff]
  %v2195 = vld [vmem:[%s1874 + $0x139] sm:$0xff]
  %v2196 = vld [vmem:[%s1874 + $0x141] sm:$0xff]
  %v2197 = vld [vmem:[%s1874 + $0x151] sm:$0xff]
  %v2198 = vld [vmem:[%s1874 + $0x159] sm:$0xff]
  %v2199 = vld [vmem:[%s1874 + $0x169] sm:$0xff]
  %v2200 = vld [vmem:[%s1874 + $0x171] sm:$0xff]
  %v2201 = vpack.c.bf16 %v2170, %v2169
  %v2202 = vpack.c.bf16 %v2172, %v2171
  %v2203 = vpack.c.bf16 %v2174, %v2173
  %v2204 = vpack.c.bf16 %v2176, %v2175
  %v2205 = vpack.c.bf16 %v2178, %v2177
  %v2206 = vpack.c.bf16 %v2180, %v2179
  %v2207 = vpack.c.bf16 %v2182, %v2181
  %v2208 = vpack.c.bf16 %v2184, %v2183
  %v2209 = vpack.c.bf16 %v2186, %v2185
  %v2210 = vpack.c.bf16 %v2188, %v2187
  %v2211 = vpack.c.bf16 %v2190, %v2189
  %v2212 = vpack.c.bf16 %v2192, %v2191
  %v2213 = vpack.c.bf16 %v2194, %v2193
  %v2214 = vpack.c.bf16 %v2196, %v2195
  %v2215 = vpack.c.bf16 %v2198, %v2197
  %v2216 = vpack.c.bf16 %v2200, %v2199
  %s2217 = scalar_lea.vmem %s1, 14
  %v2218 = vld [vmem:[%s2217] sm:$0x3]
  %v2220 = vsel %vm21, %v2201, 0
  %v2223 = vsel %vm21, %v2202, 0
  %v2226 = vsel %vm21, %v2203, 0
  %v2229 = vsel %vm21, %v2204, 0
  %v2232 = vsel %vm21, %v2205, 0
  %v2235 = vsel %vm21, %v2206, 0
  %v2238 = vsel %vm21, %v2207, 0
  %v2241 = vsel %vm21, %v2208, 0
  %v2244 = vsel %vm21, %v2209, 0
  %v2247 = vsel %vm21, %v2210, 0
  %v2250 = vsel %vm21, %v2211, 0
  %v2253 = vsel %vm21, %v2212, 0
  %v2256 = vsel %vm21, %v2213, 0
  %v2259 = vsel %vm21, %v2214, 0
  %v2262 = vsel %vm21, %v2215, 0
  %v2265 = vsel %vm21, %v2216, 0
  %v2268 = vand.u32 %v2218, %v321
  %2270 = vmatprep.subr.bf16.mxu0 0
  %2271 = vmatpush1.bf16.msra.mxu0 0
  %2272 = vmatprep.subr.bf16.mxu0 0
  %2273 = vmatpush1.bf16.msra.mxu0 0
  %2274 = vmatprep.subr.bf16.mxu0 0
  %2275 = vmatpush1.bf16.msra.mxu0 0
  %2276 = vmatprep.subr.bf16.mxu0 0
  %2277 = vmatpush1.bf16.msra.mxu0 0
  %2278 = vmatprep.subr.bf16.mxu0 0
  %2279 = vmatpush1.bf16.msra.mxu0 0
  %2280 = vmatprep.subr.bf16.mxu0 0
  %2281 = vmatpush1.bf16.msra.mxu0 0
  %2282 = vmatprep.subr.bf16.mxu0 0
  %2283 = vmatpush1.bf16.msra.mxu0 0
  %2284 = vmatprep.subr.bf16.mxu0 0
  %2285 = vmatpush1.bf16.msra.mxu0 %v2268
  %2286 = vmatprep.subr.bf16.mxu0 0
  %2287 = vmatpush2.bf16.msra.mxu0 0
  %2288 = vmatprep.subr.bf16.mxu0 0
  %2289 = vmatpush2.bf16.msra.mxu0 0
  %2290 = vmatprep.subr.bf16.mxu0 0
  %2291 = vmatpush2.bf16.msra.mxu0 0
  %2292 = vmatprep.subr.bf16.mxu0 0
  %2293 = vmatpush2.bf16.msra.mxu0 0
  %2294 = vmatprep.subr.bf16.mxu0 0
  %2295 = vmatpush2.bf16.msra.mxu0 0
  %2296 = vmatprep.subr.bf16.mxu0 0
  %2297 = vmatpush2.bf16.msra.mxu0 0
  %2298 = vmatprep.subr.bf16.mxu0 0
  %2299 = vmatpush2.bf16.msra.mxu0 0
  %2300 = vmatprep.subr.bf16.mxu0 0
  %2301 = vmatpush2.bf16.msra.mxu0 0
  %2302 = vmatprep.mubr.bf16.mxu0 0
  %2303 = vmatmul.mubr.bf16.gmra.mxu0 %v2220
  %v2304 = vpop.f32.mrf.mxu0
  %v2305 = vadd.f32 0.0, %v2304
  %v2306 = vpop.f32.mrf.mxu0
  %v2307 = vpop.f32.mrf.mxu0
  %v2308 = vadd.f32 0.0, %v2307
  %v2309 = vpop.f32.mrf.mxu0
  %2310 = vmatprep.mubr.bf16.mxu0 0
  %2311 = vmatmul.mubr.bf16.gmra.mxu0 %v2223
  %v2312 = vpop.f32.mrf.mxu0
  %v2313 = vadd.f32 0.0, %v2312
  %v2314 = vpop.f32.mrf.mxu0
  %v2315 = vpop.f32.mrf.mxu0
  %v2316 = vadd.f32 0.0, %v2315
  %v2317 = vpop.f32.mrf.mxu0
  %2318 = vmatprep.mubr.bf16.mxu0 0
  %2319 = vmatmul.mubr.bf16.gmra.mxu0 %v2226
  %v2320 = vpop.f32.mrf.mxu0
  %v2321 = vadd.f32 0.0, %v2320
  %v2322 = vpop.f32.mrf.mxu0
  %v2323 = vpop.f32.mrf.mxu0
  %v2324 = vadd.f32 0.0, %v2323
  %v2325 = vpop.f32.mrf.mxu0
  %2326 = vmatprep.mubr.bf16.mxu0 0
  %2327 = vmatmul.mubr.bf16.gmra.mxu0 %v2229
  %v2328 = vpop.f32.mrf.mxu0
  %v2329 = vadd.f32 0.0, %v2328
  %v2330 = vpop.f32.mrf.mxu0
  %v2331 = vpop.f32.mrf.mxu0
  %v2332 = vadd.f32 0.0, %v2331
  %v2333 = vpop.f32.mrf.mxu0
  %2334 = vmatprep.mubr.bf16.mxu0 0
  %2335 = vmatmul.mubr.bf16.gmra.mxu0 %v2232
  %v2336 = vpop.f32.mrf.mxu0
  %v2337 = vadd.f32 0.0, %v2336
  %v2338 = vpop.f32.mrf.mxu0
  %v2339 = vpop.f32.mrf.mxu0
  %v2340 = vadd.f32 0.0, %v2339
  %v2341 = vpop.f32.mrf.mxu0
  %2342 = vmatprep.mubr.bf16.mxu0 0
  %2343 = vmatmul.mubr.bf16.gmra.mxu0 %v2235
  %v2344 = vpop.f32.mrf.mxu0
  %v2345 = vadd.f32 0.0, %v2344
  %v2346 = vpop.f32.mrf.mxu0
  %v2347 = vpop.f32.mrf.mxu0
  %v2348 = vadd.f32 0.0, %v2347
  %v2349 = vpop.f32.mrf.mxu0
  %2350 = vmatprep.mubr.bf16.mxu0 0
  %2351 = vmatmul.mubr.bf16.gmra.mxu0 %v2238
  %v2352 = vpop.f32.mrf.mxu0
  %v2353 = vadd.f32 0.0, %v2352
  %v2354 = vpop.f32.mrf.mxu0
  %v2355 = vpop.f32.mrf.mxu0
  %v2356 = vadd.f32 0.0, %v2355
  %v2357 = vpop.f32.mrf.mxu0
  %2358 = vmatprep.mubr.bf16.mxu0 0
  %2359 = vmatmul.mubr.bf16.gmra.mxu0 %v2241
  %v2360 = vpop.f32.mrf.mxu0
  %v2361 = vadd.f32 0.0, %v2360
  %v2362 = vpop.f32.mrf.mxu0
  %v2363 = vpop.f32.mrf.mxu0
  %v2364 = vadd.f32 0.0, %v2363
  %v2365 = vpop.f32.mrf.mxu0
  %2366 = vmatprep.mubr.bf16.mxu0 0
  %2367 = vmatmul.mubr.bf16.gmra.mxu0 %v2244
  %v2368 = vpop.f32.mrf.mxu0
  %v2369 = vadd.f32 0.0, %v2368
  %v2370 = vpop.f32.mrf.mxu0
  %v2371 = vpop.f32.mrf.mxu0
  %v2372 = vadd.f32 0.0, %v2371
  %v2373 = vpop.f32.mrf.mxu0
  %2374 = vmatprep.mubr.bf16.mxu0 0
  %2375 = vmatmul.mubr.bf16.gmra.mxu0 %v2247
  %v2376 = vpop.f32.mrf.mxu0
  %v2377 = vadd.f32 0.0, %v2376
  %v2378 = vpop.f32.mrf.mxu0
  %v2379 = vpop.f32.mrf.mxu0
  %v2380 = vadd.f32 0.0, %v2379
  %v2381 = vpop.f32.mrf.mxu0
  %2382 = vmatprep.mubr.bf16.mxu0 0
  %2383 = vmatmul.mubr.bf16.gmra.mxu0 %v2250
  %v2384 = vpop.f32.mrf.mxu0
  %v2385 = vadd.f32 0.0, %v2384
  %v2386 = vpop.f32.mrf.mxu0
  %v2387 = vpop.f32.mrf.mxu0
  %v2388 = vadd.f32 0.0, %v2387
  %v2389 = vpop.f32.mrf.mxu0
  %2390 = vmatprep.mubr.bf16.mxu0 0
  %2391 = vmatmul.mubr.bf16.gmra.mxu0 %v2253
  %v2392 = vpop.f32.mrf.mxu0
  %v2393 = vadd.f32 0.0, %v2392
  %v2394 = vpop.f32.mrf.mxu0
  %v2395 = vpop.f32.mrf.mxu0
  %v2396 = vadd.f32 0.0, %v2395
  %v2397 = vpop.f32.mrf.mxu0
  %2398 = vmatprep.mubr.bf16.mxu0 0
  %2399 = vmatmul.mubr.bf16.gmra.mxu0 %v2256
  %v2400 = vpop.f32.mrf.mxu0
  %v2401 = vadd.f32 0.0, %v2400
  %v2402 = vpop.f32.mrf.mxu0
  %v2403 = vpop.f32.mrf.mxu0
  %v2404 = vadd.f32 0.0, %v2403
  %v2405 = vpop.f32.mrf.mxu0
  %2406 = vmatprep.mubr.bf16.mxu0 0
  %2407 = vmatmul.mubr.bf16.gmra.mxu0 %v2259
  %v2408 = vpop.f32.mrf.mxu0
  %v2409 = vadd.f32 0.0, %v2408
  %v2410 = vpop.f32.mrf.mxu0
  %v2411 = vpop.f32.mrf.mxu0
  %v2412 = vadd.f32 0.0, %v2411
  %v2413 = vpop.f32.mrf.mxu0
  %2414 = vmatprep.mubr.bf16.mxu0 0
  %2415 = vmatmul.mubr.bf16.gmra.mxu0 %v2262
  %v2416 = vpop.f32.mrf.mxu0
  %v2417 = vadd.f32 0.0, %v2416
  %v2418 = vpop.f32.mrf.mxu0
  %v2419 = vpop.f32.mrf.mxu0
  %v2420 = vadd.f32 0.0, %v2419
  %v2421 = vpop.f32.mrf.mxu0
  %2422 = vmatprep.mubr.bf16.mxu0 0
  %2423 = vmatmul.mubr.bf16.gmra.mxu0 %v2265
  %v2424 = vpop.f32.mrf.mxu0
  %v2425 = vadd.f32 0.0, %v2424
  %v2426 = vpop.f32.mrf.mxu0
  %v2427 = vpop.f32.mrf.mxu0
  %v2428 = vadd.f32 0.0, %v2427
  %v2429 = vpop.f32.mrf.mxu0
  %2430 = vdwg.mxu0
  %v2431 = vadd.f32 %v2137, %v2305
  %v2432 = vadd.f32 %v2138, %v2308
  %v2433 = vadd.f32 %v2139, %v2313
  %v2434 = vadd.f32 %v2140, %v2316
  %v2435 = vadd.f32 %v2141, %v2321
  %v2436 = vadd.f32 %v2142, %v2324
  %v2437 = vadd.f32 %v2143, %v2329
  %v2438 = vadd.f32 %v2144, %v2332
  %v2439 = vadd.f32 %v2145, %v2337
  %v2440 = vadd.f32 %v2146, %v2340
  %v2441 = vadd.f32 %v2147, %v2345
  %v2442 = vadd.f32 %v2148, %v2348
  %v2443 = vadd.f32 %v2149, %v2353
  %v2444 = vadd.f32 %v2150, %v2356
  %v2445 = vadd.f32 %v2151, %v2361
  %v2446 = vadd.f32 %v2152, %v2364
  %v2447 = vadd.f32 %v2153, %v2369
  %v2448 = vadd.f32 %v2154, %v2372
  %v2449 = vadd.f32 %v2155, %v2377
  %v2450 = vadd.f32 %v2156, %v2380
  %v2451 = vadd.f32 %v2157, %v2385
  %v2452 = vadd.f32 %v2158, %v2388
  %v2453 = vadd.f32 %v2159, %v2393
  %v2454 = vadd.f32 %v2160, %v2396
  %v2455 = vadd.f32 %v2161, %v2401
  %v2456 = vadd.f32 %v2162, %v2404
  %v2457 = vadd.f32 %v2163, %v2409
  %v2458 = vadd.f32 %v2164, %v2412
  %v2459 = vadd.f32 %v2165, %v2417
  %v2460 = vadd.f32 %v2166, %v2420
  %v2461 = vadd.f32 %v2167, %v2425
  %v2462 = vadd.f32 %v2168, %v2428
  %v2463 = vld [vmem:[%s1874 + $0x2] sm:$0xff]
  %v2464 = vld [vmem:[%s1874 + $0xa] sm:$0xff]
  %v2465 = vld [vmem:[%s1874 + $0x1a] sm:$0xff]
  %v2466 = vld [vmem:[%s1874 + $0x22] sm:$0xff]
  %v2467 = vld [vmem:[%s1874 + $0x32] sm:$0xff]
  %v2468 = vld [vmem:[%s1874 + $0x3a] sm:$0xff]
  %v2469 = vld [vmem:[%s1874 + $0x4a] sm:$0xff]
  %v2470 = vld [vmem:[%s1874 + $0x52] sm:$0xff]
  %v2471 = vld [vmem:[%s1874 + $0x62] sm:$0xff]
  %v2472 = vld [vmem:[%s1874 + $0x6a] sm:$0xff]
  %v2473 = vld [vmem:[%s1874 + $0x7a] sm:$0xff]
  %v2474 = vld [vmem:[%s1874 + $0x82] sm:$0xff]
  %v2475 = vld [vmem:[%s1874 + $0x92] sm:$0xff]
  %v2476 = vld [vmem:[%s1874 + $0x9a] sm:$0xff]
  %v2477 = vld [vmem:[%s1874 + $0xaa] sm:$0xff]
  %v2478 = vld [vmem:[%s1874 + $0xb2] sm:$0xff]
  %v2479 = vld [vmem:[%s1874 + $0xc2] sm:$0xff]
  %v2480 = vld [vmem:[%s1874 + $0xca] sm:$0xff]
  %v2481 = vld [vmem:[%s1874 + $0xda] sm:$0xff]
  %v2482 = vld [vmem:[%s1874 + $0xe2] sm:$0xff]
  %v2483 = vld [vmem:[%s1874 + $0xf2] sm:$0xff]
  %v2484 = vld [vmem:[%s1874 + $0xfa] sm:$0xff]
  %v2485 = vld [vmem:[%s1874 + $0x10a] sm:$0xff]
  %v2486 = vld [vmem:[%s1874 + $0x112] sm:$0xff]
  %v2487 = vld [vmem:[%s1874 + $0x122] sm:$0xff]
  %v2488 = vld [vmem:[%s1874 + $0x12a] sm:$0xff]
  %v2489 = vld [vmem:[%s1874 + $0x13a] sm:$0xff]
  %v2490 = vld [vmem:[%s1874 + $0x142] sm:$0xff]
  %v2491 = vld [vmem:[%s1874 + $0x152] sm:$0xff]
  %v2492 = vld [vmem:[%s1874 + $0x15a] sm:$0xff]
  %v2493 = vld [vmem:[%s1874 + $0x16a] sm:$0xff]
  %v2494 = vld [vmem:[%s1874 + $0x172] sm:$0xff]
  %v2495 = vpack.c.bf16 %v2464, %v2463
  %v2496 = vpack.c.bf16 %v2466, %v2465
  %v2497 = vpack.c.bf16 %v2468, %v2467
  %v2498 = vpack.c.bf16 %v2470, %v2469
  %v2499 = vpack.c.bf16 %v2472, %v2471
  %v2500 = vpack.c.bf16 %v2474, %v2473
  %v2501 = vpack.c.bf16 %v2476, %v2475
  %v2502 = vpack.c.bf16 %v2478, %v2477
  %v2503 = vpack.c.bf16 %v2480, %v2479
  %v2504 = vpack.c.bf16 %v2482, %v2481
  %v2505 = vpack.c.bf16 %v2484, %v2483
  %v2506 = vpack.c.bf16 %v2486, %v2485
  %v2507 = vpack.c.bf16 %v2488, %v2487
  %v2508 = vpack.c.bf16 %v2490, %v2489
  %v2509 = vpack.c.bf16 %v2492, %v2491
  %v2510 = vpack.c.bf16 %v2494, %v2493
  %s2511 = scalar_lea.vmem %s1, 16
  %v2512 = vld [vmem:[%s2511] sm:$0x3]
  %v2514 = vsel %vm21, %v2495, 0
  %v2517 = vsel %vm21, %v2496, 0
  %v2520 = vsel %vm21, %v2497, 0
  %v2523 = vsel %vm21, %v2498, 0
  %v2526 = vsel %vm21, %v2499, 0
  %v2529 = vsel %vm21, %v2500, 0
  %v2532 = vsel %vm21, %v2501, 0
  %v2535 = vsel %vm21, %v2502, 0
  %v2538 = vsel %vm21, %v2503, 0
  %v2541 = vsel %vm21, %v2504, 0
  %v2544 = vsel %vm21, %v2505, 0
  %v2547 = vsel %vm21, %v2506, 0
  %v2550 = vsel %vm21, %v2507, 0
  %v2553 = vsel %vm21, %v2508, 0
  %v2556 = vsel %vm21, %v2509, 0
  %v2559 = vsel %vm21, %v2510, 0
  %v2562 = vand.u32 %v2512, %v321
  %2564 = vmatprep.subr.bf16.mxu0 0
  %2565 = vmatpush1.bf16.msra.mxu0 0
  %2566 = vmatprep.subr.bf16.mxu0 0
  %2567 = vmatpush1.bf16.msra.mxu0 0
  %2568 = vmatprep.subr.bf16.mxu0 0
  %2569 = vmatpush1.bf16.msra.mxu0 0
  %2570 = vmatprep.subr.bf16.mxu0 0
  %2571 = vmatpush1.bf16.msra.mxu0 0
  %2572 = vmatprep.subr.bf16.mxu0 0
  %2573 = vmatpush1.bf16.msra.mxu0 0
  %2574 = vmatprep.subr.bf16.mxu0 0
  %2575 = vmatpush1.bf16.msra.mxu0 0
  %2576 = vmatprep.subr.bf16.mxu0 0
  %2577 = vmatpush1.bf16.msra.mxu0 0
  %2578 = vmatprep.subr.bf16.mxu0 0
  %2579 = vmatpush1.bf16.msra.mxu0 %v2562
  %2580 = vmatprep.subr.bf16.mxu0 0
  %2581 = vmatpush2.bf16.msra.mxu0 0
  %2582 = vmatprep.subr.bf16.mxu0 0
  %2583 = vmatpush2.bf16.msra.mxu0 0
  %2584 = vmatprep.subr.bf16.mxu0 0
  %2585 = vmatpush2.bf16.msra.mxu0 0
  %2586 = vmatprep.subr.bf16.mxu0 0
  %2587 = vmatpush2.bf16.msra.mxu0 0
  %2588 = vmatprep.subr.bf16.mxu0 0
  %2589 = vmatpush2.bf16.msra.mxu0 0
  %2590 = vmatprep.subr.bf16.mxu0 0
  %2591 = vmatpush2.bf16.msra.mxu0 0
  %2592 = vmatprep.subr.bf16.mxu0 0
  %2593 = vmatpush2.bf16.msra.mxu0 0
  %2594 = vmatprep.subr.bf16.mxu0 0
  %2595 = vmatpush2.bf16.msra.mxu0 0
  %2596 = vmatprep.mubr.bf16.mxu0 0
  %2597 = vmatmul.mubr.bf16.gmra.mxu0 %v2514
  %v2598 = vpop.f32.mrf.mxu0
  %v2599 = vadd.f32 0.0, %v2598
  %v2600 = vpop.f32.mrf.mxu0
  %v2601 = vpop.f32.mrf.mxu0
  %v2602 = vadd.f32 0.0, %v2601
  %v2603 = vpop.f32.mrf.mxu0
  %2604 = vmatprep.mubr.bf16.mxu0 0
  %2605 = vmatmul.mubr.bf16.gmra.mxu0 %v2517
  %v2606 = vpop.f32.mrf.mxu0
  %v2607 = vadd.f32 0.0, %v2606
  %v2608 = vpop.f32.mrf.mxu0
  %v2609 = vpop.f32.mrf.mxu0
  %v2610 = vadd.f32 0.0, %v2609
  %v2611 = vpop.f32.mrf.mxu0
  %2612 = vmatprep.mubr.bf16.mxu0 0
  %2613 = vmatmul.mubr.bf16.gmra.mxu0 %v2520
  %v2614 = vpop.f32.mrf.mxu0
  %v2615 = vadd.f32 0.0, %v2614
  %v2616 = vpop.f32.mrf.mxu0
  %v2617 = vpop.f32.mrf.mxu0
  %v2618 = vadd.f32 0.0, %v2617
  %v2619 = vpop.f32.mrf.mxu0
  %2620 = vmatprep.mubr.bf16.mxu0 0
  %2621 = vmatmul.mubr.bf16.gmra.mxu0 %v2523
  %v2622 = vpop.f32.mrf.mxu0
  %v2623 = vadd.f32 0.0, %v2622
  %v2624 = vpop.f32.mrf.mxu0
  %v2625 = vpop.f32.mrf.mxu0
  %v2626 = vadd.f32 0.0, %v2625
  %v2627 = vpop.f32.mrf.mxu0
  %2628 = vmatprep.mubr.bf16.mxu0 0
  %2629 = vmatmul.mubr.bf16.gmra.mxu0 %v2526
  %v2630 = vpop.f32.mrf.mxu0
  %v2631 = vadd.f32 0.0, %v2630
  %v2632 = vpop.f32.mrf.mxu0
  %v2633 = vpop.f32.mrf.mxu0
  %v2634 = vadd.f32 0.0, %v2633
  %v2635 = vpop.f32.mrf.mxu0
  %2636 = vmatprep.mubr.bf16.mxu0 0
  %2637 = vmatmul.mubr.bf16.gmra.mxu0 %v2529
  %v2638 = vpop.f32.mrf.mxu0
  %v2639 = vadd.f32 0.0, %v2638
  %v2640 = vpop.f32.mrf.mxu0
  %v2641 = vpop.f32.mrf.mxu0
  %v2642 = vadd.f32 0.0, %v2641
  %v2643 = vpop.f32.mrf.mxu0
  %2644 = vmatprep.mubr.bf16.mxu0 0
  %2645 = vmatmul.mubr.bf16.gmra.mxu0 %v2532
  %v2646 = vpop.f32.mrf.mxu0
  %v2647 = vadd.f32 0.0, %v2646
  %v2648 = vpop.f32.mrf.mxu0
  %v2649 = vpop.f32.mrf.mxu0
  %v2650 = vadd.f32 0.0, %v2649
  %v2651 = vpop.f32.mrf.mxu0
  %2652 = vmatprep.mubr.bf16.mxu0 0
  %2653 = vmatmul.mubr.bf16.gmra.mxu0 %v2535
  %v2654 = vpop.f32.mrf.mxu0
  %v2655 = vadd.f32 0.0, %v2654
  %v2656 = vpop.f32.mrf.mxu0
  %v2657 = vpop.f32.mrf.mxu0
  %v2658 = vadd.f32 0.0, %v2657
  %v2659 = vpop.f32.mrf.mxu0
  %2660 = vmatprep.mubr.bf16.mxu0 0
  %2661 = vmatmul.mubr.bf16.gmra.mxu0 %v2538
  %v2662 = vpop.f32.mrf.mxu0
  %v2663 = vadd.f32 0.0, %v2662
  %v2664 = vpop.f32.mrf.mxu0
  %v2665 = vpop.f32.mrf.mxu0
  %v2666 = vadd.f32 0.0, %v2665
  %v2667 = vpop.f32.mrf.mxu0
  %2668 = vmatprep.mubr.bf16.mxu0 0
  %2669 = vmatmul.mubr.bf16.gmra.mxu0 %v2541
  %v2670 = vpop.f32.mrf.mxu0
  %v2671 = vadd.f32 0.0, %v2670
  %v2672 = vpop.f32.mrf.mxu0
  %v2673 = vpop.f32.mrf.mxu0
  %v2674 = vadd.f32 0.0, %v2673
  %v2675 = vpop.f32.mrf.mxu0
  %2676 = vmatprep.mubr.bf16.mxu0 0
  %2677 = vmatmul.mubr.bf16.gmra.mxu0 %v2544
  %v2678 = vpop.f32.mrf.mxu0
  %v2679 = vadd.f32 0.0, %v2678
  %v2680 = vpop.f32.mrf.mxu0
  %v2681 = vpop.f32.mrf.mxu0
  %v2682 = vadd.f32 0.0, %v2681
  %v2683 = vpop.f32.mrf.mxu0
  %2684 = vmatprep.mubr.bf16.mxu0 0
  %2685 = vmatmul.mubr.bf16.gmra.mxu0 %v2547
  %v2686 = vpop.f32.mrf.mxu0
  %v2687 = vadd.f32 0.0, %v2686
  %v2688 = vpop.f32.mrf.mxu0
  %v2689 = vpop.f32.mrf.mxu0
  %v2690 = vadd.f32 0.0, %v2689
  %v2691 = vpop.f32.mrf.mxu0
  %2692 = vmatprep.mubr.bf16.mxu0 0
  %2693 = vmatmul.mubr.bf16.gmra.mxu0 %v2550
  %v2694 = vpop.f32.mrf.mxu0
  %v2695 = vadd.f32 0.0, %v2694
  %v2696 = vpop.f32.mrf.mxu0
  %v2697 = vpop.f32.mrf.mxu0
  %v2698 = vadd.f32 0.0, %v2697
  %v2699 = vpop.f32.mrf.mxu0
  %2700 = vmatprep.mubr.bf16.mxu0 0
  %2701 = vmatmul.mubr.bf16.gmra.mxu0 %v2553
  %v2702 = vpop.f32.mrf.mxu0
  %v2703 = vadd.f32 0.0, %v2702
  %v2704 = vpop.f32.mrf.mxu0
  %v2705 = vpop.f32.mrf.mxu0
  %v2706 = vadd.f32 0.0, %v2705
  %v2707 = vpop.f32.mrf.mxu0
  %2708 = vmatprep.mubr.bf16.mxu0 0
  %2709 = vmatmul.mubr.bf16.gmra.mxu0 %v2556
  %v2710 = vpop.f32.mrf.mxu0
  %v2711 = vadd.f32 0.0, %v2710
  %v2712 = vpop.f32.mrf.mxu0
  %v2713 = vpop.f32.mrf.mxu0
  %v2714 = vadd.f32 0.0, %v2713
  %v2715 = vpop.f32.mrf.mxu0
  %2716 = vmatprep.mubr.bf16.mxu0 0
  %2717 = vmatmul.mubr.bf16.gmra.mxu0 %v2559
  %v2718 = vpop.f32.mrf.mxu0
  %v2719 = vadd.f32 0.0, %v2718
  %v2720 = vpop.f32.mrf.mxu0
  %v2721 = vpop.f32.mrf.mxu0
  %v2722 = vadd.f32 0.0, %v2721
  %v2723 = vpop.f32.mrf.mxu0
  %2724 = vdwg.mxu0
  %v2725 = vadd.f32 %v2431, %v2599
  %v2726 = vadd.f32 %v2432, %v2602
  %v2727 = vadd.f32 %v2433, %v2607
  %v2728 = vadd.f32 %v2434, %v2610
  %v2729 = vadd.f32 %v2435, %v2615
  %v2730 = vadd.f32 %v2436, %v2618
  %v2731 = vadd.f32 %v2437, %v2623
  %v2732 = vadd.f32 %v2438, %v2626
  %v2733 = vadd.f32 %v2439, %v2631
  %v2734 = vadd.f32 %v2440, %v2634
  %v2735 = vadd.f32 %v2441, %v2639
  %v2736 = vadd.f32 %v2442, %v2642
  %v2737 = vadd.f32 %v2443, %v2647
  %v2738 = vadd.f32 %v2444, %v2650
  %v2739 = vadd.f32 %v2445, %v2655
  %v2740 = vadd.f32 %v2446, %v2658
  %v2741 = vadd.f32 %v2447, %v2663
  %v2742 = vadd.f32 %v2448, %v2666
  %v2743 = vadd.f32 %v2449, %v2671
  %v2744 = vadd.f32 %v2450, %v2674
  %v2745 = vadd.f32 %v2451, %v2679
  %v2746 = vadd.f32 %v2452, %v2682
  %v2747 = vadd.f32 %v2453, %v2687
  %v2748 = vadd.f32 %v2454, %v2690
  %v2749 = vadd.f32 %v2455, %v2695
  %v2750 = vadd.f32 %v2456, %v2698
  %v2751 = vadd.f32 %v2457, %v2703
  %v2752 = vadd.f32 %v2458, %v2706
  %v2753 = vadd.f32 %v2459, %v2711
  %v2754 = vadd.f32 %v2460, %v2714
  %v2755 = vadd.f32 %v2461, %v2719
  %v2756 = vadd.f32 %v2462, %v2722
  %v2757 = vld [vmem:[%s2] sm:$0x1]
  %v2759 = vlaneseq
  %v2760 = vshrl.u32 %v2759, 7
  %v2761 = vsub.s32 0, %v2760
  %v2762 = vrot.slane %v2757, %v2761
  %v2764 = vadd.f32 %v2725, %v2762
  %v2765 = vadd.f32 %v2726, %v2762
  %v2766 = vadd.f32 %v2727, %v2762
  %v2767 = vadd.f32 %v2728, %v2762
  %v2768 = vadd.f32 %v2729, %v2762
  %v2769 = vadd.f32 %v2730, %v2762
  %v2770 = vadd.f32 %v2731, %v2762
  %v2771 = vadd.f32 %v2732, %v2762
  %v2772 = vadd.f32 %v2733, %v2762
  %v2773 = vadd.f32 %v2734, %v2762
  %v2774 = vadd.f32 %v2735, %v2762
  %v2775 = vadd.f32 %v2736, %v2762
  %v2776 = vadd.f32 %v2737, %v2762
  %v2777 = vadd.f32 %v2738, %v2762
  %v2778 = vadd.f32 %v2739, %v2762
  %v2779 = vadd.f32 %v2740, %v2762
  %v2780 = vadd.f32 %v2741, %v2762
  %v2781 = vadd.f32 %v2742, %v2762
  %v2782 = vadd.f32 %v2743, %v2762
  %v2783 = vadd.f32 %v2744, %v2762
  %v2784 = vadd.f32 %v2745, %v2762
  %v2785 = vadd.f32 %v2746, %v2762
  %v2786 = vadd.f32 %v2747, %v2762
  %v2787 = vadd.f32 %v2748, %v2762
  %v2788 = vadd.f32 %v2749, %v2762
  %v2789 = vadd.f32 %v2750, %v2762
  %v2790 = vadd.f32 %v2751, %v2762
  %v2791 = vadd.f32 %v2752, %v2762
  %v2792 = vadd.f32 %v2753, %v2762
  %v2793 = vadd.f32 %v2754, %v2762
  %v2794 = vadd.f32 %v2755, %v2762
  %v2795 = vadd.f32 %v2756, %v2762
  %v2796 = vmax.f32 %v2764, 0.0
  %v2797 = vmax.f32 %v2765, 0.0
  %v2798 = vmax.f32 %v2766, 0.0
  %v2799 = vmax.f32 %v2767, 0.0
  %v2800 = vmax.f32 %v2768, 0.0
  %v2801 = vmax.f32 %v2769, 0.0
  %v2802 = vmax.f32 %v2770, 0.0
  %v2803 = vmax.f32 %v2771, 0.0
  %v2804 = vmax.f32 %v2772, 0.0
  %v2805 = vmax.f32 %v2773, 0.0
  %v2806 = vmax.f32 %v2774, 0.0
  %v2807 = vmax.f32 %v2775, 0.0
  %v2808 = vmax.f32 %v2776, 0.0
  %v2809 = vmax.f32 %v2777, 0.0
  %v2810 = vmax.f32 %v2778, 0.0
  %v2811 = vmax.f32 %v2779, 0.0
  %v2812 = vmax.f32 %v2780, 0.0
  %v2813 = vmax.f32 %v2781, 0.0
  %v2814 = vmax.f32 %v2782, 0.0
  %v2815 = vmax.f32 %v2783, 0.0
  %v2816 = vmax.f32 %v2784, 0.0
  %v2817 = vmax.f32 %v2785, 0.0
  %v2818 = vmax.f32 %v2786, 0.0
  %v2819 = vmax.f32 %v2787, 0.0
  %v2820 = vmax.f32 %v2788, 0.0
  %v2821 = vmax.f32 %v2789, 0.0
  %v2822 = vmax.f32 %v2790, 0.0
  %v2823 = vmax.f32 %v2791, 0.0
  %v2824 = vmax.f32 %v2792, 0.0
  %v2825 = vmax.f32 %v2793, 0.0
  %v2826 = vmax.f32 %v2794, 0.0
  %v2827 = vmax.f32 %v2795, 0.0
  %2828 = vst.msk [vmem:[%s73 + $0x1] sm:$0xff] %vm64, %v2796
  %2829 = vst.msk [vmem:[%s73 + $0x9] sm:$0xff] %vm64, %v2797
  %2830 = vst.msk [vmem:[%s73 + $0x19] sm:$0xff] %vm64, %v2798
  %2831 = vst.msk [vmem:[%s73 + $0x21] sm:$0xff] %vm64, %v2799
  %2832 = vst.msk [vmem:[%s73 + $0x31] sm:$0xff] %vm64, %v2800
  %2833 = vst.msk [vmem:[%s73 + $0x39] sm:$0xff] %vm64, %v2801
  %2834 = vst.msk [vmem:[%s73 + $0x49] sm:$0xff] %vm64, %v2802
  %2835 = vst.msk [vmem:[%s73 + $0x51] sm:$0xff] %vm64, %v2803
  %2836 = vst.msk [vmem:[%s73 + $0x61] sm:$0xff] %vm64, %v2804
  %2837 = vst.msk [vmem:[%s73 + $0x69] sm:$0xff] %vm64, %v2805
  %2838 = vst.msk [vmem:[%s73 + $0x79] sm:$0xff] %vm64, %v2806
  %2839 = vst.msk [vmem:[%s73 + $0x81] sm:$0xff] %vm64, %v2807
  %2840 = vst.msk [vmem:[%s73 + $0x91] sm:$0xff] %vm64, %v2808
  %2841 = vst.msk [vmem:[%s73 + $0x99] sm:$0xff] %vm64, %v2809
  %2842 = vst.msk [vmem:[%s73 + $0xa9] sm:$0xff] %vm64, %v2810
  %2843 = vst.msk [vmem:[%s73 + $0xb1] sm:$0xff] %vm64, %v2811
  %2844 = vst.msk [vmem:[%s73 + $0xc1] sm:$0xff] %vm64, %v2812
  %2845 = vst.msk [vmem:[%s73 + $0xc9] sm:$0xff] %vm64, %v2813
  %2846 = vst.msk [vmem:[%s73 + $0xd9] sm:$0xff] %vm64, %v2814
  %2847 = vst.msk [vmem:[%s73 + $0xe1] sm:$0xff] %vm64, %v2815
  %2848 = vst.msk [vmem:[%s73 + $0xf1] sm:$0xff] %vm64, %v2816
  %2849 = vst.msk [vmem:[%s73 + $0xf9] sm:$0xff] %vm64, %v2817
  %2850 = vst.msk [vmem:[%s73 + $0x109] sm:$0xff] %vm64, %v2818
  %2851 = vst.msk [vmem:[%s73 + $0x111] sm:$0xff] %vm64, %v2819
  %2852 = vst.msk [vmem:[%s73 + $0x121] sm:$0xff] %vm64, %v2820
  %2853 = vst.msk [vmem:[%s73 + $0x129] sm:$0xff] %vm64, %v2821
  %2854 = vst.msk [vmem:[%s73 + $0x139] sm:$0xff] %vm64, %v2822
  %2855 = vst.msk [vmem:[%s73 + $0x141] sm:$0xff] %vm64, %v2823
  %2856 = vst.msk [vmem:[%s73 + $0x151] sm:$0xff] %vm64, %v2824
  %2857 = vst.msk [vmem:[%s73 + $0x159] sm:$0xff] %vm64, %v2825
  %2858 = vst.msk [vmem:[%s73 + $0x169] sm:$0xff] %vm64, %v2826
  %2859 = vst.msk [vmem:[%s73 + $0x171] sm:$0xff] %vm64, %v2827
  %v2860 = vld [vmem:[#allocation3] sm:$0xff]
  %v2861 = vld [vmem:[#allocation3 + $0x8] sm:$0xff]
  %v2862 = vld [vmem:[#allocation3 + $0x18] sm:$0xff]
  %v2863 = vld [vmem:[#allocation3 + $0x20] sm:$0xff]
  %v2864 = vld [vmem:[#allocation3 + $0x30] sm:$0xff]
  %v2865 = vld [vmem:[#allocation3 + $0x38] sm:$0xff]
  %v2866 = vld [vmem:[#allocation3 + $0x48] sm:$0xff]
  %v2867 = vld [vmem:[#allocation3 + $0x50] sm:$0xff]
  %v2868 = vld [vmem:[#allocation3 + $0x60] sm:$0xff]
  %v2869 = vld [vmem:[#allocation3 + $0x68] sm:$0xff]
  %v2870 = vld [vmem:[#allocation3 + $0x78] sm:$0xff]
  %v2871 = vld [vmem:[#allocation3 + $0x80] sm:$0xff]
  %v2872 = vld [vmem:[#allocation3 + $0x90] sm:$0xff]
  %v2873 = vld [vmem:[#allocation3 + $0x98] sm:$0xff]
  %v2874 = vld [vmem:[#allocation3 + $0xa8] sm:$0xff]
  %v2875 = vld [vmem:[#allocation3 + $0xb0] sm:$0xff]
  %v2876 = vld [vmem:[#allocation3 + $0xc0] sm:$0xff]
  %v2877 = vld [vmem:[#allocation3 + $0xc8] sm:$0xff]
  %v2878 = vld [vmem:[#allocation3 + $0xd8] sm:$0xff]
  %v2879 = vld [vmem:[#allocation3 + $0xe0] sm:$0xff]
  %v2880 = vld [vmem:[#allocation3 + $0xf0] sm:$0xff]
  %v2881 = vld [vmem:[#allocation3 + $0xf8] sm:$0xff]
  %v2882 = vld [vmem:[#allocation3 + $0x108] sm:$0xff]
  %v2883 = vld [vmem:[#allocation3 + $0x110] sm:$0xff]
  %v2884 = vld [vmem:[#allocation3 + $0x120] sm:$0xff]
  %v2885 = vld [vmem:[#allocation3 + $0x128] sm:$0xff]
  %v2886 = vld [vmem:[#allocation3 + $0x138] sm:$0xff]
  %v2887 = vld [vmem:[#allocation3 + $0x140] sm:$0xff]
  %v2888 = vld [vmem:[#allocation3 + $0x150] sm:$0xff]
  %v2889 = vld [vmem:[#allocation3 + $0x158] sm:$0xff]
  %v2890 = vld [vmem:[#allocation3 + $0x168] sm:$0xff]
  %v2891 = vld [vmem:[#allocation3 + $0x170] sm:$0xff]
  %v2892 = vpack.c.bf16 %v2861, %v2860
  %v2893 = vpack.c.bf16 %v2863, %v2862
  %v2894 = vpack.c.bf16 %v2865, %v2864
  %v2895 = vpack.c.bf16 %v2867, %v2866
  %v2896 = vpack.c.bf16 %v2869, %v2868
  %v2897 = vpack.c.bf16 %v2871, %v2870
  %v2898 = vpack.c.bf16 %v2873, %v2872
  %v2899 = vpack.c.bf16 %v2875, %v2874
  %v2900 = vpack.c.bf16 %v2877, %v2876
  %v2901 = vpack.c.bf16 %v2879, %v2878
  %v2902 = vpack.c.bf16 %v2881, %v2880
  %v2903 = vpack.c.bf16 %v2883, %v2882
  %v2904 = vpack.c.bf16 %v2885, %v2884
  %v2905 = vpack.c.bf16 %v2887, %v2886
  %v2906 = vpack.c.bf16 %v2889, %v2888
  %v2907 = vpack.c.bf16 %v2891, %v2890
  %v2908 = vld [vmem:[%s3] sm:$0xf]
  %v2909 = vld [vmem:[#allocation3 + $0x1] sm:$0xff]
  %v2910 = vld [vmem:[#allocation3 + $0x9] sm:$0xff]
  %v2911 = vld [vmem:[#allocation3 + $0x19] sm:$0xff]
  %v2912 = vld [vmem:[#allocation3 + $0x21] sm:$0xff]
  %v2913 = vld [vmem:[#allocation3 + $0x31] sm:$0xff]
  %v2914 = vld [vmem:[#allocation3 + $0x39] sm:$0xff]
  %v2915 = vld [vmem:[#allocation3 + $0x49] sm:$0xff]
  %v2916 = vld [vmem:[#allocation3 + $0x51] sm:$0xff]
  %v2917 = vld [vmem:[#allocation3 + $0x61] sm:$0xff]
  %v2918 = vld [vmem:[#allocation3 + $0x69] sm:$0xff]
  %v2919 = vld [vmem:[#allocation3 + $0x79] sm:$0xff]
  %v2920 = vld [vmem:[#allocation3 + $0x81] sm:$0xff]
  %v2921 = vld [vmem:[#allocation3 + $0x91] sm:$0xff]
  %v2922 = vld [vmem:[#allocation3 + $0x99] sm:$0xff]
  %v2923 = vld [vmem:[#allocation3 + $0xa9] sm:$0xff]
  %v2924 = vld [vmem:[#allocation3 + $0xb1] sm:$0xff]
  %v2925 = vld [vmem:[#allocation3 + $0xc1] sm:$0xff]
  %v2926 = vld [vmem:[#allocation3 + $0xc9] sm:$0xff]
  %v2927 = vld [vmem:[#allocation3 + $0xd9] sm:$0xff]
  %v2928 = vld [vmem:[#allocation3 + $0xe1] sm:$0xff]
  %v2929 = vld [vmem:[#allocation3 + $0xf1] sm:$0xff]
  %v2930 = vld [vmem:[#allocation3 + $0xf9] sm:$0xff]
  %v2931 = vld [vmem:[#allocation3 + $0x109] sm:$0xff]
  %v2932 = vld [vmem:[#allocation3 + $0x111] sm:$0xff]
  %v2933 = vld [vmem:[#allocation3 + $0x121] sm:$0xff]
  %v2934 = vld [vmem:[#allocation3 + $0x129] sm:$0xff]
  %v2935 = vld [vmem:[#allocation3 + $0x139] sm:$0xff]
  %v2936 = vld [vmem:[#allocation3 + $0x141] sm:$0xff]
  %v2937 = vld [vmem:[#allocation3 + $0x151] sm:$0xff]
  %v2938 = vld [vmem:[#allocation3 + $0x159] sm:$0xff]
  %v2939 = vld [vmem:[#allocation3 + $0x169] sm:$0xff]
  %v2940 = vld [vmem:[#allocation3 + $0x171] sm:$0xff]
  %v2941 = vpack.c.bf16 %v2910, %v2909
  %v2942 = vpack.c.bf16 %v2912, %v2911
  %v2943 = vpack.c.bf16 %v2914, %v2913
  %v2944 = vpack.c.bf16 %v2916, %v2915
  %v2945 = vpack.c.bf16 %v2918, %v2917
  %v2946 = vpack.c.bf16 %v2920, %v2919
  %v2947 = vpack.c.bf16 %v2922, %v2921
  %v2948 = vpack.c.bf16 %v2924, %v2923
  %v2949 = vpack.c.bf16 %v2926, %v2925
  %v2950 = vpack.c.bf16 %v2928, %v2927
  %v2951 = vpack.c.bf16 %v2930, %v2929
  %v2952 = vpack.c.bf16 %v2932, %v2931
  %v2953 = vpack.c.bf16 %v2934, %v2933
  %v2954 = vpack.c.bf16 %v2936, %v2935
  %v2955 = vpack.c.bf16 %v2938, %v2937
  %v2956 = vpack.c.bf16 %v2940, %v2939
  %s2957 = scalar_lea.vmem %s3, 4
  %v2958 = vld [vmem:[%s2957] sm:$0xf]
  %v2960 = vsel %vm64, %v2941, 0
  %v2963 = vsel %vm64, %v2942, 0
  %v2966 = vsel %vm64, %v2943, 0
  %v2969 = vsel %vm64, %v2944, 0
  %v2972 = vsel %vm64, %v2945, 0
  %v2975 = vsel %vm64, %v2946, 0
  %v2978 = vsel %vm64, %v2947, 0
  %v2981 = vsel %vm64, %v2948, 0
  %v2984 = vsel %vm64, %v2949, 0
  %v2987 = vsel %vm64, %v2950, 0
  %v2990 = vsel %vm64, %v2951, 0
  %v2993 = vsel %vm64, %v2952, 0
  %v2996 = vsel %vm64, %v2953, 0
  %v2999 = vsel %vm64, %v2954, 0
  %v3002 = vsel %vm64, %v2955, 0
  %v3005 = vsel %vm64, %v2956, 0
  %vm3007 = vcmask 1043456
  %v3009 = vsel %vm3007, %v2958, 0
  %3011 = vmatprep.subr.bf16.mxu0 0
  %3012 = vmatpush1.bf16.msra.mxu0 0
  %3013 = vmatprep.subr.bf16.mxu0 0
  %3014 = vmatpush1.bf16.msra.mxu0 0
  %3015 = vmatprep.subr.bf16.mxu0 0
  %3016 = vmatpush1.bf16.msra.mxu0 0
  %3017 = vmatprep.subr.bf16.mxu0 0
  %3018 = vmatpush1.bf16.msra.mxu0 0
  %3019 = vmatprep.subr.bf16.mxu0 0
  %3020 = vmatpush1.bf16.msra.mxu0 0
  %3021 = vmatprep.subr.bf16.mxu0 0
  %3022 = vmatpush1.bf16.msra.mxu0 0
  %3023 = vmatprep.subr.bf16.mxu0 0
  %3024 = vmatpush1.bf16.msra.mxu0 0
  %3025 = vmatprep.subr.bf16.mxu0 0
  %3026 = vmatpush1.bf16.msra.mxu0 %v3009
  %3027 = vmatprep.subr.bf16.mxu0 0
  %3028 = vmatpush2.bf16.msra.mxu0 0
  %3029 = vmatprep.subr.bf16.mxu0 0
  %3030 = vmatpush2.bf16.msra.mxu0 0
  %3031 = vmatprep.subr.bf16.mxu0 0
  %3032 = vmatpush2.bf16.msra.mxu0 0
  %3033 = vmatprep.subr.bf16.mxu0 0
  %3034 = vmatpush2.bf16.msra.mxu0 0
  %3035 = vmatprep.subr.bf16.mxu0 0
  %3036 = vmatpush2.bf16.msra.mxu0 0
  %3037 = vmatprep.subr.bf16.mxu0 0
  %3038 = vmatpush2.bf16.msra.mxu0 0
  %3039 = vmatprep.subr.bf16.mxu0 0
  %3040 = vmatpush2.bf16.msra.mxu0 0
  %3041 = vmatprep.subr.bf16.mxu0 0
  %3042 = vmatpush2.bf16.msra.mxu0 0
  %3043 = vmatprep.mubr.bf16.mxu0 0
  %3044 = vmatmul.mubr.bf16.gmra.mxu0 %v2960
  %v3045 = vpop.f32.mrf.mxu0
  %v3046 = vadd.f32 0.0, %v3045
  %v3047 = vpop.f32.mrf.mxu0
  %v3048 = vpop.f32.mrf.mxu0
  %v3049 = vadd.f32 0.0, %v3048
  %v3050 = vpop.f32.mrf.mxu0
  %3051 = vmatprep.mubr.bf16.mxu0 0
  %3052 = vmatmul.mubr.bf16.gmra.mxu0 %v2963
  %v3053 = vpop.f32.mrf.mxu0
  %v3054 = vadd.f32 0.0, %v3053
  %v3055 = vpop.f32.mrf.mxu0
  %v3056 = vpop.f32.mrf.mxu0
  %v3057 = vadd.f32 0.0, %v3056
  %v3058 = vpop.f32.mrf.mxu0
  %3059 = vmatprep.mubr.bf16.mxu0 0
  %3060 = vmatmul.mubr.bf16.gmra.mxu0 %v2966
  %v3061 = vpop.f32.mrf.mxu0
  %v3062 = vadd.f32 0.0, %v3061
  %v3063 = vpop.f32.mrf.mxu0
  %v3064 = vpop.f32.mrf.mxu0
  %v3065 = vadd.f32 0.0, %v3064
  %v3066 = vpop.f32.mrf.mxu0
  %3067 = vmatprep.mubr.bf16.mxu0 0
  %3068 = vmatmul.mubr.bf16.gmra.mxu0 %v2969
  %v3069 = vpop.f32.mrf.mxu0
  %v3070 = vadd.f32 0.0, %v3069
  %v3071 = vpop.f32.mrf.mxu0
  %v3072 = vpop.f32.mrf.mxu0
  %v3073 = vadd.f32 0.0, %v3072
  %v3074 = vpop.f32.mrf.mxu0
  %3075 = vmatprep.mubr.bf16.mxu0 0
  %3076 = vmatmul.mubr.bf16.gmra.mxu0 %v2972
  %v3077 = vpop.f32.mrf.mxu0
  %v3078 = vadd.f32 0.0, %v3077
  %v3079 = vpop.f32.mrf.mxu0
  %v3080 = vpop.f32.mrf.mxu0
  %v3081 = vadd.f32 0.0, %v3080
  %v3082 = vpop.f32.mrf.mxu0
  %3083 = vmatprep.mubr.bf16.mxu0 0
  %3084 = vmatmul.mubr.bf16.gmra.mxu0 %v2975
  %v3085 = vpop.f32.mrf.mxu0
  %v3086 = vadd.f32 0.0, %v3085
  %v3087 = vpop.f32.mrf.mxu0
  %v3088 = vpop.f32.mrf.mxu0
  %v3089 = vadd.f32 0.0, %v3088
  %v3090 = vpop.f32.mrf.mxu0
  %3091 = vmatprep.mubr.bf16.mxu0 0
  %3092 = vmatmul.mubr.bf16.gmra.mxu0 %v2978
  %v3093 = vpop.f32.mrf.mxu0
  %v3094 = vadd.f32 0.0, %v3093
  %v3095 = vpop.f32.mrf.mxu0
  %v3096 = vpop.f32.mrf.mxu0
  %v3097 = vadd.f32 0.0, %v3096
  %v3098 = vpop.f32.mrf.mxu0
  %3099 = vmatprep.mubr.bf16.mxu0 0
  %3100 = vmatmul.mubr.bf16.gmra.mxu0 %v2981
  %v3101 = vpop.f32.mrf.mxu0
  %v3102 = vadd.f32 0.0, %v3101
  %v3103 = vpop.f32.mrf.mxu0
  %v3104 = vpop.f32.mrf.mxu0
  %v3105 = vadd.f32 0.0, %v3104
  %v3106 = vpop.f32.mrf.mxu0
  %3107 = vmatprep.mubr.bf16.mxu0 0
  %3108 = vmatmul.mubr.bf16.gmra.mxu0 %v2984
  %v3109 = vpop.f32.mrf.mxu0
  %v3110 = vadd.f32 0.0, %v3109
  %v3111 = vpop.f32.mrf.mxu0
  %v3112 = vpop.f32.mrf.mxu0
  %v3113 = vadd.f32 0.0, %v3112
  %v3114 = vpop.f32.mrf.mxu0
  %3115 = vmatprep.mubr.bf16.mxu0 0
  %3116 = vmatmul.mubr.bf16.gmra.mxu0 %v2987
  %v3117 = vpop.f32.mrf.mxu0
  %v3118 = vadd.f32 0.0, %v3117
  %v3119 = vpop.f32.mrf.mxu0
  %v3120 = vpop.f32.mrf.mxu0
  %v3121 = vadd.f32 0.0, %v3120
  %v3122 = vpop.f32.mrf.mxu0
  %3123 = vmatprep.mubr.bf16.mxu0 0
  %3124 = vmatmul.mubr.bf16.gmra.mxu0 %v2990
  %v3125 = vpop.f32.mrf.mxu0
  %v3126 = vadd.f32 0.0, %v3125
  %v3127 = vpop.f32.mrf.mxu0
  %v3128 = vpop.f32.mrf.mxu0
  %v3129 = vadd.f32 0.0, %v3128
  %v3130 = vpop.f32.mrf.mxu0
  %3131 = vmatprep.mubr.bf16.mxu0 0
  %3132 = vmatmul.mubr.bf16.gmra.mxu0 %v2993
  %v3133 = vpop.f32.mrf.mxu0
  %v3134 = vadd.f32 0.0, %v3133
  %v3135 = vpop.f32.mrf.mxu0
  %v3136 = vpop.f32.mrf.mxu0
  %v3137 = vadd.f32 0.0, %v3136
  %v3138 = vpop.f32.mrf.mxu0
  %3139 = vmatprep.mubr.bf16.mxu0 0
  %3140 = vmatmul.mubr.bf16.gmra.mxu0 %v2996
  %v3141 = vpop.f32.mrf.mxu0
  %v3142 = vadd.f32 0.0, %v3141
  %v3143 = vpop.f32.mrf.mxu0
  %v3144 = vpop.f32.mrf.mxu0
  %v3145 = vadd.f32 0.0, %v3144
  %v3146 = vpop.f32.mrf.mxu0
  %3147 = vmatprep.mubr.bf16.mxu0 0
  %3148 = vmatmul.mubr.bf16.gmra.mxu0 %v2999
  %v3149 = vpop.f32.mrf.mxu0
  %v3150 = vadd.f32 0.0, %v3149
  %v3151 = vpop.f32.mrf.mxu0
  %v3152 = vpop.f32.mrf.mxu0
  %v3153 = vadd.f32 0.0, %v3152
  %v3154 = vpop.f32.mrf.mxu0
  %3155 = vmatprep.mubr.bf16.mxu0 0
  %3156 = vmatmul.mubr.bf16.gmra.mxu0 %v3002
  %v3157 = vpop.f32.mrf.mxu0
  %v3158 = vadd.f32 0.0, %v3157
  %v3159 = vpop.f32.mrf.mxu0
  %v3160 = vpop.f32.mrf.mxu0
  %v3161 = vadd.f32 0.0, %v3160
  %v3162 = vpop.f32.mrf.mxu0
  %3163 = vmatprep.mubr.bf16.mxu0 0
  %3164 = vmatmul.mubr.bf16.gmra.mxu0 %v3005
  %v3165 = vpop.f32.mrf.mxu0
  %v3166 = vadd.f32 0.0, %v3165
  %v3167 = vpop.f32.mrf.mxu0
  %v3168 = vpop.f32.mrf.mxu0
  %v3169 = vadd.f32 0.0, %v3168
  %v3170 = vpop.f32.mrf.mxu0
  %3171 = vdwg.mxu0
  %v3173 = vsel %vm64, %v2892, 0
  %v3176 = vsel %vm64, %v2893, 0
  %v3179 = vsel %vm64, %v2894, 0
  %v3182 = vsel %vm64, %v2895, 0
  %v3185 = vsel %vm64, %v2896, 0
  %v3188 = vsel %vm64, %v2897, 0
  %v3191 = vsel %vm64, %v2898, 0
  %v3194 = vsel %vm64, %v2899, 0
  %v3197 = vsel %vm64, %v2900, 0
  %v3200 = vsel %vm64, %v2901, 0
  %v3203 = vsel %vm64, %v2902, 0
  %v3206 = vsel %vm64, %v2903, 0
  %v3209 = vsel %vm64, %v2904, 0
  %v3212 = vsel %vm64, %v2905, 0
  %v3215 = vsel %vm64, %v2906, 0
  %v3218 = vsel %vm64, %v2907, 0
  %v3221 = vsel %vm3007, %v2908, 0
  %3223 = vmatprep.subr.bf16.mxu0 0
  %3224 = vmatpush1.bf16.msra.mxu0 0
  %3225 = vmatprep.subr.bf16.mxu0 0
  %3226 = vmatpush1.bf16.msra.mxu0 0
  %3227 = vmatprep.subr.bf16.mxu0 0
  %3228 = vmatpush1.bf16.msra.mxu0 0
  %3229 = vmatprep.subr.bf16.mxu0 0
  %3230 = vmatpush1.bf16.msra.mxu0 0
  %3231 = vmatprep.subr.bf16.mxu0 0
  %3232 = vmatpush1.bf16.msra.mxu0 0
  %3233 = vmatprep.subr.bf16.mxu0 0
  %3234 = vmatpush1.bf16.msra.mxu0 0
  %3235 = vmatprep.subr.bf16.mxu0 0
  %3236 = vmatpush1.bf16.msra.mxu0 0
  %3237 = vmatprep.subr.bf16.mxu0 0
  %3238 = vmatpush1.bf16.msra.mxu0 %v3221
  %3239 = vmatprep.subr.bf16.mxu0 0
  %3240 = vmatpush2.bf16.msra.mxu0 0
  %3241 = vmatprep.subr.bf16.mxu0 0
  %3242 = vmatpush2.bf16.msra.mxu0 0
  %3243 = vmatprep.subr.bf16.mxu0 0
  %3244 = vmatpush2.bf16.msra.mxu0 0
  %3245 = vmatprep.subr.bf16.mxu0 0
  %3246 = vmatpush2.bf16.msra.mxu0 0
  %3247 = vmatprep.subr.bf16.mxu0 0
  %3248 = vmatpush2.bf16.msra.mxu0 0
  %3249 = vmatprep.subr.bf16.mxu0 0
  %3250 = vmatpush2.bf16.msra.mxu0 0
  %3251 = vmatprep.subr.bf16.mxu0 0
  %3252 = vmatpush2.bf16.msra.mxu0 0
  %3253 = vmatprep.subr.bf16.mxu0 0
  %3254 = vmatpush2.bf16.msra.mxu0 0
  %3255 = vmatprep.mubr.bf16.mxu0 0
  %3256 = vmatmul.mubr.bf16.gmra.mxu0 %v3173
  %v3257 = vpop.f32.mrf.mxu0
  %v3258 = vadd.f32 %v3046, %v3257
  %v3259 = vpop.f32.mrf.mxu0
  %v3260 = vpop.f32.mrf.mxu0
  %v3261 = vadd.f32 %v3049, %v3260
  %v3262 = vpop.f32.mrf.mxu0
  %3263 = vmatprep.mubr.bf16.mxu0 0
  %3264 = vmatmul.mubr.bf16.gmra.mxu0 %v3176
  %v3265 = vpop.f32.mrf.mxu0
  %v3266 = vadd.f32 %v3054, %v3265
  %v3267 = vpop.f32.mrf.mxu0
  %v3268 = vpop.f32.mrf.mxu0
  %v3269 = vadd.f32 %v3057, %v3268
  %v3270 = vpop.f32.mrf.mxu0
  %3271 = vmatprep.mubr.bf16.mxu0 0
  %3272 = vmatmul.mubr.bf16.gmra.mxu0 %v3179
  %v3273 = vpop.f32.mrf.mxu0
  %v3274 = vadd.f32 %v3062, %v3273
  %v3275 = vpop.f32.mrf.mxu0
  %v3276 = vpop.f32.mrf.mxu0
  %v3277 = vadd.f32 %v3065, %v3276
  %v3278 = vpop.f32.mrf.mxu0
  %3279 = vmatprep.mubr.bf16.mxu0 0
  %3280 = vmatmul.mubr.bf16.gmra.mxu0 %v3182
  %v3281 = vpop.f32.mrf.mxu0
  %v3282 = vadd.f32 %v3070, %v3281
  %v3283 = vpop.f32.mrf.mxu0
  %v3284 = vpop.f32.mrf.mxu0
  %v3285 = vadd.f32 %v3073, %v3284
  %v3286 = vpop.f32.mrf.mxu0
  %3287 = vmatprep.mubr.bf16.mxu0 0
  %3288 = vmatmul.mubr.bf16.gmra.mxu0 %v3185
  %v3289 = vpop.f32.mrf.mxu0
  %v3290 = vadd.f32 %v3078, %v3289
  %v3291 = vpop.f32.mrf.mxu0
  %v3292 = vpop.f32.mrf.mxu0
  %v3293 = vadd.f32 %v3081, %v3292
  %v3294 = vpop.f32.mrf.mxu0
  %3295 = vmatprep.mubr.bf16.mxu0 0
  %3296 = vmatmul.mubr.bf16.gmra.mxu0 %v3188
  %v3297 = vpop.f32.mrf.mxu0
  %v3298 = vadd.f32 %v3086, %v3297
  %v3299 = vpop.f32.mrf.mxu0
  %v3300 = vpop.f32.mrf.mxu0
  %v3301 = vadd.f32 %v3089, %v3300
  %v3302 = vpop.f32.mrf.mxu0
  %3303 = vmatprep.mubr.bf16.mxu0 0
  %3304 = vmatmul.mubr.bf16.gmra.mxu0 %v3191
  %v3305 = vpop.f32.mrf.mxu0
  %v3306 = vadd.f32 %v3094, %v3305
  %v3307 = vpop.f32.mrf.mxu0
  %v3308 = vpop.f32.mrf.mxu0
  %v3309 = vadd.f32 %v3097, %v3308
  %v3310 = vpop.f32.mrf.mxu0
  %3311 = vmatprep.mubr.bf16.mxu0 0
  %3312 = vmatmul.mubr.bf16.gmra.mxu0 %v3194
  %v3313 = vpop.f32.mrf.mxu0
  %v3314 = vadd.f32 %v3102, %v3313
  %v3315 = vpop.f32.mrf.mxu0
  %v3316 = vpop.f32.mrf.mxu0
  %v3317 = vadd.f32 %v3105, %v3316
  %v3318 = vpop.f32.mrf.mxu0
  %3319 = vmatprep.mubr.bf16.mxu0 0
  %3320 = vmatmul.mubr.bf16.gmra.mxu0 %v3197
  %v3321 = vpop.f32.mrf.mxu0
  %v3322 = vadd.f32 %v3110, %v3321
  %v3323 = vpop.f32.mrf.mxu0
  %v3324 = vpop.f32.mrf.mxu0
  %v3325 = vadd.f32 %v3113, %v3324
  %v3326 = vpop.f32.mrf.mxu0
  %3327 = vmatprep.mubr.bf16.mxu0 0
  %3328 = vmatmul.mubr.bf16.gmra.mxu0 %v3200
  %v3329 = vpop.f32.mrf.mxu0
  %v3330 = vadd.f32 %v3118, %v3329
  %v3331 = vpop.f32.mrf.mxu0
  %v3332 = vpop.f32.mrf.mxu0
  %v3333 = vadd.f32 %v3121, %v3332
  %v3334 = vpop.f32.mrf.mxu0
  %3335 = vmatprep.mubr.bf16.mxu0 0
  %3336 = vmatmul.mubr.bf16.gmra.mxu0 %v3203
  %v3337 = vpop.f32.mrf.mxu0
  %v3338 = vadd.f32 %v3126, %v3337
  %v3339 = vpop.f32.mrf.mxu0
  %v3340 = vpop.f32.mrf.mxu0
  %v3341 = vadd.f32 %v3129, %v3340
  %v3342 = vpop.f32.mrf.mxu0
  %3343 = vmatprep.mubr.bf16.mxu0 0
  %3344 = vmatmul.mubr.bf16.gmra.mxu0 %v3206
  %v3345 = vpop.f32.mrf.mxu0
  %v3346 = vadd.f32 %v3134, %v3345
  %v3347 = vpop.f32.mrf.mxu0
  %v3348 = vpop.f32.mrf.mxu0
  %v3349 = vadd.f32 %v3137, %v3348
  %v3350 = vpop.f32.mrf.mxu0
  %3351 = vmatprep.mubr.bf16.mxu0 0
  %3352 = vmatmul.mubr.bf16.gmra.mxu0 %v3209
  %v3353 = vpop.f32.mrf.mxu0
  %v3354 = vadd.f32 %v3142, %v3353
  %v3355 = vpop.f32.mrf.mxu0
  %v3356 = vpop.f32.mrf.mxu0
  %v3357 = vadd.f32 %v3145, %v3356
  %v3358 = vpop.f32.mrf.mxu0
  %3359 = vmatprep.mubr.bf16.mxu0 0
  %3360 = vmatmul.mubr.bf16.gmra.mxu0 %v3212
  %v3361 = vpop.f32.mrf.mxu0
  %v3362 = vadd.f32 %v3150, %v3361
  %v3363 = vpop.f32.mrf.mxu0
  %v3364 = vpop.f32.mrf.mxu0
  %v3365 = vadd.f32 %v3153, %v3364
  %v3366 = vpop.f32.mrf.mxu0
  %3367 = vmatprep.mubr.bf16.mxu0 0
  %3368 = vmatmul.mubr.bf16.gmra.mxu0 %v3215
  %v3369 = vpop.f32.mrf.mxu0
  %v3370 = vadd.f32 %v3158, %v3369
  %v3371 = vpop.f32.mrf.mxu0
  %v3372 = vpop.f32.mrf.mxu0
  %v3373 = vadd.f32 %v3161, %v3372
  %v3374 = vpop.f32.mrf.mxu0
  %3375 = vmatprep.mubr.bf16.mxu0 0
  %3376 = vmatmul.mubr.bf16.gmra.mxu0 %v3218
  %v3377 = vpop.f32.mrf.mxu0
  %v3378 = vadd.f32 %v3166, %v3377
  %v3379 = vpop.f32.mrf.mxu0
  %v3380 = vpop.f32.mrf.mxu0
  %v3381 = vadd.f32 %v3169, %v3380
  %v3382 = vpop.f32.mrf.mxu0
  %3383 = vdwg.mxu0
  %v3384 = vld [vmem:[#allocation3 + $0x2] sm:$0xff]
  %v3385 = vld [vmem:[#allocation3 + $0xa] sm:$0xff]
  %v3386 = vld [vmem:[#allocation3 + $0x1a] sm:$0xff]
  %v3387 = vld [vmem:[#allocation3 + $0x22] sm:$0xff]
  %v3388 = vld [vmem:[#allocation3 + $0x32] sm:$0xff]
  %v3389 = vld [vmem:[#allocation3 + $0x3a] sm:$0xff]
  %v3390 = vld [vmem:[#allocation3 + $0x4a] sm:$0xff]
  %v3391 = vld [vmem:[#allocation3 + $0x52] sm:$0xff]
  %v3392 = vld [vmem:[#allocation3 + $0x62] sm:$0xff]
  %v3393 = vld [vmem:[#allocation3 + $0x6a] sm:$0xff]
  %v3394 = vld [vmem:[#allocation3 + $0x7a] sm:$0xff]
  %v3395 = vld [vmem:[#allocation3 + $0x82] sm:$0xff]
  %v3396 = vld [vmem:[#allocation3 + $0x92] sm:$0xff]
  %v3397 = vld [vmem:[#allocation3 + $0x9a] sm:$0xff]
  %v3398 = vld [vmem:[#allocation3 + $0xaa] sm:$0xff]
  %v3399 = vld [vmem:[#allocation3 + $0xb2] sm:$0xff]
  %v3400 = vld [vmem:[#allocation3 + $0xc2] sm:$0xff]
  %v3401 = vld [vmem:[#allocation3 + $0xca] sm:$0xff]
  %v3402 = vld [vmem:[#allocation3 + $0xda] sm:$0xff]
  %v3403 = vld [vmem:[#allocation3 + $0xe2] sm:$0xff]
  %v3404 = vld [vmem:[#allocation3 + $0xf2] sm:$0xff]
  %v3405 = vld [vmem:[#allocation3 + $0xfa] sm:$0xff]
  %v3406 = vld [vmem:[#allocation3 + $0x10a] sm:$0xff]
  %v3407 = vld [vmem:[#allocation3 + $0x112] sm:$0xff]
  %v3408 = vld [vmem:[#allocation3 + $0x122] sm:$0xff]
  %v3409 = vld [vmem:[#allocation3 + $0x12a] sm:$0xff]
  %v3410 = vld [vmem:[#allocation3 + $0x13a] sm:$0xff]
  %v3411 = vld [vmem:[#allocation3 + $0x142] sm:$0xff]
  %v3412 = vld [vmem:[#allocation3 + $0x152] sm:$0xff]
  %v3413 = vld [vmem:[#allocation3 + $0x15a] sm:$0xff]
  %v3414 = vld [vmem:[#allocation3 + $0x16a] sm:$0xff]
  %v3415 = vld [vmem:[#allocation3 + $0x172] sm:$0xff]
  %v3416 = vpack.c.bf16 %v3385, %v3384
  %v3417 = vpack.c.bf16 %v3387, %v3386
  %v3418 = vpack.c.bf16 %v3389, %v3388
  %v3419 = vpack.c.bf16 %v3391, %v3390
  %v3420 = vpack.c.bf16 %v3393, %v3392
  %v3421 = vpack.c.bf16 %v3395, %v3394
  %v3422 = vpack.c.bf16 %v3397, %v3396
  %v3423 = vpack.c.bf16 %v3399, %v3398
  %v3424 = vpack.c.bf16 %v3401, %v3400
  %v3425 = vpack.c.bf16 %v3403, %v3402
  %v3426 = vpack.c.bf16 %v3405, %v3404
  %v3427 = vpack.c.bf16 %v3407, %v3406
  %v3428 = vpack.c.bf16 %v3409, %v3408
  %v3429 = vpack.c.bf16 %v3411, %v3410
  %v3430 = vpack.c.bf16 %v3413, %v3412
  %v3431 = vpack.c.bf16 %v3415, %v3414
  %s3432 = scalar_lea.vmem %s3, 8
  %v3433 = vld [vmem:[%s3432] sm:$0xf]
  %v3435 = vsel %vm64, %v3416, 0
  %v3438 = vsel %vm64, %v3417, 0
  %v3441 = vsel %vm64, %v3418, 0
  %v3444 = vsel %vm64, %v3419, 0
  %v3447 = vsel %vm64, %v3420, 0
  %v3450 = vsel %vm64, %v3421, 0
  %v3453 = vsel %vm64, %v3422, 0
  %v3456 = vsel %vm64, %v3423, 0
  %v3459 = vsel %vm64, %v3424, 0
  %v3462 = vsel %vm64, %v3425, 0
  %v3465 = vsel %vm64, %v3426, 0
  %v3468 = vsel %vm64, %v3427, 0
  %v3471 = vsel %vm64, %v3428, 0
  %v3474 = vsel %vm64, %v3429, 0
  %v3477 = vsel %vm64, %v3430, 0
  %v3480 = vsel %vm64, %v3431, 0
  %v3483 = vsel %vm3007, %v3433, 0
  %3485 = vmatprep.subr.bf16.mxu0 0
  %3486 = vmatpush1.bf16.msra.mxu0 0
  %3487 = vmatprep.subr.bf16.mxu0 0
  %3488 = vmatpush1.bf16.msra.mxu0 0
  %3489 = vmatprep.subr.bf16.mxu0 0
  %3490 = vmatpush1.bf16.msra.mxu0 0
  %3491 = vmatprep.subr.bf16.mxu0 0
  %3492 = vmatpush1.bf16.msra.mxu0 0
  %3493 = vmatprep.subr.bf16.mxu0 0
  %3494 = vmatpush1.bf16.msra.mxu0 0
  %3495 = vmatprep.subr.bf16.mxu0 0
  %3496 = vmatpush1.bf16.msra.mxu0 0
  %3497 = vmatprep.subr.bf16.mxu0 0
  %3498 = vmatpush1.bf16.msra.mxu0 0
  %3499 = vmatprep.subr.bf16.mxu0 0
  %3500 = vmatpush1.bf16.msra.mxu0 %v3483
  %3501 = vmatprep.subr.bf16.mxu0 0
  %3502 = vmatpush2.bf16.msra.mxu0 0
  %3503 = vmatprep.subr.bf16.mxu0 0
  %3504 = vmatpush2.bf16.msra.mxu0 0
  %3505 = vmatprep.subr.bf16.mxu0 0
  %3506 = vmatpush2.bf16.msra.mxu0 0
  %3507 = vmatprep.subr.bf16.mxu0 0
  %3508 = vmatpush2.bf16.msra.mxu0 0
  %3509 = vmatprep.subr.bf16.mxu0 0
  %3510 = vmatpush2.bf16.msra.mxu0 0
  %3511 = vmatprep.subr.bf16.mxu0 0
  %3512 = vmatpush2.bf16.msra.mxu0 0
  %3513 = vmatprep.subr.bf16.mxu0 0
  %3514 = vmatpush2.bf16.msra.mxu0 0
  %3515 = vmatprep.subr.bf16.mxu0 0
  %3516 = vmatpush2.bf16.msra.mxu0 0
  %3517 = vmatprep.mubr.bf16.mxu0 0
  %3518 = vmatmul.mubr.bf16.gmra.mxu0 %v3435
  %v3519 = vpop.f32.mrf.mxu0
  %v3520 = vadd.f32 0.0, %v3519
  %v3521 = vpop.f32.mrf.mxu0
  %v3522 = vpop.f32.mrf.mxu0
  %v3523 = vadd.f32 0.0, %v3522
  %v3524 = vpop.f32.mrf.mxu0
  %3525 = vmatprep.mubr.bf16.mxu0 0
  %3526 = vmatmul.mubr.bf16.gmra.mxu0 %v3438
  %v3527 = vpop.f32.mrf.mxu0
  %v3528 = vadd.f32 0.0, %v3527
  %v3529 = vpop.f32.mrf.mxu0
  %v3530 = vpop.f32.mrf.mxu0
  %v3531 = vadd.f32 0.0, %v3530
  %v3532 = vpop.f32.mrf.mxu0
  %3533 = vmatprep.mubr.bf16.mxu0 0
  %3534 = vmatmul.mubr.bf16.gmra.mxu0 %v3441
  %v3535 = vpop.f32.mrf.mxu0
  %v3536 = vadd.f32 0.0, %v3535
  %v3537 = vpop.f32.mrf.mxu0
  %v3538 = vpop.f32.mrf.mxu0
  %v3539 = vadd.f32 0.0, %v3538
  %v3540 = vpop.f32.mrf.mxu0
  %3541 = vmatprep.mubr.bf16.mxu0 0
  %3542 = vmatmul.mubr.bf16.gmra.mxu0 %v3444
  %v3543 = vpop.f32.mrf.mxu0
  %v3544 = vadd.f32 0.0, %v3543
  %v3545 = vpop.f32.mrf.mxu0
  %v3546 = vpop.f32.mrf.mxu0
  %v3547 = vadd.f32 0.0, %v3546
  %v3548 = vpop.f32.mrf.mxu0
  %3549 = vmatprep.mubr.bf16.mxu0 0
  %3550 = vmatmul.mubr.bf16.gmra.mxu0 %v3447
  %v3551 = vpop.f32.mrf.mxu0
  %v3552 = vadd.f32 0.0, %v3551
  %v3553 = vpop.f32.mrf.mxu0
  %v3554 = vpop.f32.mrf.mxu0
  %v3555 = vadd.f32 0.0, %v3554
  %v3556 = vpop.f32.mrf.mxu0
  %3557 = vmatprep.mubr.bf16.mxu0 0
  %3558 = vmatmul.mubr.bf16.gmra.mxu0 %v3450
  %v3559 = vpop.f32.mrf.mxu0
  %v3560 = vadd.f32 0.0, %v3559
  %v3561 = vpop.f32.mrf.mxu0
  %v3562 = vpop.f32.mrf.mxu0
  %v3563 = vadd.f32 0.0, %v3562
  %v3564 = vpop.f32.mrf.mxu0
  %3565 = vmatprep.mubr.bf16.mxu0 0
  %3566 = vmatmul.mubr.bf16.gmra.mxu0 %v3453
  %v3567 = vpop.f32.mrf.mxu0
  %v3568 = vadd.f32 0.0, %v3567
  %v3569 = vpop.f32.mrf.mxu0
  %v3570 = vpop.f32.mrf.mxu0
  %v3571 = vadd.f32 0.0, %v3570
  %v3572 = vpop.f32.mrf.mxu0
  %3573 = vmatprep.mubr.bf16.mxu0 0
  %3574 = vmatmul.mubr.bf16.gmra.mxu0 %v3456
  %v3575 = vpop.f32.mrf.mxu0
  %v3576 = vadd.f32 0.0, %v3575
  %v3577 = vpop.f32.mrf.mxu0
  %v3578 = vpop.f32.mrf.mxu0
  %v3579 = vadd.f32 0.0, %v3578
  %v3580 = vpop.f32.mrf.mxu0
  %3581 = vmatprep.mubr.bf16.mxu0 0
  %3582 = vmatmul.mubr.bf16.gmra.mxu0 %v3459
  %v3583 = vpop.f32.mrf.mxu0
  %v3584 = vadd.f32 0.0, %v3583
  %v3585 = vpop.f32.mrf.mxu0
  %v3586 = vpop.f32.mrf.mxu0
  %v3587 = vadd.f32 0.0, %v3586
  %v3588 = vpop.f32.mrf.mxu0
  %3589 = vmatprep.mubr.bf16.mxu0 0
  %3590 = vmatmul.mubr.bf16.gmra.mxu0 %v3462
  %v3591 = vpop.f32.mrf.mxu0
  %v3592 = vadd.f32 0.0, %v3591
  %v3593 = vpop.f32.mrf.mxu0
  %v3594 = vpop.f32.mrf.mxu0
  %v3595 = vadd.f32 0.0, %v3594
  %v3596 = vpop.f32.mrf.mxu0
  %3597 = vmatprep.mubr.bf16.mxu0 0
  %3598 = vmatmul.mubr.bf16.gmra.mxu0 %v3465
  %v3599 = vpop.f32.mrf.mxu0
  %v3600 = vadd.f32 0.0, %v3599
  %v3601 = vpop.f32.mrf.mxu0
  %v3602 = vpop.f32.mrf.mxu0
  %v3603 = vadd.f32 0.0, %v3602
  %v3604 = vpop.f32.mrf.mxu0
  %3605 = vmatprep.mubr.bf16.mxu0 0
  %3606 = vmatmul.mubr.bf16.gmra.mxu0 %v3468
  %v3607 = vpop.f32.mrf.mxu0
  %v3608 = vadd.f32 0.0, %v3607
  %v3609 = vpop.f32.mrf.mxu0
  %v3610 = vpop.f32.mrf.mxu0
  %v3611 = vadd.f32 0.0, %v3610
  %v3612 = vpop.f32.mrf.mxu0
  %3613 = vmatprep.mubr.bf16.mxu0 0
  %3614 = vmatmul.mubr.bf16.gmra.mxu0 %v3471
  %v3615 = vpop.f32.mrf.mxu0
  %v3616 = vadd.f32 0.0, %v3615
  %v3617 = vpop.f32.mrf.mxu0
  %v3618 = vpop.f32.mrf.mxu0
  %v3619 = vadd.f32 0.0, %v3618
  %v3620 = vpop.f32.mrf.mxu0
  %3621 = vmatprep.mubr.bf16.mxu0 0
  %3622 = vmatmul.mubr.bf16.gmra.mxu0 %v3474
  %v3623 = vpop.f32.mrf.mxu0
  %v3624 = vadd.f32 0.0, %v3623
  %v3625 = vpop.f32.mrf.mxu0
  %v3626 = vpop.f32.mrf.mxu0
  %v3627 = vadd.f32 0.0, %v3626
  %v3628 = vpop.f32.mrf.mxu0
  %3629 = vmatprep.mubr.bf16.mxu0 0
  %3630 = vmatmul.mubr.bf16.gmra.mxu0 %v3477
  %v3631 = vpop.f32.mrf.mxu0
  %v3632 = vadd.f32 0.0, %v3631
  %v3633 = vpop.f32.mrf.mxu0
  %v3634 = vpop.f32.mrf.mxu0
  %v3635 = vadd.f32 0.0, %v3634
  %v3636 = vpop.f32.mrf.mxu0
  %3637 = vmatprep.mubr.bf16.mxu0 0
  %3638 = vmatmul.mubr.bf16.gmra.mxu0 %v3480
  %v3639 = vpop.f32.mrf.mxu0
  %v3640 = vadd.f32 0.0, %v3639
  %v3641 = vpop.f32.mrf.mxu0
  %v3642 = vpop.f32.mrf.mxu0
  %v3643 = vadd.f32 0.0, %v3642
  %v3644 = vpop.f32.mrf.mxu0
  %3645 = vdwg.mxu0
  %v3646 = vadd.f32 %v3258, %v3520
  %v3647 = vadd.f32 %v3261, %v3523
  %v3648 = vadd.f32 %v3266, %v3528
  %v3649 = vadd.f32 %v3269, %v3531
  %v3650 = vadd.f32 %v3274, %v3536
  %v3651 = vadd.f32 %v3277, %v3539
  %v3652 = vadd.f32 %v3282, %v3544
  %v3653 = vadd.f32 %v3285, %v3547
  %v3654 = vadd.f32 %v3290, %v3552
  %v3655 = vadd.f32 %v3293, %v3555
  %v3656 = vadd.f32 %v3298, %v3560
  %v3657 = vadd.f32 %v3301, %v3563
  %v3658 = vadd.f32 %v3306, %v3568
  %v3659 = vadd.f32 %v3309, %v3571
  %v3660 = vadd.f32 %v3314, %v3576
  %v3661 = vadd.f32 %v3317, %v3579
  %v3662 = vadd.f32 %v3322, %v3584
  %v3663 = vadd.f32 %v3325, %v3587
  %v3664 = vadd.f32 %v3330, %v3592
  %v3665 = vadd.f32 %v3333, %v3595
  %v3666 = vadd.f32 %v3338, %v3600
  %v3667 = vadd.f32 %v3341, %v3603
  %v3668 = vadd.f32 %v3346, %v3608
  %v3669 = vadd.f32 %v3349, %v3611
  %v3670 = vadd.f32 %v3354, %v3616
  %v3671 = vadd.f32 %v3357, %v3619
  %v3672 = vadd.f32 %v3362, %v3624
  %v3673 = vadd.f32 %v3365, %v3627
  %v3674 = vadd.f32 %v3370, %v3632
  %v3675 = vadd.f32 %v3373, %v3635
  %v3676 = vadd.f32 %v3378, %v3640
  %v3677 = vadd.f32 %v3381, %v3643
  %v3678 = vld [vmem:[%s73] sm:$0xff]
  %v3679 = vld [vmem:[%s73 + $0x8] sm:$0xff]
  %v3680 = vld [vmem:[%s73 + $0x18] sm:$0xff]
  %v3681 = vld [vmem:[%s73 + $0x20] sm:$0xff]
  %v3682 = vld [vmem:[%s73 + $0x30] sm:$0xff]
  %v3683 = vld [vmem:[%s73 + $0x38] sm:$0xff]
  %v3684 = vld [vmem:[%s73 + $0x48] sm:$0xff]
  %v3685 = vld [vmem:[%s73 + $0x50] sm:$0xff]
  %v3686 = vld [vmem:[%s73 + $0x60] sm:$0xff]
  %v3687 = vld [vmem:[%s73 + $0x68] sm:$0xff]
  %v3688 = vld [vmem:[%s73 + $0x78] sm:$0xff]
  %v3689 = vld [vmem:[%s73 + $0x80] sm:$0xff]
  %v3690 = vld [vmem:[%s73 + $0x90] sm:$0xff]
  %v3691 = vld [vmem:[%s73 + $0x98] sm:$0xff]
  %v3692 = vld [vmem:[%s73 + $0xa8] sm:$0xff]
  %v3693 = vld [vmem:[%s73 + $0xb0] sm:$0xff]
  %v3694 = vld [vmem:[%s73 + $0xc0] sm:$0xff]
  %v3695 = vld [vmem:[%s73 + $0xc8] sm:$0xff]
  %v3696 = vld [vmem:[%s73 + $0xd8] sm:$0xff]
  %v3697 = vld [vmem:[%s73 + $0xe0] sm:$0xff]
  %v3698 = vld [vmem:[%s73 + $0xf0] sm:$0xff]
  %v3699 = vld [vmem:[%s73 + $0xf8] sm:$0xff]
  %v3700 = vld [vmem:[%s73 + $0x108] sm:$0xff]
  %v3701 = vld [vmem:[%s73 + $0x110] sm:$0xff]
  %v3702 = vld [vmem:[%s73 + $0x120] sm:$0xff]
  %v3703 = vld [vmem:[%s73 + $0x128] sm:$0xff]
  %v3704 = vld [vmem:[%s73 + $0x138] sm:$0xff]
  %v3705 = vld [vmem:[%s73 + $0x140] sm:$0xff]
  %v3706 = vld [vmem:[%s73 + $0x150] sm:$0xff]
  %v3707 = vld [vmem:[%s73 + $0x158] sm:$0xff]
  %v3708 = vld [vmem:[%s73 + $0x168] sm:$0xff]
  %v3709 = vld [vmem:[%s73 + $0x170] sm:$0xff]
  %v3710 = vpack.c.bf16 %v3679, %v3678
  %v3711 = vpack.c.bf16 %v3681, %v3680
  %v3712 = vpack.c.bf16 %v3683, %v3682
  %v3713 = vpack.c.bf16 %v3685, %v3684
  %v3714 = vpack.c.bf16 %v3687, %v3686
  %v3715 = vpack.c.bf16 %v3689, %v3688
  %v3716 = vpack.c.bf16 %v3691, %v3690
  %v3717 = vpack.c.bf16 %v3693, %v3692
  %v3718 = vpack.c.bf16 %v3695, %v3694
  %v3719 = vpack.c.bf16 %v3697, %v3696
  %v3720 = vpack.c.bf16 %v3699, %v3698
  %v3721 = vpack.c.bf16 %v3701, %v3700
  %v3722 = vpack.c.bf16 %v3703, %v3702
  %v3723 = vpack.c.bf16 %v3705, %v3704
  %v3724 = vpack.c.bf16 %v3707, %v3706
  %v3725 = vpack.c.bf16 %v3709, %v3708
  %s3726 = scalar_lea.vmem %s3, 12
  %v3727 = vld [vmem:[%s3726] sm:$0xf]
  %v3729 = vsel %vm64, %v3710, 0
  %v3732 = vsel %vm64, %v3711, 0
  %v3735 = vsel %vm64, %v3712, 0
  %v3738 = vsel %vm64, %v3713, 0
  %v3741 = vsel %vm64, %v3714, 0
  %v3744 = vsel %vm64, %v3715, 0
  %v3747 = vsel %vm64, %v3716, 0
  %v3750 = vsel %vm64, %v3717, 0
  %v3753 = vsel %vm64, %v3718, 0
  %v3756 = vsel %vm64, %v3719, 0
  %v3759 = vsel %vm64, %v3720, 0
  %v3762 = vsel %vm64, %v3721, 0
  %v3765 = vsel %vm64, %v3722, 0
  %v3768 = vsel %vm64, %v3723, 0
  %v3771 = vsel %vm64, %v3724, 0
  %v3774 = vsel %vm64, %v3725, 0
  %v3777 = vsel %vm3007, %v3727, 0
  %3779 = vmatprep.subr.bf16.mxu0 0
  %3780 = vmatpush1.bf16.msra.mxu0 0
  %3781 = vmatprep.subr.bf16.mxu0 0
  %3782 = vmatpush1.bf16.msra.mxu0 0
  %3783 = vmatprep.subr.bf16.mxu0 0
  %3784 = vmatpush1.bf16.msra.mxu0 0
  %3785 = vmatprep.subr.bf16.mxu0 0
  %3786 = vmatpush1.bf16.msra.mxu0 0
  %3787 = vmatprep.subr.bf16.mxu0 0
  %3788 = vmatpush1.bf16.msra.mxu0 0
  %3789 = vmatprep.subr.bf16.mxu0 0
  %3790 = vmatpush1.bf16.msra.mxu0 0
  %3791 = vmatprep.subr.bf16.mxu0 0
  %3792 = vmatpush1.bf16.msra.mxu0 0
  %3793 = vmatprep.subr.bf16.mxu0 0
  %3794 = vmatpush1.bf16.msra.mxu0 %v3777
  %3795 = vmatprep.subr.bf16.mxu0 0
  %3796 = vmatpush2.bf16.msra.mxu0 0
  %3797 = vmatprep.subr.bf16.mxu0 0
  %3798 = vmatpush2.bf16.msra.mxu0 0
  %3799 = vmatprep.subr.bf16.mxu0 0
  %3800 = vmatpush2.bf16.msra.mxu0 0
  %3801 = vmatprep.subr.bf16.mxu0 0
  %3802 = vmatpush2.bf16.msra.mxu0 0
  %3803 = vmatprep.subr.bf16.mxu0 0
  %3804 = vmatpush2.bf16.msra.mxu0 0
  %3805 = vmatprep.subr.bf16.mxu0 0
  %3806 = vmatpush2.bf16.msra.mxu0 0
  %3807 = vmatprep.subr.bf16.mxu0 0
  %3808 = vmatpush2.bf16.msra.mxu0 0
  %3809 = vmatprep.subr.bf16.mxu0 0
  %3810 = vmatpush2.bf16.msra.mxu0 0
  %3811 = vmatprep.mubr.bf16.mxu0 0
  %3812 = vmatmul.mubr.bf16.gmra.mxu0 %v3729
  %v3813 = vpop.f32.mrf.mxu0
  %v3814 = vadd.f32 0.0, %v3813
  %v3815 = vpop.f32.mrf.mxu0
  %v3816 = vpop.f32.mrf.mxu0
  %v3817 = vadd.f32 0.0, %v3816
  %v3818 = vpop.f32.mrf.mxu0
  %3819 = vmatprep.mubr.bf16.mxu0 0
  %3820 = vmatmul.mubr.bf16.gmra.mxu0 %v3732
  %v3821 = vpop.f32.mrf.mxu0
  %v3822 = vadd.f32 0.0, %v3821
  %v3823 = vpop.f32.mrf.mxu0
  %v3824 = vpop.f32.mrf.mxu0
  %v3825 = vadd.f32 0.0, %v3824
  %v3826 = vpop.f32.mrf.mxu0
  %3827 = vmatprep.mubr.bf16.mxu0 0
  %3828 = vmatmul.mubr.bf16.gmra.mxu0 %v3735
  %v3829 = vpop.f32.mrf.mxu0
  %v3830 = vadd.f32 0.0, %v3829
  %v3831 = vpop.f32.mrf.mxu0
  %v3832 = vpop.f32.mrf.mxu0
  %v3833 = vadd.f32 0.0, %v3832
  %v3834 = vpop.f32.mrf.mxu0
  %3835 = vmatprep.mubr.bf16.mxu0 0
  %3836 = vmatmul.mubr.bf16.gmra.mxu0 %v3738
  %v3837 = vpop.f32.mrf.mxu0
  %v3838 = vadd.f32 0.0, %v3837
  %v3839 = vpop.f32.mrf.mxu0
  %v3840 = vpop.f32.mrf.mxu0
  %v3841 = vadd.f32 0.0, %v3840
  %v3842 = vpop.f32.mrf.mxu0
  %3843 = vmatprep.mubr.bf16.mxu0 0
  %3844 = vmatmul.mubr.bf16.gmra.mxu0 %v3741
  %v3845 = vpop.f32.mrf.mxu0
  %v3846 = vadd.f32 0.0, %v3845
  %v3847 = vpop.f32.mrf.mxu0
  %v3848 = vpop.f32.mrf.mxu0
  %v3849 = vadd.f32 0.0, %v3848
  %v3850 = vpop.f32.mrf.mxu0
  %3851 = vmatprep.mubr.bf16.mxu0 0
  %3852 = vmatmul.mubr.bf16.gmra.mxu0 %v3744
  %v3853 = vpop.f32.mrf.mxu0
  %v3854 = vadd.f32 0.0, %v3853
  %v3855 = vpop.f32.mrf.mxu0
  %v3856 = vpop.f32.mrf.mxu0
  %v3857 = vadd.f32 0.0, %v3856
  %v3858 = vpop.f32.mrf.mxu0
  %3859 = vmatprep.mubr.bf16.mxu0 0
  %3860 = vmatmul.mubr.bf16.gmra.mxu0 %v3747
  %v3861 = vpop.f32.mrf.mxu0
  %v3862 = vadd.f32 0.0, %v3861
  %v3863 = vpop.f32.mrf.mxu0
  %v3864 = vpop.f32.mrf.mxu0
  %v3865 = vadd.f32 0.0, %v3864
  %v3866 = vpop.f32.mrf.mxu0
  %3867 = vmatprep.mubr.bf16.mxu0 0
  %3868 = vmatmul.mubr.bf16.gmra.mxu0 %v3750
  %v3869 = vpop.f32.mrf.mxu0
  %v3870 = vadd.f32 0.0, %v3869
  %v3871 = vpop.f32.mrf.mxu0
  %v3872 = vpop.f32.mrf.mxu0
  %v3873 = vadd.f32 0.0, %v3872
  %v3874 = vpop.f32.mrf.mxu0
  %3875 = vmatprep.mubr.bf16.mxu0 0
  %3876 = vmatmul.mubr.bf16.gmra.mxu0 %v3753
  %v3877 = vpop.f32.mrf.mxu0
  %v3878 = vadd.f32 0.0, %v3877
  %v3879 = vpop.f32.mrf.mxu0
  %v3880 = vpop.f32.mrf.mxu0
  %v3881 = vadd.f32 0.0, %v3880
  %v3882 = vpop.f32.mrf.mxu0
  %3883 = vmatprep.mubr.bf16.mxu0 0
  %3884 = vmatmul.mubr.bf16.gmra.mxu0 %v3756
  %v3885 = vpop.f32.mrf.mxu0
  %v3886 = vadd.f32 0.0, %v3885
  %v3887 = vpop.f32.mrf.mxu0
  %v3888 = vpop.f32.mrf.mxu0
  %v3889 = vadd.f32 0.0, %v3888
  %v3890 = vpop.f32.mrf.mxu0
  %3891 = vmatprep.mubr.bf16.mxu0 0
  %3892 = vmatmul.mubr.bf16.gmra.mxu0 %v3759
  %v3893 = vpop.f32.mrf.mxu0
  %v3894 = vadd.f32 0.0, %v3893
  %v3895 = vpop.f32.mrf.mxu0
  %v3896 = vpop.f32.mrf.mxu0
  %v3897 = vadd.f32 0.0, %v3896
  %v3898 = vpop.f32.mrf.mxu0
  %3899 = vmatprep.mubr.bf16.mxu0 0
  %3900 = vmatmul.mubr.bf16.gmra.mxu0 %v3762
  %v3901 = vpop.f32.mrf.mxu0
  %v3902 = vadd.f32 0.0, %v3901
  %v3903 = vpop.f32.mrf.mxu0
  %v3904 = vpop.f32.mrf.mxu0
  %v3905 = vadd.f32 0.0, %v3904
  %v3906 = vpop.f32.mrf.mxu0
  %3907 = vmatprep.mubr.bf16.mxu0 0
  %3908 = vmatmul.mubr.bf16.gmra.mxu0 %v3765
  %v3909 = vpop.f32.mrf.mxu0
  %v3910 = vadd.f32 0.0, %v3909
  %v3911 = vpop.f32.mrf.mxu0
  %v3912 = vpop.f32.mrf.mxu0
  %v3913 = vadd.f32 0.0, %v3912
  %v3914 = vpop.f32.mrf.mxu0
  %3915 = vmatprep.mubr.bf16.mxu0 0
  %3916 = vmatmul.mubr.bf16.gmra.mxu0 %v3768
  %v3917 = vpop.f32.mrf.mxu0
  %v3918 = vadd.f32 0.0, %v3917
  %v3919 = vpop.f32.mrf.mxu0
  %v3920 = vpop.f32.mrf.mxu0
  %v3921 = vadd.f32 0.0, %v3920
  %v3922 = vpop.f32.mrf.mxu0
  %3923 = vmatprep.mubr.bf16.mxu0 0
  %3924 = vmatmul.mubr.bf16.gmra.mxu0 %v3771
  %v3925 = vpop.f32.mrf.mxu0
  %v3926 = vadd.f32 0.0, %v3925
  %v3927 = vpop.f32.mrf.mxu0
  %v3928 = vpop.f32.mrf.mxu0
  %v3929 = vadd.f32 0.0, %v3928
  %v3930 = vpop.f32.mrf.mxu0
  %3931 = vmatprep.mubr.bf16.mxu0 0
  %3932 = vmatmul.mubr.bf16.gmra.mxu0 %v3774
  %v3933 = vpop.f32.mrf.mxu0
  %v3934 = vadd.f32 0.0, %v3933
  %v3935 = vpop.f32.mrf.mxu0
  %v3936 = vpop.f32.mrf.mxu0
  %v3937 = vadd.f32 0.0, %v3936
  %v3938 = vpop.f32.mrf.mxu0
  %3939 = vdwg.mxu0
  %v3940 = vadd.f32 %v3646, %v3814
  %v3941 = vadd.f32 %v3647, %v3817
  %v3942 = vadd.f32 %v3648, %v3822
  %v3943 = vadd.f32 %v3649, %v3825
  %v3944 = vadd.f32 %v3650, %v3830
  %v3945 = vadd.f32 %v3651, %v3833
  %v3946 = vadd.f32 %v3652, %v3838
  %v3947 = vadd.f32 %v3653, %v3841
  %v3948 = vadd.f32 %v3654, %v3846
  %v3949 = vadd.f32 %v3655, %v3849
  %v3950 = vadd.f32 %v3656, %v3854
  %v3951 = vadd.f32 %v3657, %v3857
  %v3952 = vadd.f32 %v3658, %v3862
  %v3953 = vadd.f32 %v3659, %v3865
  %v3954 = vadd.f32 %v3660, %v3870
  %v3955 = vadd.f32 %v3661, %v3873
  %v3956 = vadd.f32 %v3662, %v3878
  %v3957 = vadd.f32 %v3663, %v3881
  %v3958 = vadd.f32 %v3664, %v3886
  %v3959 = vadd.f32 %v3665, %v3889
  %v3960 = vadd.f32 %v3666, %v3894
  %v3961 = vadd.f32 %v3667, %v3897
  %v3962 = vadd.f32 %v3668, %v3902
  %v3963 = vadd.f32 %v3669, %v3905
  %v3964 = vadd.f32 %v3670, %v3910
  %v3965 = vadd.f32 %v3671, %v3913
  %v3966 = vadd.f32 %v3672, %v3918
  %v3967 = vadd.f32 %v3673, %v3921
  %v3968 = vadd.f32 %v3674, %v3926
  %v3969 = vadd.f32 %v3675, %v3929
  %v3970 = vadd.f32 %v3676, %v3934
  %v3971 = vadd.f32 %v3677, %v3937
  %v3972 = vld [vmem:[%s73 + $0x1] sm:$0xff]
  %v3973 = vld [vmem:[%s73 + $0x9] sm:$0xff]
  %v3974 = vld [vmem:[%s73 + $0x19] sm:$0xff]
  %v3975 = vld [vmem:[%s73 + $0x21] sm:$0xff]
  %v3976 = vld [vmem:[%s73 + $0x31] sm:$0xff]
  %v3977 = vld [vmem:[%s73 + $0x39] sm:$0xff]
  %v3978 = vld [vmem:[%s73 + $0x49] sm:$0xff]
  %v3979 = vld [vmem:[%s73 + $0x51] sm:$0xff]
  %v3980 = vld [vmem:[%s73 + $0x61] sm:$0xff]
  %v3981 = vld [vmem:[%s73 + $0x69] sm:$0xff]
  %v3982 = vld [vmem:[%s73 + $0x79] sm:$0xff]
  %v3983 = vld [vmem:[%s73 + $0x81] sm:$0xff]
  %v3984 = vld [vmem:[%s73 + $0x91] sm:$0xff]
  %v3985 = vld [vmem:[%s73 + $0x99] sm:$0xff]
  %v3986 = vld [vmem:[%s73 + $0xa9] sm:$0xff]
  %v3987 = vld [vmem:[%s73 + $0xb1] sm:$0xff]
  %v3988 = vld [vmem:[%s73 + $0xc1] sm:$0xff]
  %v3989 = vld [vmem:[%s73 + $0xc9] sm:$0xff]
  %v3990 = vld [vmem:[%s73 + $0xd9] sm:$0xff]
  %v3991 = vld [vmem:[%s73 + $0xe1] sm:$0xff]
  %v3992 = vld [vmem:[%s73 + $0xf1] sm:$0xff]
  %v3993 = vld [vmem:[%s73 + $0xf9] sm:$0xff]
  %v3994 = vld [vmem:[%s73 + $0x109] sm:$0xff]
  %v3995 = vld [vmem:[%s73 + $0x111] sm:$0xff]
  %v3996 = vld [vmem:[%s73 + $0x121] sm:$0xff]
  %v3997 = vld [vmem:[%s73 + $0x129] sm:$0xff]
  %v3998 = vld [vmem:[%s73 + $0x139] sm:$0xff]
  %v3999 = vld [vmem:[%s73 + $0x141] sm:$0xff]
  %v4000 = vld [vmem:[%s73 + $0x151] sm:$0xff]
  %v4001 = vld [vmem:[%s73 + $0x159] sm:$0xff]
  %v4002 = vld [vmem:[%s73 + $0x169] sm:$0xff]
  %v4003 = vld [vmem:[%s73 + $0x171] sm:$0xff]
  %v4004 = vpack.c.bf16 %v3973, %v3972
  %v4005 = vpack.c.bf16 %v3975, %v3974
  %v4006 = vpack.c.bf16 %v3977, %v3976
  %v4007 = vpack.c.bf16 %v3979, %v3978
  %v4008 = vpack.c.bf16 %v3981, %v3980
  %v4009 = vpack.c.bf16 %v3983, %v3982
  %v4010 = vpack.c.bf16 %v3985, %v3984
  %v4011 = vpack.c.bf16 %v3987, %v3986
  %v4012 = vpack.c.bf16 %v3989, %v3988
  %v4013 = vpack.c.bf16 %v3991, %v3990
  %v4014 = vpack.c.bf16 %v3993, %v3992
  %v4015 = vpack.c.bf16 %v3995, %v3994
  %v4016 = vpack.c.bf16 %v3997, %v3996
  %v4017 = vpack.c.bf16 %v3999, %v3998
  %v4018 = vpack.c.bf16 %v4001, %v4000
  %v4019 = vpack.c.bf16 %v4003, %v4002
  %s4020 = scalar_lea.vmem %s3, 16
  %v4021 = vld [vmem:[%s4020] sm:$0xf]
  %v4023 = vsel %vm64, %v4004, 0
  %v4026 = vsel %vm64, %v4005, 0
  %v4029 = vsel %vm64, %v4006, 0
  %v4032 = vsel %vm64, %v4007, 0
  %v4035 = vsel %vm64, %v4008, 0
  %v4038 = vsel %vm64, %v4009, 0
  %v4041 = vsel %vm64, %v4010, 0
  %v4044 = vsel %vm64, %v4011, 0
  %v4047 = vsel %vm64, %v4012, 0
  %v4050 = vsel %vm64, %v4013, 0
  %v4053 = vsel %vm64, %v4014, 0
  %v4056 = vsel %vm64, %v4015, 0
  %v4059 = vsel %vm64, %v4016, 0
  %v4062 = vsel %vm64, %v4017, 0
  %v4065 = vsel %vm64, %v4018, 0
  %v4068 = vsel %vm64, %v4019, 0
  %v4071 = vsel %vm3007, %v4021, 0
  %4073 = vmatprep.subr.bf16.mxu0 0
  %4074 = vmatpush1.bf16.msra.mxu0 0
  %4075 = vmatprep.subr.bf16.mxu0 0
  %4076 = vmatpush1.bf16.msra.mxu0 0
  %4077 = vmatprep.subr.bf16.mxu0 0
  %4078 = vmatpush1.bf16.msra.mxu0 0
  %4079 = vmatprep.subr.bf16.mxu0 0
  %4080 = vmatpush1.bf16.msra.mxu0 0
  %4081 = vmatprep.subr.bf16.mxu0 0
  %4082 = vmatpush1.bf16.msra.mxu0 0
  %4083 = vmatprep.subr.bf16.mxu0 0
  %4084 = vmatpush1.bf16.msra.mxu0 0
  %4085 = vmatprep.subr.bf16.mxu0 0
  %4086 = vmatpush1.bf16.msra.mxu0 0
  %4087 = vmatprep.subr.bf16.mxu0 0
  %4088 = vmatpush1.bf16.msra.mxu0 %v4071
  %4089 = vmatprep.subr.bf16.mxu0 0
  %4090 = vmatpush2.bf16.msra.mxu0 0
  %4091 = vmatprep.subr.bf16.mxu0 0
  %4092 = vmatpush2.bf16.msra.mxu0 0
  %4093 = vmatprep.subr.bf16.mxu0 0
  %4094 = vmatpush2.bf16.msra.mxu0 0
  %4095 = vmatprep.subr.bf16.mxu0 0
  %4096 = vmatpush2.bf16.msra.mxu0 0
  %4097 = vmatprep.subr.bf16.mxu0 0
  %4098 = vmatpush2.bf16.msra.mxu0 0
  %4099 = vmatprep.subr.bf16.mxu0 0
  %4100 = vmatpush2.bf16.msra.mxu0 0
  %4101 = vmatprep.subr.bf16.mxu0 0
  %4102 = vmatpush2.bf16.msra.mxu0 0
  %4103 = vmatprep.subr.bf16.mxu0 0
  %4104 = vmatpush2.bf16.msra.mxu0 0
  %4105 = vmatprep.mubr.bf16.mxu0 0
  %4106 = vmatmul.mubr.bf16.gmra.mxu0 %v4023
  %v4107 = vpop.f32.mrf.mxu0
  %v4108 = vadd.f32 0.0, %v4107
  %v4109 = vpop.f32.mrf.mxu0
  %v4110 = vpop.f32.mrf.mxu0
  %v4111 = vadd.f32 0.0, %v4110
  %v4112 = vpop.f32.mrf.mxu0
  %4113 = vmatprep.mubr.bf16.mxu0 0
  %4114 = vmatmul.mubr.bf16.gmra.mxu0 %v4026
  %v4115 = vpop.f32.mrf.mxu0
  %v4116 = vadd.f32 0.0, %v4115
  %v4117 = vpop.f32.mrf.mxu0
  %v4118 = vpop.f32.mrf.mxu0
  %v4119 = vadd.f32 0.0, %v4118
  %v4120 = vpop.f32.mrf.mxu0
  %4121 = vmatprep.mubr.bf16.mxu0 0
  %4122 = vmatmul.mubr.bf16.gmra.mxu0 %v4029
  %v4123 = vpop.f32.mrf.mxu0
  %v4124 = vadd.f32 0.0, %v4123
  %v4125 = vpop.f32.mrf.mxu0
  %v4126 = vpop.f32.mrf.mxu0
  %v4127 = vadd.f32 0.0, %v4126
  %v4128 = vpop.f32.mrf.mxu0
  %4129 = vmatprep.mubr.bf16.mxu0 0
  %4130 = vmatmul.mubr.bf16.gmra.mxu0 %v4032
  %v4131 = vpop.f32.mrf.mxu0
  %v4132 = vadd.f32 0.0, %v4131
  %v4133 = vpop.f32.mrf.mxu0
  %v4134 = vpop.f32.mrf.mxu0
  %v4135 = vadd.f32 0.0, %v4134
  %v4136 = vpop.f32.mrf.mxu0
  %4137 = vmatprep.mubr.bf16.mxu0 0
  %4138 = vmatmul.mubr.bf16.gmra.mxu0 %v4035
  %v4139 = vpop.f32.mrf.mxu0
  %v4140 = vadd.f32 0.0, %v4139
  %v4141 = vpop.f32.mrf.mxu0
  %v4142 = vpop.f32.mrf.mxu0
  %v4143 = vadd.f32 0.0, %v4142
  %v4144 = vpop.f32.mrf.mxu0
  %4145 = vmatprep.mubr.bf16.mxu0 0
  %4146 = vmatmul.mubr.bf16.gmra.mxu0 %v4038
  %v4147 = vpop.f32.mrf.mxu0
  %v4148 = vadd.f32 0.0, %v4147
  %v4149 = vpop.f32.mrf.mxu0
  %v4150 = vpop.f32.mrf.mxu0
  %v4151 = vadd.f32 0.0, %v4150
  %v4152 = vpop.f32.mrf.mxu0
  %4153 = vmatprep.mubr.bf16.mxu0 0
  %4154 = vmatmul.mubr.bf16.gmra.mxu0 %v4041
  %v4155 = vpop.f32.mrf.mxu0
  %v4156 = vadd.f32 0.0, %v4155
  %v4157 = vpop.f32.mrf.mxu0
  %v4158 = vpop.f32.mrf.mxu0
  %v4159 = vadd.f32 0.0, %v4158
  %v4160 = vpop.f32.mrf.mxu0
  %4161 = vmatprep.mubr.bf16.mxu0 0
  %4162 = vmatmul.mubr.bf16.gmra.mxu0 %v4044
  %v4163 = vpop.f32.mrf.mxu0
  %v4164 = vadd.f32 0.0, %v4163
  %v4165 = vpop.f32.mrf.mxu0
  %v4166 = vpop.f32.mrf.mxu0
  %v4167 = vadd.f32 0.0, %v4166
  %v4168 = vpop.f32.mrf.mxu0
  %4169 = vmatprep.mubr.bf16.mxu0 0
  %4170 = vmatmul.mubr.bf16.gmra.mxu0 %v4047
  %v4171 = vpop.f32.mrf.mxu0
  %v4172 = vadd.f32 0.0, %v4171
  %v4173 = vpop.f32.mrf.mxu0
  %v4174 = vpop.f32.mrf.mxu0
  %v4175 = vadd.f32 0.0, %v4174
  %v4176 = vpop.f32.mrf.mxu0
  %4177 = vmatprep.mubr.bf16.mxu0 0
  %4178 = vmatmul.mubr.bf16.gmra.mxu0 %v4050
  %v4179 = vpop.f32.mrf.mxu0
  %v4180 = vadd.f32 0.0, %v4179
  %v4181 = vpop.f32.mrf.mxu0
  %v4182 = vpop.f32.mrf.mxu0
  %v4183 = vadd.f32 0.0, %v4182
  %v4184 = vpop.f32.mrf.mxu0
  %4185 = vmatprep.mubr.bf16.mxu0 0
  %4186 = vmatmul.mubr.bf16.gmra.mxu0 %v4053
  %v4187 = vpop.f32.mrf.mxu0
  %v4188 = vadd.f32 0.0, %v4187
  %v4189 = vpop.f32.mrf.mxu0
  %v4190 = vpop.f32.mrf.mxu0
  %v4191 = vadd.f32 0.0, %v4190
  %v4192 = vpop.f32.mrf.mxu0
  %4193 = vmatprep.mubr.bf16.mxu0 0
  %4194 = vmatmul.mubr.bf16.gmra.mxu0 %v4056
  %v4195 = vpop.f32.mrf.mxu0
  %v4196 = vadd.f32 0.0, %v4195
  %v4197 = vpop.f32.mrf.mxu0
  %v4198 = vpop.f32.mrf.mxu0
  %v4199 = vadd.f32 0.0, %v4198
  %v4200 = vpop.f32.mrf.mxu0
  %4201 = vmatprep.mubr.bf16.mxu0 0
  %4202 = vmatmul.mubr.bf16.gmra.mxu0 %v4059
  %v4203 = vpop.f32.mrf.mxu0
  %v4204 = vadd.f32 0.0, %v4203
  %v4205 = vpop.f32.mrf.mxu0
  %v4206 = vpop.f32.mrf.mxu0
  %v4207 = vadd.f32 0.0, %v4206
  %v4208 = vpop.f32.mrf.mxu0
  %4209 = vmatprep.mubr.bf16.mxu0 0
  %4210 = vmatmul.mubr.bf16.gmra.mxu0 %v4062
  %v4211 = vpop.f32.mrf.mxu0
  %v4212 = vadd.f32 0.0, %v4211
  %v4213 = vpop.f32.mrf.mxu0
  %v4214 = vpop.f32.mrf.mxu0
  %v4215 = vadd.f32 0.0, %v4214
  %v4216 = vpop.f32.mrf.mxu0
  %4217 = vmatprep.mubr.bf16.mxu0 0
  %4218 = vmatmul.mubr.bf16.gmra.mxu0 %v4065
  %v4219 = vpop.f32.mrf.mxu0
  %v4220 = vadd.f32 0.0, %v4219
  %v4221 = vpop.f32.mrf.mxu0
  %v4222 = vpop.f32.mrf.mxu0
  %v4223 = vadd.f32 0.0, %v4222
  %v4224 = vpop.f32.mrf.mxu0
  %4225 = vmatprep.mubr.bf16.mxu0 0
  %4226 = vmatmul.mubr.bf16.gmra.mxu0 %v4068
  %v4227 = vpop.f32.mrf.mxu0
  %v4228 = vadd.f32 0.0, %v4227
  %v4229 = vpop.f32.mrf.mxu0
  %v4230 = vpop.f32.mrf.mxu0
  %v4231 = vadd.f32 0.0, %v4230
  %v4232 = vpop.f32.mrf.mxu0
  %4233 = vdwg.mxu0
  %v4234 = vadd.f32 %v3940, %v4108
  %v4235 = vadd.f32 %v3941, %v4111
  %v4236 = vadd.f32 %v3942, %v4116
  %v4237 = vadd.f32 %v3943, %v4119
  %v4238 = vadd.f32 %v3944, %v4124
  %v4239 = vadd.f32 %v3945, %v4127
  %v4240 = vadd.f32 %v3946, %v4132
  %v4241 = vadd.f32 %v3947, %v4135
  %v4242 = vadd.f32 %v3948, %v4140
  %v4243 = vadd.f32 %v3949, %v4143
  %v4244 = vadd.f32 %v3950, %v4148
  %v4245 = vadd.f32 %v3951, %v4151
  %v4246 = vadd.f32 %v3952, %v4156
  %v4247 = vadd.f32 %v3953, %v4159
  %v4248 = vadd.f32 %v3954, %v4164
  %v4249 = vadd.f32 %v3955, %v4167
  %v4250 = vadd.f32 %v3956, %v4172
  %v4251 = vadd.f32 %v3957, %v4175
  %v4252 = vadd.f32 %v3958, %v4180
  %v4253 = vadd.f32 %v3959, %v4183
  %v4254 = vadd.f32 %v3960, %v4188
  %v4255 = vadd.f32 %v3961, %v4191
  %v4256 = vadd.f32 %v3962, %v4196
  %v4257 = vadd.f32 %v3963, %v4199
  %v4258 = vadd.f32 %v3964, %v4204
  %v4259 = vadd.f32 %v3965, %v4207
  %v4260 = vadd.f32 %v3966, %v4212
  %v4261 = vadd.f32 %v3967, %v4215
  %v4262 = vadd.f32 %v3968, %v4220
  %v4263 = vadd.f32 %v3969, %v4223
  %v4264 = vadd.f32 %v3970, %v4228
  %v4265 = vadd.f32 %v3971, %v4231
  %v4266 = vld [vmem:[%s73 + $0x2] sm:$0xff]
  %v4267 = vld [vmem:[%s73 + $0xa] sm:$0xff]
  %v4268 = vld [vmem:[%s73 + $0x1a] sm:$0xff]
  %v4269 = vld [vmem:[%s73 + $0x22] sm:$0xff]
  %v4270 = vld [vmem:[%s73 + $0x32] sm:$0xff]
  %v4271 = vld [vmem:[%s73 + $0x3a] sm:$0xff]
  %v4272 = vld [vmem:[%s73 + $0x4a] sm:$0xff]
  %v4273 = vld [vmem:[%s73 + $0x52] sm:$0xff]
  %v4274 = vld [vmem:[%s73 + $0x62] sm:$0xff]
  %v4275 = vld [vmem:[%s73 + $0x6a] sm:$0xff]
  %v4276 = vld [vmem:[%s73 + $0x7a] sm:$0xff]
  %v4277 = vld [vmem:[%s73 + $0x82] sm:$0xff]
  %v4278 = vld [vmem:[%s73 + $0x92] sm:$0xff]
  %v4279 = vld [vmem:[%s73 + $0x9a] sm:$0xff]
  %v4280 = vld [vmem:[%s73 + $0xaa] sm:$0xff]
  %v4281 = vld [vmem:[%s73 + $0xb2] sm:$0xff]
  %v4282 = vld [vmem:[%s73 + $0xc2] sm:$0xff]
  %v4283 = vld [vmem:[%s73 + $0xca] sm:$0xff]
  %v4284 = vld [vmem:[%s73 + $0xda] sm:$0xff]
  %v4285 = vld [vmem:[%s73 + $0xe2] sm:$0xff]
  %v4286 = vld [vmem:[%s73 + $0xf2] sm:$0xff]
  %v4287 = vld [vmem:[%s73 + $0xfa] sm:$0xff]
  %v4288 = vld [vmem:[%s73 + $0x10a] sm:$0xff]
  %v4289 = vld [vmem:[%s73 + $0x112] sm:$0xff]
  %v4290 = vld [vmem:[%s73 + $0x122] sm:$0xff]
  %v4291 = vld [vmem:[%s73 + $0x12a] sm:$0xff]
  %v4292 = vld [vmem:[%s73 + $0x13a] sm:$0xff]
  %v4293 = vld [vmem:[%s73 + $0x142] sm:$0xff]
  %v4294 = vld [vmem:[%s73 + $0x152] sm:$0xff]
  %v4295 = vld [vmem:[%s73 + $0x15a] sm:$0xff]
  %v4296 = vld [vmem:[%s73 + $0x16a] sm:$0xff]
  %v4297 = vld [vmem:[%s73 + $0x172] sm:$0xff]
  %v4298 = vpack.c.bf16 %v4267, %v4266
  %v4299 = vpack.c.bf16 %v4269, %v4268
  %v4300 = vpack.c.bf16 %v4271, %v4270
  %v4301 = vpack.c.bf16 %v4273, %v4272
  %v4302 = vpack.c.bf16 %v4275, %v4274
  %v4303 = vpack.c.bf16 %v4277, %v4276
  %v4304 = vpack.c.bf16 %v4279, %v4278
  %v4305 = vpack.c.bf16 %v4281, %v4280
  %v4306 = vpack.c.bf16 %v4283, %v4282
  %v4307 = vpack.c.bf16 %v4285, %v4284
  %v4308 = vpack.c.bf16 %v4287, %v4286
  %v4309 = vpack.c.bf16 %v4289, %v4288
  %v4310 = vpack.c.bf16 %v4291, %v4290
  %v4311 = vpack.c.bf16 %v4293, %v4292
  %v4312 = vpack.c.bf16 %v4295, %v4294
  %v4313 = vpack.c.bf16 %v4297, %v4296
  %s4314 = scalar_lea.vmem %s3, 20
  %v4315 = vld [vmem:[%s4314] sm:$0xf]
  %v4317 = vsel %vm64, %v4298, 0
  %v4320 = vsel %vm64, %v4299, 0
  %v4323 = vsel %vm64, %v4300, 0
  %v4326 = vsel %vm64, %v4301, 0
  %v4329 = vsel %vm64, %v4302, 0
  %v4332 = vsel %vm64, %v4303, 0
  %v4335 = vsel %vm64, %v4304, 0
  %v4338 = vsel %vm64, %v4305, 0
  %v4341 = vsel %vm64, %v4306, 0
  %v4344 = vsel %vm64, %v4307, 0
  %v4347 = vsel %vm64, %v4308, 0
  %v4350 = vsel %vm64, %v4309, 0
  %v4353 = vsel %vm64, %v4310, 0
  %v4356 = vsel %vm64, %v4311, 0
  %v4359 = vsel %vm64, %v4312, 0
  %v4362 = vsel %vm64, %v4313, 0
  %v4365 = vsel %vm3007, %v4315, 0
  %4367 = vmatprep.subr.bf16.mxu0 0
  %4368 = vmatpush1.bf16.msra.mxu0 0
  %4369 = vmatprep.subr.bf16.mxu0 0
  %4370 = vmatpush1.bf16.msra.mxu0 0
  %4371 = vmatprep.subr.bf16.mxu0 0
  %4372 = vmatpush1.bf16.msra.mxu0 0
  %4373 = vmatprep.subr.bf16.mxu0 0
  %4374 = vmatpush1.bf16.msra.mxu0 0
  %4375 = vmatprep.subr.bf16.mxu0 0
  %4376 = vmatpush1.bf16.msra.mxu0 0
  %4377 = vmatprep.subr.bf16.mxu0 0
  %4378 = vmatpush1.bf16.msra.mxu0 0
  %4379 = vmatprep.subr.bf16.mxu0 0
  %4380 = vmatpush1.bf16.msra.mxu0 0
  %4381 = vmatprep.subr.bf16.mxu0 0
  %4382 = vmatpush1.bf16.msra.mxu0 %v4365
  %4383 = vmatprep.subr.bf16.mxu0 0
  %4384 = vmatpush2.bf16.msra.mxu0 0
  %4385 = vmatprep.subr.bf16.mxu0 0
  %4386 = vmatpush2.bf16.msra.mxu0 0
  %4387 = vmatprep.subr.bf16.mxu0 0
  %4388 = vmatpush2.bf16.msra.mxu0 0
  %4389 = vmatprep.subr.bf16.mxu0 0
  %4390 = vmatpush2.bf16.msra.mxu0 0
  %4391 = vmatprep.subr.bf16.mxu0 0
  %4392 = vmatpush2.bf16.msra.mxu0 0
  %4393 = vmatprep.subr.bf16.mxu0 0
  %4394 = vmatpush2.bf16.msra.mxu0 0
  %4395 = vmatprep.subr.bf16.mxu0 0
  %4396 = vmatpush2.bf16.msra.mxu0 0
  %4397 = vmatprep.subr.bf16.mxu0 0
  %4398 = vmatpush2.bf16.msra.mxu0 0
  %4399 = vmatprep.mubr.bf16.mxu0 0
  %4400 = vmatmul.mubr.bf16.gmra.mxu0 %v4317
  %v4401 = vpop.f32.mrf.mxu0
  %v4402 = vadd.f32 0.0, %v4401
  %v4403 = vpop.f32.mrf.mxu0
  %v4404 = vpop.f32.mrf.mxu0
  %v4405 = vadd.f32 0.0, %v4404
  %v4406 = vpop.f32.mrf.mxu0
  %4407 = vmatprep.mubr.bf16.mxu0 0
  %4408 = vmatmul.mubr.bf16.gmra.mxu0 %v4320
  %v4409 = vpop.f32.mrf.mxu0
  %v4410 = vadd.f32 0.0, %v4409
  %v4411 = vpop.f32.mrf.mxu0
  %v4412 = vpop.f32.mrf.mxu0
  %v4413 = vadd.f32 0.0, %v4412
  %v4414 = vpop.f32.mrf.mxu0
  %4415 = vmatprep.mubr.bf16.mxu0 0
  %4416 = vmatmul.mubr.bf16.gmra.mxu0 %v4323
  %v4417 = vpop.f32.mrf.mxu0
  %v4418 = vadd.f32 0.0, %v4417
  %v4419 = vpop.f32.mrf.mxu0
  %v4420 = vpop.f32.mrf.mxu0
  %v4421 = vadd.f32 0.0, %v4420
  %v4422 = vpop.f32.mrf.mxu0
  %4423 = vmatprep.mubr.bf16.mxu0 0
  %4424 = vmatmul.mubr.bf16.gmra.mxu0 %v4326
  %v4425 = vpop.f32.mrf.mxu0
  %v4426 = vadd.f32 0.0, %v4425
  %v4427 = vpop.f32.mrf.mxu0
  %v4428 = vpop.f32.mrf.mxu0
  %v4429 = vadd.f32 0.0, %v4428
  %v4430 = vpop.f32.mrf.mxu0
  %4431 = vmatprep.mubr.bf16.mxu0 0
  %4432 = vmatmul.mubr.bf16.gmra.mxu0 %v4329
  %v4433 = vpop.f32.mrf.mxu0
  %v4434 = vadd.f32 0.0, %v4433
  %v4435 = vpop.f32.mrf.mxu0
  %v4436 = vpop.f32.mrf.mxu0
  %v4437 = vadd.f32 0.0, %v4436
  %v4438 = vpop.f32.mrf.mxu0
  %4439 = vmatprep.mubr.bf16.mxu0 0
  %4440 = vmatmul.mubr.bf16.gmra.mxu0 %v4332
  %v4441 = vpop.f32.mrf.mxu0
  %v4442 = vadd.f32 0.0, %v4441
  %v4443 = vpop.f32.mrf.mxu0
  %v4444 = vpop.f32.mrf.mxu0
  %v4445 = vadd.f32 0.0, %v4444
  %v4446 = vpop.f32.mrf.mxu0
  %4447 = vmatprep.mubr.bf16.mxu0 0
  %4448 = vmatmul.mubr.bf16.gmra.mxu0 %v4335
  %v4449 = vpop.f32.mrf.mxu0
  %v4450 = vadd.f32 0.0, %v4449
  %v4451 = vpop.f32.mrf.mxu0
  %v4452 = vpop.f32.mrf.mxu0
  %v4453 = vadd.f32 0.0, %v4452
  %v4454 = vpop.f32.mrf.mxu0
  %4455 = vmatprep.mubr.bf16.mxu0 0
  %4456 = vmatmul.mubr.bf16.gmra.mxu0 %v4338
  %v4457 = vpop.f32.mrf.mxu0
  %v4458 = vadd.f32 0.0, %v4457
  %v4459 = vpop.f32.mrf.mxu0
  %v4460 = vpop.f32.mrf.mxu0
  %v4461 = vadd.f32 0.0, %v4460
  %v4462 = vpop.f32.mrf.mxu0
  %4463 = vmatprep.mubr.bf16.mxu0 0
  %4464 = vmatmul.mubr.bf16.gmra.mxu0 %v4341
  %v4465 = vpop.f32.mrf.mxu0
  %v4466 = vadd.f32 0.0, %v4465
  %v4467 = vpop.f32.mrf.mxu0
  %v4468 = vpop.f32.mrf.mxu0
  %v4469 = vadd.f32 0.0, %v4468
  %v4470 = vpop.f32.mrf.mxu0
  %4471 = vmatprep.mubr.bf16.mxu0 0
  %4472 = vmatmul.mubr.bf16.gmra.mxu0 %v4344
  %v4473 = vpop.f32.mrf.mxu0
  %v4474 = vadd.f32 0.0, %v4473
  %v4475 = vpop.f32.mrf.mxu0
  %v4476 = vpop.f32.mrf.mxu0
  %v4477 = vadd.f32 0.0, %v4476
  %v4478 = vpop.f32.mrf.mxu0
  %4479 = vmatprep.mubr.bf16.mxu0 0
  %4480 = vmatmul.mubr.bf16.gmra.mxu0 %v4347
  %v4481 = vpop.f32.mrf.mxu0
  %v4482 = vadd.f32 0.0, %v4481
  %v4483 = vpop.f32.mrf.mxu0
  %v4484 = vpop.f32.mrf.mxu0
  %v4485 = vadd.f32 0.0, %v4484
  %v4486 = vpop.f32.mrf.mxu0
  %4487 = vmatprep.mubr.bf16.mxu0 0
  %4488 = vmatmul.mubr.bf16.gmra.mxu0 %v4350
  %v4489 = vpop.f32.mrf.mxu0
  %v4490 = vadd.f32 0.0, %v4489
  %v4491 = vpop.f32.mrf.mxu0
  %v4492 = vpop.f32.mrf.mxu0
  %v4493 = vadd.f32 0.0, %v4492
  %v4494 = vpop.f32.mrf.mxu0
  %4495 = vmatprep.mubr.bf16.mxu0 0
  %4496 = vmatmul.mubr.bf16.gmra.mxu0 %v4353
  %v4497 = vpop.f32.mrf.mxu0
  %v4498 = vadd.f32 0.0, %v4497
  %v4499 = vpop.f32.mrf.mxu0
  %v4500 = vpop.f32.mrf.mxu0
  %v4501 = vadd.f32 0.0, %v4500
  %v4502 = vpop.f32.mrf.mxu0
  %4503 = vmatprep.mubr.bf16.mxu0 0
  %4504 = vmatmul.mubr.bf16.gmra.mxu0 %v4356
  %v4505 = vpop.f32.mrf.mxu0
  %v4506 = vadd.f32 0.0, %v4505
  %v4507 = vpop.f32.mrf.mxu0
  %v4508 = vpop.f32.mrf.mxu0
  %v4509 = vadd.f32 0.0, %v4508
  %v4510 = vpop.f32.mrf.mxu0
  %4511 = vmatprep.mubr.bf16.mxu0 0
  %4512 = vmatmul.mubr.bf16.gmra.mxu0 %v4359
  %v4513 = vpop.f32.mrf.mxu0
  %v4514 = vadd.f32 0.0, %v4513
  %v4515 = vpop.f32.mrf.mxu0
  %v4516 = vpop.f32.mrf.mxu0
  %v4517 = vadd.f32 0.0, %v4516
  %v4518 = vpop.f32.mrf.mxu0
  %4519 = vmatprep.mubr.bf16.mxu0 0
  %4520 = vmatmul.mubr.bf16.gmra.mxu0 %v4362
  %v4521 = vpop.f32.mrf.mxu0
  %v4522 = vadd.f32 0.0, %v4521
  %v4523 = vpop.f32.mrf.mxu0
  %v4524 = vpop.f32.mrf.mxu0
  %v4525 = vadd.f32 0.0, %v4524
  %v4526 = vpop.f32.mrf.mxu0
  %4527 = vdwg.mxu0
  %v4528 = vadd.f32 %v4234, %v4402
  %v4529 = vadd.f32 %v4235, %v4405
  %v4530 = vadd.f32 %v4236, %v4410
  %v4531 = vadd.f32 %v4237, %v4413
  %v4532 = vadd.f32 %v4238, %v4418
  %v4533 = vadd.f32 %v4239, %v4421
  %v4534 = vadd.f32 %v4240, %v4426
  %v4535 = vadd.f32 %v4241, %v4429
  %v4536 = vadd.f32 %v4242, %v4434
  %v4537 = vadd.f32 %v4243, %v4437
  %v4538 = vadd.f32 %v4244, %v4442
  %v4539 = vadd.f32 %v4245, %v4445
  %v4540 = vadd.f32 %v4246, %v4450
  %v4541 = vadd.f32 %v4247, %v4453
  %v4542 = vadd.f32 %v4248, %v4458
  %v4543 = vadd.f32 %v4249, %v4461
  %v4544 = vadd.f32 %v4250, %v4466
  %v4545 = vadd.f32 %v4251, %v4469
  %v4546 = vadd.f32 %v4252, %v4474
  %v4547 = vadd.f32 %v4253, %v4477
  %v4548 = vadd.f32 %v4254, %v4482
  %v4549 = vadd.f32 %v4255, %v4485
  %v4550 = vadd.f32 %v4256, %v4490
  %v4551 = vadd.f32 %v4257, %v4493
  %v4552 = vadd.f32 %v4258, %v4498
  %v4553 = vadd.f32 %v4259, %v4501
  %v4554 = vadd.f32 %v4260, %v4506
  %v4555 = vadd.f32 %v4261, %v4509
  %v4556 = vadd.f32 %v4262, %v4514
  %v4557 = vadd.f32 %v4263, %v4517
  %v4558 = vadd.f32 %v4264, %v4522
  %v4559 = vadd.f32 %v4265, %v4525
  %s4560 = scalar_lea.vmem [#allocation3], 48
  %v4561 = vld [vmem:[%s4560] sm:$0xff]
  %v4562 = vld [vmem:[%s4560 + $0x8] sm:$0xff]
  %v4563 = vld [vmem:[%s4560 + $0x18] sm:$0xff]
  %v4564 = vld [vmem:[%s4560 + $0x20] sm:$0xff]
  %v4565 = vld [vmem:[%s4560 + $0x30] sm:$0xff]
  %v4566 = vld [vmem:[%s4560 + $0x38] sm:$0xff]
  %v4567 = vld [vmem:[%s4560 + $0x48] sm:$0xff]
  %v4568 = vld [vmem:[%s4560 + $0x50] sm:$0xff]
  %v4569 = vld [vmem:[%s4560 + $0x60] sm:$0xff]
  %v4570 = vld [vmem:[%s4560 + $0x68] sm:$0xff]
  %v4571 = vld [vmem:[%s4560 + $0x78] sm:$0xff]
  %v4572 = vld [vmem:[%s4560 + $0x80] sm:$0xff]
  %v4573 = vld [vmem:[%s4560 + $0x90] sm:$0xff]
  %v4574 = vld [vmem:[%s4560 + $0x98] sm:$0xff]
  %v4575 = vld [vmem:[%s4560 + $0xa8] sm:$0xff]
  %v4576 = vld [vmem:[%s4560 + $0xb0] sm:$0xff]
  %v4577 = vld [vmem:[%s4560 + $0xc0] sm:$0xff]
  %v4578 = vld [vmem:[%s4560 + $0xc8] sm:$0xff]
  %v4579 = vld [vmem:[%s4560 + $0xd8] sm:$0xff]
  %v4580 = vld [vmem:[%s4560 + $0xe0] sm:$0xff]
  %v4581 = vld [vmem:[%s4560 + $0xf0] sm:$0xff]
  %v4582 = vld [vmem:[%s4560 + $0xf8] sm:$0xff]
  %v4583 = vld [vmem:[%s4560 + $0x108] sm:$0xff]
  %v4584 = vld [vmem:[%s4560 + $0x110] sm:$0xff]
  %v4585 = vld [vmem:[%s4560 + $0x120] sm:$0xff]
  %v4586 = vld [vmem:[%s4560 + $0x128] sm:$0xff]
  %v4587 = vld [vmem:[%s4560 + $0x138] sm:$0xff]
  %v4588 = vld [vmem:[%s4560 + $0x140] sm:$0xff]
  %v4589 = vld [vmem:[%s4560 + $0x150] sm:$0xff]
  %v4590 = vld [vmem:[%s4560 + $0x158] sm:$0xff]
  %v4591 = vld [vmem:[%s4560 + $0x168] sm:$0xff]
  %v4592 = vld [vmem:[%s4560 + $0x170] sm:$0xff]
  %v4593 = vpack.c.bf16 %v4562, %v4561
  %v4594 = vpack.c.bf16 %v4564, %v4563
  %v4595 = vpack.c.bf16 %v4566, %v4565
  %v4596 = vpack.c.bf16 %v4568, %v4567
  %v4597 = vpack.c.bf16 %v4570, %v4569
  %v4598 = vpack.c.bf16 %v4572, %v4571
  %v4599 = vpack.c.bf16 %v4574, %v4573
  %v4600 = vpack.c.bf16 %v4576, %v4575
  %v4601 = vpack.c.bf16 %v4578, %v4577
  %v4602 = vpack.c.bf16 %v4580, %v4579
  %v4603 = vpack.c.bf16 %v4582, %v4581
  %v4604 = vpack.c.bf16 %v4584, %v4583
  %v4605 = vpack.c.bf16 %v4586, %v4585
  %v4606 = vpack.c.bf16 %v4588, %v4587
  %v4607 = vpack.c.bf16 %v4590, %v4589
  %v4608 = vpack.c.bf16 %v4592, %v4591
  %s4609 = scalar_lea.vmem %s3, 24
  %v4610 = vld [vmem:[%s4609] sm:$0xf]
  %v4612 = vsel %vm64, %v4593, 0
  %v4615 = vsel %vm64, %v4594, 0
  %v4618 = vsel %vm64, %v4595, 0
  %v4621 = vsel %vm64, %v4596, 0
  %v4624 = vsel %vm64, %v4597, 0
  %v4627 = vsel %vm64, %v4598, 0
  %v4630 = vsel %vm64, %v4599, 0
  %v4633 = vsel %vm64, %v4600, 0
  %v4636 = vsel %vm64, %v4601, 0
  %v4639 = vsel %vm64, %v4602, 0
  %v4642 = vsel %vm64, %v4603, 0
  %v4645 = vsel %vm64, %v4604, 0
  %v4648 = vsel %vm64, %v4605, 0
  %v4651 = vsel %vm64, %v4606, 0
  %v4654 = vsel %vm64, %v4607, 0
  %v4657 = vsel %vm64, %v4608, 0
  %v4660 = vsel %vm3007, %v4610, 0
  %4662 = vmatprep.subr.bf16.mxu0 0
  %4663 = vmatpush1.bf16.msra.mxu0 0
  %4664 = vmatprep.subr.bf16.mxu0 0
  %4665 = vmatpush1.bf16.msra.mxu0 0
  %4666 = vmatprep.subr.bf16.mxu0 0
  %4667 = vmatpush1.bf16.msra.mxu0 0
  %4668 = vmatprep.subr.bf16.mxu0 0
  %4669 = vmatpush1.bf16.msra.mxu0 0
  %4670 = vmatprep.subr.bf16.mxu0 0
  %4671 = vmatpush1.bf16.msra.mxu0 0
  %4672 = vmatprep.subr.bf16.mxu0 0
  %4673 = vmatpush1.bf16.msra.mxu0 0
  %4674 = vmatprep.subr.bf16.mxu0 0
  %4675 = vmatpush1.bf16.msra.mxu0 0
  %4676 = vmatprep.subr.bf16.mxu0 0
  %4677 = vmatpush1.bf16.msra.mxu0 %v4660
  %4678 = vmatprep.subr.bf16.mxu0 0
  %4679 = vmatpush2.bf16.msra.mxu0 0
  %4680 = vmatprep.subr.bf16.mxu0 0
  %4681 = vmatpush2.bf16.msra.mxu0 0
  %4682 = vmatprep.subr.bf16.mxu0 0
  %4683 = vmatpush2.bf16.msra.mxu0 0
  %4684 = vmatprep.subr.bf16.mxu0 0
  %4685 = vmatpush2.bf16.msra.mxu0 0
  %4686 = vmatprep.subr.bf16.mxu0 0
  %4687 = vmatpush2.bf16.msra.mxu0 0
  %4688 = vmatprep.subr.bf16.mxu0 0
  %4689 = vmatpush2.bf16.msra.mxu0 0
  %4690 = vmatprep.subr.bf16.mxu0 0
  %4691 = vmatpush2.bf16.msra.mxu0 0
  %4692 = vmatprep.subr.bf16.mxu0 0
  %4693 = vmatpush2.bf16.msra.mxu0 0
  %4694 = vmatprep.mubr.bf16.mxu0 0
  %4695 = vmatmul.mubr.bf16.gmra.mxu0 %v4612
  %v4696 = vpop.f32.mrf.mxu0
  %v4697 = vadd.f32 0.0, %v4696
  %v4698 = vpop.f32.mrf.mxu0
  %v4699 = vpop.f32.mrf.mxu0
  %v4700 = vadd.f32 0.0, %v4699
  %v4701 = vpop.f32.mrf.mxu0
  %4702 = vmatprep.mubr.bf16.mxu0 0
  %4703 = vmatmul.mubr.bf16.gmra.mxu0 %v4615
  %v4704 = vpop.f32.mrf.mxu0
  %v4705 = vadd.f32 0.0, %v4704
  %v4706 = vpop.f32.mrf.mxu0
  %v4707 = vpop.f32.mrf.mxu0
  %v4708 = vadd.f32 0.0, %v4707
  %v4709 = vpop.f32.mrf.mxu0
  %4710 = vmatprep.mubr.bf16.mxu0 0
  %4711 = vmatmul.mubr.bf16.gmra.mxu0 %v4618
  %v4712 = vpop.f32.mrf.mxu0
  %v4713 = vadd.f32 0.0, %v4712
  %v4714 = vpop.f32.mrf.mxu0
  %v4715 = vpop.f32.mrf.mxu0
  %v4716 = vadd.f32 0.0, %v4715
  %v4717 = vpop.f32.mrf.mxu0
  %4718 = vmatprep.mubr.bf16.mxu0 0
  %4719 = vmatmul.mubr.bf16.gmra.mxu0 %v4621
  %v4720 = vpop.f32.mrf.mxu0
  %v4721 = vadd.f32 0.0, %v4720
  %v4722 = vpop.f32.mrf.mxu0
  %v4723 = vpop.f32.mrf.mxu0
  %v4724 = vadd.f32 0.0, %v4723
  %v4725 = vpop.f32.mrf.mxu0
  %4726 = vmatprep.mubr.bf16.mxu0 0
  %4727 = vmatmul.mubr.bf16.gmra.mxu0 %v4624
  %v4728 = vpop.f32.mrf.mxu0
  %v4729 = vadd.f32 0.0, %v4728
  %v4730 = vpop.f32.mrf.mxu0
  %v4731 = vpop.f32.mrf.mxu0
  %v4732 = vadd.f32 0.0, %v4731
  %v4733 = vpop.f32.mrf.mxu0
  %4734 = vmatprep.mubr.bf16.mxu0 0
  %4735 = vmatmul.mubr.bf16.gmra.mxu0 %v4627
  %v4736 = vpop.f32.mrf.mxu0
  %v4737 = vadd.f32 0.0, %v4736
  %v4738 = vpop.f32.mrf.mxu0
  %v4739 = vpop.f32.mrf.mxu0
  %v4740 = vadd.f32 0.0, %v4739
  %v4741 = vpop.f32.mrf.mxu0
  %4742 = vmatprep.mubr.bf16.mxu0 0
  %4743 = vmatmul.mubr.bf16.gmra.mxu0 %v4630
  %v4744 = vpop.f32.mrf.mxu0
  %v4745 = vadd.f32 0.0, %v4744
  %v4746 = vpop.f32.mrf.mxu0
  %v4747 = vpop.f32.mrf.mxu0
  %v4748 = vadd.f32 0.0, %v4747
  %v4749 = vpop.f32.mrf.mxu0
  %4750 = vmatprep.mubr.bf16.mxu0 0
  %4751 = vmatmul.mubr.bf16.gmra.mxu0 %v4633
  %v4752 = vpop.f32.mrf.mxu0
  %v4753 = vadd.f32 0.0, %v4752
  %v4754 = vpop.f32.mrf.mxu0
  %v4755 = vpop.f32.mrf.mxu0
  %v4756 = vadd.f32 0.0, %v4755
  %v4757 = vpop.f32.mrf.mxu0
  %4758 = vmatprep.mubr.bf16.mxu0 0
  %4759 = vmatmul.mubr.bf16.gmra.mxu0 %v4636
  %v4760 = vpop.f32.mrf.mxu0
  %v4761 = vadd.f32 0.0, %v4760
  %v4762 = vpop.f32.mrf.mxu0
  %v4763 = vpop.f32.mrf.mxu0
  %v4764 = vadd.f32 0.0, %v4763
  %v4765 = vpop.f32.mrf.mxu0
  %4766 = vmatprep.mubr.bf16.mxu0 0
  %4767 = vmatmul.mubr.bf16.gmra.mxu0 %v4639
  %v4768 = vpop.f32.mrf.mxu0
  %v4769 = vadd.f32 0.0, %v4768
  %v4770 = vpop.f32.mrf.mxu0
  %v4771 = vpop.f32.mrf.mxu0
  %v4772 = vadd.f32 0.0, %v4771
  %v4773 = vpop.f32.mrf.mxu0
  %4774 = vmatprep.mubr.bf16.mxu0 0
  %4775 = vmatmul.mubr.bf16.gmra.mxu0 %v4642
  %v4776 = vpop.f32.mrf.mxu0
  %v4777 = vadd.f32 0.0, %v4776
  %v4778 = vpop.f32.mrf.mxu0
  %v4779 = vpop.f32.mrf.mxu0
  %v4780 = vadd.f32 0.0, %v4779
  %v4781 = vpop.f32.mrf.mxu0
  %4782 = vmatprep.mubr.bf16.mxu0 0
  %4783 = vmatmul.mubr.bf16.gmra.mxu0 %v4645
  %v4784 = vpop.f32.mrf.mxu0
  %v4785 = vadd.f32 0.0, %v4784
  %v4786 = vpop.f32.mrf.mxu0
  %v4787 = vpop.f32.mrf.mxu0
  %v4788 = vadd.f32 0.0, %v4787
  %v4789 = vpop.f32.mrf.mxu0
  %4790 = vmatprep.mubr.bf16.mxu0 0
  %4791 = vmatmul.mubr.bf16.gmra.mxu0 %v4648
  %v4792 = vpop.f32.mrf.mxu0
  %v4793 = vadd.f32 0.0, %v4792
  %v4794 = vpop.f32.mrf.mxu0
  %v4795 = vpop.f32.mrf.mxu0
  %v4796 = vadd.f32 0.0, %v4795
  %v4797 = vpop.f32.mrf.mxu0
  %4798 = vmatprep.mubr.bf16.mxu0 0
  %4799 = vmatmul.mubr.bf16.gmra.mxu0 %v4651
  %v4800 = vpop.f32.mrf.mxu0
  %v4801 = vadd.f32 0.0, %v4800
  %v4802 = vpop.f32.mrf.mxu0
  %v4803 = vpop.f32.mrf.mxu0
  %v4804 = vadd.f32 0.0, %v4803
  %v4805 = vpop.f32.mrf.mxu0
  %4806 = vmatprep.mubr.bf16.mxu0 0
  %4807 = vmatmul.mubr.bf16.gmra.mxu0 %v4654
  %v4808 = vpop.f32.mrf.mxu0
  %v4809 = vadd.f32 0.0, %v4808
  %v4810 = vpop.f32.mrf.mxu0
  %v4811 = vpop.f32.mrf.mxu0
  %v4812 = vadd.f32 0.0, %v4811
  %v4813 = vpop.f32.mrf.mxu0
  %4814 = vmatprep.mubr.bf16.mxu0 0
  %4815 = vmatmul.mubr.bf16.gmra.mxu0 %v4657
  %v4816 = vpop.f32.mrf.mxu0
  %v4817 = vadd.f32 0.0, %v4816
  %v4818 = vpop.f32.mrf.mxu0
  %v4819 = vpop.f32.mrf.mxu0
  %v4820 = vadd.f32 0.0, %v4819
  %v4821 = vpop.f32.mrf.mxu0
  %4822 = vdwg.mxu0
  %v4823 = vadd.f32 %v4528, %v4697
  %v4824 = vadd.f32 %v4529, %v4700
  %v4825 = vadd.f32 %v4530, %v4705
  %v4826 = vadd.f32 %v4531, %v4708
  %v4827 = vadd.f32 %v4532, %v4713
  %v4828 = vadd.f32 %v4533, %v4716
  %v4829 = vadd.f32 %v4534, %v4721
  %v4830 = vadd.f32 %v4535, %v4724
  %v4831 = vadd.f32 %v4536, %v4729
  %v4832 = vadd.f32 %v4537, %v4732
  %v4833 = vadd.f32 %v4538, %v4737
  %v4834 = vadd.f32 %v4539, %v4740
  %v4835 = vadd.f32 %v4540, %v4745
  %v4836 = vadd.f32 %v4541, %v4748
  %v4837 = vadd.f32 %v4542, %v4753
  %v4838 = vadd.f32 %v4543, %v4756
  %v4839 = vadd.f32 %v4544, %v4761
  %v4840 = vadd.f32 %v4545, %v4764
  %v4841 = vadd.f32 %v4546, %v4769
  %v4842 = vadd.f32 %v4547, %v4772
  %v4843 = vadd.f32 %v4548, %v4777
  %v4844 = vadd.f32 %v4549, %v4780
  %v4845 = vadd.f32 %v4550, %v4785
  %v4846 = vadd.f32 %v4551, %v4788
  %v4847 = vadd.f32 %v4552, %v4793
  %v4848 = vadd.f32 %v4553, %v4796
  %v4849 = vadd.f32 %v4554, %v4801
  %v4850 = vadd.f32 %v4555, %v4804
  %v4851 = vadd.f32 %v4556, %v4809
  %v4852 = vadd.f32 %v4557, %v4812
  %v4853 = vadd.f32 %v4558, %v4817
  %v4854 = vadd.f32 %v4559, %v4820
  %v4855 = vld [vmem:[%s4560 + $0x1] sm:$0xff]
  %v4856 = vld [vmem:[%s4560 + $0x9] sm:$0xff]
  %v4857 = vld [vmem:[%s4560 + $0x19] sm:$0xff]
  %v4858 = vld [vmem:[%s4560 + $0x21] sm:$0xff]
  %v4859 = vld [vmem:[%s4560 + $0x31] sm:$0xff]
  %v4860 = vld [vmem:[%s4560 + $0x39] sm:$0xff]
  %v4861 = vld [vmem:[%s4560 + $0x49] sm:$0xff]
  %v4862 = vld [vmem:[%s4560 + $0x51] sm:$0xff]
  %v4863 = vld [vmem:[%s4560 + $0x61] sm:$0xff]
  %v4864 = vld [vmem:[%s4560 + $0x69] sm:$0xff]
  %v4865 = vld [vmem:[%s4560 + $0x79] sm:$0xff]
  %v4866 = vld [vmem:[%s4560 + $0x81] sm:$0xff]
  %v4867 = vld [vmem:[%s4560 + $0x91] sm:$0xff]
  %v4868 = vld [vmem:[%s4560 + $0x99] sm:$0xff]
  %v4869 = vld [vmem:[%s4560 + $0xa9] sm:$0xff]
  %v4870 = vld [vmem:[%s4560 + $0xb1] sm:$0xff]
  %v4871 = vld [vmem:[%s4560 + $0xc1] sm:$0xff]
  %v4872 = vld [vmem:[%s4560 + $0xc9] sm:$0xff]
  %v4873 = vld [vmem:[%s4560 + $0xd9] sm:$0xff]
  %v4874 = vld [vmem:[%s4560 + $0xe1] sm:$0xff]
  %v4875 = vld [vmem:[%s4560 + $0xf1] sm:$0xff]
  %v4876 = vld [vmem:[%s4560 + $0xf9] sm:$0xff]
  %v4877 = vld [vmem:[%s4560 + $0x109] sm:$0xff]
  %v4878 = vld [vmem:[%s4560 + $0x111] sm:$0xff]
  %v4879 = vld [vmem:[%s4560 + $0x121] sm:$0xff]
  %v4880 = vld [vmem:[%s4560 + $0x129] sm:$0xff]
  %v4881 = vld [vmem:[%s4560 + $0x139] sm:$0xff]
  %v4882 = vld [vmem:[%s4560 + $0x141] sm:$0xff]
  %v4883 = vld [vmem:[%s4560 + $0x151] sm:$0xff]
  %v4884 = vld [vmem:[%s4560 + $0x159] sm:$0xff]
  %v4885 = vld [vmem:[%s4560 + $0x169] sm:$0xff]
  %v4886 = vld [vmem:[%s4560 + $0x171] sm:$0xff]
  %v4887 = vpack.c.bf16 %v4856, %v4855
  %v4888 = vpack.c.bf16 %v4858, %v4857
  %v4889 = vpack.c.bf16 %v4860, %v4859
  %v4890 = vpack.c.bf16 %v4862, %v4861
  %v4891 = vpack.c.bf16 %v4864, %v4863
  %v4892 = vpack.c.bf16 %v4866, %v4865
  %v4893 = vpack.c.bf16 %v4868, %v4867
  %v4894 = vpack.c.bf16 %v4870, %v4869
  %v4895 = vpack.c.bf16 %v4872, %v4871
  %v4896 = vpack.c.bf16 %v4874, %v4873
  %v4897 = vpack.c.bf16 %v4876, %v4875
  %v4898 = vpack.c.bf16 %v4878, %v4877
  %v4899 = vpack.c.bf16 %v4880, %v4879
  %v4900 = vpack.c.bf16 %v4882, %v4881
  %v4901 = vpack.c.bf16 %v4884, %v4883
  %v4902 = vpack.c.bf16 %v4886, %v4885
  %s4903 = scalar_lea.vmem %s3, 28
  %v4904 = vld [vmem:[%s4903] sm:$0xf]
  %v4906 = vsel %vm64, %v4887, 0
  %v4909 = vsel %vm64, %v4888, 0
  %v4912 = vsel %vm64, %v4889, 0
  %v4915 = vsel %vm64, %v4890, 0
  %v4918 = vsel %vm64, %v4891, 0
  %v4921 = vsel %vm64, %v4892, 0
  %v4924 = vsel %vm64, %v4893, 0
  %v4927 = vsel %vm64, %v4894, 0
  %v4930 = vsel %vm64, %v4895, 0
  %v4933 = vsel %vm64, %v4896, 0
  %v4936 = vsel %vm64, %v4897, 0
  %v4939 = vsel %vm64, %v4898, 0
  %v4942 = vsel %vm64, %v4899, 0
  %v4945 = vsel %vm64, %v4900, 0
  %v4948 = vsel %vm64, %v4901, 0
  %v4951 = vsel %vm64, %v4902, 0
  %v4954 = vsel %vm3007, %v4904, 0
  %4956 = vmatprep.subr.bf16.mxu0 0
  %4957 = vmatpush1.bf16.msra.mxu0 0
  %4958 = vmatprep.subr.bf16.mxu0 0
  %4959 = vmatpush1.bf16.msra.mxu0 0
  %4960 = vmatprep.subr.bf16.mxu0 0
  %4961 = vmatpush1.bf16.msra.mxu0 0
  %4962 = vmatprep.subr.bf16.mxu0 0
  %4963 = vmatpush1.bf16.msra.mxu0 0
  %4964 = vmatprep.subr.bf16.mxu0 0
  %4965 = vmatpush1.bf16.msra.mxu0 0
  %4966 = vmatprep.subr.bf16.mxu0 0
  %4967 = vmatpush1.bf16.msra.mxu0 0
  %4968 = vmatprep.subr.bf16.mxu0 0
  %4969 = vmatpush1.bf16.msra.mxu0 0
  %4970 = vmatprep.subr.bf16.mxu0 0
  %4971 = vmatpush1.bf16.msra.mxu0 %v4954
  %4972 = vmatprep.subr.bf16.mxu0 0
  %4973 = vmatpush2.bf16.msra.mxu0 0
  %4974 = vmatprep.subr.bf16.mxu0 0
  %4975 = vmatpush2.bf16.msra.mxu0 0
  %4976 = vmatprep.subr.bf16.mxu0 0
  %4977 = vmatpush2.bf16.msra.mxu0 0
  %4978 = vmatprep.subr.bf16.mxu0 0
  %4979 = vmatpush2.bf16.msra.mxu0 0
  %4980 = vmatprep.subr.bf16.mxu0 0
  %4981 = vmatpush2.bf16.msra.mxu0 0
  %4982 = vmatprep.subr.bf16.mxu0 0
  %4983 = vmatpush2.bf16.msra.mxu0 0
  %4984 = vmatprep.subr.bf16.mxu0 0
  %4985 = vmatpush2.bf16.msra.mxu0 0
  %4986 = vmatprep.subr.bf16.mxu0 0
  %4987 = vmatpush2.bf16.msra.mxu0 0
  %4988 = vmatprep.mubr.bf16.mxu0 0
  %4989 = vmatmul.mubr.bf16.gmra.mxu0 %v4906
  %v4990 = vpop.f32.mrf.mxu0
  %v4991 = vadd.f32 0.0, %v4990
  %v4992 = vpop.f32.mrf.mxu0
  %v4993 = vpop.f32.mrf.mxu0
  %v4994 = vadd.f32 0.0, %v4993
  %v4995 = vpop.f32.mrf.mxu0
  %4996 = vmatprep.mubr.bf16.mxu0 0
  %4997 = vmatmul.mubr.bf16.gmra.mxu0 %v4909
  %v4998 = vpop.f32.mrf.mxu0
  %v4999 = vadd.f32 0.0, %v4998
  %v5000 = vpop.f32.mrf.mxu0
  %v5001 = vpop.f32.mrf.mxu0
  %v5002 = vadd.f32 0.0, %v5001
  %v5003 = vpop.f32.mrf.mxu0
  %5004 = vmatprep.mubr.bf16.mxu0 0
  %5005 = vmatmul.mubr.bf16.gmra.mxu0 %v4912
  %v5006 = vpop.f32.mrf.mxu0
  %v5007 = vadd.f32 0.0, %v5006
  %v5008 = vpop.f32.mrf.mxu0
  %v5009 = vpop.f32.mrf.mxu0
  %v5010 = vadd.f32 0.0, %v5009
  %v5011 = vpop.f32.mrf.mxu0
  %5012 = vmatprep.mubr.bf16.mxu0 0
  %5013 = vmatmul.mubr.bf16.gmra.mxu0 %v4915
  %v5014 = vpop.f32.mrf.mxu0
  %v5015 = vadd.f32 0.0, %v5014
  %v5016 = vpop.f32.mrf.mxu0
  %v5017 = vpop.f32.mrf.mxu0
  %v5018 = vadd.f32 0.0, %v5017
  %v5019 = vpop.f32.mrf.mxu0
  %5020 = vmatprep.mubr.bf16.mxu0 0
  %5021 = vmatmul.mubr.bf16.gmra.mxu0 %v4918
  %v5022 = vpop.f32.mrf.mxu0
  %v5023 = vadd.f32 0.0, %v5022
  %v5024 = vpop.f32.mrf.mxu0
  %v5025 = vpop.f32.mrf.mxu0
  %v5026 = vadd.f32 0.0, %v5025
  %v5027 = vpop.f32.mrf.mxu0
  %5028 = vmatprep.mubr.bf16.mxu0 0
  %5029 = vmatmul.mubr.bf16.gmra.mxu0 %v4921
  %v5030 = vpop.f32.mrf.mxu0
  %v5031 = vadd.f32 0.0, %v5030
  %v5032 = vpop.f32.mrf.mxu0
  %v5033 = vpop.f32.mrf.mxu0
  %v5034 = vadd.f32 0.0, %v5033
  %v5035 = vpop.f32.mrf.mxu0
  %5036 = vmatprep.mubr.bf16.mxu0 0
  %5037 = vmatmul.mubr.bf16.gmra.mxu0 %v4924
  %v5038 = vpop.f32.mrf.mxu0
  %v5039 = vadd.f32 0.0, %v5038
  %v5040 = vpop.f32.mrf.mxu0
  %v5041 = vpop.f32.mrf.mxu0
  %v5042 = vadd.f32 0.0, %v5041
  %v5043 = vpop.f32.mrf.mxu0
  %5044 = vmatprep.mubr.bf16.mxu0 0
  %5045 = vmatmul.mubr.bf16.gmra.mxu0 %v4927
  %v5046 = vpop.f32.mrf.mxu0
  %v5047 = vadd.f32 0.0, %v5046
  %v5048 = vpop.f32.mrf.mxu0
  %v5049 = vpop.f32.mrf.mxu0
  %v5050 = vadd.f32 0.0, %v5049
  %v5051 = vpop.f32.mrf.mxu0
  %5052 = vmatprep.mubr.bf16.mxu0 0
  %5053 = vmatmul.mubr.bf16.gmra.mxu0 %v4930
  %v5054 = vpop.f32.mrf.mxu0
  %v5055 = vadd.f32 0.0, %v5054
  %v5056 = vpop.f32.mrf.mxu0
  %v5057 = vpop.f32.mrf.mxu0
  %v5058 = vadd.f32 0.0, %v5057
  %v5059 = vpop.f32.mrf.mxu0
  %5060 = vmatprep.mubr.bf16.mxu0 0
  %5061 = vmatmul.mubr.bf16.gmra.mxu0 %v4933
  %v5062 = vpop.f32.mrf.mxu0
  %v5063 = vadd.f32 0.0, %v5062
  %v5064 = vpop.f32.mrf.mxu0
  %v5065 = vpop.f32.mrf.mxu0
  %v5066 = vadd.f32 0.0, %v5065
  %v5067 = vpop.f32.mrf.mxu0
  %5068 = vmatprep.mubr.bf16.mxu0 0
  %5069 = vmatmul.mubr.bf16.gmra.mxu0 %v4936
  %v5070 = vpop.f32.mrf.mxu0
  %v5071 = vadd.f32 0.0, %v5070
  %v5072 = vpop.f32.mrf.mxu0
  %v5073 = vpop.f32.mrf.mxu0
  %v5074 = vadd.f32 0.0, %v5073
  %v5075 = vpop.f32.mrf.mxu0
  %5076 = vmatprep.mubr.bf16.mxu0 0
  %5077 = vmatmul.mubr.bf16.gmra.mxu0 %v4939
  %v5078 = vpop.f32.mrf.mxu0
  %v5079 = vadd.f32 0.0, %v5078
  %v5080 = vpop.f32.mrf.mxu0
  %v5081 = vpop.f32.mrf.mxu0
  %v5082 = vadd.f32 0.0, %v5081
  %v5083 = vpop.f32.mrf.mxu0
  %5084 = vmatprep.mubr.bf16.mxu0 0
  %5085 = vmatmul.mubr.bf16.gmra.mxu0 %v4942
  %v5086 = vpop.f32.mrf.mxu0
  %v5087 = vadd.f32 0.0, %v5086
  %v5088 = vpop.f32.mrf.mxu0
  %v5089 = vpop.f32.mrf.mxu0
  %v5090 = vadd.f32 0.0, %v5089
  %v5091 = vpop.f32.mrf.mxu0
  %5092 = vmatprep.mubr.bf16.mxu0 0
  %5093 = vmatmul.mubr.bf16.gmra.mxu0 %v4945
  %v5094 = vpop.f32.mrf.mxu0
  %v5095 = vadd.f32 0.0, %v5094
  %v5096 = vpop.f32.mrf.mxu0
  %v5097 = vpop.f32.mrf.mxu0
  %v5098 = vadd.f32 0.0, %v5097
  %v5099 = vpop.f32.mrf.mxu0
  %5100 = vmatprep.mubr.bf16.mxu0 0
  %5101 = vmatmul.mubr.bf16.gmra.mxu0 %v4948
  %v5102 = vpop.f32.mrf.mxu0
  %v5103 = vadd.f32 0.0, %v5102
  %v5104 = vpop.f32.mrf.mxu0
  %v5105 = vpop.f32.mrf.mxu0
  %v5106 = vadd.f32 0.0, %v5105
  %v5107 = vpop.f32.mrf.mxu0
  %5108 = vmatprep.mubr.bf16.mxu0 0
  %5109 = vmatmul.mubr.bf16.gmra.mxu0 %v4951
  %v5110 = vpop.f32.mrf.mxu0
  %v5111 = vadd.f32 0.0, %v5110
  %v5112 = vpop.f32.mrf.mxu0
  %v5113 = vpop.f32.mrf.mxu0
  %v5114 = vadd.f32 0.0, %v5113
  %v5115 = vpop.f32.mrf.mxu0
  %5116 = vdwg.mxu0
  %v5117 = vadd.f32 %v4823, %v4991
  %v5118 = vadd.f32 %v4824, %v4994
  %v5119 = vadd.f32 %v4825, %v4999
  %v5120 = vadd.f32 %v4826, %v5002
  %v5121 = vadd.f32 %v4827, %v5007
  %v5122 = vadd.f32 %v4828, %v5010
  %v5123 = vadd.f32 %v4829, %v5015
  %v5124 = vadd.f32 %v4830, %v5018
  %v5125 = vadd.f32 %v4831, %v5023
  %v5126 = vadd.f32 %v4832, %v5026
  %v5127 = vadd.f32 %v4833, %v5031
  %v5128 = vadd.f32 %v4834, %v5034
  %v5129 = vadd.f32 %v4835, %v5039
  %v5130 = vadd.f32 %v4836, %v5042
  %v5131 = vadd.f32 %v4837, %v5047
  %v5132 = vadd.f32 %v4838, %v5050
  %v5133 = vadd.f32 %v4839, %v5055
  %v5134 = vadd.f32 %v4840, %v5058
  %v5135 = vadd.f32 %v4841, %v5063
  %v5136 = vadd.f32 %v4842, %v5066
  %v5137 = vadd.f32 %v4843, %v5071
  %v5138 = vadd.f32 %v4844, %v5074
  %v5139 = vadd.f32 %v4845, %v5079
  %v5140 = vadd.f32 %v4846, %v5082
  %v5141 = vadd.f32 %v4847, %v5087
  %v5142 = vadd.f32 %v4848, %v5090
  %v5143 = vadd.f32 %v4849, %v5095
  %v5144 = vadd.f32 %v4850, %v5098
  %v5145 = vadd.f32 %v4851, %v5103
  %v5146 = vadd.f32 %v4852, %v5106
  %v5147 = vadd.f32 %v4853, %v5111
  %v5148 = vadd.f32 %v4854, %v5114
  %v5149 = vld [vmem:[%s4560 + $0x2] sm:$0xff]
  %v5150 = vld [vmem:[%s4560 + $0xa] sm:$0xff]
  %v5151 = vld [vmem:[%s4560 + $0x1a] sm:$0xff]
  %v5152 = vld [vmem:[%s4560 + $0x22] sm:$0xff]
  %v5153 = vld [vmem:[%s4560 + $0x32] sm:$0xff]
  %v5154 = vld [vmem:[%s4560 + $0x3a] sm:$0xff]
  %v5155 = vld [vmem:[%s4560 + $0x4a] sm:$0xff]
  %v5156 = vld [vmem:[%s4560 + $0x52] sm:$0xff]
  %v5157 = vld [vmem:[%s4560 + $0x62] sm:$0xff]
  %v5158 = vld [vmem:[%s4560 + $0x6a] sm:$0xff]
  %v5159 = vld [vmem:[%s4560 + $0x7a] sm:$0xff]
  %v5160 = vld [vmem:[%s4560 + $0x82] sm:$0xff]
  %v5161 = vld [vmem:[%s4560 + $0x92] sm:$0xff]
  %v5162 = vld [vmem:[%s4560 + $0x9a] sm:$0xff]
  %v5163 = vld [vmem:[%s4560 + $0xaa] sm:$0xff]
  %v5164 = vld [vmem:[%s4560 + $0xb2] sm:$0xff]
  %v5165 = vld [vmem:[%s4560 + $0xc2] sm:$0xff]
  %v5166 = vld [vmem:[%s4560 + $0xca] sm:$0xff]
  %v5167 = vld [vmem:[%s4560 + $0xda] sm:$0xff]
  %v5168 = vld [vmem:[%s4560 + $0xe2] sm:$0xff]
  %v5169 = vld [vmem:[%s4560 + $0xf2] sm:$0xff]
  %v5170 = vld [vmem:[%s4560 + $0xfa] sm:$0xff]
  %v5171 = vld [vmem:[%s4560 + $0x10a] sm:$0xff]
  %v5172 = vld [vmem:[%s4560 + $0x112] sm:$0xff]
  %v5173 = vld [vmem:[%s4560 + $0x122] sm:$0xff]
  %v5174 = vld [vmem:[%s4560 + $0x12a] sm:$0xff]
  %v5175 = vld [vmem:[%s4560 + $0x13a] sm:$0xff]
  %v5176 = vld [vmem:[%s4560 + $0x142] sm:$0xff]
  %v5177 = vld [vmem:[%s4560 + $0x152] sm:$0xff]
  %v5178 = vld [vmem:[%s4560 + $0x15a] sm:$0xff]
  %v5179 = vld [vmem:[%s4560 + $0x16a] sm:$0xff]
  %v5180 = vld [vmem:[%s4560 + $0x172] sm:$0xff]
  %v5181 = vpack.c.bf16 %v5150, %v5149
  %v5182 = vpack.c.bf16 %v5152, %v5151
  %v5183 = vpack.c.bf16 %v5154, %v5153
  %v5184 = vpack.c.bf16 %v5156, %v5155
  %v5185 = vpack.c.bf16 %v5158, %v5157
  %v5186 = vpack.c.bf16 %v5160, %v5159
  %v5187 = vpack.c.bf16 %v5162, %v5161
  %v5188 = vpack.c.bf16 %v5164, %v5163
  %v5189 = vpack.c.bf16 %v5166, %v5165
  %v5190 = vpack.c.bf16 %v5168, %v5167
  %v5191 = vpack.c.bf16 %v5170, %v5169
  %v5192 = vpack.c.bf16 %v5172, %v5171
  %v5193 = vpack.c.bf16 %v5174, %v5173
  %v5194 = vpack.c.bf16 %v5176, %v5175
  %v5195 = vpack.c.bf16 %v5178, %v5177
  %v5196 = vpack.c.bf16 %v5180, %v5179
  %s5197 = scalar_lea.vmem %s3, 32
  %v5198 = vld [vmem:[%s5197] sm:$0xf]
  %v5200 = vsel %vm64, %v5181, 0
  %v5203 = vsel %vm64, %v5182, 0
  %v5206 = vsel %vm64, %v5183, 0
  %v5209 = vsel %vm64, %v5184, 0
  %v5212 = vsel %vm64, %v5185, 0
  %v5215 = vsel %vm64, %v5186, 0
  %v5218 = vsel %vm64, %v5187, 0
  %v5221 = vsel %vm64, %v5188, 0
  %v5224 = vsel %vm64, %v5189, 0
  %v5227 = vsel %vm64, %v5190, 0
  %v5230 = vsel %vm64, %v5191, 0
  %v5233 = vsel %vm64, %v5192, 0
  %v5236 = vsel %vm64, %v5193, 0
  %v5239 = vsel %vm64, %v5194, 0
  %v5242 = vsel %vm64, %v5195, 0
  %v5245 = vsel %vm64, %v5196, 0
  %v5248 = vsel %vm3007, %v5198, 0
  %5250 = vmatprep.subr.bf16.mxu0 0
  %5251 = vmatpush1.bf16.msra.mxu0 0
  %5252 = vmatprep.subr.bf16.mxu0 0
  %5253 = vmatpush1.bf16.msra.mxu0 0
  %5254 = vmatprep.subr.bf16.mxu0 0
  %5255 = vmatpush1.bf16.msra.mxu0 0
  %5256 = vmatprep.subr.bf16.mxu0 0
  %5257 = vmatpush1.bf16.msra.mxu0 0
  %5258 = vmatprep.subr.bf16.mxu0 0
  %5259 = vmatpush1.bf16.msra.mxu0 0
  %5260 = vmatprep.subr.bf16.mxu0 0
  %5261 = vmatpush1.bf16.msra.mxu0 0
  %5262 = vmatprep.subr.bf16.mxu0 0
  %5263 = vmatpush1.bf16.msra.mxu0 0
  %5264 = vmatprep.subr.bf16.mxu0 0
  %5265 = vmatpush1.bf16.msra.mxu0 %v5248
  %5266 = vmatprep.subr.bf16.mxu0 0
  %5267 = vmatpush2.bf16.msra.mxu0 0
  %5268 = vmatprep.subr.bf16.mxu0 0
  %5269 = vmatpush2.bf16.msra.mxu0 0
  %5270 = vmatprep.subr.bf16.mxu0 0
  %5271 = vmatpush2.bf16.msra.mxu0 0
  %5272 = vmatprep.subr.bf16.mxu0 0
  %5273 = vmatpush2.bf16.msra.mxu0 0
  %5274 = vmatprep.subr.bf16.mxu0 0
  %5275 = vmatpush2.bf16.msra.mxu0 0
  %5276 = vmatprep.subr.bf16.mxu0 0
  %5277 = vmatpush2.bf16.msra.mxu0 0
  %5278 = vmatprep.subr.bf16.mxu0 0
  %5279 = vmatpush2.bf16.msra.mxu0 0
  %5280 = vmatprep.subr.bf16.mxu0 0
  %5281 = vmatpush2.bf16.msra.mxu0 0
  %5282 = vmatprep.mubr.bf16.mxu0 0
  %5283 = vmatmul.mubr.bf16.gmra.mxu0 %v5200
  %v5284 = vpop.f32.mrf.mxu0
  %v5285 = vadd.f32 0.0, %v5284
  %v5286 = vpop.f32.mrf.mxu0
  %v5287 = vpop.f32.mrf.mxu0
  %v5288 = vadd.f32 0.0, %v5287
  %v5289 = vpop.f32.mrf.mxu0
  %5290 = vmatprep.mubr.bf16.mxu0 0
  %5291 = vmatmul.mubr.bf16.gmra.mxu0 %v5203
  %v5292 = vpop.f32.mrf.mxu0
  %v5293 = vadd.f32 0.0, %v5292
  %v5294 = vpop.f32.mrf.mxu0
  %v5295 = vpop.f32.mrf.mxu0
  %v5296 = vadd.f32 0.0, %v5295
  %v5297 = vpop.f32.mrf.mxu0
  %5298 = vmatprep.mubr.bf16.mxu0 0
  %5299 = vmatmul.mubr.bf16.gmra.mxu0 %v5206
  %v5300 = vpop.f32.mrf.mxu0
  %v5301 = vadd.f32 0.0, %v5300
  %v5302 = vpop.f32.mrf.mxu0
  %v5303 = vpop.f32.mrf.mxu0
  %v5304 = vadd.f32 0.0, %v5303
  %v5305 = vpop.f32.mrf.mxu0
  %5306 = vmatprep.mubr.bf16.mxu0 0
  %5307 = vmatmul.mubr.bf16.gmra.mxu0 %v5209
  %v5308 = vpop.f32.mrf.mxu0
  %v5309 = vadd.f32 0.0, %v5308
  %v5310 = vpop.f32.mrf.mxu0
  %v5311 = vpop.f32.mrf.mxu0
  %v5312 = vadd.f32 0.0, %v5311
  %v5313 = vpop.f32.mrf.mxu0
  %5314 = vmatprep.mubr.bf16.mxu0 0
  %5315 = vmatmul.mubr.bf16.gmra.mxu0 %v5212
  %v5316 = vpop.f32.mrf.mxu0
  %v5317 = vadd.f32 0.0, %v5316
  %v5318 = vpop.f32.mrf.mxu0
  %v5319 = vpop.f32.mrf.mxu0
  %v5320 = vadd.f32 0.0, %v5319
  %v5321 = vpop.f32.mrf.mxu0
  %5322 = vmatprep.mubr.bf16.mxu0 0
  %5323 = vmatmul.mubr.bf16.gmra.mxu0 %v5215
  %v5324 = vpop.f32.mrf.mxu0
  %v5325 = vadd.f32 0.0, %v5324
  %v5326 = vpop.f32.mrf.mxu0
  %v5327 = vpop.f32.mrf.mxu0
  %v5328 = vadd.f32 0.0, %v5327
  %v5329 = vpop.f32.mrf.mxu0
  %5330 = vmatprep.mubr.bf16.mxu0 0
  %5331 = vmatmul.mubr.bf16.gmra.mxu0 %v5218
  %v5332 = vpop.f32.mrf.mxu0
  %v5333 = vadd.f32 0.0, %v5332
  %v5334 = vpop.f32.mrf.mxu0
  %v5335 = vpop.f32.mrf.mxu0
  %v5336 = vadd.f32 0.0, %v5335
  %v5337 = vpop.f32.mrf.mxu0
  %5338 = vmatprep.mubr.bf16.mxu0 0
  %5339 = vmatmul.mubr.bf16.gmra.mxu0 %v5221
  %v5340 = vpop.f32.mrf.mxu0
  %v5341 = vadd.f32 0.0, %v5340
  %v5342 = vpop.f32.mrf.mxu0
  %v5343 = vpop.f32.mrf.mxu0
  %v5344 = vadd.f32 0.0, %v5343
  %v5345 = vpop.f32.mrf.mxu0
  %5346 = vmatprep.mubr.bf16.mxu0 0
  %5347 = vmatmul.mubr.bf16.gmra.mxu0 %v5224
  %v5348 = vpop.f32.mrf.mxu0
  %v5349 = vadd.f32 0.0, %v5348
  %v5350 = vpop.f32.mrf.mxu0
  %v5351 = vpop.f32.mrf.mxu0
  %v5352 = vadd.f32 0.0, %v5351
  %v5353 = vpop.f32.mrf.mxu0
  %5354 = vmatprep.mubr.bf16.mxu0 0
  %5355 = vmatmul.mubr.bf16.gmra.mxu0 %v5227
  %v5356 = vpop.f32.mrf.mxu0
  %v5357 = vadd.f32 0.0, %v5356
  %v5358 = vpop.f32.mrf.mxu0
  %v5359 = vpop.f32.mrf.mxu0
  %v5360 = vadd.f32 0.0, %v5359
  %v5361 = vpop.f32.mrf.mxu0
  %5362 = vmatprep.mubr.bf16.mxu0 0
  %5363 = vmatmul.mubr.bf16.gmra.mxu0 %v5230
  %v5364 = vpop.f32.mrf.mxu0
  %v5365 = vadd.f32 0.0, %v5364
  %v5366 = vpop.f32.mrf.mxu0
  %v5367 = vpop.f32.mrf.mxu0
  %v5368 = vadd.f32 0.0, %v5367
  %v5369 = vpop.f32.mrf.mxu0
  %5370 = vmatprep.mubr.bf16.mxu0 0
  %5371 = vmatmul.mubr.bf16.gmra.mxu0 %v5233
  %v5372 = vpop.f32.mrf.mxu0
  %v5373 = vadd.f32 0.0, %v5372
  %v5374 = vpop.f32.mrf.mxu0
  %v5375 = vpop.f32.mrf.mxu0
  %v5376 = vadd.f32 0.0, %v5375
  %v5377 = vpop.f32.mrf.mxu0
  %5378 = vmatprep.mubr.bf16.mxu0 0
  %5379 = vmatmul.mubr.bf16.gmra.mxu0 %v5236
  %v5380 = vpop.f32.mrf.mxu0
  %v5381 = vadd.f32 0.0, %v5380
  %v5382 = vpop.f32.mrf.mxu0
  %v5383 = vpop.f32.mrf.mxu0
  %v5384 = vadd.f32 0.0, %v5383
  %v5385 = vpop.f32.mrf.mxu0
  %5386 = vmatprep.mubr.bf16.mxu0 0
  %5387 = vmatmul.mubr.bf16.gmra.mxu0 %v5239
  %v5388 = vpop.f32.mrf.mxu0
  %v5389 = vadd.f32 0.0, %v5388
  %v5390 = vpop.f32.mrf.mxu0
  %v5391 = vpop.f32.mrf.mxu0
  %v5392 = vadd.f32 0.0, %v5391
  %v5393 = vpop.f32.mrf.mxu0
  %5394 = vmatprep.mubr.bf16.mxu0 0
  %5395 = vmatmul.mubr.bf16.gmra.mxu0 %v5242
  %v5396 = vpop.f32.mrf.mxu0
  %v5397 = vadd.f32 0.0, %v5396
  %v5398 = vpop.f32.mrf.mxu0
  %v5399 = vpop.f32.mrf.mxu0
  %v5400 = vadd.f32 0.0, %v5399
  %v5401 = vpop.f32.mrf.mxu0
  %5402 = vmatprep.mubr.bf16.mxu0 0
  %5403 = vmatmul.mubr.bf16.gmra.mxu0 %v5245
  %v5404 = vpop.f32.mrf.mxu0
  %v5405 = vadd.f32 0.0, %v5404
  %v5406 = vpop.f32.mrf.mxu0
  %v5407 = vpop.f32.mrf.mxu0
  %v5408 = vadd.f32 0.0, %v5407
  %v5409 = vpop.f32.mrf.mxu0
  %5410 = vdwg.mxu0
  %v5411 = vadd.f32 %v5117, %v5285
  %v5412 = vadd.f32 %v5118, %v5288
  %v5413 = vadd.f32 %v5119, %v5293
  %v5414 = vadd.f32 %v5120, %v5296
  %v5415 = vadd.f32 %v5121, %v5301
  %v5416 = vadd.f32 %v5122, %v5304
  %v5417 = vadd.f32 %v5123, %v5309
  %v5418 = vadd.f32 %v5124, %v5312
  %v5419 = vadd.f32 %v5125, %v5317
  %v5420 = vadd.f32 %v5126, %v5320
  %v5421 = vadd.f32 %v5127, %v5325
  %v5422 = vadd.f32 %v5128, %v5328
  %v5423 = vadd.f32 %v5129, %v5333
  %v5424 = vadd.f32 %v5130, %v5336
  %v5425 = vadd.f32 %v5131, %v5341
  %v5426 = vadd.f32 %v5132, %v5344
  %v5427 = vadd.f32 %v5133, %v5349
  %v5428 = vadd.f32 %v5134, %v5352
  %v5429 = vadd.f32 %v5135, %v5357
  %v5430 = vadd.f32 %v5136, %v5360
  %v5431 = vadd.f32 %v5137, %v5365
  %v5432 = vadd.f32 %v5138, %v5368
  %v5433 = vadd.f32 %v5139, %v5373
  %v5434 = vadd.f32 %v5140, %v5376
  %v5435 = vadd.f32 %v5141, %v5381
  %v5436 = vadd.f32 %v5142, %v5384
  %v5437 = vadd.f32 %v5143, %v5389
  %v5438 = vadd.f32 %v5144, %v5392
  %v5439 = vadd.f32 %v5145, %v5397
  %v5440 = vadd.f32 %v5146, %v5400
  %v5441 = vadd.f32 %v5147, %v5405
  %v5442 = vadd.f32 %v5148, %v5408
  %v5443 = vld [vmem:[%s4] sm:$0x1]
  %v5445 = vlaneseq
  %v5446 = vshrl.u32 %v5445, 7
  %v5447 = vsub.s32 0, %v5446
  %v5448 = vrot.slane %v5443, %v5447
  %v5450 = vadd.f32 %v5411, %v5448
  %v5451 = vadd.f32 %v5412, %v5448
  %v5452 = vadd.f32 %v5413, %v5448
  %v5453 = vadd.f32 %v5414, %v5448
  %v5454 = vadd.f32 %v5415, %v5448
  %v5455 = vadd.f32 %v5416, %v5448
  %v5456 = vadd.f32 %v5417, %v5448
  %v5457 = vadd.f32 %v5418, %v5448
  %v5458 = vadd.f32 %v5419, %v5448
  %v5459 = vadd.f32 %v5420, %v5448
  %v5460 = vadd.f32 %v5421, %v5448
  %v5461 = vadd.f32 %v5422, %v5448
  %v5462 = vadd.f32 %v5423, %v5448
  %v5463 = vadd.f32 %v5424, %v5448
  %v5464 = vadd.f32 %v5425, %v5448
  %v5465 = vadd.f32 %v5426, %v5448
  %v5466 = vadd.f32 %v5427, %v5448
  %v5467 = vadd.f32 %v5428, %v5448
  %v5468 = vadd.f32 %v5429, %v5448
  %v5469 = vadd.f32 %v5430, %v5448
  %v5470 = vadd.f32 %v5431, %v5448
  %v5471 = vadd.f32 %v5432, %v5448
  %v5472 = vadd.f32 %v5433, %v5448
  %v5473 = vadd.f32 %v5434, %v5448
  %v5474 = vadd.f32 %v5435, %v5448
  %v5475 = vadd.f32 %v5436, %v5448
  %v5476 = vadd.f32 %v5437, %v5448
  %v5477 = vadd.f32 %v5438, %v5448
  %v5478 = vadd.f32 %v5439, %v5448
  %v5479 = vadd.f32 %v5440, %v5448
  %v5480 = vadd.f32 %v5441, %v5448
  %v5481 = vadd.f32 %v5442, %v5448
  %v5482 = vmax.f32 %v5450, 0.0
  %v5483 = vmax.f32 %v5451, 0.0
  %v5484 = vmax.f32 %v5452, 0.0
  %v5485 = vmax.f32 %v5453, 0.0
  %v5486 = vmax.f32 %v5454, 0.0
  %v5487 = vmax.f32 %v5455, 0.0
  %v5488 = vmax.f32 %v5456, 0.0
  %v5489 = vmax.f32 %v5457, 0.0
  %v5490 = vmax.f32 %v5458, 0.0
  %v5491 = vmax.f32 %v5459, 0.0
  %v5492 = vmax.f32 %v5460, 0.0
  %v5493 = vmax.f32 %v5461, 0.0
  %v5494 = vmax.f32 %v5462, 0.0
  %v5495 = vmax.f32 %v5463, 0.0
  %v5496 = vmax.f32 %v5464, 0.0
  %v5497 = vmax.f32 %v5465, 0.0
  %v5498 = vmax.f32 %v5466, 0.0
  %v5499 = vmax.f32 %v5467, 0.0
  %v5500 = vmax.f32 %v5468, 0.0
  %v5501 = vmax.f32 %v5469, 0.0
  %v5502 = vmax.f32 %v5470, 0.0
  %v5503 = vmax.f32 %v5471, 0.0
  %v5504 = vmax.f32 %v5472, 0.0
  %v5505 = vmax.f32 %v5473, 0.0
  %v5506 = vmax.f32 %v5474, 0.0
  %v5507 = vmax.f32 %v5475, 0.0
  %v5508 = vmax.f32 %v5476, 0.0
  %v5509 = vmax.f32 %v5477, 0.0
  %v5510 = vmax.f32 %v5478, 0.0
  %v5511 = vmax.f32 %v5479, 0.0
  %v5512 = vmax.f32 %v5480, 0.0
  %v5513 = vmax.f32 %v5481, 0.0
  %v5514 = vpack.c.bf16 %v5483, %v5482
  %v5515 = vpack.c.bf16 %v5485, %v5484
  %v5516 = vpack.c.bf16 %v5487, %v5486
  %v5517 = vpack.c.bf16 %v5489, %v5488
  %v5518 = vpack.c.bf16 %v5491, %v5490
  %v5519 = vpack.c.bf16 %v5493, %v5492
  %v5520 = vpack.c.bf16 %v5495, %v5494
  %v5521 = vpack.c.bf16 %v5497, %v5496
  %v5522 = vpack.c.bf16 %v5499, %v5498
  %v5523 = vpack.c.bf16 %v5501, %v5500
  %v5524 = vpack.c.bf16 %v5503, %v5502
  %v5525 = vpack.c.bf16 %v5505, %v5504
  %v5526 = vpack.c.bf16 %v5507, %v5506
  %v5527 = vpack.c.bf16 %v5509, %v5508
  %v5528 = vpack.c.bf16 %v5511, %v5510
  %v5529 = vpack.c.bf16 %v5513, %v5512
  %v5546 = vunpack.c.l.b16 %v5514
  %v5547 = vunpack.c.h.b16 %v5514
  %v5548 = vunpack.c.l.b16 %v5515
  %v5549 = vunpack.c.h.b16 %v5515
  %v5550 = vunpack.c.l.b16 %v5516
  %v5551 = vunpack.c.h.b16 %v5516
  %v5552 = vunpack.c.l.b16 %v5517
  %v5553 = vunpack.c.h.b16 %v5517
  %v5554 = vunpack.c.l.b16 %v5518
  %v5555 = vunpack.c.h.b16 %v5518
  %v5556 = vunpack.c.l.b16 %v5519
  %v5557 = vunpack.c.h.b16 %v5519
  %v5558 = vunpack.c.l.b16 %v5520
  %v5559 = vunpack.c.h.b16 %v5520
  %v5560 = vunpack.c.l.b16 %v5521
  %v5561 = vunpack.c.h.b16 %v5521
  %v5562 = vunpack.c.l.b16 %v5522
  %v5563 = vunpack.c.h.b16 %v5522
  %v5564 = vunpack.c.l.b16 %v5523
  %v5565 = vunpack.c.h.b16 %v5523
  %v5566 = vunpack.c.l.b16 %v5524
  %v5567 = vunpack.c.h.b16 %v5524
  %v5568 = vunpack.c.l.b16 %v5525
  %v5569 = vunpack.c.h.b16 %v5525
  %v5570 = vunpack.c.l.b16 %v5526
  %v5571 = vunpack.c.h.b16 %v5526
  %v5572 = vunpack.c.l.b16 %v5527
  %v5573 = vunpack.c.h.b16 %v5527
  %v5574 = vunpack.c.l.b16 %v5528
  %v5575 = vunpack.c.h.b16 %v5528
  %v5576 = vunpack.c.l.b16 %v5529
  %v5577 = vunpack.c.h.b16 %v5529
  %v5578 = vpack.c.b16 %v5546, %v5546
  %v5579 = vpack.c.b16 %v5547, %v5547
  %v5580 = vpack.c.b16 %v5548, %v5548
  %v5581 = vpack.c.b16 %v5549, %v5549
  %v5582 = vpack.c.b16 %v5550, %v5550
  %v5583 = vpack.c.b16 %v5551, %v5551
  %v5584 = vpack.c.b16 %v5552, %v5552
  %v5585 = vpack.c.b16 %v5553, %v5553
  %v5586 = vpack.c.b16 %v5554, %v5554
  %v5587 = vpack.c.b16 %v5555, %v5555
  %v5588 = vpack.c.b16 %v5556, %v5556
  %v5589 = vpack.c.b16 %v5557, %v5557
  %v5590 = vpack.c.b16 %v5558, %v5558
  %v5591 = vpack.c.b16 %v5559, %v5559
  %v5592 = vpack.c.b16 %v5560, %v5560
  %v5593 = vpack.c.b16 %v5561, %v5561
  %v5594 = vpack.c.b16 %v5562, %v5562
  %v5595 = vpack.c.b16 %v5563, %v5563
  %v5596 = vpack.c.b16 %v5564, %v5564
  %v5597 = vpack.c.b16 %v5565, %v5565
  %v5598 = vpack.c.b16 %v5566, %v5566
  %v5599 = vpack.c.b16 %v5567, %v5567
  %v5600 = vpack.c.b16 %v5568, %v5568
  %v5601 = vpack.c.b16 %v5569, %v5569
  %v5602 = vpack.c.b16 %v5570, %v5570
  %v5603 = vpack.c.b16 %v5571, %v5571
  %v5604 = vpack.c.b16 %v5572, %v5572
  %v5605 = vpack.c.b16 %v5573, %v5573
  %v5606 = vpack.c.b16 %v5574, %v5574
  %v5607 = vpack.c.b16 %v5575, %v5575
  %v5608 = vpack.c.b16 %v5576, %v5576
  %v5609 = vpack.c.b16 %v5577, %v5577
  %vm5642 = vcmask 60416
  %5643 = vst.msk [vmem:[%s5] sm:$0xf] %vm5642, %v5578
  %5644 = vst.msk [vmem:[%s5 + $0x4] sm:$0xf] %vm5642, %v5579
  %5645 = vst.msk [vmem:[%s5 + $0x8] sm:$0xf] %vm5642, %v5580
  %5646 = vst.msk [vmem:[%s5 + $0xc] sm:$0xf] %vm5642, %v5581
  %5647 = vst.msk [vmem:[%s5 + $0x10] sm:$0xf] %vm5642, %v5582
  %5648 = vst.msk [vmem:[%s5 + $0x14] sm:$0xf] %vm5642, %v5583
  %5649 = vst.msk [vmem:[%s5 + $0x18] sm:$0xf] %vm5642, %v5584
  %5650 = vst.msk [vmem:[%s5 + $0x1c] sm:$0xf] %vm5642, %v5585
  %5651 = vst.msk [vmem:[%s5 + $0x20] sm:$0xf] %vm5642, %v5586
  %5652 = vst.msk [vmem:[%s5 + $0x24] sm:$0xf] %vm5642, %v5587
  %5653 = vst.msk [vmem:[%s5 + $0x28] sm:$0xf] %vm5642, %v5588
  %5654 = vst.msk [vmem:[%s5 + $0x2c] sm:$0xf] %vm5642, %v5589
  %5655 = vst.msk [vmem:[%s5 + $0x30] sm:$0xf] %vm5642, %v5590
  %5656 = vst.msk [vmem:[%s5 + $0x34] sm:$0xf] %vm5642, %v5591
  %5657 = vst.msk [vmem:[%s5 + $0x38] sm:$0xf] %vm5642, %v5592
  %5658 = vst.msk [vmem:[%s5 + $0x3c] sm:$0xf] %vm5642, %v5593
  %5659 = vst.msk [vmem:[%s5 + $0x40] sm:$0xf] %vm5642, %v5594
  %5660 = vst.msk [vmem:[%s5 + $0x44] sm:$0xf] %vm5642, %v5595
  %5661 = vst.msk [vmem:[%s5 + $0x48] sm:$0xf] %vm5642, %v5596
  %5662 = vst.msk [vmem:[%s5 + $0x4c] sm:$0xf] %vm5642, %v5597
  %5663 = vst.msk [vmem:[%s5 + $0x50] sm:$0xf] %vm5642, %v5598
  %5664 = vst.msk [vmem:[%s5 + $0x54] sm:$0xf] %vm5642, %v5599
  %5665 = vst.msk [vmem:[%s5 + $0x58] sm:$0xf] %vm5642, %v5600
  %5666 = vst.msk [vmem:[%s5 + $0x5c] sm:$0xf] %vm5642, %v5601
  %5667 = vst.msk [vmem:[%s5 + $0x60] sm:$0xf] %vm5642, %v5602
  %5668 = vst.msk [vmem:[%s5 + $0x64] sm:$0xf] %vm5642, %v5603
  %5669 = vst.msk [vmem:[%s5 + $0x68] sm:$0xf] %vm5642, %v5604
  %5670 = vst.msk [vmem:[%s5 + $0x6c] sm:$0xf] %vm5642, %v5605
  %5671 = vst.msk [vmem:[%s5 + $0x70] sm:$0xf] %vm5642, %v5606
  %5672 = vst.msk [vmem:[%s5 + $0x74] sm:$0xf] %vm5642, %v5607
  %5673 = vst.msk [vmem:[%s5 + $0x78] sm:$0xf] %vm5642, %v5608
  %5674 = vst.msk [vmem:[%s5 + $0x7c] sm:$0xf] %vm5642, %v5609
  %s5675 = scalar_lea.vmem %s0, 256
  %v5676 = vld [vmem:[%s5675] sm:$0xff]
  %v5677 = vld [vmem:[%s5675 + $0x8] sm:$0xff]
  %v5678 = vld [vmem:[%s5675 + $0x10] sm:$0xff]
  %v5679 = vld [vmem:[%s5675 + $0x18] sm:$0xff]
  %v5680 = vld [vmem:[%s5675 + $0x20] sm:$0xff]
  %v5681 = vld [vmem:[%s5675 + $0x28] sm:$0xff]
  %v5682 = vld [vmem:[%s5675 + $0x30] sm:$0xff]
  %v5683 = vld [vmem:[%s5675 + $0x38] sm:$0xff]
  %v5684 = vld [vmem:[%s5675 + $0x40] sm:$0xff]
  %v5685 = vld [vmem:[%s5675 + $0x48] sm:$0xff]
  %v5686 = vld [vmem:[%s5675 + $0x50] sm:$0xff]
  %v5687 = vld [vmem:[%s5675 + $0x58] sm:$0xff]
  %v5688 = vld [vmem:[%s5675 + $0x60] sm:$0xff]
  %v5689 = vld [vmem:[%s5675 + $0x68] sm:$0xff]
  %v5690 = vld [vmem:[%s5675 + $0x70] sm:$0xff]
  %v5691 = vld [vmem:[%s5675 + $0x78] sm:$0xff]
  %v5692 = vld [vmem:[%s5675 + $0x80] sm:$0xff]
  %v5693 = vld [vmem:[%s5675 + $0x88] sm:$0xff]
  %v5694 = vld [vmem:[%s5675 + $0x90] sm:$0xff]
  %v5695 = vld [vmem:[%s5675 + $0x98] sm:$0xff]
  %v5696 = vld [vmem:[%s5675 + $0xa0] sm:$0xff]
  %v5697 = vld [vmem:[%s5675 + $0xa8] sm:$0xff]
  %v5698 = vld [vmem:[%s5675 + $0xb0] sm:$0xff]
  %v5699 = vld [vmem:[%s5675 + $0xb8] sm:$0xff]
  %v5700 = vld [vmem:[%s5675 + $0xc0] sm:$0xff]
  %v5701 = vld [vmem:[%s5675 + $0xc8] sm:$0xff]
  %v5702 = vld [vmem:[%s5675 + $0xd0] sm:$0xff]
  %v5703 = vld [vmem:[%s5675 + $0xd8] sm:$0xff]
  %v5704 = vld [vmem:[%s5675 + $0xe0] sm:$0xff]
  %v5705 = vld [vmem:[%s5675 + $0xe8] sm:$0xff]
  %v5706 = vld [vmem:[%s5675 + $0xf0] sm:$0xff]
  %v5707 = vld [vmem:[%s5675 + $0xf8] sm:$0xff]
  %5708 = vst.msk [vmem:[%s30 + $0x1] sm:$0xff] %vm21, %v5676
  %5709 = vst.msk [vmem:[%s30 + $0x9] sm:$0xff] %vm21, %v5677
  %5710 = vst.msk [vmem:[%s30 + $0x19] sm:$0xff] %vm21, %v5678
  %5711 = vst.msk [vmem:[%s30 + $0x21] sm:$0xff] %vm21, %v5679
  %5712 = vst.msk [vmem:[%s30 + $0x31] sm:$0xff] %vm21, %v5680
  %5713 = vst.msk [vmem:[%s30 + $0x39] sm:$0xff] %vm21, %v5681
  %5714 = vst.msk [vmem:[%s30 + $0x49] sm:$0xff] %vm21, %v5682
  %5715 = vst.msk [vmem:[%s30 + $0x51] sm:$0xff] %vm21, %v5683
  %5716 = vst.msk [vmem:[%s30 + $0x61] sm:$0xff] %vm21, %v5684
  %5717 = vst.msk [vmem:[%s30 + $0x69] sm:$0xff] %vm21, %v5685
  %5718 = vst.msk [vmem:[%s30 + $0x79] sm:$0xff] %vm21, %v5686
  %5719 = vst.msk [vmem:[%s30 + $0x81] sm:$0xff] %vm21, %v5687
  %5720 = vst.msk [vmem:[%s30 + $0x91] sm:$0xff] %vm21, %v5688
  %5721 = vst.msk [vmem:[%s30 + $0x99] sm:$0xff] %vm21, %v5689
  %5722 = vst.msk [vmem:[%s30 + $0xa9] sm:$0xff] %vm21, %v5690
  %5723 = vst.msk [vmem:[%s30 + $0xb1] sm:$0xff] %vm21, %v5691
  %5724 = vst.msk [vmem:[%s30 + $0xc1] sm:$0xff] %vm21, %v5692
  %5725 = vst.msk [vmem:[%s30 + $0xc9] sm:$0xff] %vm21, %v5693
  %5726 = vst.msk [vmem:[%s30 + $0xd9] sm:$0xff] %vm21, %v5694
  %5727 = vst.msk [vmem:[%s30 + $0xe1] sm:$0xff] %vm21, %v5695
  %5728 = vst.msk [vmem:[%s30 + $0xf1] sm:$0xff] %vm21, %v5696
  %5729 = vst.msk [vmem:[%s30 + $0xf9] sm:$0xff] %vm21, %v5697
  %5730 = vst.msk [vmem:[%s30 + $0x109] sm:$0xff] %vm21, %v5698
  %5731 = vst.msk [vmem:[%s30 + $0x111] sm:$0xff] %vm21, %v5699
  %5732 = vst.msk [vmem:[%s30 + $0x121] sm:$0xff] %vm21, %v5700
  %5733 = vst.msk [vmem:[%s30 + $0x129] sm:$0xff] %vm21, %v5701
  %5734 = vst.msk [vmem:[%s30 + $0x139] sm:$0xff] %vm21, %v5702
  %5735 = vst.msk [vmem:[%s30 + $0x141] sm:$0xff] %vm21, %v5703
  %5736 = vst.msk [vmem:[%s30 + $0x151] sm:$0xff] %vm21, %v5704
  %5737 = vst.msk [vmem:[%s30 + $0x159] sm:$0xff] %vm21, %v5705
  %5738 = vst.msk [vmem:[%s30 + $0x169] sm:$0xff] %vm21, %v5706
  %5739 = vst.msk [vmem:[%s30 + $0x171] sm:$0xff] %vm21, %v5707
  %v5740 = vld [vmem:[#allocation2] sm:$0xff]
  %v5741 = vld [vmem:[#allocation2 + $0x8] sm:$0xff]
  %v5742 = vld [vmem:[#allocation2 + $0x18] sm:$0xff]
  %v5743 = vld [vmem:[#allocation2 + $0x20] sm:$0xff]
  %v5744 = vld [vmem:[#allocation2 + $0x30] sm:$0xff]
  %v5745 = vld [vmem:[#allocation2 + $0x38] sm:$0xff]
  %v5746 = vld [vmem:[#allocation2 + $0x48] sm:$0xff]
  %v5747 = vld [vmem:[#allocation2 + $0x50] sm:$0xff]
  %v5748 = vld [vmem:[#allocation2 + $0x60] sm:$0xff]
  %v5749 = vld [vmem:[#allocation2 + $0x68] sm:$0xff]
  %v5750 = vld [vmem:[#allocation2 + $0x78] sm:$0xff]
  %v5751 = vld [vmem:[#allocation2 + $0x80] sm:$0xff]
  %v5752 = vld [vmem:[#allocation2 + $0x90] sm:$0xff]
  %v5753 = vld [vmem:[#allocation2 + $0x98] sm:$0xff]
  %v5754 = vld [vmem:[#allocation2 + $0xa8] sm:$0xff]
  %v5755 = vld [vmem:[#allocation2 + $0xb0] sm:$0xff]
  %v5756 = vld [vmem:[#allocation2 + $0xc0] sm:$0xff]
  %v5757 = vld [vmem:[#allocation2 + $0xc8] sm:$0xff]
  %v5758 = vld [vmem:[#allocation2 + $0xd8] sm:$0xff]
  %v5759 = vld [vmem:[#allocation2 + $0xe0] sm:$0xff]
  %v5760 = vld [vmem:[#allocation2 + $0xf0] sm:$0xff]
  %v5761 = vld [vmem:[#allocation2 + $0xf8] sm:$0xff]
  %v5762 = vld [vmem:[#allocation2 + $0x108] sm:$0xff]
  %v5763 = vld [vmem:[#allocation2 + $0x110] sm:$0xff]
  %v5764 = vld [vmem:[#allocation2 + $0x120] sm:$0xff]
  %v5765 = vld [vmem:[#allocation2 + $0x128] sm:$0xff]
  %v5766 = vld [vmem:[#allocation2 + $0x138] sm:$0xff]
  %v5767 = vld [vmem:[#allocation2 + $0x140] sm:$0xff]
  %v5768 = vld [vmem:[#allocation2 + $0x150] sm:$0xff]
  %v5769 = vld [vmem:[#allocation2 + $0x158] sm:$0xff]
  %v5770 = vld [vmem:[#allocation2 + $0x168] sm:$0xff]
  %v5771 = vld [vmem:[#allocation2 + $0x170] sm:$0xff]
  %v5772 = vpack.c.bf16 %v5741, %v5740
  %v5773 = vpack.c.bf16 %v5743, %v5742
  %v5774 = vpack.c.bf16 %v5745, %v5744
  %v5775 = vpack.c.bf16 %v5747, %v5746
  %v5776 = vpack.c.bf16 %v5749, %v5748
  %v5777 = vpack.c.bf16 %v5751, %v5750
  %v5778 = vpack.c.bf16 %v5753, %v5752
  %v5779 = vpack.c.bf16 %v5755, %v5754
  %v5780 = vpack.c.bf16 %v5757, %v5756
  %v5781 = vpack.c.bf16 %v5759, %v5758
  %v5782 = vpack.c.bf16 %v5761, %v5760
  %v5783 = vpack.c.bf16 %v5763, %v5762
  %v5784 = vpack.c.bf16 %v5765, %v5764
  %v5785 = vpack.c.bf16 %v5767, %v5766
  %v5786 = vpack.c.bf16 %v5769, %v5768
  %v5787 = vpack.c.bf16 %v5771, %v5770
  %v5788 = vld [vmem:[%s1] sm:$0x3]
  %v5789 = vld [vmem:[#allocation2 + $0x1] sm:$0xff]
  %v5790 = vld [vmem:[#allocation2 + $0x9] sm:$0xff]
  %v5791 = vld [vmem:[#allocation2 + $0x19] sm:$0xff]
  %v5792 = vld [vmem:[#allocation2 + $0x21] sm:$0xff]
  %v5793 = vld [vmem:[#allocation2 + $0x31] sm:$0xff]
  %v5794 = vld [vmem:[#allocation2 + $0x39] sm:$0xff]
  %v5795 = vld [vmem:[#allocation2 + $0x49] sm:$0xff]
  %v5796 = vld [vmem:[#allocation2 + $0x51] sm:$0xff]
  %v5797 = vld [vmem:[#allocation2 + $0x61] sm:$0xff]
  %v5798 = vld [vmem:[#allocation2 + $0x69] sm:$0xff]
  %v5799 = vld [vmem:[#allocation2 + $0x79] sm:$0xff]
  %v5800 = vld [vmem:[#allocation2 + $0x81] sm:$0xff]
  %v5801 = vld [vmem:[#allocation2 + $0x91] sm:$0xff]
  %v5802 = vld [vmem:[#allocation2 + $0x99] sm:$0xff]
  %v5803 = vld [vmem:[#allocation2 + $0xa9] sm:$0xff]
  %v5804 = vld [vmem:[#allocation2 + $0xb1] sm:$0xff]
  %v5805 = vld [vmem:[#allocation2 + $0xc1] sm:$0xff]
  %v5806 = vld [vmem:[#allocation2 + $0xc9] sm:$0xff]
  %v5807 = vld [vmem:[#allocation2 + $0xd9] sm:$0xff]
  %v5808 = vld [vmem:[#allocation2 + $0xe1] sm:$0xff]
  %v5809 = vld [vmem:[#allocation2 + $0xf1] sm:$0xff]
  %v5810 = vld [vmem:[#allocation2 + $0xf9] sm:$0xff]
  %v5811 = vld [vmem:[#allocation2 + $0x109] sm:$0xff]
  %v5812 = vld [vmem:[#allocation2 + $0x111] sm:$0xff]
  %v5813 = vld [vmem:[#allocation2 + $0x121] sm:$0xff]
  %v5814 = vld [vmem:[#allocation2 + $0x129] sm:$0xff]
  %v5815 = vld [vmem:[#allocation2 + $0x139] sm:$0xff]
  %v5816 = vld [vmem:[#allocation2 + $0x141] sm:$0xff]
  %v5817 = vld [vmem:[#allocation2 + $0x151] sm:$0xff]
  %v5818 = vld [vmem:[#allocation2 + $0x159] sm:$0xff]
  %v5819 = vld [vmem:[#allocation2 + $0x169] sm:$0xff]
  %v5820 = vld [vmem:[#allocation2 + $0x171] sm:$0xff]
  %v5821 = vpack.c.bf16 %v5790, %v5789
  %v5822 = vpack.c.bf16 %v5792, %v5791
  %v5823 = vpack.c.bf16 %v5794, %v5793
  %v5824 = vpack.c.bf16 %v5796, %v5795
  %v5825 = vpack.c.bf16 %v5798, %v5797
  %v5826 = vpack.c.bf16 %v5800, %v5799
  %v5827 = vpack.c.bf16 %v5802, %v5801
  %v5828 = vpack.c.bf16 %v5804, %v5803
  %v5829 = vpack.c.bf16 %v5806, %v5805
  %v5830 = vpack.c.bf16 %v5808, %v5807
  %v5831 = vpack.c.bf16 %v5810, %v5809
  %v5832 = vpack.c.bf16 %v5812, %v5811
  %v5833 = vpack.c.bf16 %v5814, %v5813
  %v5834 = vpack.c.bf16 %v5816, %v5815
  %v5835 = vpack.c.bf16 %v5818, %v5817
  %v5836 = vpack.c.bf16 %v5820, %v5819
  %v5837 = vld [vmem:[%s268] sm:$0x3]
  %v5839 = vsel %vm21, %v5821, 0
  %v5842 = vsel %vm21, %v5822, 0
  %v5845 = vsel %vm21, %v5823, 0
  %v5848 = vsel %vm21, %v5824, 0
  %v5851 = vsel %vm21, %v5825, 0
  %v5854 = vsel %vm21, %v5826, 0
  %v5857 = vsel %vm21, %v5827, 0
  %v5860 = vsel %vm21, %v5828, 0
  %v5863 = vsel %vm21, %v5829, 0
  %v5866 = vsel %vm21, %v5830, 0
  %v5869 = vsel %vm21, %v5831, 0
  %v5872 = vsel %vm21, %v5832, 0
  %v5875 = vsel %vm21, %v5833, 0
  %v5878 = vsel %vm21, %v5834, 0
  %v5881 = vsel %vm21, %v5835, 0
  %v5884 = vsel %vm21, %v5836, 0
  %v5887 = vand.u32 %v5837, %v321
  %5889 = vmatprep.subr.bf16.mxu0 0
  %5890 = vmatpush1.bf16.msra.mxu0 0
  %5891 = vmatprep.subr.bf16.mxu0 0
  %5892 = vmatpush1.bf16.msra.mxu0 0
  %5893 = vmatprep.subr.bf16.mxu0 0
  %5894 = vmatpush1.bf16.msra.mxu0 0
  %5895 = vmatprep.subr.bf16.mxu0 0
  %5896 = vmatpush1.bf16.msra.mxu0 0
  %5897 = vmatprep.subr.bf16.mxu0 0
  %5898 = vmatpush1.bf16.msra.mxu0 0
  %5899 = vmatprep.subr.bf16.mxu0 0
  %5900 = vmatpush1.bf16.msra.mxu0 0
  %5901 = vmatprep.subr.bf16.mxu0 0
  %5902 = vmatpush1.bf16.msra.mxu0 0
  %5903 = vmatprep.subr.bf16.mxu0 0
  %5904 = vmatpush1.bf16.msra.mxu0 %v5887
  %5905 = vmatprep.subr.bf16.mxu0 0
  %5906 = vmatpush2.bf16.msra.mxu0 0
  %5907 = vmatprep.subr.bf16.mxu0 0
  %5908 = vmatpush2.bf16.msra.mxu0 0
  %5909 = vmatprep.subr.bf16.mxu0 0
  %5910 = vmatpush2.bf16.msra.mxu0 0
  %5911 = vmatprep.subr.bf16.mxu0 0
  %5912 = vmatpush2.bf16.msra.mxu0 0
  %5913 = vmatprep.subr.bf16.mxu0 0
  %5914 = vmatpush2.bf16.msra.mxu0 0
  %5915 = vmatprep.subr.bf16.mxu0 0
  %5916 = vmatpush2.bf16.msra.mxu0 0
  %5917 = vmatprep.subr.bf16.mxu0 0
  %5918 = vmatpush2.bf16.msra.mxu0 0
  %5919 = vmatprep.subr.bf16.mxu0 0
  %5920 = vmatpush2.bf16.msra.mxu0 0
  %5921 = vmatprep.mubr.bf16.mxu0 0
  %5922 = vmatmul.mubr.bf16.gmra.mxu0 %v5839
  %v5923 = vpop.f32.mrf.mxu0
  %v5924 = vadd.f32 0.0, %v5923
  %v5925 = vpop.f32.mrf.mxu0
  %v5926 = vpop.f32.mrf.mxu0
  %v5927 = vadd.f32 0.0, %v5926
  %v5928 = vpop.f32.mrf.mxu0
  %5929 = vmatprep.mubr.bf16.mxu0 0
  %5930 = vmatmul.mubr.bf16.gmra.mxu0 %v5842
  %v5931 = vpop.f32.mrf.mxu0
  %v5932 = vadd.f32 0.0, %v5931
  %v5933 = vpop.f32.mrf.mxu0
  %v5934 = vpop.f32.mrf.mxu0
  %v5935 = vadd.f32 0.0, %v5934
  %v5936 = vpop.f32.mrf.mxu0
  %5937 = vmatprep.mubr.bf16.mxu0 0
  %5938 = vmatmul.mubr.bf16.gmra.mxu0 %v5845
  %v5939 = vpop.f32.mrf.mxu0
  %v5940 = vadd.f32 0.0, %v5939
  %v5941 = vpop.f32.mrf.mxu0
  %v5942 = vpop.f32.mrf.mxu0
  %v5943 = vadd.f32 0.0, %v5942
  %v5944 = vpop.f32.mrf.mxu0
  %5945 = vmatprep.mubr.bf16.mxu0 0
  %5946 = vmatmul.mubr.bf16.gmra.mxu0 %v5848
  %v5947 = vpop.f32.mrf.mxu0
  %v5948 = vadd.f32 0.0, %v5947
  %v5949 = vpop.f32.mrf.mxu0
  %v5950 = vpop.f32.mrf.mxu0
  %v5951 = vadd.f32 0.0, %v5950
  %v5952 = vpop.f32.mrf.mxu0
  %5953 = vmatprep.mubr.bf16.mxu0 0
  %5954 = vmatmul.mubr.bf16.gmra.mxu0 %v5851
  %v5955 = vpop.f32.mrf.mxu0
  %v5956 = vadd.f32 0.0, %v5955
  %v5957 = vpop.f32.mrf.mxu0
  %v5958 = vpop.f32.mrf.mxu0
  %v5959 = vadd.f32 0.0, %v5958
  %v5960 = vpop.f32.mrf.mxu0
  %5961 = vmatprep.mubr.bf16.mxu0 0
  %5962 = vmatmul.mubr.bf16.gmra.mxu0 %v5854
  %v5963 = vpop.f32.mrf.mxu0
  %v5964 = vadd.f32 0.0, %v5963
  %v5965 = vpop.f32.mrf.mxu0
  %v5966 = vpop.f32.mrf.mxu0
  %v5967 = vadd.f32 0.0, %v5966
  %v5968 = vpop.f32.mrf.mxu0
  %5969 = vmatprep.mubr.bf16.mxu0 0
  %5970 = vmatmul.mubr.bf16.gmra.mxu0 %v5857
  %v5971 = vpop.f32.mrf.mxu0
  %v5972 = vadd.f32 0.0, %v5971
  %v5973 = vpop.f32.mrf.mxu0
  %v5974 = vpop.f32.mrf.mxu0
  %v5975 = vadd.f32 0.0, %v5974
  %v5976 = vpop.f32.mrf.mxu0
  %5977 = vmatprep.mubr.bf16.mxu0 0
  %5978 = vmatmul.mubr.bf16.gmra.mxu0 %v5860
  %v5979 = vpop.f32.mrf.mxu0
  %v5980 = vadd.f32 0.0, %v5979
  %v5981 = vpop.f32.mrf.mxu0
  %v5982 = vpop.f32.mrf.mxu0
  %v5983 = vadd.f32 0.0, %v5982
  %v5984 = vpop.f32.mrf.mxu0
  %5985 = vmatprep.mubr.bf16.mxu0 0
  %5986 = vmatmul.mubr.bf16.gmra.mxu0 %v5863
  %v5987 = vpop.f32.mrf.mxu0
  %v5988 = vadd.f32 0.0, %v5987
  %v5989 = vpop.f32.mrf.mxu0
  %v5990 = vpop.f32.mrf.mxu0
  %v5991 = vadd.f32 0.0, %v5990
  %v5992 = vpop.f32.mrf.mxu0
  %5993 = vmatprep.mubr.bf16.mxu0 0
  %5994 = vmatmul.mubr.bf16.gmra.mxu0 %v5866
  %v5995 = vpop.f32.mrf.mxu0
  %v5996 = vadd.f32 0.0, %v5995
  %v5997 = vpop.f32.mrf.mxu0
  %v5998 = vpop.f32.mrf.mxu0
  %v5999 = vadd.f32 0.0, %v5998
  %v6000 = vpop.f32.mrf.mxu0
  %6001 = vmatprep.mubr.bf16.mxu0 0
  %6002 = vmatmul.mubr.bf16.gmra.mxu0 %v5869
  %v6003 = vpop.f32.mrf.mxu0
  %v6004 = vadd.f32 0.0, %v6003
  %v6005 = vpop.f32.mrf.mxu0
  %v6006 = vpop.f32.mrf.mxu0
  %v6007 = vadd.f32 0.0, %v6006
  %v6008 = vpop.f32.mrf.mxu0
  %6009 = vmatprep.mubr.bf16.mxu0 0
  %6010 = vmatmul.mubr.bf16.gmra.mxu0 %v5872
  %v6011 = vpop.f32.mrf.mxu0
  %v6012 = vadd.f32 0.0, %v6011
  %v6013 = vpop.f32.mrf.mxu0
  %v6014 = vpop.f32.mrf.mxu0
  %v6015 = vadd.f32 0.0, %v6014
  %v6016 = vpop.f32.mrf.mxu0
  %6017 = vmatprep.mubr.bf16.mxu0 0
  %6018 = vmatmul.mubr.bf16.gmra.mxu0 %v5875
  %v6019 = vpop.f32.mrf.mxu0
  %v6020 = vadd.f32 0.0, %v6019
  %v6021 = vpop.f32.mrf.mxu0
  %v6022 = vpop.f32.mrf.mxu0
  %v6023 = vadd.f32 0.0, %v6022
  %v6024 = vpop.f32.mrf.mxu0
  %6025 = vmatprep.mubr.bf16.mxu0 0
  %6026 = vmatmul.mubr.bf16.gmra.mxu0 %v5878
  %v6027 = vpop.f32.mrf.mxu0
  %v6028 = vadd.f32 0.0, %v6027
  %v6029 = vpop.f32.mrf.mxu0
  %v6030 = vpop.f32.mrf.mxu0
  %v6031 = vadd.f32 0.0, %v6030
  %v6032 = vpop.f32.mrf.mxu0
  %6033 = vmatprep.mubr.bf16.mxu0 0
  %6034 = vmatmul.mubr.bf16.gmra.mxu0 %v5881
  %v6035 = vpop.f32.mrf.mxu0
  %v6036 = vadd.f32 0.0, %v6035
  %v6037 = vpop.f32.mrf.mxu0
  %v6038 = vpop.f32.mrf.mxu0
  %v6039 = vadd.f32 0.0, %v6038
  %v6040 = vpop.f32.mrf.mxu0
  %6041 = vmatprep.mubr.bf16.mxu0 0
  %6042 = vmatmul.mubr.bf16.gmra.mxu0 %v5884
  %v6043 = vpop.f32.mrf.mxu0
  %v6044 = vadd.f32 0.0, %v6043
  %v6045 = vpop.f32.mrf.mxu0
  %v6046 = vpop.f32.mrf.mxu0
  %v6047 = vadd.f32 0.0, %v6046
  %v6048 = vpop.f32.mrf.mxu0
  %6049 = vdwg.mxu0
  %v6051 = vsel %vm21, %v5772, 0
  %v6054 = vsel %vm21, %v5773, 0
  %v6057 = vsel %vm21, %v5774, 0
  %v6060 = vsel %vm21, %v5775, 0
  %v6063 = vsel %vm21, %v5776, 0
  %v6066 = vsel %vm21, %v5777, 0
  %v6069 = vsel %vm21, %v5778, 0
  %v6072 = vsel %vm21, %v5779, 0
  %v6075 = vsel %vm21, %v5780, 0
  %v6078 = vsel %vm21, %v5781, 0
  %v6081 = vsel %vm21, %v5782, 0
  %v6084 = vsel %vm21, %v5783, 0
  %v6087 = vsel %vm21, %v5784, 0
  %v6090 = vsel %vm21, %v5785, 0
  %v6093 = vsel %vm21, %v5786, 0
  %v6096 = vsel %vm21, %v5787, 0
  %v6099 = vand.u32 %v5788, %v321
  %6101 = vmatprep.subr.bf16.mxu0 0
  %6102 = vmatpush1.bf16.msra.mxu0 0
  %6103 = vmatprep.subr.bf16.mxu0 0
  %6104 = vmatpush1.bf16.msra.mxu0 0
  %6105 = vmatprep.subr.bf16.mxu0 0
  %6106 = vmatpush1.bf16.msra.mxu0 0
  %6107 = vmatprep.subr.bf16.mxu0 0
  %6108 = vmatpush1.bf16.msra.mxu0 0
  %6109 = vmatprep.subr.bf16.mxu0 0
  %6110 = vmatpush1.bf16.msra.mxu0 0
  %6111 = vmatprep.subr.bf16.mxu0 0
  %6112 = vmatpush1.bf16.msra.mxu0 0
  %6113 = vmatprep.subr.bf16.mxu0 0
  %6114 = vmatpush1.bf16.msra.mxu0 0
  %6115 = vmatprep.subr.bf16.mxu0 0
  %6116 = vmatpush1.bf16.msra.mxu0 %v6099
  %6117 = vmatprep.subr.bf16.mxu0 0
  %6118 = vmatpush2.bf16.msra.mxu0 0
  %6119 = vmatprep.subr.bf16.mxu0 0
  %6120 = vmatpush2.bf16.msra.mxu0 0
  %6121 = vmatprep.subr.bf16.mxu0 0
  %6122 = vmatpush2.bf16.msra.mxu0 0
  %6123 = vmatprep.subr.bf16.mxu0 0
  %6124 = vmatpush2.bf16.msra.mxu0 0
  %6125 = vmatprep.subr.bf16.mxu0 0
  %6126 = vmatpush2.bf16.msra.mxu0 0
  %6127 = vmatprep.subr.bf16.mxu0 0
  %6128 = vmatpush2.bf16.msra.mxu0 0
  %6129 = vmatprep.subr.bf16.mxu0 0
  %6130 = vmatpush2.bf16.msra.mxu0 0
  %6131 = vmatprep.subr.bf16.mxu0 0
  %6132 = vmatpush2.bf16.msra.mxu0 0
  %6133 = vmatprep.mubr.bf16.mxu0 0
  %6134 = vmatmul.mubr.bf16.gmra.mxu0 %v6051
  %v6135 = vpop.f32.mrf.mxu0
  %v6136 = vadd.f32 %v5924, %v6135
  %v6137 = vpop.f32.mrf.mxu0
  %v6138 = vpop.f32.mrf.mxu0
  %v6139 = vadd.f32 %v5927, %v6138
  %v6140 = vpop.f32.mrf.mxu0
  %6141 = vmatprep.mubr.bf16.mxu0 0
  %6142 = vmatmul.mubr.bf16.gmra.mxu0 %v6054
  %v6143 = vpop.f32.mrf.mxu0
  %v6144 = vadd.f32 %v5932, %v6143
  %v6145 = vpop.f32.mrf.mxu0
  %v6146 = vpop.f32.mrf.mxu0
  %v6147 = vadd.f32 %v5935, %v6146
  %v6148 = vpop.f32.mrf.mxu0
  %6149 = vmatprep.mubr.bf16.mxu0 0
  %6150 = vmatmul.mubr.bf16.gmra.mxu0 %v6057
  %v6151 = vpop.f32.mrf.mxu0
  %v6152 = vadd.f32 %v5940, %v6151
  %v6153 = vpop.f32.mrf.mxu0
  %v6154 = vpop.f32.mrf.mxu0
  %v6155 = vadd.f32 %v5943, %v6154
  %v6156 = vpop.f32.mrf.mxu0
  %6157 = vmatprep.mubr.bf16.mxu0 0
  %6158 = vmatmul.mubr.bf16.gmra.mxu0 %v6060
  %v6159 = vpop.f32.mrf.mxu0
  %v6160 = vadd.f32 %v5948, %v6159
  %v6161 = vpop.f32.mrf.mxu0
  %v6162 = vpop.f32.mrf.mxu0
  %v6163 = vadd.f32 %v5951, %v6162
  %v6164 = vpop.f32.mrf.mxu0
  %6165 = vmatprep.mubr.bf16.mxu0 0
  %6166 = vmatmul.mubr.bf16.gmra.mxu0 %v6063
  %v6167 = vpop.f32.mrf.mxu0
  %v6168 = vadd.f32 %v5956, %v6167
  %v6169 = vpop.f32.mrf.mxu0
  %v6170 = vpop.f32.mrf.mxu0
  %v6171 = vadd.f32 %v5959, %v6170
  %v6172 = vpop.f32.mrf.mxu0
  %6173 = vmatprep.mubr.bf16.mxu0 0
  %6174 = vmatmul.mubr.bf16.gmra.mxu0 %v6066
  %v6175 = vpop.f32.mrf.mxu0
  %v6176 = vadd.f32 %v5964, %v6175
  %v6177 = vpop.f32.mrf.mxu0
  %v6178 = vpop.f32.mrf.mxu0
  %v6179 = vadd.f32 %v5967, %v6178
  %v6180 = vpop.f32.mrf.mxu0
  %6181 = vmatprep.mubr.bf16.mxu0 0
  %6182 = vmatmul.mubr.bf16.gmra.mxu0 %v6069
  %v6183 = vpop.f32.mrf.mxu0
  %v6184 = vadd.f32 %v5972, %v6183
  %v6185 = vpop.f32.mrf.mxu0
  %v6186 = vpop.f32.mrf.mxu0
  %v6187 = vadd.f32 %v5975, %v6186
  %v6188 = vpop.f32.mrf.mxu0
  %6189 = vmatprep.mubr.bf16.mxu0 0
  %6190 = vmatmul.mubr.bf16.gmra.mxu0 %v6072
  %v6191 = vpop.f32.mrf.mxu0
  %v6192 = vadd.f32 %v5980, %v6191
  %v6193 = vpop.f32.mrf.mxu0
  %v6194 = vpop.f32.mrf.mxu0
  %v6195 = vadd.f32 %v5983, %v6194
  %v6196 = vpop.f32.mrf.mxu0
  %6197 = vmatprep.mubr.bf16.mxu0 0
  %6198 = vmatmul.mubr.bf16.gmra.mxu0 %v6075
  %v6199 = vpop.f32.mrf.mxu0
  %v6200 = vadd.f32 %v5988, %v6199
  %v6201 = vpop.f32.mrf.mxu0
  %v6202 = vpop.f32.mrf.mxu0
  %v6203 = vadd.f32 %v5991, %v6202
  %v6204 = vpop.f32.mrf.mxu0
  %6205 = vmatprep.mubr.bf16.mxu0 0
  %6206 = vmatmul.mubr.bf16.gmra.mxu0 %v6078
  %v6207 = vpop.f32.mrf.mxu0
  %v6208 = vadd.f32 %v5996, %v6207
  %v6209 = vpop.f32.mrf.mxu0
  %v6210 = vpop.f32.mrf.mxu0
  %v6211 = vadd.f32 %v5999, %v6210
  %v6212 = vpop.f32.mrf.mxu0
  %6213 = vmatprep.mubr.bf16.mxu0 0
  %6214 = vmatmul.mubr.bf16.gmra.mxu0 %v6081
  %v6215 = vpop.f32.mrf.mxu0
  %v6216 = vadd.f32 %v6004, %v6215
  %v6217 = vpop.f32.mrf.mxu0
  %v6218 = vpop.f32.mrf.mxu0
  %v6219 = vadd.f32 %v6007, %v6218
  %v6220 = vpop.f32.mrf.mxu0
  %6221 = vmatprep.mubr.bf16.mxu0 0
  %6222 = vmatmul.mubr.bf16.gmra.mxu0 %v6084
  %v6223 = vpop.f32.mrf.mxu0
  %v6224 = vadd.f32 %v6012, %v6223
  %v6225 = vpop.f32.mrf.mxu0
  %v6226 = vpop.f32.mrf.mxu0
  %v6227 = vadd.f32 %v6015, %v6226
  %v6228 = vpop.f32.mrf.mxu0
  %6229 = vmatprep.mubr.bf16.mxu0 0
  %6230 = vmatmul.mubr.bf16.gmra.mxu0 %v6087
  %v6231 = vpop.f32.mrf.mxu0
  %v6232 = vadd.f32 %v6020, %v6231
  %v6233 = vpop.f32.mrf.mxu0
  %v6234 = vpop.f32.mrf.mxu0
  %v6235 = vadd.f32 %v6023, %v6234
  %v6236 = vpop.f32.mrf.mxu0
  %6237 = vmatprep.mubr.bf16.mxu0 0
  %6238 = vmatmul.mubr.bf16.gmra.mxu0 %v6090
  %v6239 = vpop.f32.mrf.mxu0
  %v6240 = vadd.f32 %v6028, %v6239
  %v6241 = vpop.f32.mrf.mxu0
  %v6242 = vpop.f32.mrf.mxu0
  %v6243 = vadd.f32 %v6031, %v6242
  %v6244 = vpop.f32.mrf.mxu0
  %6245 = vmatprep.mubr.bf16.mxu0 0
  %6246 = vmatmul.mubr.bf16.gmra.mxu0 %v6093
  %v6247 = vpop.f32.mrf.mxu0
  %v6248 = vadd.f32 %v6036, %v6247
  %v6249 = vpop.f32.mrf.mxu0
  %v6250 = vpop.f32.mrf.mxu0
  %v6251 = vadd.f32 %v6039, %v6250
  %v6252 = vpop.f32.mrf.mxu0
  %6253 = vmatprep.mubr.bf16.mxu0 0
  %6254 = vmatmul.mubr.bf16.gmra.mxu0 %v6096
  %v6255 = vpop.f32.mrf.mxu0
  %v6256 = vadd.f32 %v6044, %v6255
  %v6257 = vpop.f32.mrf.mxu0
  %v6258 = vpop.f32.mrf.mxu0
  %v6259 = vadd.f32 %v6047, %v6258
  %v6260 = vpop.f32.mrf.mxu0
  %6261 = vdwg.mxu0
  %v6262 = vld [vmem:[#allocation2 + $0x2] sm:$0xff]
  %v6263 = vld [vmem:[#allocation2 + $0xa] sm:$0xff]
  %v6264 = vld [vmem:[#allocation2 + $0x1a] sm:$0xff]
  %v6265 = vld [vmem:[#allocation2 + $0x22] sm:$0xff]
  %v6266 = vld [vmem:[#allocation2 + $0x32] sm:$0xff]
  %v6267 = vld [vmem:[#allocation2 + $0x3a] sm:$0xff]
  %v6268 = vld [vmem:[#allocation2 + $0x4a] sm:$0xff]
  %v6269 = vld [vmem:[#allocation2 + $0x52] sm:$0xff]
  %v6270 = vld [vmem:[#allocation2 + $0x62] sm:$0xff]
  %v6271 = vld [vmem:[#allocation2 + $0x6a] sm:$0xff]
  %v6272 = vld [vmem:[#allocation2 + $0x7a] sm:$0xff]
  %v6273 = vld [vmem:[#allocation2 + $0x82] sm:$0xff]
  %v6274 = vld [vmem:[#allocation2 + $0x92] sm:$0xff]
  %v6275 = vld [vmem:[#allocation2 + $0x9a] sm:$0xff]
  %v6276 = vld [vmem:[#allocation2 + $0xaa] sm:$0xff]
  %v6277 = vld [vmem:[#allocation2 + $0xb2] sm:$0xff]
  %v6278 = vld [vmem:[#allocation2 + $0xc2] sm:$0xff]
  %v6279 = vld [vmem:[#allocation2 + $0xca] sm:$0xff]
  %v6280 = vld [vmem:[#allocation2 + $0xda] sm:$0xff]
  %v6281 = vld [vmem:[#allocation2 + $0xe2] sm:$0xff]
  %v6282 = vld [vmem:[#allocation2 + $0xf2] sm:$0xff]
  %v6283 = vld [vmem:[#allocation2 + $0xfa] sm:$0xff]
  %v6284 = vld [vmem:[#allocation2 + $0x10a] sm:$0xff]
  %v6285 = vld [vmem:[#allocation2 + $0x112] sm:$0xff]
  %v6286 = vld [vmem:[#allocation2 + $0x122] sm:$0xff]
  %v6287 = vld [vmem:[#allocation2 + $0x12a] sm:$0xff]
  %v6288 = vld [vmem:[#allocation2 + $0x13a] sm:$0xff]
  %v6289 = vld [vmem:[#allocation2 + $0x142] sm:$0xff]
  %v6290 = vld [vmem:[#allocation2 + $0x152] sm:$0xff]
  %v6291 = vld [vmem:[#allocation2 + $0x15a] sm:$0xff]
  %v6292 = vld [vmem:[#allocation2 + $0x16a] sm:$0xff]
  %v6293 = vld [vmem:[#allocation2 + $0x172] sm:$0xff]
  %v6294 = vpack.c.bf16 %v6263, %v6262
  %v6295 = vpack.c.bf16 %v6265, %v6264
  %v6296 = vpack.c.bf16 %v6267, %v6266
  %v6297 = vpack.c.bf16 %v6269, %v6268
  %v6298 = vpack.c.bf16 %v6271, %v6270
  %v6299 = vpack.c.bf16 %v6273, %v6272
  %v6300 = vpack.c.bf16 %v6275, %v6274
  %v6301 = vpack.c.bf16 %v6277, %v6276
  %v6302 = vpack.c.bf16 %v6279, %v6278
  %v6303 = vpack.c.bf16 %v6281, %v6280
  %v6304 = vpack.c.bf16 %v6283, %v6282
  %v6305 = vpack.c.bf16 %v6285, %v6284
  %v6306 = vpack.c.bf16 %v6287, %v6286
  %v6307 = vpack.c.bf16 %v6289, %v6288
  %v6308 = vpack.c.bf16 %v6291, %v6290
  %v6309 = vpack.c.bf16 %v6293, %v6292
  %v6310 = vld [vmem:[%s746] sm:$0x3]
  %v6312 = vsel %vm21, %v6294, 0
  %v6315 = vsel %vm21, %v6295, 0
  %v6318 = vsel %vm21, %v6296, 0
  %v6321 = vsel %vm21, %v6297, 0
  %v6324 = vsel %vm21, %v6298, 0
  %v6327 = vsel %vm21, %v6299, 0
  %v6330 = vsel %vm21, %v6300, 0
  %v6333 = vsel %vm21, %v6301, 0
  %v6336 = vsel %vm21, %v6302, 0
  %v6339 = vsel %vm21, %v6303, 0
  %v6342 = vsel %vm21, %v6304, 0
  %v6345 = vsel %vm21, %v6305, 0
  %v6348 = vsel %vm21, %v6306, 0
  %v6351 = vsel %vm21, %v6307, 0
  %v6354 = vsel %vm21, %v6308, 0
  %v6357 = vsel %vm21, %v6309, 0
  %v6360 = vand.u32 %v6310, %v321
  %6362 = vmatprep.subr.bf16.mxu0 0
  %6363 = vmatpush1.bf16.msra.mxu0 0
  %6364 = vmatprep.subr.bf16.mxu0 0
  %6365 = vmatpush1.bf16.msra.mxu0 0
  %6366 = vmatprep.subr.bf16.mxu0 0
  %6367 = vmatpush1.bf16.msra.mxu0 0
  %6368 = vmatprep.subr.bf16.mxu0 0
  %6369 = vmatpush1.bf16.msra.mxu0 0
  %6370 = vmatprep.subr.bf16.mxu0 0
  %6371 = vmatpush1.bf16.msra.mxu0 0
  %6372 = vmatprep.subr.bf16.mxu0 0
  %6373 = vmatpush1.bf16.msra.mxu0 0
  %6374 = vmatprep.subr.bf16.mxu0 0
  %6375 = vmatpush1.bf16.msra.mxu0 0
  %6376 = vmatprep.subr.bf16.mxu0 0
  %6377 = vmatpush1.bf16.msra.mxu0 %v6360
  %6378 = vmatprep.subr.bf16.mxu0 0
  %6379 = vmatpush2.bf16.msra.mxu0 0
  %6380 = vmatprep.subr.bf16.mxu0 0
  %6381 = vmatpush2.bf16.msra.mxu0 0
  %6382 = vmatprep.subr.bf16.mxu0 0
  %6383 = vmatpush2.bf16.msra.mxu0 0
  %6384 = vmatprep.subr.bf16.mxu0 0
  %6385 = vmatpush2.bf16.msra.mxu0 0
  %6386 = vmatprep.subr.bf16.mxu0 0
  %6387 = vmatpush2.bf16.msra.mxu0 0
  %6388 = vmatprep.subr.bf16.mxu0 0
  %6389 = vmatpush2.bf16.msra.mxu0 0
  %6390 = vmatprep.subr.bf16.mxu0 0
  %6391 = vmatpush2.bf16.msra.mxu0 0
  %6392 = vmatprep.subr.bf16.mxu0 0
  %6393 = vmatpush2.bf16.msra.mxu0 0
  %6394 = vmatprep.mubr.bf16.mxu0 0
  %6395 = vmatmul.mubr.bf16.gmra.mxu0 %v6312
  %v6396 = vpop.f32.mrf.mxu0
  %v6397 = vadd.f32 0.0, %v6396
  %v6398 = vpop.f32.mrf.mxu0
  %v6399 = vpop.f32.mrf.mxu0
  %v6400 = vadd.f32 0.0, %v6399
  %v6401 = vpop.f32.mrf.mxu0
  %6402 = vmatprep.mubr.bf16.mxu0 0
  %6403 = vmatmul.mubr.bf16.gmra.mxu0 %v6315
  %v6404 = vpop.f32.mrf.mxu0
  %v6405 = vadd.f32 0.0, %v6404
  %v6406 = vpop.f32.mrf.mxu0
  %v6407 = vpop.f32.mrf.mxu0
  %v6408 = vadd.f32 0.0, %v6407
  %v6409 = vpop.f32.mrf.mxu0
  %6410 = vmatprep.mubr.bf16.mxu0 0
  %6411 = vmatmul.mubr.bf16.gmra.mxu0 %v6318
  %v6412 = vpop.f32.mrf.mxu0
  %v6413 = vadd.f32 0.0, %v6412
  %v6414 = vpop.f32.mrf.mxu0
  %v6415 = vpop.f32.mrf.mxu0
  %v6416 = vadd.f32 0.0, %v6415
  %v6417 = vpop.f32.mrf.mxu0
  %6418 = vmatprep.mubr.bf16.mxu0 0
  %6419 = vmatmul.mubr.bf16.gmra.mxu0 %v6321
  %v6420 = vpop.f32.mrf.mxu0
  %v6421 = vadd.f32 0.0, %v6420
  %v6422 = vpop.f32.mrf.mxu0
  %v6423 = vpop.f32.mrf.mxu0
  %v6424 = vadd.f32 0.0, %v6423
  %v6425 = vpop.f32.mrf.mxu0
  %6426 = vmatprep.mubr.bf16.mxu0 0
  %6427 = vmatmul.mubr.bf16.gmra.mxu0 %v6324
  %v6428 = vpop.f32.mrf.mxu0
  %v6429 = vadd.f32 0.0, %v6428
  %v6430 = vpop.f32.mrf.mxu0
  %v6431 = vpop.f32.mrf.mxu0
  %v6432 = vadd.f32 0.0, %v6431
  %v6433 = vpop.f32.mrf.mxu0
  %6434 = vmatprep.mubr.bf16.mxu0 0
  %6435 = vmatmul.mubr.bf16.gmra.mxu0 %v6327
  %v6436 = vpop.f32.mrf.mxu0
  %v6437 = vadd.f32 0.0, %v6436
  %v6438 = vpop.f32.mrf.mxu0
  %v6439 = vpop.f32.mrf.mxu0
  %v6440 = vadd.f32 0.0, %v6439
  %v6441 = vpop.f32.mrf.mxu0
  %6442 = vmatprep.mubr.bf16.mxu0 0
  %6443 = vmatmul.mubr.bf16.gmra.mxu0 %v6330
  %v6444 = vpop.f32.mrf.mxu0
  %v6445 = vadd.f32 0.0, %v6444
  %v6446 = vpop.f32.mrf.mxu0
  %v6447 = vpop.f32.mrf.mxu0
  %v6448 = vadd.f32 0.0, %v6447
  %v6449 = vpop.f32.mrf.mxu0
  %6450 = vmatprep.mubr.bf16.mxu0 0
  %6451 = vmatmul.mubr.bf16.gmra.mxu0 %v6333
  %v6452 = vpop.f32.mrf.mxu0
  %v6453 = vadd.f32 0.0, %v6452
  %v6454 = vpop.f32.mrf.mxu0
  %v6455 = vpop.f32.mrf.mxu0
  %v6456 = vadd.f32 0.0, %v6455
  %v6457 = vpop.f32.mrf.mxu0
  %6458 = vmatprep.mubr.bf16.mxu0 0
  %6459 = vmatmul.mubr.bf16.gmra.mxu0 %v6336
  %v6460 = vpop.f32.mrf.mxu0
  %v6461 = vadd.f32 0.0, %v6460
  %v6462 = vpop.f32.mrf.mxu0
  %v6463 = vpop.f32.mrf.mxu0
  %v6464 = vadd.f32 0.0, %v6463
  %v6465 = vpop.f32.mrf.mxu0
  %6466 = vmatprep.mubr.bf16.mxu0 0
  %6467 = vmatmul.mubr.bf16.gmra.mxu0 %v6339
  %v6468 = vpop.f32.mrf.mxu0
  %v6469 = vadd.f32 0.0, %v6468
  %v6470 = vpop.f32.mrf.mxu0
  %v6471 = vpop.f32.mrf.mxu0
  %v6472 = vadd.f32 0.0, %v6471
  %v6473 = vpop.f32.mrf.mxu0
  %6474 = vmatprep.mubr.bf16.mxu0 0
  %6475 = vmatmul.mubr.bf16.gmra.mxu0 %v6342
  %v6476 = vpop.f32.mrf.mxu0
  %v6477 = vadd.f32 0.0, %v6476
  %v6478 = vpop.f32.mrf.mxu0
  %v6479 = vpop.f32.mrf.mxu0
  %v6480 = vadd.f32 0.0, %v6479
  %v6481 = vpop.f32.mrf.mxu0
  %6482 = vmatprep.mubr.bf16.mxu0 0
  %6483 = vmatmul.mubr.bf16.gmra.mxu0 %v6345
  %v6484 = vpop.f32.mrf.mxu0
  %v6485 = vadd.f32 0.0, %v6484
  %v6486 = vpop.f32.mrf.mxu0
  %v6487 = vpop.f32.mrf.mxu0
  %v6488 = vadd.f32 0.0, %v6487
  %v6489 = vpop.f32.mrf.mxu0
  %6490 = vmatprep.mubr.bf16.mxu0 0
  %6491 = vmatmul.mubr.bf16.gmra.mxu0 %v6348
  %v6492 = vpop.f32.mrf.mxu0
  %v6493 = vadd.f32 0.0, %v6492
  %v6494 = vpop.f32.mrf.mxu0
  %v6495 = vpop.f32.mrf.mxu0
  %v6496 = vadd.f32 0.0, %v6495
  %v6497 = vpop.f32.mrf.mxu0
  %6498 = vmatprep.mubr.bf16.mxu0 0
  %6499 = vmatmul.mubr.bf16.gmra.mxu0 %v6351
  %v6500 = vpop.f32.mrf.mxu0
  %v6501 = vadd.f32 0.0, %v6500
  %v6502 = vpop.f32.mrf.mxu0
  %v6503 = vpop.f32.mrf.mxu0
  %v6504 = vadd.f32 0.0, %v6503
  %v6505 = vpop.f32.mrf.mxu0
  %6506 = vmatprep.mubr.bf16.mxu0 0
  %6507 = vmatmul.mubr.bf16.gmra.mxu0 %v6354
  %v6508 = vpop.f32.mrf.mxu0
  %v6509 = vadd.f32 0.0, %v6508
  %v6510 = vpop.f32.mrf.mxu0
  %v6511 = vpop.f32.mrf.mxu0
  %v6512 = vadd.f32 0.0, %v6511
  %v6513 = vpop.f32.mrf.mxu0
  %6514 = vmatprep.mubr.bf16.mxu0 0
  %6515 = vmatmul.mubr.bf16.gmra.mxu0 %v6357
  %v6516 = vpop.f32.mrf.mxu0
  %v6517 = vadd.f32 0.0, %v6516
  %v6518 = vpop.f32.mrf.mxu0
  %v6519 = vpop.f32.mrf.mxu0
  %v6520 = vadd.f32 0.0, %v6519
  %v6521 = vpop.f32.mrf.mxu0
  %6522 = vdwg.mxu0
  %v6523 = vadd.f32 %v6136, %v6397
  %v6524 = vadd.f32 %v6139, %v6400
  %v6525 = vadd.f32 %v6144, %v6405
  %v6526 = vadd.f32 %v6147, %v6408
  %v6527 = vadd.f32 %v6152, %v6413
  %v6528 = vadd.f32 %v6155, %v6416
  %v6529 = vadd.f32 %v6160, %v6421
  %v6530 = vadd.f32 %v6163, %v6424
  %v6531 = vadd.f32 %v6168, %v6429
  %v6532 = vadd.f32 %v6171, %v6432
  %v6533 = vadd.f32 %v6176, %v6437
  %v6534 = vadd.f32 %v6179, %v6440
  %v6535 = vadd.f32 %v6184, %v6445
  %v6536 = vadd.f32 %v6187, %v6448
  %v6537 = vadd.f32 %v6192, %v6453
  %v6538 = vadd.f32 %v6195, %v6456
  %v6539 = vadd.f32 %v6200, %v6461
  %v6540 = vadd.f32 %v6203, %v6464
  %v6541 = vadd.f32 %v6208, %v6469
  %v6542 = vadd.f32 %v6211, %v6472
  %v6543 = vadd.f32 %v6216, %v6477
  %v6544 = vadd.f32 %v6219, %v6480
  %v6545 = vadd.f32 %v6224, %v6485
  %v6546 = vadd.f32 %v6227, %v6488
  %v6547 = vadd.f32 %v6232, %v6493
  %v6548 = vadd.f32 %v6235, %v6496
  %v6549 = vadd.f32 %v6240, %v6501
  %v6550 = vadd.f32 %v6243, %v6504
  %v6551 = vadd.f32 %v6248, %v6509
  %v6552 = vadd.f32 %v6251, %v6512
  %v6553 = vadd.f32 %v6256, %v6517
  %v6554 = vadd.f32 %v6259, %v6520
  %v6555 = vld [vmem:[%s30] sm:$0xff]
  %v6556 = vld [vmem:[%s30 + $0x8] sm:$0xff]
  %v6557 = vld [vmem:[%s30 + $0x18] sm:$0xff]
  %v6558 = vld [vmem:[%s30 + $0x20] sm:$0xff]
  %v6559 = vld [vmem:[%s30 + $0x30] sm:$0xff]
  %v6560 = vld [vmem:[%s30 + $0x38] sm:$0xff]
  %v6561 = vld [vmem:[%s30 + $0x48] sm:$0xff]
  %v6562 = vld [vmem:[%s30 + $0x50] sm:$0xff]
  %v6563 = vld [vmem:[%s30 + $0x60] sm:$0xff]
  %v6564 = vld [vmem:[%s30 + $0x68] sm:$0xff]
  %v6565 = vld [vmem:[%s30 + $0x78] sm:$0xff]
  %v6566 = vld [vmem:[%s30 + $0x80] sm:$0xff]
  %v6567 = vld [vmem:[%s30 + $0x90] sm:$0xff]
  %v6568 = vld [vmem:[%s30 + $0x98] sm:$0xff]
  %v6569 = vld [vmem:[%s30 + $0xa8] sm:$0xff]
  %v6570 = vld [vmem:[%s30 + $0xb0] sm:$0xff]
  %v6571 = vld [vmem:[%s30 + $0xc0] sm:$0xff]
  %v6572 = vld [vmem:[%s30 + $0xc8] sm:$0xff]
  %v6573 = vld [vmem:[%s30 + $0xd8] sm:$0xff]
  %v6574 = vld [vmem:[%s30 + $0xe0] sm:$0xff]
  %v6575 = vld [vmem:[%s30 + $0xf0] sm:$0xff]
  %v6576 = vld [vmem:[%s30 + $0xf8] sm:$0xff]
  %v6577 = vld [vmem:[%s30 + $0x108] sm:$0xff]
  %v6578 = vld [vmem:[%s30 + $0x110] sm:$0xff]
  %v6579 = vld [vmem:[%s30 + $0x120] sm:$0xff]
  %v6580 = vld [vmem:[%s30 + $0x128] sm:$0xff]
  %v6581 = vld [vmem:[%s30 + $0x138] sm:$0xff]
  %v6582 = vld [vmem:[%s30 + $0x140] sm:$0xff]
  %v6583 = vld [vmem:[%s30 + $0x150] sm:$0xff]
  %v6584 = vld [vmem:[%s30 + $0x158] sm:$0xff]
  %v6585 = vld [vmem:[%s30 + $0x168] sm:$0xff]
  %v6586 = vld [vmem:[%s30 + $0x170] sm:$0xff]
  %v6587 = vpack.c.bf16 %v6556, %v6555
  %v6588 = vpack.c.bf16 %v6558, %v6557
  %v6589 = vpack.c.bf16 %v6560, %v6559
  %v6590 = vpack.c.bf16 %v6562, %v6561
  %v6591 = vpack.c.bf16 %v6564, %v6563
  %v6592 = vpack.c.bf16 %v6566, %v6565
  %v6593 = vpack.c.bf16 %v6568, %v6567
  %v6594 = vpack.c.bf16 %v6570, %v6569
  %v6595 = vpack.c.bf16 %v6572, %v6571
  %v6596 = vpack.c.bf16 %v6574, %v6573
  %v6597 = vpack.c.bf16 %v6576, %v6575
  %v6598 = vpack.c.bf16 %v6578, %v6577
  %v6599 = vpack.c.bf16 %v6580, %v6579
  %v6600 = vpack.c.bf16 %v6582, %v6581
  %v6601 = vpack.c.bf16 %v6584, %v6583
  %v6602 = vpack.c.bf16 %v6586, %v6585
  %v6603 = vld [vmem:[%s1040] sm:$0x3]
  %v6605 = vsel %vm21, %v6587, 0
  %v6608 = vsel %vm21, %v6588, 0
  %v6611 = vsel %vm21, %v6589, 0
  %v6614 = vsel %vm21, %v6590, 0
  %v6617 = vsel %vm21, %v6591, 0
  %v6620 = vsel %vm21, %v6592, 0
  %v6623 = vsel %vm21, %v6593, 0
  %v6626 = vsel %vm21, %v6594, 0
  %v6629 = vsel %vm21, %v6595, 0
  %v6632 = vsel %vm21, %v6596, 0
  %v6635 = vsel %vm21, %v6597, 0
  %v6638 = vsel %vm21, %v6598, 0
  %v6641 = vsel %vm21, %v6599, 0
  %v6644 = vsel %vm21, %v6600, 0
  %v6647 = vsel %vm21, %v6601, 0
  %v6650 = vsel %vm21, %v6602, 0
  %v6653 = vand.u32 %v6603, %v321
  %6655 = vmatprep.subr.bf16.mxu0 0
  %6656 = vmatpush1.bf16.msra.mxu0 0
  %6657 = vmatprep.subr.bf16.mxu0 0
  %6658 = vmatpush1.bf16.msra.mxu0 0
  %6659 = vmatprep.subr.bf16.mxu0 0
  %6660 = vmatpush1.bf16.msra.mxu0 0
  %6661 = vmatprep.subr.bf16.mxu0 0
  %6662 = vmatpush1.bf16.msra.mxu0 0
  %6663 = vmatprep.subr.bf16.mxu0 0
  %6664 = vmatpush1.bf16.msra.mxu0 0
  %6665 = vmatprep.subr.bf16.mxu0 0
  %6666 = vmatpush1.bf16.msra.mxu0 0
  %6667 = vmatprep.subr.bf16.mxu0 0
  %6668 = vmatpush1.bf16.msra.mxu0 0
  %6669 = vmatprep.subr.bf16.mxu0 0
  %6670 = vmatpush1.bf16.msra.mxu0 %v6653
  %6671 = vmatprep.subr.bf16.mxu0 0
  %6672 = vmatpush2.bf16.msra.mxu0 0
  %6673 = vmatprep.subr.bf16.mxu0 0
  %6674 = vmatpush2.bf16.msra.mxu0 0
  %6675 = vmatprep.subr.bf16.mxu0 0
  %6676 = vmatpush2.bf16.msra.mxu0 0
  %6677 = vmatprep.subr.bf16.mxu0 0
  %6678 = vmatpush2.bf16.msra.mxu0 0
  %6679 = vmatprep.subr.bf16.mxu0 0
  %6680 = vmatpush2.bf16.msra.mxu0 0
  %6681 = vmatprep.subr.bf16.mxu0 0
  %6682 = vmatpush2.bf16.msra.mxu0 0
  %6683 = vmatprep.subr.bf16.mxu0 0
  %6684 = vmatpush2.bf16.msra.mxu0 0
  %6685 = vmatprep.subr.bf16.mxu0 0
  %6686 = vmatpush2.bf16.msra.mxu0 0
  %6687 = vmatprep.mubr.bf16.mxu0 0
  %6688 = vmatmul.mubr.bf16.gmra.mxu0 %v6605
  %v6689 = vpop.f32.mrf.mxu0
  %v6690 = vadd.f32 0.0, %v6689
  %v6691 = vpop.f32.mrf.mxu0
  %v6692 = vpop.f32.mrf.mxu0
  %v6693 = vadd.f32 0.0, %v6692
  %v6694 = vpop.f32.mrf.mxu0
  %6695 = vmatprep.mubr.bf16.mxu0 0
  %6696 = vmatmul.mubr.bf16.gmra.mxu0 %v6608
  %v6697 = vpop.f32.mrf.mxu0
  %v6698 = vadd.f32 0.0, %v6697
  %v6699 = vpop.f32.mrf.mxu0
  %v6700 = vpop.f32.mrf.mxu0
  %v6701 = vadd.f32 0.0, %v6700
  %v6702 = vpop.f32.mrf.mxu0
  %6703 = vmatprep.mubr.bf16.mxu0 0
  %6704 = vmatmul.mubr.bf16.gmra.mxu0 %v6611
  %v6705 = vpop.f32.mrf.mxu0
  %v6706 = vadd.f32 0.0, %v6705
  %v6707 = vpop.f32.mrf.mxu0
  %v6708 = vpop.f32.mrf.mxu0
  %v6709 = vadd.f32 0.0, %v6708
  %v6710 = vpop.f32.mrf.mxu0
  %6711 = vmatprep.mubr.bf16.mxu0 0
  %6712 = vmatmul.mubr.bf16.gmra.mxu0 %v6614
  %v6713 = vpop.f32.mrf.mxu0
  %v6714 = vadd.f32 0.0, %v6713
  %v6715 = vpop.f32.mrf.mxu0
  %v6716 = vpop.f32.mrf.mxu0
  %v6717 = vadd.f32 0.0, %v6716
  %v6718 = vpop.f32.mrf.mxu0
  %6719 = vmatprep.mubr.bf16.mxu0 0
  %6720 = vmatmul.mubr.bf16.gmra.mxu0 %v6617
  %v6721 = vpop.f32.mrf.mxu0
  %v6722 = vadd.f32 0.0, %v6721
  %v6723 = vpop.f32.mrf.mxu0
  %v6724 = vpop.f32.mrf.mxu0
  %v6725 = vadd.f32 0.0, %v6724
  %v6726 = vpop.f32.mrf.mxu0
  %6727 = vmatprep.mubr.bf16.mxu0 0
  %6728 = vmatmul.mubr.bf16.gmra.mxu0 %v6620
  %v6729 = vpop.f32.mrf.mxu0
  %v6730 = vadd.f32 0.0, %v6729
  %v6731 = vpop.f32.mrf.mxu0
  %v6732 = vpop.f32.mrf.mxu0
  %v6733 = vadd.f32 0.0, %v6732
  %v6734 = vpop.f32.mrf.mxu0
  %6735 = vmatprep.mubr.bf16.mxu0 0
  %6736 = vmatmul.mubr.bf16.gmra.mxu0 %v6623
  %v6737 = vpop.f32.mrf.mxu0
  %v6738 = vadd.f32 0.0, %v6737
  %v6739 = vpop.f32.mrf.mxu0
  %v6740 = vpop.f32.mrf.mxu0
  %v6741 = vadd.f32 0.0, %v6740
  %v6742 = vpop.f32.mrf.mxu0
  %6743 = vmatprep.mubr.bf16.mxu0 0
  %6744 = vmatmul.mubr.bf16.gmra.mxu0 %v6626
  %v6745 = vpop.f32.mrf.mxu0
  %v6746 = vadd.f32 0.0, %v6745
  %v6747 = vpop.f32.mrf.mxu0
  %v6748 = vpop.f32.mrf.mxu0
  %v6749 = vadd.f32 0.0, %v6748
  %v6750 = vpop.f32.mrf.mxu0
  %6751 = vmatprep.mubr.bf16.mxu0 0
  %6752 = vmatmul.mubr.bf16.gmra.mxu0 %v6629
  %v6753 = vpop.f32.mrf.mxu0
  %v6754 = vadd.f32 0.0, %v6753
  %v6755 = vpop.f32.mrf.mxu0
  %v6756 = vpop.f32.mrf.mxu0
  %v6757 = vadd.f32 0.0, %v6756
  %v6758 = vpop.f32.mrf.mxu0
  %6759 = vmatprep.mubr.bf16.mxu0 0
  %6760 = vmatmul.mubr.bf16.gmra.mxu0 %v6632
  %v6761 = vpop.f32.mrf.mxu0
  %v6762 = vadd.f32 0.0, %v6761
  %v6763 = vpop.f32.mrf.mxu0
  %v6764 = vpop.f32.mrf.mxu0
  %v6765 = vadd.f32 0.0, %v6764
  %v6766 = vpop.f32.mrf.mxu0
  %6767 = vmatprep.mubr.bf16.mxu0 0
  %6768 = vmatmul.mubr.bf16.gmra.mxu0 %v6635
  %v6769 = vpop.f32.mrf.mxu0
  %v6770 = vadd.f32 0.0, %v6769
  %v6771 = vpop.f32.mrf.mxu0
  %v6772 = vpop.f32.mrf.mxu0
  %v6773 = vadd.f32 0.0, %v6772
  %v6774 = vpop.f32.mrf.mxu0
  %6775 = vmatprep.mubr.bf16.mxu0 0
  %6776 = vmatmul.mubr.bf16.gmra.mxu0 %v6638
  %v6777 = vpop.f32.mrf.mxu0
  %v6778 = vadd.f32 0.0, %v6777
  %v6779 = vpop.f32.mrf.mxu0
  %v6780 = vpop.f32.mrf.mxu0
  %v6781 = vadd.f32 0.0, %v6780
  %v6782 = vpop.f32.mrf.mxu0
  %6783 = vmatprep.mubr.bf16.mxu0 0
  %6784 = vmatmul.mubr.bf16.gmra.mxu0 %v6641
  %v6785 = vpop.f32.mrf.mxu0
  %v6786 = vadd.f32 0.0, %v6785
  %v6787 = vpop.f32.mrf.mxu0
  %v6788 = vpop.f32.mrf.mxu0
  %v6789 = vadd.f32 0.0, %v6788
  %v6790 = vpop.f32.mrf.mxu0
  %6791 = vmatprep.mubr.bf16.mxu0 0
  %6792 = vmatmul.mubr.bf16.gmra.mxu0 %v6644
  %v6793 = vpop.f32.mrf.mxu0
  %v6794 = vadd.f32 0.0, %v6793
  %v6795 = vpop.f32.mrf.mxu0
  %v6796 = vpop.f32.mrf.mxu0
  %v6797 = vadd.f32 0.0, %v6796
  %v6798 = vpop.f32.mrf.mxu0
  %6799 = vmatprep.mubr.bf16.mxu0 0
  %6800 = vmatmul.mubr.bf16.gmra.mxu0 %v6647
  %v6801 = vpop.f32.mrf.mxu0
  %v6802 = vadd.f32 0.0, %v6801
  %v6803 = vpop.f32.mrf.mxu0
  %v6804 = vpop.f32.mrf.mxu0
  %v6805 = vadd.f32 0.0, %v6804
  %v6806 = vpop.f32.mrf.mxu0
  %6807 = vmatprep.mubr.bf16.mxu0 0
  %6808 = vmatmul.mubr.bf16.gmra.mxu0 %v6650
  %v6809 = vpop.f32.mrf.mxu0
  %v6810 = vadd.f32 0.0, %v6809
  %v6811 = vpop.f32.mrf.mxu0
  %v6812 = vpop.f32.mrf.mxu0
  %v6813 = vadd.f32 0.0, %v6812
  %v6814 = vpop.f32.mrf.mxu0
  %6815 = vdwg.mxu0
  %v6816 = vadd.f32 %v6523, %v6690
  %v6817 = vadd.f32 %v6524, %v6693
  %v6818 = vadd.f32 %v6525, %v6698
  %v6819 = vadd.f32 %v6526, %v6701
  %v6820 = vadd.f32 %v6527, %v6706
  %v6821 = vadd.f32 %v6528, %v6709
  %v6822 = vadd.f32 %v6529, %v6714
  %v6823 = vadd.f32 %v6530, %v6717
  %v6824 = vadd.f32 %v6531, %v6722
  %v6825 = vadd.f32 %v6532, %v6725
  %v6826 = vadd.f32 %v6533, %v6730
  %v6827 = vadd.f32 %v6534, %v6733
  %v6828 = vadd.f32 %v6535, %v6738
  %v6829 = vadd.f32 %v6536, %v6741
  %v6830 = vadd.f32 %v6537, %v6746
  %v6831 = vadd.f32 %v6538, %v6749
  %v6832 = vadd.f32 %v6539, %v6754
  %v6833 = vadd.f32 %v6540, %v6757
  %v6834 = vadd.f32 %v6541, %v6762
  %v6835 = vadd.f32 %v6542, %v6765
  %v6836 = vadd.f32 %v6543, %v6770
  %v6837 = vadd.f32 %v6544, %v6773
  %v6838 = vadd.f32 %v6545, %v6778
  %v6839 = vadd.f32 %v6546, %v6781
  %v6840 = vadd.f32 %v6547, %v6786
  %v6841 = vadd.f32 %v6548, %v6789
  %v6842 = vadd.f32 %v6549, %v6794
  %v6843 = vadd.f32 %v6550, %v6797
  %v6844 = vadd.f32 %v6551, %v6802
  %v6845 = vadd.f32 %v6552, %v6805
  %v6846 = vadd.f32 %v6553, %v6810
  %v6847 = vadd.f32 %v6554, %v6813
  %v6848 = vld [vmem:[%s30 + $0x1] sm:$0xff]
  %v6849 = vld [vmem:[%s30 + $0x9] sm:$0xff]
  %v6850 = vld [vmem:[%s30 + $0x19] sm:$0xff]
  %v6851 = vld [vmem:[%s30 + $0x21] sm:$0xff]
  %v6852 = vld [vmem:[%s30 + $0x31] sm:$0xff]
  %v6853 = vld [vmem:[%s30 + $0x39] sm:$0xff]
  %v6854 = vld [vmem:[%s30 + $0x49] sm:$0xff]
  %v6855 = vld [vmem:[%s30 + $0x51] sm:$0xff]
  %v6856 = vld [vmem:[%s30 + $0x61] sm:$0xff]
  %v6857 = vld [vmem:[%s30 + $0x69] sm:$0xff]
  %v6858 = vld [vmem:[%s30 + $0x79] sm:$0xff]
  %v6859 = vld [vmem:[%s30 + $0x81] sm:$0xff]
  %v6860 = vld [vmem:[%s30 + $0x91] sm:$0xff]
  %v6861 = vld [vmem:[%s30 + $0x99] sm:$0xff]
  %v6862 = vld [vmem:[%s30 + $0xa9] sm:$0xff]
  %v6863 = vld [vmem:[%s30 + $0xb1] sm:$0xff]
  %v6864 = vld [vmem:[%s30 + $0xc1] sm:$0xff]
  %v6865 = vld [vmem:[%s30 + $0xc9] sm:$0xff]
  %v6866 = vld [vmem:[%s30 + $0xd9] sm:$0xff]
  %v6867 = vld [vmem:[%s30 + $0xe1] sm:$0xff]
  %v6868 = vld [vmem:[%s30 + $0xf1] sm:$0xff]
  %v6869 = vld [vmem:[%s30 + $0xf9] sm:$0xff]
  %v6870 = vld [vmem:[%s30 + $0x109] sm:$0xff]
  %v6871 = vld [vmem:[%s30 + $0x111] sm:$0xff]
  %v6872 = vld [vmem:[%s30 + $0x121] sm:$0xff]
  %v6873 = vld [vmem:[%s30 + $0x129] sm:$0xff]
  %v6874 = vld [vmem:[%s30 + $0x139] sm:$0xff]
  %v6875 = vld [vmem:[%s30 + $0x141] sm:$0xff]
  %v6876 = vld [vmem:[%s30 + $0x151] sm:$0xff]
  %v6877 = vld [vmem:[%s30 + $0x159] sm:$0xff]
  %v6878 = vld [vmem:[%s30 + $0x169] sm:$0xff]
  %v6879 = vld [vmem:[%s30 + $0x171] sm:$0xff]
  %v6880 = vpack.c.bf16 %v6849, %v6848
  %v6881 = vpack.c.bf16 %v6851, %v6850
  %v6882 = vpack.c.bf16 %v6853, %v6852
  %v6883 = vpack.c.bf16 %v6855, %v6854
  %v6884 = vpack.c.bf16 %v6857, %v6856
  %v6885 = vpack.c.bf16 %v6859, %v6858
  %v6886 = vpack.c.bf16 %v6861, %v6860
  %v6887 = vpack.c.bf16 %v6863, %v6862
  %v6888 = vpack.c.bf16 %v6865, %v6864
  %v6889 = vpack.c.bf16 %v6867, %v6866
  %v6890 = vpack.c.bf16 %v6869, %v6868
  %v6891 = vpack.c.bf16 %v6871, %v6870
  %v6892 = vpack.c.bf16 %v6873, %v6872
  %v6893 = vpack.c.bf16 %v6875, %v6874
  %v6894 = vpack.c.bf16 %v6877, %v6876
  %v6895 = vpack.c.bf16 %v6879, %v6878
  %v6896 = vld [vmem:[%s1334] sm:$0x3]
  %v6898 = vsel %vm21, %v6880, 0
  %v6901 = vsel %vm21, %v6881, 0
  %v6904 = vsel %vm21, %v6882, 0
  %v6907 = vsel %vm21, %v6883, 0
  %v6910 = vsel %vm21, %v6884, 0
  %v6913 = vsel %vm21, %v6885, 0
  %v6916 = vsel %vm21, %v6886, 0
  %v6919 = vsel %vm21, %v6887, 0
  %v6922 = vsel %vm21, %v6888, 0
  %v6925 = vsel %vm21, %v6889, 0
  %v6928 = vsel %vm21, %v6890, 0
  %v6931 = vsel %vm21, %v6891, 0
  %v6934 = vsel %vm21, %v6892, 0
  %v6937 = vsel %vm21, %v6893, 0
  %v6940 = vsel %vm21, %v6894, 0
  %v6943 = vsel %vm21, %v6895, 0
  %v6946 = vand.u32 %v6896, %v321
  %6948 = vmatprep.subr.bf16.mxu0 0
  %6949 = vmatpush1.bf16.msra.mxu0 0
  %6950 = vmatprep.subr.bf16.mxu0 0
  %6951 = vmatpush1.bf16.msra.mxu0 0
  %6952 = vmatprep.subr.bf16.mxu0 0
  %6953 = vmatpush1.bf16.msra.mxu0 0
  %6954 = vmatprep.subr.bf16.mxu0 0
  %6955 = vmatpush1.bf16.msra.mxu0 0
  %6956 = vmatprep.subr.bf16.mxu0 0
  %6957 = vmatpush1.bf16.msra.mxu0 0
  %6958 = vmatprep.subr.bf16.mxu0 0
  %6959 = vmatpush1.bf16.msra.mxu0 0
  %6960 = vmatprep.subr.bf16.mxu0 0
  %6961 = vmatpush1.bf16.msra.mxu0 0
  %6962 = vmatprep.subr.bf16.mxu0 0
  %6963 = vmatpush1.bf16.msra.mxu0 %v6946
  %6964 = vmatprep.subr.bf16.mxu0 0
  %6965 = vmatpush2.bf16.msra.mxu0 0
  %6966 = vmatprep.subr.bf16.mxu0 0
  %6967 = vmatpush2.bf16.msra.mxu0 0
  %6968 = vmatprep.subr.bf16.mxu0 0
  %6969 = vmatpush2.bf16.msra.mxu0 0
  %6970 = vmatprep.subr.bf16.mxu0 0
  %6971 = vmatpush2.bf16.msra.mxu0 0
  %6972 = vmatprep.subr.bf16.mxu0 0
  %6973 = vmatpush2.bf16.msra.mxu0 0
  %6974 = vmatprep.subr.bf16.mxu0 0
  %6975 = vmatpush2.bf16.msra.mxu0 0
  %6976 = vmatprep.subr.bf16.mxu0 0
  %6977 = vmatpush2.bf16.msra.mxu0 0
  %6978 = vmatprep.subr.bf16.mxu0 0
  %6979 = vmatpush2.bf16.msra.mxu0 0
  %6980 = vmatprep.mubr.bf16.mxu0 0
  %6981 = vmatmul.mubr.bf16.gmra.mxu0 %v6898
  %v6982 = vpop.f32.mrf.mxu0
  %v6983 = vadd.f32 0.0, %v6982
  %v6984 = vpop.f32.mrf.mxu0
  %v6985 = vpop.f32.mrf.mxu0
  %v6986 = vadd.f32 0.0, %v6985
  %v6987 = vpop.f32.mrf.mxu0
  %6988 = vmatprep.mubr.bf16.mxu0 0
  %6989 = vmatmul.mubr.bf16.gmra.mxu0 %v6901
  %v6990 = vpop.f32.mrf.mxu0
  %v6991 = vadd.f32 0.0, %v6990
  %v6992 = vpop.f32.mrf.mxu0
  %v6993 = vpop.f32.mrf.mxu0
  %v6994 = vadd.f32 0.0, %v6993
  %v6995 = vpop.f32.mrf.mxu0
  %6996 = vmatprep.mubr.bf16.mxu0 0
  %6997 = vmatmul.mubr.bf16.gmra.mxu0 %v6904
  %v6998 = vpop.f32.mrf.mxu0
  %v6999 = vadd.f32 0.0, %v6998
  %v7000 = vpop.f32.mrf.mxu0
  %v7001 = vpop.f32.mrf.mxu0
  %v7002 = vadd.f32 0.0, %v7001
  %v7003 = vpop.f32.mrf.mxu0
  %7004 = vmatprep.mubr.bf16.mxu0 0
  %7005 = vmatmul.mubr.bf16.gmra.mxu0 %v6907
  %v7006 = vpop.f32.mrf.mxu0
  %v7007 = vadd.f32 0.0, %v7006
  %v7008 = vpop.f32.mrf.mxu0
  %v7009 = vpop.f32.mrf.mxu0
  %v7010 = vadd.f32 0.0, %v7009
  %v7011 = vpop.f32.mrf.mxu0
  %7012 = vmatprep.mubr.bf16.mxu0 0
  %7013 = vmatmul.mubr.bf16.gmra.mxu0 %v6910
  %v7014 = vpop.f32.mrf.mxu0
  %v7015 = vadd.f32 0.0, %v7014
  %v7016 = vpop.f32.mrf.mxu0
  %v7017 = vpop.f32.mrf.mxu0
  %v7018 = vadd.f32 0.0, %v7017
  %v7019 = vpop.f32.mrf.mxu0
  %7020 = vmatprep.mubr.bf16.mxu0 0
  %7021 = vmatmul.mubr.bf16.gmra.mxu0 %v6913
  %v7022 = vpop.f32.mrf.mxu0
  %v7023 = vadd.f32 0.0, %v7022
  %v7024 = vpop.f32.mrf.mxu0
  %v7025 = vpop.f32.mrf.mxu0
  %v7026 = vadd.f32 0.0, %v7025
  %v7027 = vpop.f32.mrf.mxu0
  %7028 = vmatprep.mubr.bf16.mxu0 0
  %7029 = vmatmul.mubr.bf16.gmra.mxu0 %v6916
  %v7030 = vpop.f32.mrf.mxu0
  %v7031 = vadd.f32 0.0, %v7030
  %v7032 = vpop.f32.mrf.mxu0
  %v7033 = vpop.f32.mrf.mxu0
  %v7034 = vadd.f32 0.0, %v7033
  %v7035 = vpop.f32.mrf.mxu0
  %7036 = vmatprep.mubr.bf16.mxu0 0
  %7037 = vmatmul.mubr.bf16.gmra.mxu0 %v6919
  %v7038 = vpop.f32.mrf.mxu0
  %v7039 = vadd.f32 0.0, %v7038
  %v7040 = vpop.f32.mrf.mxu0
  %v7041 = vpop.f32.mrf.mxu0
  %v7042 = vadd.f32 0.0, %v7041
  %v7043 = vpop.f32.mrf.mxu0
  %7044 = vmatprep.mubr.bf16.mxu0 0
  %7045 = vmatmul.mubr.bf16.gmra.mxu0 %v6922
  %v7046 = vpop.f32.mrf.mxu0
  %v7047 = vadd.f32 0.0, %v7046
  %v7048 = vpop.f32.mrf.mxu0
  %v7049 = vpop.f32.mrf.mxu0
  %v7050 = vadd.f32 0.0, %v7049
  %v7051 = vpop.f32.mrf.mxu0
  %7052 = vmatprep.mubr.bf16.mxu0 0
  %7053 = vmatmul.mubr.bf16.gmra.mxu0 %v6925
  %v7054 = vpop.f32.mrf.mxu0
  %v7055 = vadd.f32 0.0, %v7054
  %v7056 = vpop.f32.mrf.mxu0
  %v7057 = vpop.f32.mrf.mxu0
  %v7058 = vadd.f32 0.0, %v7057
  %v7059 = vpop.f32.mrf.mxu0
  %7060 = vmatprep.mubr.bf16.mxu0 0
  %7061 = vmatmul.mubr.bf16.gmra.mxu0 %v6928
  %v7062 = vpop.f32.mrf.mxu0
  %v7063 = vadd.f32 0.0, %v7062
  %v7064 = vpop.f32.mrf.mxu0
  %v7065 = vpop.f32.mrf.mxu0
  %v7066 = vadd.f32 0.0, %v7065
  %v7067 = vpop.f32.mrf.mxu0
  %7068 = vmatprep.mubr.bf16.mxu0 0
  %7069 = vmatmul.mubr.bf16.gmra.mxu0 %v6931
  %v7070 = vpop.f32.mrf.mxu0
  %v7071 = vadd.f32 0.0, %v7070
  %v7072 = vpop.f32.mrf.mxu0
  %v7073 = vpop.f32.mrf.mxu0
  %v7074 = vadd.f32 0.0, %v7073
  %v7075 = vpop.f32.mrf.mxu0
  %7076 = vmatprep.mubr.bf16.mxu0 0
  %7077 = vmatmul.mubr.bf16.gmra.mxu0 %v6934
  %v7078 = vpop.f32.mrf.mxu0
  %v7079 = vadd.f32 0.0, %v7078
  %v7080 = vpop.f32.mrf.mxu0
  %v7081 = vpop.f32.mrf.mxu0
  %v7082 = vadd.f32 0.0, %v7081
  %v7083 = vpop.f32.mrf.mxu0
  %7084 = vmatprep.mubr.bf16.mxu0 0
  %7085 = vmatmul.mubr.bf16.gmra.mxu0 %v6937
  %v7086 = vpop.f32.mrf.mxu0
  %v7087 = vadd.f32 0.0, %v7086
  %v7088 = vpop.f32.mrf.mxu0
  %v7089 = vpop.f32.mrf.mxu0
  %v7090 = vadd.f32 0.0, %v7089
  %v7091 = vpop.f32.mrf.mxu0
  %7092 = vmatprep.mubr.bf16.mxu0 0
  %7093 = vmatmul.mubr.bf16.gmra.mxu0 %v6940
  %v7094 = vpop.f32.mrf.mxu0
  %v7095 = vadd.f32 0.0, %v7094
  %v7096 = vpop.f32.mrf.mxu0
  %v7097 = vpop.f32.mrf.mxu0
  %v7098 = vadd.f32 0.0, %v7097
  %v7099 = vpop.f32.mrf.mxu0
  %7100 = vmatprep.mubr.bf16.mxu0 0
  %7101 = vmatmul.mubr.bf16.gmra.mxu0 %v6943
  %v7102 = vpop.f32.mrf.mxu0
  %v7103 = vadd.f32 0.0, %v7102
  %v7104 = vpop.f32.mrf.mxu0
  %v7105 = vpop.f32.mrf.mxu0
  %v7106 = vadd.f32 0.0, %v7105
  %v7107 = vpop.f32.mrf.mxu0
  %7108 = vdwg.mxu0
  %v7109 = vadd.f32 %v6816, %v6983
  %v7110 = vadd.f32 %v6817, %v6986
  %v7111 = vadd.f32 %v6818, %v6991
  %v7112 = vadd.f32 %v6819, %v6994
  %v7113 = vadd.f32 %v6820, %v6999
  %v7114 = vadd.f32 %v6821, %v7002
  %v7115 = vadd.f32 %v6822, %v7007
  %v7116 = vadd.f32 %v6823, %v7010
  %v7117 = vadd.f32 %v6824, %v7015
  %v7118 = vadd.f32 %v6825, %v7018
  %v7119 = vadd.f32 %v6826, %v7023
  %v7120 = vadd.f32 %v6827, %v7026
  %v7121 = vadd.f32 %v6828, %v7031
  %v7122 = vadd.f32 %v6829, %v7034
  %v7123 = vadd.f32 %v6830, %v7039
  %v7124 = vadd.f32 %v6831, %v7042
  %v7125 = vadd.f32 %v6832, %v7047
  %v7126 = vadd.f32 %v6833, %v7050
  %v7127 = vadd.f32 %v6834, %v7055
  %v7128 = vadd.f32 %v6835, %v7058
  %v7129 = vadd.f32 %v6836, %v7063
  %v7130 = vadd.f32 %v6837, %v7066
  %v7131 = vadd.f32 %v6838, %v7071
  %v7132 = vadd.f32 %v6839, %v7074
  %v7133 = vadd.f32 %v6840, %v7079
  %v7134 = vadd.f32 %v6841, %v7082
  %v7135 = vadd.f32 %v6842, %v7087
  %v7136 = vadd.f32 %v6843, %v7090
  %v7137 = vadd.f32 %v6844, %v7095
  %v7138 = vadd.f32 %v6845, %v7098
  %v7139 = vadd.f32 %v6846, %v7103
  %v7140 = vadd.f32 %v6847, %v7106
  %v7141 = vld [vmem:[%s30 + $0x2] sm:$0xff]
  %v7142 = vld [vmem:[%s30 + $0xa] sm:$0xff]
  %v7143 = vld [vmem:[%s30 + $0x1a] sm:$0xff]
  %v7144 = vld [vmem:[%s30 + $0x22] sm:$0xff]
  %v7145 = vld [vmem:[%s30 + $0x32] sm:$0xff]
  %v7146 = vld [vmem:[%s30 + $0x3a] sm:$0xff]
  %v7147 = vld [vmem:[%s30 + $0x4a] sm:$0xff]
  %v7148 = vld [vmem:[%s30 + $0x52] sm:$0xff]
  %v7149 = vld [vmem:[%s30 + $0x62] sm:$0xff]
  %v7150 = vld [vmem:[%s30 + $0x6a] sm:$0xff]
  %v7151 = vld [vmem:[%s30 + $0x7a] sm:$0xff]
  %v7152 = vld [vmem:[%s30 + $0x82] sm:$0xff]
  %v7153 = vld [vmem:[%s30 + $0x92] sm:$0xff]
  %v7154 = vld [vmem:[%s30 + $0x9a] sm:$0xff]
  %v7155 = vld [vmem:[%s30 + $0xaa] sm:$0xff]
  %v7156 = vld [vmem:[%s30 + $0xb2] sm:$0xff]
  %v7157 = vld [vmem:[%s30 + $0xc2] sm:$0xff]
  %v7158 = vld [vmem:[%s30 + $0xca] sm:$0xff]
  %v7159 = vld [vmem:[%s30 + $0xda] sm:$0xff]
  %v7160 = vld [vmem:[%s30 + $0xe2] sm:$0xff]
  %v7161 = vld [vmem:[%s30 + $0xf2] sm:$0xff]
  %v7162 = vld [vmem:[%s30 + $0xfa] sm:$0xff]
  %v7163 = vld [vmem:[%s30 + $0x10a] sm:$0xff]
  %v7164 = vld [vmem:[%s30 + $0x112] sm:$0xff]
  %v7165 = vld [vmem:[%s30 + $0x122] sm:$0xff]
  %v7166 = vld [vmem:[%s30 + $0x12a] sm:$0xff]
  %v7167 = vld [vmem:[%s30 + $0x13a] sm:$0xff]
  %v7168 = vld [vmem:[%s30 + $0x142] sm:$0xff]
  %v7169 = vld [vmem:[%s30 + $0x152] sm:$0xff]
  %v7170 = vld [vmem:[%s30 + $0x15a] sm:$0xff]
  %v7171 = vld [vmem:[%s30 + $0x16a] sm:$0xff]
  %v7172 = vld [vmem:[%s30 + $0x172] sm:$0xff]
  %v7173 = vpack.c.bf16 %v7142, %v7141
  %v7174 = vpack.c.bf16 %v7144, %v7143
  %v7175 = vpack.c.bf16 %v7146, %v7145
  %v7176 = vpack.c.bf16 %v7148, %v7147
  %v7177 = vpack.c.bf16 %v7150, %v7149
  %v7178 = vpack.c.bf16 %v7152, %v7151
  %v7179 = vpack.c.bf16 %v7154, %v7153
  %v7180 = vpack.c.bf16 %v7156, %v7155
  %v7181 = vpack.c.bf16 %v7158, %v7157
  %v7182 = vpack.c.bf16 %v7160, %v7159
  %v7183 = vpack.c.bf16 %v7162, %v7161
  %v7184 = vpack.c.bf16 %v7164, %v7163
  %v7185 = vpack.c.bf16 %v7166, %v7165
  %v7186 = vpack.c.bf16 %v7168, %v7167
  %v7187 = vpack.c.bf16 %v7170, %v7169
  %v7188 = vpack.c.bf16 %v7172, %v7171
  %v7189 = vld [vmem:[%s1628] sm:$0x3]
  %v7191 = vsel %vm21, %v7173, 0
  %v7194 = vsel %vm21, %v7174, 0
  %v7197 = vsel %vm21, %v7175, 0
  %v7200 = vsel %vm21, %v7176, 0
  %v7203 = vsel %vm21, %v7177, 0
  %v7206 = vsel %vm21, %v7178, 0
  %v7209 = vsel %vm21, %v7179, 0
  %v7212 = vsel %vm21, %v7180, 0
  %v7215 = vsel %vm21, %v7181, 0
  %v7218 = vsel %vm21, %v7182, 0
  %v7221 = vsel %vm21, %v7183, 0
  %v7224 = vsel %vm21, %v7184, 0
  %v7227 = vsel %vm21, %v7185, 0
  %v7230 = vsel %vm21, %v7186, 0
  %v7233 = vsel %vm21, %v7187, 0
  %v7236 = vsel %vm21, %v7188, 0
  %v7239 = vand.u32 %v7189, %v321
  %7241 = vmatprep.subr.bf16.mxu0 0
  %7242 = vmatpush1.bf16.msra.mxu0 0
  %7243 = vmatprep.subr.bf16.mxu0 0
  %7244 = vmatpush1.bf16.msra.mxu0 0
  %7245 = vmatprep.subr.bf16.mxu0 0
  %7246 = vmatpush1.bf16.msra.mxu0 0
  %7247 = vmatprep.subr.bf16.mxu0 0
  %7248 = vmatpush1.bf16.msra.mxu0 0
  %7249 = vmatprep.subr.bf16.mxu0 0
  %7250 = vmatpush1.bf16.msra.mxu0 0
  %7251 = vmatprep.subr.bf16.mxu0 0
  %7252 = vmatpush1.bf16.msra.mxu0 0
  %7253 = vmatprep.subr.bf16.mxu0 0
  %7254 = vmatpush1.bf16.msra.mxu0 0
  %7255 = vmatprep.subr.bf16.mxu0 0
  %7256 = vmatpush1.bf16.msra.mxu0 %v7239
  %7257 = vmatprep.subr.bf16.mxu0 0
  %7258 = vmatpush2.bf16.msra.mxu0 0
  %7259 = vmatprep.subr.bf16.mxu0 0
  %7260 = vmatpush2.bf16.msra.mxu0 0
  %7261 = vmatprep.subr.bf16.mxu0 0
  %7262 = vmatpush2.bf16.msra.mxu0 0
  %7263 = vmatprep.subr.bf16.mxu0 0
  %7264 = vmatpush2.bf16.msra.mxu0 0
  %7265 = vmatprep.subr.bf16.mxu0 0
  %7266 = vmatpush2.bf16.msra.mxu0 0
  %7267 = vmatprep.subr.bf16.mxu0 0
  %7268 = vmatpush2.bf16.msra.mxu0 0
  %7269 = vmatprep.subr.bf16.mxu0 0
  %7270 = vmatpush2.bf16.msra.mxu0 0
  %7271 = vmatprep.subr.bf16.mxu0 0
  %7272 = vmatpush2.bf16.msra.mxu0 0
  %7273 = vmatprep.mubr.bf16.mxu0 0
  %7274 = vmatmul.mubr.bf16.gmra.mxu0 %v7191
  %v7275 = vpop.f32.mrf.mxu0
  %v7276 = vadd.f32 0.0, %v7275
  %v7277 = vpop.f32.mrf.mxu0
  %v7278 = vpop.f32.mrf.mxu0
  %v7279 = vadd.f32 0.0, %v7278
  %v7280 = vpop.f32.mrf.mxu0
  %7281 = vmatprep.mubr.bf16.mxu0 0
  %7282 = vmatmul.mubr.bf16.gmra.mxu0 %v7194
  %v7283 = vpop.f32.mrf.mxu0
  %v7284 = vadd.f32 0.0, %v7283
  %v7285 = vpop.f32.mrf.mxu0
  %v7286 = vpop.f32.mrf.mxu0
  %v7287 = vadd.f32 0.0, %v7286
  %v7288 = vpop.f32.mrf.mxu0
  %7289 = vmatprep.mubr.bf16.mxu0 0
  %7290 = vmatmul.mubr.bf16.gmra.mxu0 %v7197
  %v7291 = vpop.f32.mrf.mxu0
  %v7292 = vadd.f32 0.0, %v7291
  %v7293 = vpop.f32.mrf.mxu0
  %v7294 = vpop.f32.mrf.mxu0
  %v7295 = vadd.f32 0.0, %v7294
  %v7296 = vpop.f32.mrf.mxu0
  %7297 = vmatprep.mubr.bf16.mxu0 0
  %7298 = vmatmul.mubr.bf16.gmra.mxu0 %v7200
  %v7299 = vpop.f32.mrf.mxu0
  %v7300 = vadd.f32 0.0, %v7299
  %v7301 = vpop.f32.mrf.mxu0
  %v7302 = vpop.f32.mrf.mxu0
  %v7303 = vadd.f32 0.0, %v7302
  %v7304 = vpop.f32.mrf.mxu0
  %7305 = vmatprep.mubr.bf16.mxu0 0
  %7306 = vmatmul.mubr.bf16.gmra.mxu0 %v7203
  %v7307 = vpop.f32.mrf.mxu0
  %v7308 = vadd.f32 0.0, %v7307
  %v7309 = vpop.f32.mrf.mxu0
  %v7310 = vpop.f32.mrf.mxu0
  %v7311 = vadd.f32 0.0, %v7310
  %v7312 = vpop.f32.mrf.mxu0
  %7313 = vmatprep.mubr.bf16.mxu0 0
  %7314 = vmatmul.mubr.bf16.gmra.mxu0 %v7206
  %v7315 = vpop.f32.mrf.mxu0
  %v7316 = vadd.f32 0.0, %v7315
  %v7317 = vpop.f32.mrf.mxu0
  %v7318 = vpop.f32.mrf.mxu0
  %v7319 = vadd.f32 0.0, %v7318
  %v7320 = vpop.f32.mrf.mxu0
  %7321 = vmatprep.mubr.bf16.mxu0 0
  %7322 = vmatmul.mubr.bf16.gmra.mxu0 %v7209
  %v7323 = vpop.f32.mrf.mxu0
  %v7324 = vadd.f32 0.0, %v7323
  %v7325 = vpop.f32.mrf.mxu0
  %v7326 = vpop.f32.mrf.mxu0
  %v7327 = vadd.f32 0.0, %v7326
  %v7328 = vpop.f32.mrf.mxu0
  %7329 = vmatprep.mubr.bf16.mxu0 0
  %7330 = vmatmul.mubr.bf16.gmra.mxu0 %v7212
  %v7331 = vpop.f32.mrf.mxu0
  %v7332 = vadd.f32 0.0, %v7331
  %v7333 = vpop.f32.mrf.mxu0
  %v7334 = vpop.f32.mrf.mxu0
  %v7335 = vadd.f32 0.0, %v7334
  %v7336 = vpop.f32.mrf.mxu0
  %7337 = vmatprep.mubr.bf16.mxu0 0
  %7338 = vmatmul.mubr.bf16.gmra.mxu0 %v7215
  %v7339 = vpop.f32.mrf.mxu0
  %v7340 = vadd.f32 0.0, %v7339
  %v7341 = vpop.f32.mrf.mxu0
  %v7342 = vpop.f32.mrf.mxu0
  %v7343 = vadd.f32 0.0, %v7342
  %v7344 = vpop.f32.mrf.mxu0
  %7345 = vmatprep.mubr.bf16.mxu0 0
  %7346 = vmatmul.mubr.bf16.gmra.mxu0 %v7218
  %v7347 = vpop.f32.mrf.mxu0
  %v7348 = vadd.f32 0.0, %v7347
  %v7349 = vpop.f32.mrf.mxu0
  %v7350 = vpop.f32.mrf.mxu0
  %v7351 = vadd.f32 0.0, %v7350
  %v7352 = vpop.f32.mrf.mxu0
  %7353 = vmatprep.mubr.bf16.mxu0 0
  %7354 = vmatmul.mubr.bf16.gmra.mxu0 %v7221
  %v7355 = vpop.f32.mrf.mxu0
  %v7356 = vadd.f32 0.0, %v7355
  %v7357 = vpop.f32.mrf.mxu0
  %v7358 = vpop.f32.mrf.mxu0
  %v7359 = vadd.f32 0.0, %v7358
  %v7360 = vpop.f32.mrf.mxu0
  %7361 = vmatprep.mubr.bf16.mxu0 0
  %7362 = vmatmul.mubr.bf16.gmra.mxu0 %v7224
  %v7363 = vpop.f32.mrf.mxu0
  %v7364 = vadd.f32 0.0, %v7363
  %v7365 = vpop.f32.mrf.mxu0
  %v7366 = vpop.f32.mrf.mxu0
  %v7367 = vadd.f32 0.0, %v7366
  %v7368 = vpop.f32.mrf.mxu0
  %7369 = vmatprep.mubr.bf16.mxu0 0
  %7370 = vmatmul.mubr.bf16.gmra.mxu0 %v7227
  %v7371 = vpop.f32.mrf.mxu0
  %v7372 = vadd.f32 0.0, %v7371
  %v7373 = vpop.f32.mrf.mxu0
  %v7374 = vpop.f32.mrf.mxu0
  %v7375 = vadd.f32 0.0, %v7374
  %v7376 = vpop.f32.mrf.mxu0
  %7377 = vmatprep.mubr.bf16.mxu0 0
  %7378 = vmatmul.mubr.bf16.gmra.mxu0 %v7230
  %v7379 = vpop.f32.mrf.mxu0
  %v7380 = vadd.f32 0.0, %v7379
  %v7381 = vpop.f32.mrf.mxu0
  %v7382 = vpop.f32.mrf.mxu0
  %v7383 = vadd.f32 0.0, %v7382
  %v7384 = vpop.f32.mrf.mxu0
  %7385 = vmatprep.mubr.bf16.mxu0 0
  %7386 = vmatmul.mubr.bf16.gmra.mxu0 %v7233
  %v7387 = vpop.f32.mrf.mxu0
  %v7388 = vadd.f32 0.0, %v7387
  %v7389 = vpop.f32.mrf.mxu0
  %v7390 = vpop.f32.mrf.mxu0
  %v7391 = vadd.f32 0.0, %v7390
  %v7392 = vpop.f32.mrf.mxu0
  %7393 = vmatprep.mubr.bf16.mxu0 0
  %7394 = vmatmul.mubr.bf16.gmra.mxu0 %v7236
  %v7395 = vpop.f32.mrf.mxu0
  %v7396 = vadd.f32 0.0, %v7395
  %v7397 = vpop.f32.mrf.mxu0
  %v7398 = vpop.f32.mrf.mxu0
  %v7399 = vadd.f32 0.0, %v7398
  %v7400 = vpop.f32.mrf.mxu0
  %7401 = vdwg.mxu0
  %v7402 = vadd.f32 %v7109, %v7276
  %v7403 = vadd.f32 %v7110, %v7279
  %v7404 = vadd.f32 %v7111, %v7284
  %v7405 = vadd.f32 %v7112, %v7287
  %v7406 = vadd.f32 %v7113, %v7292
  %v7407 = vadd.f32 %v7114, %v7295
  %v7408 = vadd.f32 %v7115, %v7300
  %v7409 = vadd.f32 %v7116, %v7303
  %v7410 = vadd.f32 %v7117, %v7308
  %v7411 = vadd.f32 %v7118, %v7311
  %v7412 = vadd.f32 %v7119, %v7316
  %v7413 = vadd.f32 %v7120, %v7319
  %v7414 = vadd.f32 %v7121, %v7324
  %v7415 = vadd.f32 %v7122, %v7327
  %v7416 = vadd.f32 %v7123, %v7332
  %v7417 = vadd.f32 %v7124, %v7335
  %v7418 = vadd.f32 %v7125, %v7340
  %v7419 = vadd.f32 %v7126, %v7343
  %v7420 = vadd.f32 %v7127, %v7348
  %v7421 = vadd.f32 %v7128, %v7351
  %v7422 = vadd.f32 %v7129, %v7356
  %v7423 = vadd.f32 %v7130, %v7359
  %v7424 = vadd.f32 %v7131, %v7364
  %v7425 = vadd.f32 %v7132, %v7367
  %v7426 = vadd.f32 %v7133, %v7372
  %v7427 = vadd.f32 %v7134, %v7375
  %v7428 = vadd.f32 %v7135, %v7380
  %v7429 = vadd.f32 %v7136, %v7383
  %v7430 = vadd.f32 %v7137, %v7388
  %v7431 = vadd.f32 %v7138, %v7391
  %v7432 = vadd.f32 %v7139, %v7396
  %v7433 = vadd.f32 %v7140, %v7399
  %v7434 = vld [vmem:[%s1874] sm:$0xff]
  %v7435 = vld [vmem:[%s1874 + $0x8] sm:$0xff]
  %v7436 = vld [vmem:[%s1874 + $0x18] sm:$0xff]
  %v7437 = vld [vmem:[%s1874 + $0x20] sm:$0xff]
  %v7438 = vld [vmem:[%s1874 + $0x30] sm:$0xff]
  %v7439 = vld [vmem:[%s1874 + $0x38] sm:$0xff]
  %v7440 = vld [vmem:[%s1874 + $0x48] sm:$0xff]
  %v7441 = vld [vmem:[%s1874 + $0x50] sm:$0xff]
  %v7442 = vld [vmem:[%s1874 + $0x60] sm:$0xff]
  %v7443 = vld [vmem:[%s1874 + $0x68] sm:$0xff]
  %v7444 = vld [vmem:[%s1874 + $0x78] sm:$0xff]
  %v7445 = vld [vmem:[%s1874 + $0x80] sm:$0xff]
  %v7446 = vld [vmem:[%s1874 + $0x90] sm:$0xff]
  %v7447 = vld [vmem:[%s1874 + $0x98] sm:$0xff]
  %v7448 = vld [vmem:[%s1874 + $0xa8] sm:$0xff]
  %v7449 = vld [vmem:[%s1874 + $0xb0] sm:$0xff]
  %v7450 = vld [vmem:[%s1874 + $0xc0] sm:$0xff]
  %v7451 = vld [vmem:[%s1874 + $0xc8] sm:$0xff]
  %v7452 = vld [vmem:[%s1874 + $0xd8] sm:$0xff]
  %v7453 = vld [vmem:[%s1874 + $0xe0] sm:$0xff]
  %v7454 = vld [vmem:[%s1874 + $0xf0] sm:$0xff]
  %v7455 = vld [vmem:[%s1874 + $0xf8] sm:$0xff]
  %v7456 = vld [vmem:[%s1874 + $0x108] sm:$0xff]
  %v7457 = vld [vmem:[%s1874 + $0x110] sm:$0xff]
  %v7458 = vld [vmem:[%s1874 + $0x120] sm:$0xff]
  %v7459 = vld [vmem:[%s1874 + $0x128] sm:$0xff]
  %v7460 = vld [vmem:[%s1874 + $0x138] sm:$0xff]
  %v7461 = vld [vmem:[%s1874 + $0x140] sm:$0xff]
  %v7462 = vld [vmem:[%s1874 + $0x150] sm:$0xff]
  %v7463 = vld [vmem:[%s1874 + $0x158] sm:$0xff]
  %v7464 = vld [vmem:[%s1874 + $0x168] sm:$0xff]
  %v7465 = vld [vmem:[%s1874 + $0x170] sm:$0xff]
  %v7466 = vpack.c.bf16 %v7435, %v7434
  %v7467 = vpack.c.bf16 %v7437, %v7436
  %v7468 = vpack.c.bf16 %v7439, %v7438
  %v7469 = vpack.c.bf16 %v7441, %v7440
  %v7470 = vpack.c.bf16 %v7443, %v7442
  %v7471 = vpack.c.bf16 %v7445, %v7444
  %v7472 = vpack.c.bf16 %v7447, %v7446
  %v7473 = vpack.c.bf16 %v7449, %v7448
  %v7474 = vpack.c.bf16 %v7451, %v7450
  %v7475 = vpack.c.bf16 %v7453, %v7452
  %v7476 = vpack.c.bf16 %v7455, %v7454
  %v7477 = vpack.c.bf16 %v7457, %v7456
  %v7478 = vpack.c.bf16 %v7459, %v7458
  %v7479 = vpack.c.bf16 %v7461, %v7460
  %v7480 = vpack.c.bf16 %v7463, %v7462
  %v7481 = vpack.c.bf16 %v7465, %v7464
  %v7482 = vld [vmem:[%s1923] sm:$0x3]
  %v7484 = vsel %vm21, %v7466, 0
  %v7487 = vsel %vm21, %v7467, 0
  %v7490 = vsel %vm21, %v7468, 0
  %v7493 = vsel %vm21, %v7469, 0
  %v7496 = vsel %vm21, %v7470, 0
  %v7499 = vsel %vm21, %v7471, 0
  %v7502 = vsel %vm21, %v7472, 0
  %v7505 = vsel %vm21, %v7473, 0
  %v7508 = vsel %vm21, %v7474, 0
  %v7511 = vsel %vm21, %v7475, 0
  %v7514 = vsel %vm21, %v7476, 0
  %v7517 = vsel %vm21, %v7477, 0
  %v7520 = vsel %vm21, %v7478, 0
  %v7523 = vsel %vm21, %v7479, 0
  %v7526 = vsel %vm21, %v7480, 0
  %v7529 = vsel %vm21, %v7481, 0
  %v7532 = vand.u32 %v7482, %v321
  %7534 = vmatprep.subr.bf16.mxu0 0
  %7535 = vmatpush1.bf16.msra.mxu0 0
  %7536 = vmatprep.subr.bf16.mxu0 0
  %7537 = vmatpush1.bf16.msra.mxu0 0
  %7538 = vmatprep.subr.bf16.mxu0 0
  %7539 = vmatpush1.bf16.msra.mxu0 0
  %7540 = vmatprep.subr.bf16.mxu0 0
  %7541 = vmatpush1.bf16.msra.mxu0 0
  %7542 = vmatprep.subr.bf16.mxu0 0
  %7543 = vmatpush1.bf16.msra.mxu0 0
  %7544 = vmatprep.subr.bf16.mxu0 0
  %7545 = vmatpush1.bf16.msra.mxu0 0
  %7546 = vmatprep.subr.bf16.mxu0 0
  %7547 = vmatpush1.bf16.msra.mxu0 0
  %7548 = vmatprep.subr.bf16.mxu0 0
  %7549 = vmatpush1.bf16.msra.mxu0 %v7532
  %7550 = vmatprep.subr.bf16.mxu0 0
  %7551 = vmatpush2.bf16.msra.mxu0 0
  %7552 = vmatprep.subr.bf16.mxu0 0
  %7553 = vmatpush2.bf16.msra.mxu0 0
  %7554 = vmatprep.subr.bf16.mxu0 0
  %7555 = vmatpush2.bf16.msra.mxu0 0
  %7556 = vmatprep.subr.bf16.mxu0 0
  %7557 = vmatpush2.bf16.msra.mxu0 0
  %7558 = vmatprep.subr.bf16.mxu0 0
  %7559 = vmatpush2.bf16.msra.mxu0 0
  %7560 = vmatprep.subr.bf16.mxu0 0
  %7561 = vmatpush2.bf16.msra.mxu0 0
  %7562 = vmatprep.subr.bf16.mxu0 0
  %7563 = vmatpush2.bf16.msra.mxu0 0
  %7564 = vmatprep.subr.bf16.mxu0 0
  %7565 = vmatpush2.bf16.msra.mxu0 0
  %7566 = vmatprep.mubr.bf16.mxu0 0
  %7567 = vmatmul.mubr.bf16.gmra.mxu0 %v7484
  %v7568 = vpop.f32.mrf.mxu0
  %v7569 = vadd.f32 0.0, %v7568
  %v7570 = vpop.f32.mrf.mxu0
  %v7571 = vpop.f32.mrf.mxu0
  %v7572 = vadd.f32 0.0, %v7571
  %v7573 = vpop.f32.mrf.mxu0
  %7574 = vmatprep.mubr.bf16.mxu0 0
  %7575 = vmatmul.mubr.bf16.gmra.mxu0 %v7487
  %v7576 = vpop.f32.mrf.mxu0
  %v7577 = vadd.f32 0.0, %v7576
  %v7578 = vpop.f32.mrf.mxu0
  %v7579 = vpop.f32.mrf.mxu0
  %v7580 = vadd.f32 0.0, %v7579
  %v7581 = vpop.f32.mrf.mxu0
  %7582 = vmatprep.mubr.bf16.mxu0 0
  %7583 = vmatmul.mubr.bf16.gmra.mxu0 %v7490
  %v7584 = vpop.f32.mrf.mxu0
  %v7585 = vadd.f32 0.0, %v7584
  %v7586 = vpop.f32.mrf.mxu0
  %v7587 = vpop.f32.mrf.mxu0
  %v7588 = vadd.f32 0.0, %v7587
  %v7589 = vpop.f32.mrf.mxu0
  %7590 = vmatprep.mubr.bf16.mxu0 0
  %7591 = vmatmul.mubr.bf16.gmra.mxu0 %v7493
  %v7592 = vpop.f32.mrf.mxu0
  %v7593 = vadd.f32 0.0, %v7592
  %v7594 = vpop.f32.mrf.mxu0
  %v7595 = vpop.f32.mrf.mxu0
  %v7596 = vadd.f32 0.0, %v7595
  %v7597 = vpop.f32.mrf.mxu0
  %7598 = vmatprep.mubr.bf16.mxu0 0
  %7599 = vmatmul.mubr.bf16.gmra.mxu0 %v7496
  %v7600 = vpop.f32.mrf.mxu0
  %v7601 = vadd.f32 0.0, %v7600
  %v7602 = vpop.f32.mrf.mxu0
  %v7603 = vpop.f32.mrf.mxu0
  %v7604 = vadd.f32 0.0, %v7603
  %v7605 = vpop.f32.mrf.mxu0
  %7606 = vmatprep.mubr.bf16.mxu0 0
  %7607 = vmatmul.mubr.bf16.gmra.mxu0 %v7499
  %v7608 = vpop.f32.mrf.mxu0
  %v7609 = vadd.f32 0.0, %v7608
  %v7610 = vpop.f32.mrf.mxu0
  %v7611 = vpop.f32.mrf.mxu0
  %v7612 = vadd.f32 0.0, %v7611
  %v7613 = vpop.f32.mrf.mxu0
  %7614 = vmatprep.mubr.bf16.mxu0 0
  %7615 = vmatmul.mubr.bf16.gmra.mxu0 %v7502
  %v7616 = vpop.f32.mrf.mxu0
  %v7617 = vadd.f32 0.0, %v7616
  %v7618 = vpop.f32.mrf.mxu0
  %v7619 = vpop.f32.mrf.mxu0
  %v7620 = vadd.f32 0.0, %v7619
  %v7621 = vpop.f32.mrf.mxu0
  %7622 = vmatprep.mubr.bf16.mxu0 0
  %7623 = vmatmul.mubr.bf16.gmra.mxu0 %v7505
  %v7624 = vpop.f32.mrf.mxu0
  %v7625 = vadd.f32 0.0, %v7624
  %v7626 = vpop.f32.mrf.mxu0
  %v7627 = vpop.f32.mrf.mxu0
  %v7628 = vadd.f32 0.0, %v7627
  %v7629 = vpop.f32.mrf.mxu0
  %7630 = vmatprep.mubr.bf16.mxu0 0
  %7631 = vmatmul.mubr.bf16.gmra.mxu0 %v7508
  %v7632 = vpop.f32.mrf.mxu0
  %v7633 = vadd.f32 0.0, %v7632
  %v7634 = vpop.f32.mrf.mxu0
  %v7635 = vpop.f32.mrf.mxu0
  %v7636 = vadd.f32 0.0, %v7635
  %v7637 = vpop.f32.mrf.mxu0
  %7638 = vmatprep.mubr.bf16.mxu0 0
  %7639 = vmatmul.mubr.bf16.gmra.mxu0 %v7511
  %v7640 = vpop.f32.mrf.mxu0
  %v7641 = vadd.f32 0.0, %v7640
  %v7642 = vpop.f32.mrf.mxu0
  %v7643 = vpop.f32.mrf.mxu0
  %v7644 = vadd.f32 0.0, %v7643
  %v7645 = vpop.f32.mrf.mxu0
  %7646 = vmatprep.mubr.bf16.mxu0 0
  %7647 = vmatmul.mubr.bf16.gmra.mxu0 %v7514
  %v7648 = vpop.f32.mrf.mxu0
  %v7649 = vadd.f32 0.0, %v7648
  %v7650 = vpop.f32.mrf.mxu0
  %v7651 = vpop.f32.mrf.mxu0
  %v7652 = vadd.f32 0.0, %v7651
  %v7653 = vpop.f32.mrf.mxu0
  %7654 = vmatprep.mubr.bf16.mxu0 0
  %7655 = vmatmul.mubr.bf16.gmra.mxu0 %v7517
  %v7656 = vpop.f32.mrf.mxu0
  %v7657 = vadd.f32 0.0, %v7656
  %v7658 = vpop.f32.mrf.mxu0
  %v7659 = vpop.f32.mrf.mxu0
  %v7660 = vadd.f32 0.0, %v7659
  %v7661 = vpop.f32.mrf.mxu0
  %7662 = vmatprep.mubr.bf16.mxu0 0
  %7663 = vmatmul.mubr.bf16.gmra.mxu0 %v7520
  %v7664 = vpop.f32.mrf.mxu0
  %v7665 = vadd.f32 0.0, %v7664
  %v7666 = vpop.f32.mrf.mxu0
  %v7667 = vpop.f32.mrf.mxu0
  %v7668 = vadd.f32 0.0, %v7667
  %v7669 = vpop.f32.mrf.mxu0
  %7670 = vmatprep.mubr.bf16.mxu0 0
  %7671 = vmatmul.mubr.bf16.gmra.mxu0 %v7523
  %v7672 = vpop.f32.mrf.mxu0
  %v7673 = vadd.f32 0.0, %v7672
  %v7674 = vpop.f32.mrf.mxu0
  %v7675 = vpop.f32.mrf.mxu0
  %v7676 = vadd.f32 0.0, %v7675
  %v7677 = vpop.f32.mrf.mxu0
  %7678 = vmatprep.mubr.bf16.mxu0 0
  %7679 = vmatmul.mubr.bf16.gmra.mxu0 %v7526
  %v7680 = vpop.f32.mrf.mxu0
  %v7681 = vadd.f32 0.0, %v7680
  %v7682 = vpop.f32.mrf.mxu0
  %v7683 = vpop.f32.mrf.mxu0
  %v7684 = vadd.f32 0.0, %v7683
  %v7685 = vpop.f32.mrf.mxu0
  %7686 = vmatprep.mubr.bf16.mxu0 0
  %7687 = vmatmul.mubr.bf16.gmra.mxu0 %v7529
  %v7688 = vpop.f32.mrf.mxu0
  %v7689 = vadd.f32 0.0, %v7688
  %v7690 = vpop.f32.mrf.mxu0
  %v7691 = vpop.f32.mrf.mxu0
  %v7692 = vadd.f32 0.0, %v7691
  %v7693 = vpop.f32.mrf.mxu0
  %7694 = vdwg.mxu0
  %v7695 = vadd.f32 %v7402, %v7569
  %v7696 = vadd.f32 %v7403, %v7572
  %v7697 = vadd.f32 %v7404, %v7577
  %v7698 = vadd.f32 %v7405, %v7580
  %v7699 = vadd.f32 %v7406, %v7585
  %v7700 = vadd.f32 %v7407, %v7588
  %v7701 = vadd.f32 %v7408, %v7593
  %v7702 = vadd.f32 %v7409, %v7596
  %v7703 = vadd.f32 %v7410, %v7601
  %v7704 = vadd.f32 %v7411, %v7604
  %v7705 = vadd.f32 %v7412, %v7609
  %v7706 = vadd.f32 %v7413, %v7612
  %v7707 = vadd.f32 %v7414, %v7617
  %v7708 = vadd.f32 %v7415, %v7620
  %v7709 = vadd.f32 %v7416, %v7625
  %v7710 = vadd.f32 %v7417, %v7628
  %v7711 = vadd.f32 %v7418, %v7633
  %v7712 = vadd.f32 %v7419, %v7636
  %v7713 = vadd.f32 %v7420, %v7641
  %v7714 = vadd.f32 %v7421, %v7644
  %v7715 = vadd.f32 %v7422, %v7649
  %v7716 = vadd.f32 %v7423, %v7652
  %v7717 = vadd.f32 %v7424, %v7657
  %v7718 = vadd.f32 %v7425, %v7660
  %v7719 = vadd.f32 %v7426, %v7665
  %v7720 = vadd.f32 %v7427, %v7668
  %v7721 = vadd.f32 %v7428, %v7673
  %v7722 = vadd.f32 %v7429, %v7676
  %v7723 = vadd.f32 %v7430, %v7681
  %v7724 = vadd.f32 %v7431, %v7684
  %v7725 = vadd.f32 %v7432, %v7689
  %v7726 = vadd.f32 %v7433, %v7692
  %v7727 = vld [vmem:[%s1874 + $0x1] sm:$0xff]
  %v7728 = vld [vmem:[%s1874 + $0x9] sm:$0xff]
  %v7729 = vld [vmem:[%s1874 + $0x19] sm:$0xff]
  %v7730 = vld [vmem:[%s1874 + $0x21] sm:$0xff]
  %v7731 = vld [vmem:[%s1874 + $0x31] sm:$0xff]
  %v7732 = vld [vmem:[%s1874 + $0x39] sm:$0xff]
  %v7733 = vld [vmem:[%s1874 + $0x49] sm:$0xff]
  %v7734 = vld [vmem:[%s1874 + $0x51] sm:$0xff]
  %v7735 = vld [vmem:[%s1874 + $0x61] sm:$0xff]
  %v7736 = vld [vmem:[%s1874 + $0x69] sm:$0xff]
  %v7737 = vld [vmem:[%s1874 + $0x79] sm:$0xff]
  %v7738 = vld [vmem:[%s1874 + $0x81] sm:$0xff]
  %v7739 = vld [vmem:[%s1874 + $0x91] sm:$0xff]
  %v7740 = vld [vmem:[%s1874 + $0x99] sm:$0xff]
  %v7741 = vld [vmem:[%s1874 + $0xa9] sm:$0xff]
  %v7742 = vld [vmem:[%s1874 + $0xb1] sm:$0xff]
  %v7743 = vld [vmem:[%s1874 + $0xc1] sm:$0xff]
  %v7744 = vld [vmem:[%s1874 + $0xc9] sm:$0xff]
  %v7745 = vld [vmem:[%s1874 + $0xd9] sm:$0xff]
  %v7746 = vld [vmem:[%s1874 + $0xe1] sm:$0xff]
  %v7747 = vld [vmem:[%s1874 + $0xf1] sm:$0xff]
  %v7748 = vld [vmem:[%s1874 + $0xf9] sm:$0xff]
  %v7749 = vld [vmem:[%s1874 + $0x109] sm:$0xff]
  %v7750 = vld [vmem:[%s1874 + $0x111] sm:$0xff]
  %v7751 = vld [vmem:[%s1874 + $0x121] sm:$0xff]
  %v7752 = vld [vmem:[%s1874 + $0x129] sm:$0xff]
  %v7753 = vld [vmem:[%s1874 + $0x139] sm:$0xff]
  %v7754 = vld [vmem:[%s1874 + $0x141] sm:$0xff]
  %v7755 = vld [vmem:[%s1874 + $0x151] sm:$0xff]
  %v7756 = vld [vmem:[%s1874 + $0x159] sm:$0xff]
  %v7757 = vld [vmem:[%s1874 + $0x169] sm:$0xff]
  %v7758 = vld [vmem:[%s1874 + $0x171] sm:$0xff]
  %v7759 = vpack.c.bf16 %v7728, %v7727
  %v7760 = vpack.c.bf16 %v7730, %v7729
  %v7761 = vpack.c.bf16 %v7732, %v7731
  %v7762 = vpack.c.bf16 %v7734, %v7733
  %v7763 = vpack.c.bf16 %v7736, %v7735
  %v7764 = vpack.c.bf16 %v7738, %v7737
  %v7765 = vpack.c.bf16 %v7740, %v7739
  %v7766 = vpack.c.bf16 %v7742, %v7741
  %v7767 = vpack.c.bf16 %v7744, %v7743
  %v7768 = vpack.c.bf16 %v7746, %v7745
  %v7769 = vpack.c.bf16 %v7748, %v7747
  %v7770 = vpack.c.bf16 %v7750, %v7749
  %v7771 = vpack.c.bf16 %v7752, %v7751
  %v7772 = vpack.c.bf16 %v7754, %v7753
  %v7773 = vpack.c.bf16 %v7756, %v7755
  %v7774 = vpack.c.bf16 %v7758, %v7757
  %v7775 = vld [vmem:[%s2217] sm:$0x3]
  %v7777 = vsel %vm21, %v7759, 0
  %v7780 = vsel %vm21, %v7760, 0
  %v7783 = vsel %vm21, %v7761, 0
  %v7786 = vsel %vm21, %v7762, 0
  %v7789 = vsel %vm21, %v7763, 0
  %v7792 = vsel %vm21, %v7764, 0
  %v7795 = vsel %vm21, %v7765, 0
  %v7798 = vsel %vm21, %v7766, 0
  %v7801 = vsel %vm21, %v7767, 0
  %v7804 = vsel %vm21, %v7768, 0
  %v7807 = vsel %vm21, %v7769, 0
  %v7810 = vsel %vm21, %v7770, 0
  %v7813 = vsel %vm21, %v7771, 0
  %v7816 = vsel %vm21, %v7772, 0
  %v7819 = vsel %vm21, %v7773, 0
  %v7822 = vsel %vm21, %v7774, 0
  %v7825 = vand.u32 %v7775, %v321
  %7827 = vmatprep.subr.bf16.mxu0 0
  %7828 = vmatpush1.bf16.msra.mxu0 0
  %7829 = vmatprep.subr.bf16.mxu0 0
  %7830 = vmatpush1.bf16.msra.mxu0 0
  %7831 = vmatprep.subr.bf16.mxu0 0
  %7832 = vmatpush1.bf16.msra.mxu0 0
  %7833 = vmatprep.subr.bf16.mxu0 0
  %7834 = vmatpush1.bf16.msra.mxu0 0
  %7835 = vmatprep.subr.bf16.mxu0 0
  %7836 = vmatpush1.bf16.msra.mxu0 0
  %7837 = vmatprep.subr.bf16.mxu0 0
  %7838 = vmatpush1.bf16.msra.mxu0 0
  %7839 = vmatprep.subr.bf16.mxu0 0
  %7840 = vmatpush1.bf16.msra.mxu0 0
  %7841 = vmatprep.subr.bf16.mxu0 0
  %7842 = vmatpush1.bf16.msra.mxu0 %v7825
  %7843 = vmatprep.subr.bf16.mxu0 0
  %7844 = vmatpush2.bf16.msra.mxu0 0
  %7845 = vmatprep.subr.bf16.mxu0 0
  %7846 = vmatpush2.bf16.msra.mxu0 0
  %7847 = vmatprep.subr.bf16.mxu0 0
  %7848 = vmatpush2.bf16.msra.mxu0 0
  %7849 = vmatprep.subr.bf16.mxu0 0
  %7850 = vmatpush2.bf16.msra.mxu0 0
  %7851 = vmatprep.subr.bf16.mxu0 0
  %7852 = vmatpush2.bf16.msra.mxu0 0
  %7853 = vmatprep.subr.bf16.mxu0 0
  %7854 = vmatpush2.bf16.msra.mxu0 0
  %7855 = vmatprep.subr.bf16.mxu0 0
  %7856 = vmatpush2.bf16.msra.mxu0 0
  %7857 = vmatprep.subr.bf16.mxu0 0
  %7858 = vmatpush2.bf16.msra.mxu0 0
  %7859 = vmatprep.mubr.bf16.mxu0 0
  %7860 = vmatmul.mubr.bf16.gmra.mxu0 %v7777
  %v7861 = vpop.f32.mrf.mxu0
  %v7862 = vadd.f32 0.0, %v7861
  %v7863 = vpop.f32.mrf.mxu0
  %v7864 = vpop.f32.mrf.mxu0
  %v7865 = vadd.f32 0.0, %v7864
  %v7866 = vpop.f32.mrf.mxu0
  %7867 = vmatprep.mubr.bf16.mxu0 0
  %7868 = vmatmul.mubr.bf16.gmra.mxu0 %v7780
  %v7869 = vpop.f32.mrf.mxu0
  %v7870 = vadd.f32 0.0, %v7869
  %v7871 = vpop.f32.mrf.mxu0
  %v7872 = vpop.f32.mrf.mxu0
  %v7873 = vadd.f32 0.0, %v7872
  %v7874 = vpop.f32.mrf.mxu0
  %7875 = vmatprep.mubr.bf16.mxu0 0
  %7876 = vmatmul.mubr.bf16.gmra.mxu0 %v7783
  %v7877 = vpop.f32.mrf.mxu0
  %v7878 = vadd.f32 0.0, %v7877
  %v7879 = vpop.f32.mrf.mxu0
  %v7880 = vpop.f32.mrf.mxu0
  %v7881 = vadd.f32 0.0, %v7880
  %v7882 = vpop.f32.mrf.mxu0
  %7883 = vmatprep.mubr.bf16.mxu0 0
  %7884 = vmatmul.mubr.bf16.gmra.mxu0 %v7786
  %v7885 = vpop.f32.mrf.mxu0
  %v7886 = vadd.f32 0.0, %v7885
  %v7887 = vpop.f32.mrf.mxu0
  %v7888 = vpop.f32.mrf.mxu0
  %v7889 = vadd.f32 0.0, %v7888
  %v7890 = vpop.f32.mrf.mxu0
  %7891 = vmatprep.mubr.bf16.mxu0 0
  %7892 = vmatmul.mubr.bf16.gmra.mxu0 %v7789
  %v7893 = vpop.f32.mrf.mxu0
  %v7894 = vadd.f32 0.0, %v7893
  %v7895 = vpop.f32.mrf.mxu0
  %v7896 = vpop.f32.mrf.mxu0
  %v7897 = vadd.f32 0.0, %v7896
  %v7898 = vpop.f32.mrf.mxu0
  %7899 = vmatprep.mubr.bf16.mxu0 0
  %7900 = vmatmul.mubr.bf16.gmra.mxu0 %v7792
  %v7901 = vpop.f32.mrf.mxu0
  %v7902 = vadd.f32 0.0, %v7901
  %v7903 = vpop.f32.mrf.mxu0
  %v7904 = vpop.f32.mrf.mxu0
  %v7905 = vadd.f32 0.0, %v7904
  %v7906 = vpop.f32.mrf.mxu0
  %7907 = vmatprep.mubr.bf16.mxu0 0
  %7908 = vmatmul.mubr.bf16.gmra.mxu0 %v7795
  %v7909 = vpop.f32.mrf.mxu0
  %v7910 = vadd.f32 0.0, %v7909
  %v7911 = vpop.f32.mrf.mxu0
  %v7912 = vpop.f32.mrf.mxu0
  %v7913 = vadd.f32 0.0, %v7912
  %v7914 = vpop.f32.mrf.mxu0
  %7915 = vmatprep.mubr.bf16.mxu0 0
  %7916 = vmatmul.mubr.bf16.gmra.mxu0 %v7798
  %v7917 = vpop.f32.mrf.mxu0
  %v7918 = vadd.f32 0.0, %v7917
  %v7919 = vpop.f32.mrf.mxu0
  %v7920 = vpop.f32.mrf.mxu0
  %v7921 = vadd.f32 0.0, %v7920
  %v7922 = vpop.f32.mrf.mxu0
  %7923 = vmatprep.mubr.bf16.mxu0 0
  %7924 = vmatmul.mubr.bf16.gmra.mxu0 %v7801
  %v7925 = vpop.f32.mrf.mxu0
  %v7926 = vadd.f32 0.0, %v7925
  %v7927 = vpop.f32.mrf.mxu0
  %v7928 = vpop.f32.mrf.mxu0
  %v7929 = vadd.f32 0.0, %v7928
  %v7930 = vpop.f32.mrf.mxu0
  %7931 = vmatprep.mubr.bf16.mxu0 0
  %7932 = vmatmul.mubr.bf16.gmra.mxu0 %v7804
  %v7933 = vpop.f32.mrf.mxu0
  %v7934 = vadd.f32 0.0, %v7933
  %v7935 = vpop.f32.mrf.mxu0
  %v7936 = vpop.f32.mrf.mxu0
  %v7937 = vadd.f32 0.0, %v7936
  %v7938 = vpop.f32.mrf.mxu0
  %7939 = vmatprep.mubr.bf16.mxu0 0
  %7940 = vmatmul.mubr.bf16.gmra.mxu0 %v7807
  %v7941 = vpop.f32.mrf.mxu0
  %v7942 = vadd.f32 0.0, %v7941
  %v7943 = vpop.f32.mrf.mxu0
  %v7944 = vpop.f32.mrf.mxu0
  %v7945 = vadd.f32 0.0, %v7944
  %v7946 = vpop.f32.mrf.mxu0
  %7947 = vmatprep.mubr.bf16.mxu0 0
  %7948 = vmatmul.mubr.bf16.gmra.mxu0 %v7810
  %v7949 = vpop.f32.mrf.mxu0
  %v7950 = vadd.f32 0.0, %v7949
  %v7951 = vpop.f32.mrf.mxu0
  %v7952 = vpop.f32.mrf.mxu0
  %v7953 = vadd.f32 0.0, %v7952
  %v7954 = vpop.f32.mrf.mxu0
  %7955 = vmatprep.mubr.bf16.mxu0 0
  %7956 = vmatmul.mubr.bf16.gmra.mxu0 %v7813
  %v7957 = vpop.f32.mrf.mxu0
  %v7958 = vadd.f32 0.0, %v7957
  %v7959 = vpop.f32.mrf.mxu0
  %v7960 = vpop.f32.mrf.mxu0
  %v7961 = vadd.f32 0.0, %v7960
  %v7962 = vpop.f32.mrf.mxu0
  %7963 = vmatprep.mubr.bf16.mxu0 0
  %7964 = vmatmul.mubr.bf16.gmra.mxu0 %v7816
  %v7965 = vpop.f32.mrf.mxu0
  %v7966 = vadd.f32 0.0, %v7965
  %v7967 = vpop.f32.mrf.mxu0
  %v7968 = vpop.f32.mrf.mxu0
  %v7969 = vadd.f32 0.0, %v7968
  %v7970 = vpop.f32.mrf.mxu0
  %7971 = vmatprep.mubr.bf16.mxu0 0
  %7972 = vmatmul.mubr.bf16.gmra.mxu0 %v7819
  %v7973 = vpop.f32.mrf.mxu0
  %v7974 = vadd.f32 0.0, %v7973
  %v7975 = vpop.f32.mrf.mxu0
  %v7976 = vpop.f32.mrf.mxu0
  %v7977 = vadd.f32 0.0, %v7976
  %v7978 = vpop.f32.mrf.mxu0
  %7979 = vmatprep.mubr.bf16.mxu0 0
  %7980 = vmatmul.mubr.bf16.gmra.mxu0 %v7822
  %v7981 = vpop.f32.mrf.mxu0
  %v7982 = vadd.f32 0.0, %v7981
  %v7983 = vpop.f32.mrf.mxu0
  %v7984 = vpop.f32.mrf.mxu0
  %v7985 = vadd.f32 0.0, %v7984
  %v7986 = vpop.f32.mrf.mxu0
  %7987 = vdwg.mxu0
  %v7988 = vadd.f32 %v7695, %v7862
  %v7989 = vadd.f32 %v7696, %v7865
  %v7990 = vadd.f32 %v7697, %v7870
  %v7991 = vadd.f32 %v7698, %v7873
  %v7992 = vadd.f32 %v7699, %v7878
  %v7993 = vadd.f32 %v7700, %v7881
  %v7994 = vadd.f32 %v7701, %v7886
  %v7995 = vadd.f32 %v7702, %v7889
  %v7996 = vadd.f32 %v7703, %v7894
  %v7997 = vadd.f32 %v7704, %v7897
  %v7998 = vadd.f32 %v7705, %v7902
  %v7999 = vadd.f32 %v7706, %v7905
  %v8000 = vadd.f32 %v7707, %v7910
  %v8001 = vadd.f32 %v7708, %v7913
  %v8002 = vadd.f32 %v7709, %v7918
  %v8003 = vadd.f32 %v7710, %v7921
  %v8004 = vadd.f32 %v7711, %v7926
  %v8005 = vadd.f32 %v7712, %v7929
  %v8006 = vadd.f32 %v7713, %v7934
  %v8007 = vadd.f32 %v7714, %v7937
  %v8008 = vadd.f32 %v7715, %v7942
  %v8009 = vadd.f32 %v7716, %v7945
  %v8010 = vadd.f32 %v7717, %v7950
  %v8011 = vadd.f32 %v7718, %v7953
  %v8012 = vadd.f32 %v7719, %v7958
  %v8013 = vadd.f32 %v7720, %v7961
  %v8014 = vadd.f32 %v7721, %v7966
  %v8015 = vadd.f32 %v7722, %v7969
  %v8016 = vadd.f32 %v7723, %v7974
  %v8017 = vadd.f32 %v7724, %v7977
  %v8018 = vadd.f32 %v7725, %v7982
  %v8019 = vadd.f32 %v7726, %v7985
  %v8020 = vld [vmem:[%s1874 + $0x2] sm:$0xff]
  %v8021 = vld [vmem:[%s1874 + $0xa] sm:$0xff]
  %v8022 = vld [vmem:[%s1874 + $0x1a] sm:$0xff]
  %v8023 = vld [vmem:[%s1874 + $0x22] sm:$0xff]
  %v8024 = vld [vmem:[%s1874 + $0x32] sm:$0xff]
  %v8025 = vld [vmem:[%s1874 + $0x3a] sm:$0xff]
  %v8026 = vld [vmem:[%s1874 + $0x4a] sm:$0xff]
  %v8027 = vld [vmem:[%s1874 + $0x52] sm:$0xff]
  %v8028 = vld [vmem:[%s1874 + $0x62] sm:$0xff]
  %v8029 = vld [vmem:[%s1874 + $0x6a] sm:$0xff]
  %v8030 = vld [vmem:[%s1874 + $0x7a] sm:$0xff]
  %v8031 = vld [vmem:[%s1874 + $0x82] sm:$0xff]
  %v8032 = vld [vmem:[%s1874 + $0x92] sm:$0xff]
  %v8033 = vld [vmem:[%s1874 + $0x9a] sm:$0xff]
  %v8034 = vld [vmem:[%s1874 + $0xaa] sm:$0xff]
  %v8035 = vld [vmem:[%s1874 + $0xb2] sm:$0xff]
  %v8036 = vld [vmem:[%s1874 + $0xc2] sm:$0xff]
  %v8037 = vld [vmem:[%s1874 + $0xca] sm:$0xff]
  %v8038 = vld [vmem:[%s1874 + $0xda] sm:$0xff]
  %v8039 = vld [vmem:[%s1874 + $0xe2] sm:$0xff]
  %v8040 = vld [vmem:[%s1874 + $0xf2] sm:$0xff]
  %v8041 = vld [vmem:[%s1874 + $0xfa] sm:$0xff]
  %v8042 = vld [vmem:[%s1874 + $0x10a] sm:$0xff]
  %v8043 = vld [vmem:[%s1874 + $0x112] sm:$0xff]
  %v8044 = vld [vmem:[%s1874 + $0x122] sm:$0xff]
  %v8045 = vld [vmem:[%s1874 + $0x12a] sm:$0xff]
  %v8046 = vld [vmem:[%s1874 + $0x13a] sm:$0xff]
  %v8047 = vld [vmem:[%s1874 + $0x142] sm:$0xff]
  %v8048 = vld [vmem:[%s1874 + $0x152] sm:$0xff]
  %v8049 = vld [vmem:[%s1874 + $0x15a] sm:$0xff]
  %v8050 = vld [vmem:[%s1874 + $0x16a] sm:$0xff]
  %v8051 = vld [vmem:[%s1874 + $0x172] sm:$0xff]
  %v8052 = vpack.c.bf16 %v8021, %v8020
  %v8053 = vpack.c.bf16 %v8023, %v8022
  %v8054 = vpack.c.bf16 %v8025, %v8024
  %v8055 = vpack.c.bf16 %v8027, %v8026
  %v8056 = vpack.c.bf16 %v8029, %v8028
  %v8057 = vpack.c.bf16 %v8031, %v8030
  %v8058 = vpack.c.bf16 %v8033, %v8032
  %v8059 = vpack.c.bf16 %v8035, %v8034
  %v8060 = vpack.c.bf16 %v8037, %v8036
  %v8061 = vpack.c.bf16 %v8039, %v8038
  %v8062 = vpack.c.bf16 %v8041, %v8040
  %v8063 = vpack.c.bf16 %v8043, %v8042
  %v8064 = vpack.c.bf16 %v8045, %v8044
  %v8065 = vpack.c.bf16 %v8047, %v8046
  %v8066 = vpack.c.bf16 %v8049, %v8048
  %v8067 = vpack.c.bf16 %v8051, %v8050
  %v8068 = vld [vmem:[%s2511] sm:$0x3]
  %v8070 = vsel %vm21, %v8052, 0
  %v8073 = vsel %vm21, %v8053, 0
  %v8076 = vsel %vm21, %v8054, 0
  %v8079 = vsel %vm21, %v8055, 0
  %v8082 = vsel %vm21, %v8056, 0
  %v8085 = vsel %vm21, %v8057, 0
  %v8088 = vsel %vm21, %v8058, 0
  %v8091 = vsel %vm21, %v8059, 0
  %v8094 = vsel %vm21, %v8060, 0
  %v8097 = vsel %vm21, %v8061, 0
  %v8100 = vsel %vm21, %v8062, 0
  %v8103 = vsel %vm21, %v8063, 0
  %v8106 = vsel %vm21, %v8064, 0
  %v8109 = vsel %vm21, %v8065, 0
  %v8112 = vsel %vm21, %v8066, 0
  %v8115 = vsel %vm21, %v8067, 0
  %v8118 = vand.u32 %v8068, %v321
  %8120 = vmatprep.subr.bf16.mxu0 0
  %8121 = vmatpush1.bf16.msra.mxu0 0
  %8122 = vmatprep.subr.bf16.mxu0 0
  %8123 = vmatpush1.bf16.msra.mxu0 0
  %8124 = vmatprep.subr.bf16.mxu0 0
  %8125 = vmatpush1.bf16.msra.mxu0 0
  %8126 = vmatprep.subr.bf16.mxu0 0
  %8127 = vmatpush1.bf16.msra.mxu0 0
  %8128 = vmatprep.subr.bf16.mxu0 0
  %8129 = vmatpush1.bf16.msra.mxu0 0
  %8130 = vmatprep.subr.bf16.mxu0 0
  %8131 = vmatpush1.bf16.msra.mxu0 0
  %8132 = vmatprep.subr.bf16.mxu0 0
  %8133 = vmatpush1.bf16.msra.mxu0 0
  %8134 = vmatprep.subr.bf16.mxu0 0
  %8135 = vmatpush1.bf16.msra.mxu0 %v8118
  %8136 = vmatprep.subr.bf16.mxu0 0
  %8137 = vmatpush2.bf16.msra.mxu0 0
  %8138 = vmatprep.subr.bf16.mxu0 0
  %8139 = vmatpush2.bf16.msra.mxu0 0
  %8140 = vmatprep.subr.bf16.mxu0 0
  %8141 = vmatpush2.bf16.msra.mxu0 0
  %8142 = vmatprep.subr.bf16.mxu0 0
  %8143 = vmatpush2.bf16.msra.mxu0 0
  %8144 = vmatprep.subr.bf16.mxu0 0
  %8145 = vmatpush2.bf16.msra.mxu0 0
  %8146 = vmatprep.subr.bf16.mxu0 0
  %8147 = vmatpush2.bf16.msra.mxu0 0
  %8148 = vmatprep.subr.bf16.mxu0 0
  %8149 = vmatpush2.bf16.msra.mxu0 0
  %8150 = vmatprep.subr.bf16.mxu0 0
  %8151 = vmatpush2.bf16.msra.mxu0 0
  %8152 = vmatprep.mubr.bf16.mxu0 0
  %8153 = vmatmul.mubr.bf16.gmra.mxu0 %v8070
  %v8154 = vpop.f32.mrf.mxu0
  %v8155 = vadd.f32 0.0, %v8154
  %v8156 = vpop.f32.mrf.mxu0
  %v8157 = vpop.f32.mrf.mxu0
  %v8158 = vadd.f32 0.0, %v8157
  %v8159 = vpop.f32.mrf.mxu0
  %8160 = vmatprep.mubr.bf16.mxu0 0
  %8161 = vmatmul.mubr.bf16.gmra.mxu0 %v8073
  %v8162 = vpop.f32.mrf.mxu0
  %v8163 = vadd.f32 0.0, %v8162
  %v8164 = vpop.f32.mrf.mxu0
  %v8165 = vpop.f32.mrf.mxu0
  %v8166 = vadd.f32 0.0, %v8165
  %v8167 = vpop.f32.mrf.mxu0
  %8168 = vmatprep.mubr.bf16.mxu0 0
  %8169 = vmatmul.mubr.bf16.gmra.mxu0 %v8076
  %v8170 = vpop.f32.mrf.mxu0
  %v8171 = vadd.f32 0.0, %v8170
  %v8172 = vpop.f32.mrf.mxu0
  %v8173 = vpop.f32.mrf.mxu0
  %v8174 = vadd.f32 0.0, %v8173
  %v8175 = vpop.f32.mrf.mxu0
  %8176 = vmatprep.mubr.bf16.mxu0 0
  %8177 = vmatmul.mubr.bf16.gmra.mxu0 %v8079
  %v8178 = vpop.f32.mrf.mxu0
  %v8179 = vadd.f32 0.0, %v8178
  %v8180 = vpop.f32.mrf.mxu0
  %v8181 = vpop.f32.mrf.mxu0
  %v8182 = vadd.f32 0.0, %v8181
  %v8183 = vpop.f32.mrf.mxu0
  %8184 = vmatprep.mubr.bf16.mxu0 0
  %8185 = vmatmul.mubr.bf16.gmra.mxu0 %v8082
  %v8186 = vpop.f32.mrf.mxu0
  %v8187 = vadd.f32 0.0, %v8186
  %v8188 = vpop.f32.mrf.mxu0
  %v8189 = vpop.f32.mrf.mxu0
  %v8190 = vadd.f32 0.0, %v8189
  %v8191 = vpop.f32.mrf.mxu0
  %8192 = vmatprep.mubr.bf16.mxu0 0
  %8193 = vmatmul.mubr.bf16.gmra.mxu0 %v8085
  %v8194 = vpop.f32.mrf.mxu0
  %v8195 = vadd.f32 0.0, %v8194
  %v8196 = vpop.f32.mrf.mxu0
  %v8197 = vpop.f32.mrf.mxu0
  %v8198 = vadd.f32 0.0, %v8197
  %v8199 = vpop.f32.mrf.mxu0
  %8200 = vmatprep.mubr.bf16.mxu0 0
  %8201 = vmatmul.mubr.bf16.gmra.mxu0 %v8088
  %v8202 = vpop.f32.mrf.mxu0
  %v8203 = vadd.f32 0.0, %v8202
  %v8204 = vpop.f32.mrf.mxu0
  %v8205 = vpop.f32.mrf.mxu0
  %v8206 = vadd.f32 0.0, %v8205
  %v8207 = vpop.f32.mrf.mxu0
  %8208 = vmatprep.mubr.bf16.mxu0 0
  %8209 = vmatmul.mubr.bf16.gmra.mxu0 %v8091
  %v8210 = vpop.f32.mrf.mxu0
  %v8211 = vadd.f32 0.0, %v8210
  %v8212 = vpop.f32.mrf.mxu0
  %v8213 = vpop.f32.mrf.mxu0
  %v8214 = vadd.f32 0.0, %v8213
  %v8215 = vpop.f32.mrf.mxu0
  %8216 = vmatprep.mubr.bf16.mxu0 0
  %8217 = vmatmul.mubr.bf16.gmra.mxu0 %v8094
  %v8218 = vpop.f32.mrf.mxu0
  %v8219 = vadd.f32 0.0, %v8218
  %v8220 = vpop.f32.mrf.mxu0
  %v8221 = vpop.f32.mrf.mxu0
  %v8222 = vadd.f32 0.0, %v8221
  %v8223 = vpop.f32.mrf.mxu0
  %8224 = vmatprep.mubr.bf16.mxu0 0
  %8225 = vmatmul.mubr.bf16.gmra.mxu0 %v8097
  %v8226 = vpop.f32.mrf.mxu0
  %v8227 = vadd.f32 0.0, %v8226
  %v8228 = vpop.f32.mrf.mxu0
  %v8229 = vpop.f32.mrf.mxu0
  %v8230 = vadd.f32 0.0, %v8229
  %v8231 = vpop.f32.mrf.mxu0
  %8232 = vmatprep.mubr.bf16.mxu0 0
  %8233 = vmatmul.mubr.bf16.gmra.mxu0 %v8100
  %v8234 = vpop.f32.mrf.mxu0
  %v8235 = vadd.f32 0.0, %v8234
  %v8236 = vpop.f32.mrf.mxu0
  %v8237 = vpop.f32.mrf.mxu0
  %v8238 = vadd.f32 0.0, %v8237
  %v8239 = vpop.f32.mrf.mxu0
  %8240 = vmatprep.mubr.bf16.mxu0 0
  %8241 = vmatmul.mubr.bf16.gmra.mxu0 %v8103
  %v8242 = vpop.f32.mrf.mxu0
  %v8243 = vadd.f32 0.0, %v8242
  %v8244 = vpop.f32.mrf.mxu0
  %v8245 = vpop.f32.mrf.mxu0
  %v8246 = vadd.f32 0.0, %v8245
  %v8247 = vpop.f32.mrf.mxu0
  %8248 = vmatprep.mubr.bf16.mxu0 0
  %8249 = vmatmul.mubr.bf16.gmra.mxu0 %v8106
  %v8250 = vpop.f32.mrf.mxu0
  %v8251 = vadd.f32 0.0, %v8250
  %v8252 = vpop.f32.mrf.mxu0
  %v8253 = vpop.f32.mrf.mxu0
  %v8254 = vadd.f32 0.0, %v8253
  %v8255 = vpop.f32.mrf.mxu0
  %8256 = vmatprep.mubr.bf16.mxu0 0
  %8257 = vmatmul.mubr.bf16.gmra.mxu0 %v8109
  %v8258 = vpop.f32.mrf.mxu0
  %v8259 = vadd.f32 0.0, %v8258
  %v8260 = vpop.f32.mrf.mxu0
  %v8261 = vpop.f32.mrf.mxu0
  %v8262 = vadd.f32 0.0, %v8261
  %v8263 = vpop.f32.mrf.mxu0
  %8264 = vmatprep.mubr.bf16.mxu0 0
  %8265 = vmatmul.mubr.bf16.gmra.mxu0 %v8112
  %v8266 = vpop.f32.mrf.mxu0
  %v8267 = vadd.f32 0.0, %v8266
  %v8268 = vpop.f32.mrf.mxu0
  %v8269 = vpop.f32.mrf.mxu0
  %v8270 = vadd.f32 0.0, %v8269
  %v8271 = vpop.f32.mrf.mxu0
  %8272 = vmatprep.mubr.bf16.mxu0 0
  %8273 = vmatmul.mubr.bf16.gmra.mxu0 %v8115
  %v8274 = vpop.f32.mrf.mxu0
  %v8275 = vadd.f32 0.0, %v8274
  %v8276 = vpop.f32.mrf.mxu0
  %v8277 = vpop.f32.mrf.mxu0
  %v8278 = vadd.f32 0.0, %v8277
  %v8279 = vpop.f32.mrf.mxu0
  %8280 = vdwg.mxu0
  %v8281 = vadd.f32 %v7988, %v8155
  %v8282 = vadd.f32 %v7989, %v8158
  %v8283 = vadd.f32 %v7990, %v8163
  %v8284 = vadd.f32 %v7991, %v8166
  %v8285 = vadd.f32 %v7992, %v8171
  %v8286 = vadd.f32 %v7993, %v8174
  %v8287 = vadd.f32 %v7994, %v8179
  %v8288 = vadd.f32 %v7995, %v8182
  %v8289 = vadd.f32 %v7996, %v8187
  %v8290 = vadd.f32 %v7997, %v8190
  %v8291 = vadd.f32 %v7998, %v8195
  %v8292 = vadd.f32 %v7999, %v8198
  %v8293 = vadd.f32 %v8000, %v8203
  %v8294 = vadd.f32 %v8001, %v8206
  %v8295 = vadd.f32 %v8002, %v8211
  %v8296 = vadd.f32 %v8003, %v8214
  %v8297 = vadd.f32 %v8004, %v8219
  %v8298 = vadd.f32 %v8005, %v8222
  %v8299 = vadd.f32 %v8006, %v8227
  %v8300 = vadd.f32 %v8007, %v8230
  %v8301 = vadd.f32 %v8008, %v8235
  %v8302 = vadd.f32 %v8009, %v8238
  %v8303 = vadd.f32 %v8010, %v8243
  %v8304 = vadd.f32 %v8011, %v8246
  %v8305 = vadd.f32 %v8012, %v8251
  %v8306 = vadd.f32 %v8013, %v8254
  %v8307 = vadd.f32 %v8014, %v8259
  %v8308 = vadd.f32 %v8015, %v8262
  %v8309 = vadd.f32 %v8016, %v8267
  %v8310 = vadd.f32 %v8017, %v8270
  %v8311 = vadd.f32 %v8018, %v8275
  %v8312 = vadd.f32 %v8019, %v8278
  %v8313 = vld [vmem:[%s2] sm:$0x1]
  %v8315 = vlaneseq
  %v8316 = vshrl.u32 %v8315, 7
  %v8317 = vsub.s32 0, %v8316
  %v8318 = vrot.slane %v8313, %v8317
  %v8320 = vadd.f32 %v8281, %v8318
  %v8321 = vadd.f32 %v8282, %v8318
  %v8322 = vadd.f32 %v8283, %v8318
  %v8323 = vadd.f32 %v8284, %v8318
  %v8324 = vadd.f32 %v8285, %v8318
  %v8325 = vadd.f32 %v8286, %v8318
  %v8326 = vadd.f32 %v8287, %v8318
  %v8327 = vadd.f32 %v8288, %v8318
  %v8328 = vadd.f32 %v8289, %v8318
  %v8329 = vadd.f32 %v8290, %v8318
  %v8330 = vadd.f32 %v8291, %v8318
  %v8331 = vadd.f32 %v8292, %v8318
  %v8332 = vadd.f32 %v8293, %v8318
  %v8333 = vadd.f32 %v8294, %v8318
  %v8334 = vadd.f32 %v8295, %v8318
  %v8335 = vadd.f32 %v8296, %v8318
  %v8336 = vadd.f32 %v8297, %v8318
  %v8337 = vadd.f32 %v8298, %v8318
  %v8338 = vadd.f32 %v8299, %v8318
  %v8339 = vadd.f32 %v8300, %v8318
  %v8340 = vadd.f32 %v8301, %v8318
  %v8341 = vadd.f32 %v8302, %v8318
  %v8342 = vadd.f32 %v8303, %v8318
  %v8343 = vadd.f32 %v8304, %v8318
  %v8344 = vadd.f32 %v8305, %v8318
  %v8345 = vadd.f32 %v8306, %v8318
  %v8346 = vadd.f32 %v8307, %v8318
  %v8347 = vadd.f32 %v8308, %v8318
  %v8348 = vadd.f32 %v8309, %v8318
  %v8349 = vadd.f32 %v8310, %v8318
  %v8350 = vadd.f32 %v8311, %v8318
  %v8351 = vadd.f32 %v8312, %v8318
  %v8352 = vmax.f32 %v8320, 0.0
  %v8353 = vmax.f32 %v8321, 0.0
  %v8354 = vmax.f32 %v8322, 0.0
  %v8355 = vmax.f32 %v8323, 0.0
  %v8356 = vmax.f32 %v8324, 0.0
  %v8357 = vmax.f32 %v8325, 0.0
  %v8358 = vmax.f32 %v8326, 0.0
  %v8359 = vmax.f32 %v8327, 0.0
  %v8360 = vmax.f32 %v8328, 0.0
  %v8361 = vmax.f32 %v8329, 0.0
  %v8362 = vmax.f32 %v8330, 0.0
  %v8363 = vmax.f32 %v8331, 0.0
  %v8364 = vmax.f32 %v8332, 0.0
  %v8365 = vmax.f32 %v8333, 0.0
  %v8366 = vmax.f32 %v8334, 0.0
  %v8367 = vmax.f32 %v8335, 0.0
  %v8368 = vmax.f32 %v8336, 0.0
  %v8369 = vmax.f32 %v8337, 0.0
  %v8370 = vmax.f32 %v8338, 0.0
  %v8371 = vmax.f32 %v8339, 0.0
  %v8372 = vmax.f32 %v8340, 0.0
  %v8373 = vmax.f32 %v8341, 0.0
  %v8374 = vmax.f32 %v8342, 0.0
  %v8375 = vmax.f32 %v8343, 0.0
  %v8376 = vmax.f32 %v8344, 0.0
  %v8377 = vmax.f32 %v8345, 0.0
  %v8378 = vmax.f32 %v8346, 0.0
  %v8379 = vmax.f32 %v8347, 0.0
  %v8380 = vmax.f32 %v8348, 0.0
  %v8381 = vmax.f32 %v8349, 0.0
  %v8382 = vmax.f32 %v8350, 0.0
  %v8383 = vmax.f32 %v8351, 0.0
  %8384 = vst.msk [vmem:[%s73 + $0x1] sm:$0xff] %vm64, %v8352
  %8385 = vst.msk [vmem:[%s73 + $0x9] sm:$0xff] %vm64, %v8353
  %8386 = vst.msk [vmem:[%s73 + $0x19] sm:$0xff] %vm64, %v8354
  %8387 = vst.msk [vmem:[%s73 + $0x21] sm:$0xff] %vm64, %v8355
  %8388 = vst.msk [vmem:[%s73 + $0x31] sm:$0xff] %vm64, %v8356
  %8389 = vst.msk [vmem:[%s73 + $0x39] sm:$0xff] %vm64, %v8357
  %8390 = vst.msk [vmem:[%s73 + $0x49] sm:$0xff] %vm64, %v8358
  %8391 = vst.msk [vmem:[%s73 + $0x51] sm:$0xff] %vm64, %v8359
  %8392 = vst.msk [vmem:[%s73 + $0x61] sm:$0xff] %vm64, %v8360
  %8393 = vst.msk [vmem:[%s73 + $0x69] sm:$0xff] %vm64, %v8361
  %8394 = vst.msk [vmem:[%s73 + $0x79] sm:$0xff] %vm64, %v8362
  %8395 = vst.msk [vmem:[%s73 + $0x81] sm:$0xff] %vm64, %v8363
  %8396 = vst.msk [vmem:[%s73 + $0x91] sm:$0xff] %vm64, %v8364
  %8397 = vst.msk [vmem:[%s73 + $0x99] sm:$0xff] %vm64, %v8365
  %8398 = vst.msk [vmem:[%s73 + $0xa9] sm:$0xff] %vm64, %v8366
  %8399 = vst.msk [vmem:[%s73 + $0xb1] sm:$0xff] %vm64, %v8367
  %8400 = vst.msk [vmem:[%s73 + $0xc1] sm:$0xff] %vm64, %v8368
  %8401 = vst.msk [vmem:[%s73 + $0xc9] sm:$0xff] %vm64, %v8369
  %8402 = vst.msk [vmem:[%s73 + $0xd9] sm:$0xff] %vm64, %v8370
  %8403 = vst.msk [vmem:[%s73 + $0xe1] sm:$0xff] %vm64, %v8371
  %8404 = vst.msk [vmem:[%s73 + $0xf1] sm:$0xff] %vm64, %v8372
  %8405 = vst.msk [vmem:[%s73 + $0xf9] sm:$0xff] %vm64, %v8373
  %8406 = vst.msk [vmem:[%s73 + $0x109] sm:$0xff] %vm64, %v8374
  %8407 = vst.msk [vmem:[%s73 + $0x111] sm:$0xff] %vm64, %v8375
  %8408 = vst.msk [vmem:[%s73 + $0x121] sm:$0xff] %vm64, %v8376
  %8409 = vst.msk [vmem:[%s73 + $0x129] sm:$0xff] %vm64, %v8377
  %8410 = vst.msk [vmem:[%s73 + $0x139] sm:$0xff] %vm64, %v8378
  %8411 = vst.msk [vmem:[%s73 + $0x141] sm:$0xff] %vm64, %v8379
  %8412 = vst.msk [vmem:[%s73 + $0x151] sm:$0xff] %vm64, %v8380
  %8413 = vst.msk [vmem:[%s73 + $0x159] sm:$0xff] %vm64, %v8381
  %8414 = vst.msk [vmem:[%s73 + $0x169] sm:$0xff] %vm64, %v8382
  %8415 = vst.msk [vmem:[%s73 + $0x171] sm:$0xff] %vm64, %v8383
  %v8416 = vld [vmem:[#allocation3] sm:$0xff]
  %v8417 = vld [vmem:[#allocation3 + $0x8] sm:$0xff]
  %v8418 = vld [vmem:[#allocation3 + $0x18] sm:$0xff]
  %v8419 = vld [vmem:[#allocation3 + $0x20] sm:$0xff]
  %v8420 = vld [vmem:[#allocation3 + $0x30] sm:$0xff]
  %v8421 = vld [vmem:[#allocation3 + $0x38] sm:$0xff]
  %v8422 = vld [vmem:[#allocation3 + $0x48] sm:$0xff]
  %v8423 = vld [vmem:[#allocation3 + $0x50] sm:$0xff]
  %v8424 = vld [vmem:[#allocation3 + $0x60] sm:$0xff]
  %v8425 = vld [vmem:[#allocation3 + $0x68] sm:$0xff]
  %v8426 = vld [vmem:[#allocation3 + $0x78] sm:$0xff]
  %v8427 = vld [vmem:[#allocation3 + $0x80] sm:$0xff]
  %v8428 = vld [vmem:[#allocation3 + $0x90] sm:$0xff]
  %v8429 = vld [vmem:[#allocation3 + $0x98] sm:$0xff]
  %v8430 = vld [vmem:[#allocation3 + $0xa8] sm:$0xff]
  %v8431 = vld [vmem:[#allocation3 + $0xb0] sm:$0xff]
  %v8432 = vld [vmem:[#allocation3 + $0xc0] sm:$0xff]
  %v8433 = vld [vmem:[#allocation3 + $0xc8] sm:$0xff]
  %v8434 = vld [vmem:[#allocation3 + $0xd8] sm:$0xff]
  %v8435 = vld [vmem:[#allocation3 + $0xe0] sm:$0xff]
  %v8436 = vld [vmem:[#allocation3 + $0xf0] sm:$0xff]
  %v8437 = vld [vmem:[#allocation3 + $0xf8] sm:$0xff]
  %v8438 = vld [vmem:[#allocation3 + $0x108] sm:$0xff]
  %v8439 = vld [vmem:[#allocation3 + $0x110] sm:$0xff]
  %v8440 = vld [vmem:[#allocation3 + $0x120] sm:$0xff]
  %v8441 = vld [vmem:[#allocation3 + $0x128] sm:$0xff]
  %v8442 = vld [vmem:[#allocation3 + $0x138] sm:$0xff]
  %v8443 = vld [vmem:[#allocation3 + $0x140] sm:$0xff]
  %v8444 = vld [vmem:[#allocation3 + $0x150] sm:$0xff]
  %v8445 = vld [vmem:[#allocation3 + $0x158] sm:$0xff]
  %v8446 = vld [vmem:[#allocation3 + $0x168] sm:$0xff]
  %v8447 = vld [vmem:[#allocation3 + $0x170] sm:$0xff]
  %v8448 = vpack.c.bf16 %v8417, %v8416
  %v8449 = vpack.c.bf16 %v8419, %v8418
  %v8450 = vpack.c.bf16 %v8421, %v8420
  %v8451 = vpack.c.bf16 %v8423, %v8422
  %v8452 = vpack.c.bf16 %v8425, %v8424
  %v8453 = vpack.c.bf16 %v8427, %v8426
  %v8454 = vpack.c.bf16 %v8429, %v8428
  %v8455 = vpack.c.bf16 %v8431, %v8430
  %v8456 = vpack.c.bf16 %v8433, %v8432
  %v8457 = vpack.c.bf16 %v8435, %v8434
  %v8458 = vpack.c.bf16 %v8437, %v8436
  %v8459 = vpack.c.bf16 %v8439, %v8438
  %v8460 = vpack.c.bf16 %v8441, %v8440
  %v8461 = vpack.c.bf16 %v8443, %v8442
  %v8462 = vpack.c.bf16 %v8445, %v8444
  %v8463 = vpack.c.bf16 %v8447, %v8446
  %v8464 = vld [vmem:[%s3] sm:$0xf]
  %v8465 = vld [vmem:[#allocation3 + $0x1] sm:$0xff]
  %v8466 = vld [vmem:[#allocation3 + $0x9] sm:$0xff]
  %v8467 = vld [vmem:[#allocation3 + $0x19] sm:$0xff]
  %v8468 = vld [vmem:[#allocation3 + $0x21] sm:$0xff]
  %v8469 = vld [vmem:[#allocation3 + $0x31] sm:$0xff]
  %v8470 = vld [vmem:[#allocation3 + $0x39] sm:$0xff]
  %v8471 = vld [vmem:[#allocation3 + $0x49] sm:$0xff]
  %v8472 = vld [vmem:[#allocation3 + $0x51] sm:$0xff]
  %v8473 = vld [vmem:[#allocation3 + $0x61] sm:$0xff]
  %v8474 = vld [vmem:[#allocation3 + $0x69] sm:$0xff]
  %v8475 = vld [vmem:[#allocation3 + $0x79] sm:$0xff]
  %v8476 = vld [vmem:[#allocation3 + $0x81] sm:$0xff]
  %v8477 = vld [vmem:[#allocation3 + $0x91] sm:$0xff]
  %v8478 = vld [vmem:[#allocation3 + $0x99] sm:$0xff]
  %v8479 = vld [vmem:[#allocation3 + $0xa9] sm:$0xff]
  %v8480 = vld [vmem:[#allocation3 + $0xb1] sm:$0xff]
  %v8481 = vld [vmem:[#allocation3 + $0xc1] sm:$0xff]
  %v8482 = vld [vmem:[#allocation3 + $0xc9] sm:$0xff]
  %v8483 = vld [vmem:[#allocation3 + $0xd9] sm:$0xff]
  %v8484 = vld [vmem:[#allocation3 + $0xe1] sm:$0xff]
  %v8485 = vld [vmem:[#allocation3 + $0xf1] sm:$0xff]
  %v8486 = vld [vmem:[#allocation3 + $0xf9] sm:$0xff]
  %v8487 = vld [vmem:[#allocation3 + $0x109] sm:$0xff]
  %v8488 = vld [vmem:[#allocation3 + $0x111] sm:$0xff]
  %v8489 = vld [vmem:[#allocation3 + $0x121] sm:$0xff]
  %v8490 = vld [vmem:[#allocation3 + $0x129] sm:$0xff]
  %v8491 = vld [vmem:[#allocation3 + $0x139] sm:$0xff]
  %v8492 = vld [vmem:[#allocation3 + $0x141] sm:$0xff]
  %v8493 = vld [vmem:[#allocation3 + $0x151] sm:$0xff]
  %v8494 = vld [vmem:[#allocation3 + $0x159] sm:$0xff]
  %v8495 = vld [vmem:[#allocation3 + $0x169] sm:$0xff]
  %v8496 = vld [vmem:[#allocation3 + $0x171] sm:$0xff]
  %v8497 = vpack.c.bf16 %v8466, %v8465
  %v8498 = vpack.c.bf16 %v8468, %v8467
  %v8499 = vpack.c.bf16 %v8470, %v8469
  %v8500 = vpack.c.bf16 %v8472, %v8471
  %v8501 = vpack.c.bf16 %v8474, %v8473
  %v8502 = vpack.c.bf16 %v8476, %v8475
  %v8503 = vpack.c.bf16 %v8478, %v8477
  %v8504 = vpack.c.bf16 %v8480, %v8479
  %v8505 = vpack.c.bf16 %v8482, %v8481
  %v8506 = vpack.c.bf16 %v8484, %v8483
  %v8507 = vpack.c.bf16 %v8486, %v8485
  %v8508 = vpack.c.bf16 %v8488, %v8487
  %v8509 = vpack.c.bf16 %v8490, %v8489
  %v8510 = vpack.c.bf16 %v8492, %v8491
  %v8511 = vpack.c.bf16 %v8494, %v8493
  %v8512 = vpack.c.bf16 %v8496, %v8495
  %v8513 = vld [vmem:[%s2957] sm:$0xf]
  %v8515 = vsel %vm64, %v8497, 0
  %v8518 = vsel %vm64, %v8498, 0
  %v8521 = vsel %vm64, %v8499, 0
  %v8524 = vsel %vm64, %v8500, 0
  %v8527 = vsel %vm64, %v8501, 0
  %v8530 = vsel %vm64, %v8502, 0
  %v8533 = vsel %vm64, %v8503, 0
  %v8536 = vsel %vm64, %v8504, 0
  %v8539 = vsel %vm64, %v8505, 0
  %v8542 = vsel %vm64, %v8506, 0
  %v8545 = vsel %vm64, %v8507, 0
  %v8548 = vsel %vm64, %v8508, 0
  %v8551 = vsel %vm64, %v8509, 0
  %v8554 = vsel %vm64, %v8510, 0
  %v8557 = vsel %vm64, %v8511, 0
  %v8560 = vsel %vm64, %v8512, 0
  %v8563 = vsel %vm3007, %v8513, 0
  %8565 = vmatprep.subr.bf16.mxu0 0
  %8566 = vmatpush1.bf16.msra.mxu0 0
  %8567 = vmatprep.subr.bf16.mxu0 0
  %8568 = vmatpush1.bf16.msra.mxu0 0
  %8569 = vmatprep.subr.bf16.mxu0 0
  %8570 = vmatpush1.bf16.msra.mxu0 0
  %8571 = vmatprep.subr.bf16.mxu0 0
  %8572 = vmatpush1.bf16.msra.mxu0 0
  %8573 = vmatprep.subr.bf16.mxu0 0
  %8574 = vmatpush1.bf16.msra.mxu0 0
  %8575 = vmatprep.subr.bf16.mxu0 0
  %8576 = vmatpush1.bf16.msra.mxu0 0
  %8577 = vmatprep.subr.bf16.mxu0 0
  %8578 = vmatpush1.bf16.msra.mxu0 0
  %8579 = vmatprep.subr.bf16.mxu0 0
  %8580 = vmatpush1.bf16.msra.mxu0 %v8563
  %8581 = vmatprep.subr.bf16.mxu0 0
  %8582 = vmatpush2.bf16.msra.mxu0 0
  %8583 = vmatprep.subr.bf16.mxu0 0
  %8584 = vmatpush2.bf16.msra.mxu0 0
  %8585 = vmatprep.subr.bf16.mxu0 0
  %8586 = vmatpush2.bf16.msra.mxu0 0
  %8587 = vmatprep.subr.bf16.mxu0 0
  %8588 = vmatpush2.bf16.msra.mxu0 0
  %8589 = vmatprep.subr.bf16.mxu0 0
  %8590 = vmatpush2.bf16.msra.mxu0 0
  %8591 = vmatprep.subr.bf16.mxu0 0
  %8592 = vmatpush2.bf16.msra.mxu0 0
  %8593 = vmatprep.subr.bf16.mxu0 0
  %8594 = vmatpush2.bf16.msra.mxu0 0
  %8595 = vmatprep.subr.bf16.mxu0 0
  %8596 = vmatpush2.bf16.msra.mxu0 0
  %8597 = vmatprep.mubr.bf16.mxu0 0
  %8598 = vmatmul.mubr.bf16.gmra.mxu0 %v8515
  %v8599 = vpop.f32.mrf.mxu0
  %v8600 = vadd.f32 0.0, %v8599
  %v8601 = vpop.f32.mrf.mxu0
  %v8602 = vpop.f32.mrf.mxu0
  %v8603 = vadd.f32 0.0, %v8602
  %v8604 = vpop.f32.mrf.mxu0
  %8605 = vmatprep.mubr.bf16.mxu0 0
  %8606 = vmatmul.mubr.bf16.gmra.mxu0 %v8518
  %v8607 = vpop.f32.mrf.mxu0
  %v8608 = vadd.f32 0.0, %v8607
  %v8609 = vpop.f32.mrf.mxu0
  %v8610 = vpop.f32.mrf.mxu0
  %v8611 = vadd.f32 0.0, %v8610
  %v8612 = vpop.f32.mrf.mxu0
  %8613 = vmatprep.mubr.bf16.mxu0 0
  %8614 = vmatmul.mubr.bf16.gmra.mxu0 %v8521
  %v8615 = vpop.f32.mrf.mxu0
  %v8616 = vadd.f32 0.0, %v8615
  %v8617 = vpop.f32.mrf.mxu0
  %v8618 = vpop.f32.mrf.mxu0
  %v8619 = vadd.f32 0.0, %v8618
  %v8620 = vpop.f32.mrf.mxu0
  %8621 = vmatprep.mubr.bf16.mxu0 0
  %8622 = vmatmul.mubr.bf16.gmra.mxu0 %v8524
  %v8623 = vpop.f32.mrf.mxu0
  %v8624 = vadd.f32 0.0, %v8623
  %v8625 = vpop.f32.mrf.mxu0
  %v8626 = vpop.f32.mrf.mxu0
  %v8627 = vadd.f32 0.0, %v8626
  %v8628 = vpop.f32.mrf.mxu0
  %8629 = vmatprep.mubr.bf16.mxu0 0
  %8630 = vmatmul.mubr.bf16.gmra.mxu0 %v8527
  %v8631 = vpop.f32.mrf.mxu0
  %v8632 = vadd.f32 0.0, %v8631
  %v8633 = vpop.f32.mrf.mxu0
  %v8634 = vpop.f32.mrf.mxu0
  %v8635 = vadd.f32 0.0, %v8634
  %v8636 = vpop.f32.mrf.mxu0
  %8637 = vmatprep.mubr.bf16.mxu0 0
  %8638 = vmatmul.mubr.bf16.gmra.mxu0 %v8530
  %v8639 = vpop.f32.mrf.mxu0
  %v8640 = vadd.f32 0.0, %v8639
  %v8641 = vpop.f32.mrf.mxu0
  %v8642 = vpop.f32.mrf.mxu0
  %v8643 = vadd.f32 0.0, %v8642
  %v8644 = vpop.f32.mrf.mxu0
  %8645 = vmatprep.mubr.bf16.mxu0 0
  %8646 = vmatmul.mubr.bf16.gmra.mxu0 %v8533
  %v8647 = vpop.f32.mrf.mxu0
  %v8648 = vadd.f32 0.0, %v8647
  %v8649 = vpop.f32.mrf.mxu0
  %v8650 = vpop.f32.mrf.mxu0
  %v8651 = vadd.f32 0.0, %v8650
  %v8652 = vpop.f32.mrf.mxu0
  %8653 = vmatprep.mubr.bf16.mxu0 0
  %8654 = vmatmul.mubr.bf16.gmra.mxu0 %v8536
  %v8655 = vpop.f32.mrf.mxu0
  %v8656 = vadd.f32 0.0, %v8655
  %v8657 = vpop.f32.mrf.mxu0
  %v8658 = vpop.f32.mrf.mxu0
  %v8659 = vadd.f32 0.0, %v8658
  %v8660 = vpop.f32.mrf.mxu0
  %8661 = vmatprep.mubr.bf16.mxu0 0
  %8662 = vmatmul.mubr.bf16.gmra.mxu0 %v8539
  %v8663 = vpop.f32.mrf.mxu0
  %v8664 = vadd.f32 0.0, %v8663
  %v8665 = vpop.f32.mrf.mxu0
  %v8666 = vpop.f32.mrf.mxu0
  %v8667 = vadd.f32 0.0, %v8666
  %v8668 = vpop.f32.mrf.mxu0
  %8669 = vmatprep.mubr.bf16.mxu0 0
  %8670 = vmatmul.mubr.bf16.gmra.mxu0 %v8542
  %v8671 = vpop.f32.mrf.mxu0
  %v8672 = vadd.f32 0.0, %v8671
  %v8673 = vpop.f32.mrf.mxu0
  %v8674 = vpop.f32.mrf.mxu0
  %v8675 = vadd.f32 0.0, %v8674
  %v8676 = vpop.f32.mrf.mxu0
  %8677 = vmatprep.mubr.bf16.mxu0 0
  %8678 = vmatmul.mubr.bf16.gmra.mxu0 %v8545
  %v8679 = vpop.f32.mrf.mxu0
  %v8680 = vadd.f32 0.0, %v8679
  %v8681 = vpop.f32.mrf.mxu0
  %v8682 = vpop.f32.mrf.mxu0
  %v8683 = vadd.f32 0.0, %v8682
  %v8684 = vpop.f32.mrf.mxu0
  %8685 = vmatprep.mubr.bf16.mxu0 0
  %8686 = vmatmul.mubr.bf16.gmra.mxu0 %v8548
  %v8687 = vpop.f32.mrf.mxu0
  %v8688 = vadd.f32 0.0, %v8687
  %v8689 = vpop.f32.mrf.mxu0
  %v8690 = vpop.f32.mrf.mxu0
  %v8691 = vadd.f32 0.0, %v8690
  %v8692 = vpop.f32.mrf.mxu0
  %8693 = vmatprep.mubr.bf16.mxu0 0
  %8694 = vmatmul.mubr.bf16.gmra.mxu0 %v8551
  %v8695 = vpop.f32.mrf.mxu0
  %v8696 = vadd.f32 0.0, %v8695
  %v8697 = vpop.f32.mrf.mxu0
  %v8698 = vpop.f32.mrf.mxu0
  %v8699 = vadd.f32 0.0, %v8698
  %v8700 = vpop.f32.mrf.mxu0
  %8701 = vmatprep.mubr.bf16.mxu0 0
  %8702 = vmatmul.mubr.bf16.gmra.mxu0 %v8554
  %v8703 = vpop.f32.mrf.mxu0
  %v8704 = vadd.f32 0.0, %v8703
  %v8705 = vpop.f32.mrf.mxu0
  %v8706 = vpop.f32.mrf.mxu0
  %v8707 = vadd.f32 0.0, %v8706
  %v8708 = vpop.f32.mrf.mxu0
  %8709 = vmatprep.mubr.bf16.mxu0 0
  %8710 = vmatmul.mubr.bf16.gmra.mxu0 %v8557
  %v8711 = vpop.f32.mrf.mxu0
  %v8712 = vadd.f32 0.0, %v8711
  %v8713 = vpop.f32.mrf.mxu0
  %v8714 = vpop.f32.mrf.mxu0
  %v8715 = vadd.f32 0.0, %v8714
  %v8716 = vpop.f32.mrf.mxu0
  %8717 = vmatprep.mubr.bf16.mxu0 0
  %8718 = vmatmul.mubr.bf16.gmra.mxu0 %v8560
  %v8719 = vpop.f32.mrf.mxu0
  %v8720 = vadd.f32 0.0, %v8719
  %v8721 = vpop.f32.mrf.mxu0
  %v8722 = vpop.f32.mrf.mxu0
  %v8723 = vadd.f32 0.0, %v8722
  %v8724 = vpop.f32.mrf.mxu0
  %8725 = vdwg.mxu0
  %v8727 = vsel %vm64, %v8448, 0
  %v8730 = vsel %vm64, %v8449, 0
  %v8733 = vsel %vm64, %v8450, 0
  %v8736 = vsel %vm64, %v8451, 0
  %v8739 = vsel %vm64, %v8452, 0
  %v8742 = vsel %vm64, %v8453, 0
  %v8745 = vsel %vm64, %v8454, 0
  %v8748 = vsel %vm64, %v8455, 0
  %v8751 = vsel %vm64, %v8456, 0
  %v8754 = vsel %vm64, %v8457, 0
  %v8757 = vsel %vm64, %v8458, 0
  %v8760 = vsel %vm64, %v8459, 0
  %v8763 = vsel %vm64, %v8460, 0
  %v8766 = vsel %vm64, %v8461, 0
  %v8769 = vsel %vm64, %v8462, 0
  %v8772 = vsel %vm64, %v8463, 0
  %v8775 = vsel %vm3007, %v8464, 0
  %8777 = vmatprep.subr.bf16.mxu0 0
  %8778 = vmatpush1.bf16.msra.mxu0 0
  %8779 = vmatprep.subr.bf16.mxu0 0
  %8780 = vmatpush1.bf16.msra.mxu0 0
  %8781 = vmatprep.subr.bf16.mxu0 0
  %8782 = vmatpush1.bf16.msra.mxu0 0
  %8783 = vmatprep.subr.bf16.mxu0 0
  %8784 = vmatpush1.bf16.msra.mxu0 0
  %8785 = vmatprep.subr.bf16.mxu0 0
  %8786 = vmatpush1.bf16.msra.mxu0 0
  %8787 = vmatprep.subr.bf16.mxu0 0
  %8788 = vmatpush1.bf16.msra.mxu0 0
  %8789 = vmatprep.subr.bf16.mxu0 0
  %8790 = vmatpush1.bf16.msra.mxu0 0
  %8791 = vmatprep.subr.bf16.mxu0 0
  %8792 = vmatpush1.bf16.msra.mxu0 %v8775
  %8793 = vmatprep.subr.bf16.mxu0 0
  %8794 = vmatpush2.bf16.msra.mxu0 0
  %8795 = vmatprep.subr.bf16.mxu0 0
  %8796 = vmatpush2.bf16.msra.mxu0 0
  %8797 = vmatprep.subr.bf16.mxu0 0
  %8798 = vmatpush2.bf16.msra.mxu0 0
  %8799 = vmatprep.subr.bf16.mxu0 0
  %8800 = vmatpush2.bf16.msra.mxu0 0
  %8801 = vmatprep.subr.bf16.mxu0 0
  %8802 = vmatpush2.bf16.msra.mxu0 0
  %8803 = vmatprep.subr.bf16.mxu0 0
  %8804 = vmatpush2.bf16.msra.mxu0 0
  %8805 = vmatprep.subr.bf16.mxu0 0
  %8806 = vmatpush2.bf16.msra.mxu0 0
  %8807 = vmatprep.subr.bf16.mxu0 0
  %8808 = vmatpush2.bf16.msra.mxu0 0
  %8809 = vmatprep.mubr.bf16.mxu0 0
  %8810 = vmatmul.mubr.bf16.gmra.mxu0 %v8727
  %v8811 = vpop.f32.mrf.mxu0
  %v8812 = vadd.f32 %v8600, %v8811
  %v8813 = vpop.f32.mrf.mxu0
  %v8814 = vpop.f32.mrf.mxu0
  %v8815 = vadd.f32 %v8603, %v8814
  %v8816 = vpop.f32.mrf.mxu0
  %8817 = vmatprep.mubr.bf16.mxu0 0
  %8818 = vmatmul.mubr.bf16.gmra.mxu0 %v8730
  %v8819 = vpop.f32.mrf.mxu0
  %v8820 = vadd.f32 %v8608, %v8819
  %v8821 = vpop.f32.mrf.mxu0
  %v8822 = vpop.f32.mrf.mxu0
  %v8823 = vadd.f32 %v8611, %v8822
  %v8824 = vpop.f32.mrf.mxu0
  %8825 = vmatprep.mubr.bf16.mxu0 0
  %8826 = vmatmul.mubr.bf16.gmra.mxu0 %v8733
  %v8827 = vpop.f32.mrf.mxu0
  %v8828 = vadd.f32 %v8616, %v8827
  %v8829 = vpop.f32.mrf.mxu0
  %v8830 = vpop.f32.mrf.mxu0
  %v8831 = vadd.f32 %v8619, %v8830
  %v8832 = vpop.f32.mrf.mxu0
  %8833 = vmatprep.mubr.bf16.mxu0 0
  %8834 = vmatmul.mubr.bf16.gmra.mxu0 %v8736
  %v8835 = vpop.f32.mrf.mxu0
  %v8836 = vadd.f32 %v8624, %v8835
  %v8837 = vpop.f32.mrf.mxu0
  %v8838 = vpop.f32.mrf.mxu0
  %v8839 = vadd.f32 %v8627, %v8838
  %v8840 = vpop.f32.mrf.mxu0
  %8841 = vmatprep.mubr.bf16.mxu0 0
  %8842 = vmatmul.mubr.bf16.gmra.mxu0 %v8739
  %v8843 = vpop.f32.mrf.mxu0
  %v8844 = vadd.f32 %v8632, %v8843
  %v8845 = vpop.f32.mrf.mxu0
  %v8846 = vpop.f32.mrf.mxu0
  %v8847 = vadd.f32 %v8635, %v8846
  %v8848 = vpop.f32.mrf.mxu0
  %8849 = vmatprep.mubr.bf16.mxu0 0
  %8850 = vmatmul.mubr.bf16.gmra.mxu0 %v8742
  %v8851 = vpop.f32.mrf.mxu0
  %v8852 = vadd.f32 %v8640, %v8851
  %v8853 = vpop.f32.mrf.mxu0
  %v8854 = vpop.f32.mrf.mxu0
  %v8855 = vadd.f32 %v8643, %v8854
  %v8856 = vpop.f32.mrf.mxu0
  %8857 = vmatprep.mubr.bf16.mxu0 0
  %8858 = vmatmul.mubr.bf16.gmra.mxu0 %v8745
  %v8859 = vpop.f32.mrf.mxu0
  %v8860 = vadd.f32 %v8648, %v8859
  %v8861 = vpop.f32.mrf.mxu0
  %v8862 = vpop.f32.mrf.mxu0
  %v8863 = vadd.f32 %v8651, %v8862
  %v8864 = vpop.f32.mrf.mxu0
  %8865 = vmatprep.mubr.bf16.mxu0 0
  %8866 = vmatmul.mubr.bf16.gmra.mxu0 %v8748
  %v8867 = vpop.f32.mrf.mxu0
  %v8868 = vadd.f32 %v8656, %v8867
  %v8869 = vpop.f32.mrf.mxu0
  %v8870 = vpop.f32.mrf.mxu0
  %v8871 = vadd.f32 %v8659, %v8870
  %v8872 = vpop.f32.mrf.mxu0
  %8873 = vmatprep.mubr.bf16.mxu0 0
  %8874 = vmatmul.mubr.bf16.gmra.mxu0 %v8751
  %v8875 = vpop.f32.mrf.mxu0
  %v8876 = vadd.f32 %v8664, %v8875
  %v8877 = vpop.f32.mrf.mxu0
  %v8878 = vpop.f32.mrf.mxu0
  %v8879 = vadd.f32 %v8667, %v8878
  %v8880 = vpop.f32.mrf.mxu0
  %8881 = vmatprep.mubr.bf16.mxu0 0
  %8882 = vmatmul.mubr.bf16.gmra.mxu0 %v8754
  %v8883 = vpop.f32.mrf.mxu0
  %v8884 = vadd.f32 %v8672, %v8883
  %v8885 = vpop.f32.mrf.mxu0
  %v8886 = vpop.f32.mrf.mxu0
  %v8887 = vadd.f32 %v8675, %v8886
  %v8888 = vpop.f32.mrf.mxu0
  %8889 = vmatprep.mubr.bf16.mxu0 0
  %8890 = vmatmul.mubr.bf16.gmra.mxu0 %v8757
  %v8891 = vpop.f32.mrf.mxu0
  %v8892 = vadd.f32 %v8680, %v8891
  %v8893 = vpop.f32.mrf.mxu0
  %v8894 = vpop.f32.mrf.mxu0
  %v8895 = vadd.f32 %v8683, %v8894
  %v8896 = vpop.f32.mrf.mxu0
  %8897 = vmatprep.mubr.bf16.mxu0 0
  %8898 = vmatmul.mubr.bf16.gmra.mxu0 %v8760
  %v8899 = vpop.f32.mrf.mxu0
  %v8900 = vadd.f32 %v8688, %v8899
  %v8901 = vpop.f32.mrf.mxu0
  %v8902 = vpop.f32.mrf.mxu0
  %v8903 = vadd.f32 %v8691, %v8902
  %v8904 = vpop.f32.mrf.mxu0
  %8905 = vmatprep.mubr.bf16.mxu0 0
  %8906 = vmatmul.mubr.bf16.gmra.mxu0 %v8763
  %v8907 = vpop.f32.mrf.mxu0
  %v8908 = vadd.f32 %v8696, %v8907
  %v8909 = vpop.f32.mrf.mxu0
  %v8910 = vpop.f32.mrf.mxu0
  %v8911 = vadd.f32 %v8699, %v8910
  %v8912 = vpop.f32.mrf.mxu0
  %8913 = vmatprep.mubr.bf16.mxu0 0
  %8914 = vmatmul.mubr.bf16.gmra.mxu0 %v8766
  %v8915 = vpop.f32.mrf.mxu0
  %v8916 = vadd.f32 %v8704, %v8915
  %v8917 = vpop.f32.mrf.mxu0
  %v8918 = vpop.f32.mrf.mxu0
  %v8919 = vadd.f32 %v8707, %v8918
  %v8920 = vpop.f32.mrf.mxu0
  %8921 = vmatprep.mubr.bf16.mxu0 0
  %8922 = vmatmul.mubr.bf16.gmra.mxu0 %v8769
  %v8923 = vpop.f32.mrf.mxu0
  %v8924 = vadd.f32 %v8712, %v8923
  %v8925 = vpop.f32.mrf.mxu0
  %v8926 = vpop.f32.mrf.mxu0
  %v8927 = vadd.f32 %v8715, %v8926
  %v8928 = vpop.f32.mrf.mxu0
  %8929 = vmatprep.mubr.bf16.mxu0 0
  %8930 = vmatmul.mubr.bf16.gmra.mxu0 %v8772
  %v8931 = vpop.f32.mrf.mxu0
  %v8932 = vadd.f32 %v8720, %v8931
  %v8933 = vpop.f32.mrf.mxu0
  %v8934 = vpop.f32.mrf.mxu0
  %v8935 = vadd.f32 %v8723, %v8934
  %v8936 = vpop.f32.mrf.mxu0
  %8937 = vdwg.mxu0
  %v8938 = vld [vmem:[#allocation3 + $0x2] sm:$0xff]
  %v8939 = vld [vmem:[#allocation3 + $0xa] sm:$0xff]
  %v8940 = vld [vmem:[#allocation3 + $0x1a] sm:$0xff]
  %v8941 = vld [vmem:[#allocation3 + $0x22] sm:$0xff]
  %v8942 = vld [vmem:[#allocation3 + $0x32] sm:$0xff]
  %v8943 = vld [vmem:[#allocation3 + $0x3a] sm:$0xff]
  %v8944 = vld [vmem:[#allocation3 + $0x4a] sm:$0xff]
  %v8945 = vld [vmem:[#allocation3 + $0x52] sm:$0xff]
  %v8946 = vld [vmem:[#allocation3 + $0x62] sm:$0xff]
  %v8947 = vld [vmem:[#allocation3 + $0x6a] sm:$0xff]
  %v8948 = vld [vmem:[#allocation3 + $0x7a] sm:$0xff]
  %v8949 = vld [vmem:[#allocation3 + $0x82] sm:$0xff]
  %v8950 = vld [vmem:[#allocation3 + $0x92] sm:$0xff]
  %v8951 = vld [vmem:[#allocation3 + $0x9a] sm:$0xff]
  %v8952 = vld [vmem:[#allocation3 + $0xaa] sm:$0xff]
  %v8953 = vld [vmem:[#allocation3 + $0xb2] sm:$0xff]
  %v8954 = vld [vmem:[#allocation3 + $0xc2] sm:$0xff]
  %v8955 = vld [vmem:[#allocation3 + $0xca] sm:$0xff]
  %v8956 = vld [vmem:[#allocation3 + $0xda] sm:$0xff]
  %v8957 = vld [vmem:[#allocation3 + $0xe2] sm:$0xff]
  %v8958 = vld [vmem:[#allocation3 + $0xf2] sm:$0xff]
  %v8959 = vld [vmem:[#allocation3 + $0xfa] sm:$0xff]
  %v8960 = vld [vmem:[#allocation3 + $0x10a] sm:$0xff]
  %v8961 = vld [vmem:[#allocation3 + $0x112] sm:$0xff]
  %v8962 = vld [vmem:[#allocation3 + $0x122] sm:$0xff]
  %v8963 = vld [vmem:[#allocation3 + $0x12a] sm:$0xff]
  %v8964 = vld [vmem:[#allocation3 + $0x13a] sm:$0xff]
  %v8965 = vld [vmem:[#allocation3 + $0x142] sm:$0xff]
  %v8966 = vld [vmem:[#allocation3 + $0x152] sm:$0xff]
  %v8967 = vld [vmem:[#allocation3 + $0x15a] sm:$0xff]
  %v8968 = vld [vmem:[#allocation3 + $0x16a] sm:$0xff]
  %v8969 = vld [vmem:[#allocation3 + $0x172] sm:$0xff]
  %v8970 = vpack.c.bf16 %v8939, %v8938
  %v8971 = vpack.c.bf16 %v8941, %v8940
  %v8972 = vpack.c.bf16 %v8943, %v8942
  %v8973 = vpack.c.bf16 %v8945, %v8944
  %v8974 = vpack.c.bf16 %v8947, %v8946
  %v8975 = vpack.c.bf16 %v8949, %v8948
  %v8976 = vpack.c.bf16 %v8951, %v8950
  %v8977 = vpack.c.bf16 %v8953, %v8952
  %v8978 = vpack.c.bf16 %v8955, %v8954
  %v8979 = vpack.c.bf16 %v8957, %v8956
  %v8980 = vpack.c.bf16 %v8959, %v8958
  %v8981 = vpack.c.bf16 %v8961, %v8960
  %v8982 = vpack.c.bf16 %v8963, %v8962
  %v8983 = vpack.c.bf16 %v8965, %v8964
  %v8984 = vpack.c.bf16 %v8967, %v8966
  %v8985 = vpack.c.bf16 %v8969, %v8968
  %v8986 = vld [vmem:[%s3432] sm:$0xf]
  %v8988 = vsel %vm64, %v8970, 0
  %v8991 = vsel %vm64, %v8971, 0
  %v8994 = vsel %vm64, %v8972, 0
  %v8997 = vsel %vm64, %v8973, 0
  %v9000 = vsel %vm64, %v8974, 0
  %v9003 = vsel %vm64, %v8975, 0
  %v9006 = vsel %vm64, %v8976, 0
  %v9009 = vsel %vm64, %v8977, 0
  %v9012 = vsel %vm64, %v8978, 0
  %v9015 = vsel %vm64, %v8979, 0
  %v9018 = vsel %vm64, %v8980, 0
  %v9021 = vsel %vm64, %v8981, 0
  %v9024 = vsel %vm64, %v8982, 0
  %v9027 = vsel %vm64, %v8983, 0
  %v9030 = vsel %vm64, %v8984, 0
  %v9033 = vsel %vm64, %v8985, 0
  %v9036 = vsel %vm3007, %v8986, 0
  %9038 = vmatprep.subr.bf16.mxu0 0
  %9039 = vmatpush1.bf16.msra.mxu0 0
  %9040 = vmatprep.subr.bf16.mxu0 0
  %9041 = vmatpush1.bf16.msra.mxu0 0
  %9042 = vmatprep.subr.bf16.mxu0 0
  %9043 = vmatpush1.bf16.msra.mxu0 0
  %9044 = vmatprep.subr.bf16.mxu0 0
  %9045 = vmatpush1.bf16.msra.mxu0 0
  %9046 = vmatprep.subr.bf16.mxu0 0
  %9047 = vmatpush1.bf16.msra.mxu0 0
  %9048 = vmatprep.subr.bf16.mxu0 0
  %9049 = vmatpush1.bf16.msra.mxu0 0
  %9050 = vmatprep.subr.bf16.mxu0 0
  %9051 = vmatpush1.bf16.msra.mxu0 0
  %9052 = vmatprep.subr.bf16.mxu0 0
  %9053 = vmatpush1.bf16.msra.mxu0 %v9036
  %9054 = vmatprep.subr.bf16.mxu0 0
  %9055 = vmatpush2.bf16.msra.mxu0 0
  %9056 = vmatprep.subr.bf16.mxu0 0
  %9057 = vmatpush2.bf16.msra.mxu0 0
  %9058 = vmatprep.subr.bf16.mxu0 0
  %9059 = vmatpush2.bf16.msra.mxu0 0
  %9060 = vmatprep.subr.bf16.mxu0 0
  %9061 = vmatpush2.bf16.msra.mxu0 0
  %9062 = vmatprep.subr.bf16.mxu0 0
  %9063 = vmatpush2.bf16.msra.mxu0 0
  %9064 = vmatprep.subr.bf16.mxu0 0
  %9065 = vmatpush2.bf16.msra.mxu0 0
  %9066 = vmatprep.subr.bf16.mxu0 0
  %9067 = vmatpush2.bf16.msra.mxu0 0
  %9068 = vmatprep.subr.bf16.mxu0 0
  %9069 = vmatpush2.bf16.msra.mxu0 0
  %9070 = vmatprep.mubr.bf16.mxu0 0
  %9071 = vmatmul.mubr.bf16.gmra.mxu0 %v8988
  %v9072 = vpop.f32.mrf.mxu0
  %v9073 = vadd.f32 0.0, %v9072
  %v9074 = vpop.f32.mrf.mxu0
  %v9075 = vpop.f32.mrf.mxu0
  %v9076 = vadd.f32 0.0, %v9075
  %v9077 = vpop.f32.mrf.mxu0
  %9078 = vmatprep.mubr.bf16.mxu0 0
  %9079 = vmatmul.mubr.bf16.gmra.mxu0 %v8991
  %v9080 = vpop.f32.mrf.mxu0
  %v9081 = vadd.f32 0.0, %v9080
  %v9082 = vpop.f32.mrf.mxu0
  %v9083 = vpop.f32.mrf.mxu0
  %v9084 = vadd.f32 0.0, %v9083
  %v9085 = vpop.f32.mrf.mxu0
  %9086 = vmatprep.mubr.bf16.mxu0 0
  %9087 = vmatmul.mubr.bf16.gmra.mxu0 %v8994
  %v9088 = vpop.f32.mrf.mxu0
  %v9089 = vadd.f32 0.0, %v9088
  %v9090 = vpop.f32.mrf.mxu0
  %v9091 = vpop.f32.mrf.mxu0
  %v9092 = vadd.f32 0.0, %v9091
  %v9093 = vpop.f32.mrf.mxu0
  %9094 = vmatprep.mubr.bf16.mxu0 0
  %9095 = vmatmul.mubr.bf16.gmra.mxu0 %v8997
  %v9096 = vpop.f32.mrf.mxu0
  %v9097 = vadd.f32 0.0, %v9096
  %v9098 = vpop.f32.mrf.mxu0
  %v9099 = vpop.f32.mrf.mxu0
  %v9100 = vadd.f32 0.0, %v9099
  %v9101 = vpop.f32.mrf.mxu0
  %9102 = vmatprep.mubr.bf16.mxu0 0
  %9103 = vmatmul.mubr.bf16.gmra.mxu0 %v9000
  %v9104 = vpop.f32.mrf.mxu0
  %v9105 = vadd.f32 0.0, %v9104
  %v9106 = vpop.f32.mrf.mxu0
  %v9107 = vpop.f32.mrf.mxu0
  %v9108 = vadd.f32 0.0, %v9107
  %v9109 = vpop.f32.mrf.mxu0
  %9110 = vmatprep.mubr.bf16.mxu0 0
  %9111 = vmatmul.mubr.bf16.gmra.mxu0 %v9003
  %v9112 = vpop.f32.mrf.mxu0
  %v9113 = vadd.f32 0.0, %v9112
  %v9114 = vpop.f32.mrf.mxu0
  %v9115 = vpop.f32.mrf.mxu0
  %v9116 = vadd.f32 0.0, %v9115
  %v9117 = vpop.f32.mrf.mxu0
  %9118 = vmatprep.mubr.bf16.mxu0 0
  %9119 = vmatmul.mubr.bf16.gmra.mxu0 %v9006
  %v9120 = vpop.f32.mrf.mxu0
  %v9121 = vadd.f32 0.0, %v9120
  %v9122 = vpop.f32.mrf.mxu0
  %v9123 = vpop.f32.mrf.mxu0
  %v9124 = vadd.f32 0.0, %v9123
  %v9125 = vpop.f32.mrf.mxu0
  %9126 = vmatprep.mubr.bf16.mxu0 0
  %9127 = vmatmul.mubr.bf16.gmra.mxu0 %v9009
  %v9128 = vpop.f32.mrf.mxu0
  %v9129 = vadd.f32 0.0, %v9128
  %v9130 = vpop.f32.mrf.mxu0
  %v9131 = vpop.f32.mrf.mxu0
  %v9132 = vadd.f32 0.0, %v9131
  %v9133 = vpop.f32.mrf.mxu0
  %9134 = vmatprep.mubr.bf16.mxu0 0
  %9135 = vmatmul.mubr.bf16.gmra.mxu0 %v9012
  %v9136 = vpop.f32.mrf.mxu0
  %v9137 = vadd.f32 0.0, %v9136
  %v9138 = vpop.f32.mrf.mxu0
  %v9139 = vpop.f32.mrf.mxu0
  %v9140 = vadd.f32 0.0, %v9139
  %v9141 = vpop.f32.mrf.mxu0
  %9142 = vmatprep.mubr.bf16.mxu0 0
  %9143 = vmatmul.mubr.bf16.gmra.mxu0 %v9015
  %v9144 = vpop.f32.mrf.mxu0
  %v9145 = vadd.f32 0.0, %v9144
  %v9146 = vpop.f32.mrf.mxu0
  %v9147 = vpop.f32.mrf.mxu0
  %v9148 = vadd.f32 0.0, %v9147
  %v9149 = vpop.f32.mrf.mxu0
  %9150 = vmatprep.mubr.bf16.mxu0 0
  %9151 = vmatmul.mubr.bf16.gmra.mxu0 %v9018
  %v9152 = vpop.f32.mrf.mxu0
  %v9153 = vadd.f32 0.0, %v9152
  %v9154 = vpop.f32.mrf.mxu0
  %v9155 = vpop.f32.mrf.mxu0
  %v9156 = vadd.f32 0.0, %v9155
  %v9157 = vpop.f32.mrf.mxu0
  %9158 = vmatprep.mubr.bf16.mxu0 0
  %9159 = vmatmul.mubr.bf16.gmra.mxu0 %v9021
  %v9160 = vpop.f32.mrf.mxu0
  %v9161 = vadd.f32 0.0, %v9160
  %v9162 = vpop.f32.mrf.mxu0
  %v9163 = vpop.f32.mrf.mxu0
  %v9164 = vadd.f32 0.0, %v9163
  %v9165 = vpop.f32.mrf.mxu0
  %9166 = vmatprep.mubr.bf16.mxu0 0
  %9167 = vmatmul.mubr.bf16.gmra.mxu0 %v9024
  %v9168 = vpop.f32.mrf.mxu0
  %v9169 = vadd.f32 0.0, %v9168
  %v9170 = vpop.f32.mrf.mxu0
  %v9171 = vpop.f32.mrf.mxu0
  %v9172 = vadd.f32 0.0, %v9171
  %v9173 = vpop.f32.mrf.mxu0
  %9174 = vmatprep.mubr.bf16.mxu0 0
  %9175 = vmatmul.mubr.bf16.gmra.mxu0 %v9027
  %v9176 = vpop.f32.mrf.mxu0
  %v9177 = vadd.f32 0.0, %v9176
  %v9178 = vpop.f32.mrf.mxu0
  %v9179 = vpop.f32.mrf.mxu0
  %v9180 = vadd.f32 0.0, %v9179
  %v9181 = vpop.f32.mrf.mxu0
  %9182 = vmatprep.mubr.bf16.mxu0 0
  %9183 = vmatmul.mubr.bf16.gmra.mxu0 %v9030
  %v9184 = vpop.f32.mrf.mxu0
  %v9185 = vadd.f32 0.0, %v9184
  %v9186 = vpop.f32.mrf.mxu0
  %v9187 = vpop.f32.mrf.mxu0
  %v9188 = vadd.f32 0.0, %v9187
  %v9189 = vpop.f32.mrf.mxu0
  %9190 = vmatprep.mubr.bf16.mxu0 0
  %9191 = vmatmul.mubr.bf16.gmra.mxu0 %v9033
  %v9192 = vpop.f32.mrf.mxu0
  %v9193 = vadd.f32 0.0, %v9192
  %v9194 = vpop.f32.mrf.mxu0
  %v9195 = vpop.f32.mrf.mxu0
  %v9196 = vadd.f32 0.0, %v9195
  %v9197 = vpop.f32.mrf.mxu0
  %9198 = vdwg.mxu0
  %v9199 = vadd.f32 %v8812, %v9073
  %v9200 = vadd.f32 %v8815, %v9076
  %v9201 = vadd.f32 %v8820, %v9081
  %v9202 = vadd.f32 %v8823, %v9084
  %v9203 = vadd.f32 %v8828, %v9089
  %v9204 = vadd.f32 %v8831, %v9092
  %v9205 = vadd.f32 %v8836, %v9097
  %v9206 = vadd.f32 %v8839, %v9100
  %v9207 = vadd.f32 %v8844, %v9105
  %v9208 = vadd.f32 %v8847, %v9108
  %v9209 = vadd.f32 %v8852, %v9113
  %v9210 = vadd.f32 %v8855, %v9116
  %v9211 = vadd.f32 %v8860, %v9121
  %v9212 = vadd.f32 %v8863, %v9124
  %v9213 = vadd.f32 %v8868, %v9129
  %v9214 = vadd.f32 %v8871, %v9132
  %v9215 = vadd.f32 %v8876, %v9137
  %v9216 = vadd.f32 %v8879, %v9140
  %v9217 = vadd.f32 %v8884, %v9145
  %v9218 = vadd.f32 %v8887, %v9148
  %v9219 = vadd.f32 %v8892, %v9153
  %v9220 = vadd.f32 %v8895, %v9156
  %v9221 = vadd.f32 %v8900, %v9161
  %v9222 = vadd.f32 %v8903, %v9164
  %v9223 = vadd.f32 %v8908, %v9169
  %v9224 = vadd.f32 %v8911, %v9172
  %v9225 = vadd.f32 %v8916, %v9177
  %v9226 = vadd.f32 %v8919, %v9180
  %v9227 = vadd.f32 %v8924, %v9185
  %v9228 = vadd.f32 %v8927, %v9188
  %v9229 = vadd.f32 %v8932, %v9193
  %v9230 = vadd.f32 %v8935, %v9196
  %v9231 = vld [vmem:[%s73] sm:$0xff]
  %v9232 = vld [vmem:[%s73 + $0x8] sm:$0xff]
  %v9233 = vld [vmem:[%s73 + $0x18] sm:$0xff]
  %v9234 = vld [vmem:[%s73 + $0x20] sm:$0xff]
  %v9235 = vld [vmem:[%s73 + $0x30] sm:$0xff]
  %v9236 = vld [vmem:[%s73 + $0x38] sm:$0xff]
  %v9237 = vld [vmem:[%s73 + $0x48] sm:$0xff]
  %v9238 = vld [vmem:[%s73 + $0x50] sm:$0xff]
  %v9239 = vld [vmem:[%s73 + $0x60] sm:$0xff]
  %v9240 = vld [vmem:[%s73 + $0x68] sm:$0xff]
  %v9241 = vld [vmem:[%s73 + $0x78] sm:$0xff]
  %v9242 = vld [vmem:[%s73 + $0x80] sm:$0xff]
  %v9243 = vld [vmem:[%s73 + $0x90] sm:$0xff]
  %v9244 = vld [vmem:[%s73 + $0x98] sm:$0xff]
  %v9245 = vld [vmem:[%s73 + $0xa8] sm:$0xff]
  %v9246 = vld [vmem:[%s73 + $0xb0] sm:$0xff]
  %v9247 = vld [vmem:[%s73 + $0xc0] sm:$0xff]
  %v9248 = vld [vmem:[%s73 + $0xc8] sm:$0xff]
  %v9249 = vld [vmem:[%s73 + $0xd8] sm:$0xff]
  %v9250 = vld [vmem:[%s73 + $0xe0] sm:$0xff]
  %v9251 = vld [vmem:[%s73 + $0xf0] sm:$0xff]
  %v9252 = vld [vmem:[%s73 + $0xf8] sm:$0xff]
  %v9253 = vld [vmem:[%s73 + $0x108] sm:$0xff]
  %v9254 = vld [vmem:[%s73 + $0x110] sm:$0xff]
  %v9255 = vld [vmem:[%s73 + $0x120] sm:$0xff]
  %v9256 = vld [vmem:[%s73 + $0x128] sm:$0xff]
  %v9257 = vld [vmem:[%s73 + $0x138] sm:$0xff]
  %v9258 = vld [vmem:[%s73 + $0x140] sm:$0xff]
  %v9259 = vld [vmem:[%s73 + $0x150] sm:$0xff]
  %v9260 = vld [vmem:[%s73 + $0x158] sm:$0xff]
  %v9261 = vld [vmem:[%s73 + $0x168] sm:$0xff]
  %v9262 = vld [vmem:[%s73 + $0x170] sm:$0xff]
  %v9263 = vpack.c.bf16 %v9232, %v9231
  %v9264 = vpack.c.bf16 %v9234, %v9233
  %v9265 = vpack.c.bf16 %v9236, %v9235
  %v9266 = vpack.c.bf16 %v9238, %v9237
  %v9267 = vpack.c.bf16 %v9240, %v9239
  %v9268 = vpack.c.bf16 %v9242, %v9241
  %v9269 = vpack.c.bf16 %v9244, %v9243
  %v9270 = vpack.c.bf16 %v9246, %v9245
  %v9271 = vpack.c.bf16 %v9248, %v9247
  %v9272 = vpack.c.bf16 %v9250, %v9249
  %v9273 = vpack.c.bf16 %v9252, %v9251
  %v9274 = vpack.c.bf16 %v9254, %v9253
  %v9275 = vpack.c.bf16 %v9256, %v9255
  %v9276 = vpack.c.bf16 %v9258, %v9257
  %v9277 = vpack.c.bf16 %v9260, %v9259
  %v9278 = vpack.c.bf16 %v9262, %v9261
  %v9279 = vld [vmem:[%s3726] sm:$0xf]
  %v9281 = vsel %vm64, %v9263, 0
  %v9284 = vsel %vm64, %v9264, 0
  %v9287 = vsel %vm64, %v9265, 0
  %v9290 = vsel %vm64, %v9266, 0
  %v9293 = vsel %vm64, %v9267, 0
  %v9296 = vsel %vm64, %v9268, 0
  %v9299 = vsel %vm64, %v9269, 0
  %v9302 = vsel %vm64, %v9270, 0
  %v9305 = vsel %vm64, %v9271, 0
  %v9308 = vsel %vm64, %v9272, 0
  %v9311 = vsel %vm64, %v9273, 0
  %v9314 = vsel %vm64, %v9274, 0
  %v9317 = vsel %vm64, %v9275, 0
  %v9320 = vsel %vm64, %v9276, 0
  %v9323 = vsel %vm64, %v9277, 0
  %v9326 = vsel %vm64, %v9278, 0
  %v9329 = vsel %vm3007, %v9279, 0
  %9331 = vmatprep.subr.bf16.mxu0 0
  %9332 = vmatpush1.bf16.msra.mxu0 0
  %9333 = vmatprep.subr.bf16.mxu0 0
  %9334 = vmatpush1.bf16.msra.mxu0 0
  %9335 = vmatprep.subr.bf16.mxu0 0
  %9336 = vmatpush1.bf16.msra.mxu0 0
  %9337 = vmatprep.subr.bf16.mxu0 0
  %9338 = vmatpush1.bf16.msra.mxu0 0
  %9339 = vmatprep.subr.bf16.mxu0 0
  %9340 = vmatpush1.bf16.msra.mxu0 0
  %9341 = vmatprep.subr.bf16.mxu0 0
  %9342 = vmatpush1.bf16.msra.mxu0 0
  %9343 = vmatprep.subr.bf16.mxu0 0
  %9344 = vmatpush1.bf16.msra.mxu0 0
  %9345 = vmatprep.subr.bf16.mxu0 0
  %9346 = vmatpush1.bf16.msra.mxu0 %v9329
  %9347 = vmatprep.subr.bf16.mxu0 0
  %9348 = vmatpush2.bf16.msra.mxu0 0
  %9349 = vmatprep.subr.bf16.mxu0 0
  %9350 = vmatpush2.bf16.msra.mxu0 0
  %9351 = vmatprep.subr.bf16.mxu0 0
  %9352 = vmatpush2.bf16.msra.mxu0 0
  %9353 = vmatprep.subr.bf16.mxu0 0
  %9354 = vmatpush2.bf16.msra.mxu0 0
  %9355 = vmatprep.subr.bf16.mxu0 0
  %9356 = vmatpush2.bf16.msra.mxu0 0
  %9357 = vmatprep.subr.bf16.mxu0 0
  %9358 = vmatpush2.bf16.msra.mxu0 0
  %9359 = vmatprep.subr.bf16.mxu0 0
  %9360 = vmatpush2.bf16.msra.mxu0 0
  %9361 = vmatprep.subr.bf16.mxu0 0
  %9362 = vmatpush2.bf16.msra.mxu0 0
  %9363 = vmatprep.mubr.bf16.mxu0 0
  %9364 = vmatmul.mubr.bf16.gmra.mxu0 %v9281
  %v9365 = vpop.f32.mrf.mxu0
  %v9366 = vadd.f32 0.0, %v9365
  %v9367 = vpop.f32.mrf.mxu0
  %v9368 = vpop.f32.mrf.mxu0
  %v9369 = vadd.f32 0.0, %v9368
  %v9370 = vpop.f32.mrf.mxu0
  %9371 = vmatprep.mubr.bf16.mxu0 0
  %9372 = vmatmul.mubr.bf16.gmra.mxu0 %v9284
  %v9373 = vpop.f32.mrf.mxu0
  %v9374 = vadd.f32 0.0, %v9373
  %v9375 = vpop.f32.mrf.mxu0
  %v9376 = vpop.f32.mrf.mxu0
  %v9377 = vadd.f32 0.0, %v9376
  %v9378 = vpop.f32.mrf.mxu0
  %9379 = vmatprep.mubr.bf16.mxu0 0
  %9380 = vmatmul.mubr.bf16.gmra.mxu0 %v9287
  %v9381 = vpop.f32.mrf.mxu0
  %v9382 = vadd.f32 0.0, %v9381
  %v9383 = vpop.f32.mrf.mxu0
  %v9384 = vpop.f32.mrf.mxu0
  %v9385 = vadd.f32 0.0, %v9384
  %v9386 = vpop.f32.mrf.mxu0
  %9387 = vmatprep.mubr.bf16.mxu0 0
  %9388 = vmatmul.mubr.bf16.gmra.mxu0 %v9290
  %v9389 = vpop.f32.mrf.mxu0
  %v9390 = vadd.f32 0.0, %v9389
  %v9391 = vpop.f32.mrf.mxu0
  %v9392 = vpop.f32.mrf.mxu0
  %v9393 = vadd.f32 0.0, %v9392
  %v9394 = vpop.f32.mrf.mxu0
  %9395 = vmatprep.mubr.bf16.mxu0 0
  %9396 = vmatmul.mubr.bf16.gmra.mxu0 %v9293
  %v9397 = vpop.f32.mrf.mxu0
  %v9398 = vadd.f32 0.0, %v9397
  %v9399 = vpop.f32.mrf.mxu0
  %v9400 = vpop.f32.mrf.mxu0
  %v9401 = vadd.f32 0.0, %v9400
  %v9402 = vpop.f32.mrf.mxu0
  %9403 = vmatprep.mubr.bf16.mxu0 0
  %9404 = vmatmul.mubr.bf16.gmra.mxu0 %v9296
  %v9405 = vpop.f32.mrf.mxu0
  %v9406 = vadd.f32 0.0, %v9405
  %v9407 = vpop.f32.mrf.mxu0
  %v9408 = vpop.f32.mrf.mxu0
  %v9409 = vadd.f32 0.0, %v9408
  %v9410 = vpop.f32.mrf.mxu0
  %9411 = vmatprep.mubr.bf16.mxu0 0
  %9412 = vmatmul.mubr.bf16.gmra.mxu0 %v9299
  %v9413 = vpop.f32.mrf.mxu0
  %v9414 = vadd.f32 0.0, %v9413
  %v9415 = vpop.f32.mrf.mxu0
  %v9416 = vpop.f32.mrf.mxu0
  %v9417 = vadd.f32 0.0, %v9416
  %v9418 = vpop.f32.mrf.mxu0
  %9419 = vmatprep.mubr.bf16.mxu0 0
  %9420 = vmatmul.mubr.bf16.gmra.mxu0 %v9302
  %v9421 = vpop.f32.mrf.mxu0
  %v9422 = vadd.f32 0.0, %v9421
  %v9423 = vpop.f32.mrf.mxu0
  %v9424 = vpop.f32.mrf.mxu0
  %v9425 = vadd.f32 0.0, %v9424
  %v9426 = vpop.f32.mrf.mxu0
  %9427 = vmatprep.mubr.bf16.mxu0 0
  %9428 = vmatmul.mubr.bf16.gmra.mxu0 %v9305
  %v9429 = vpop.f32.mrf.mxu0
  %v9430 = vadd.f32 0.0, %v9429
  %v9431 = vpop.f32.mrf.mxu0
  %v9432 = vpop.f32.mrf.mxu0
  %v9433 = vadd.f32 0.0, %v9432
  %v9434 = vpop.f32.mrf.mxu0
  %9435 = vmatprep.mubr.bf16.mxu0 0
  %9436 = vmatmul.mubr.bf16.gmra.mxu0 %v9308
  %v9437 = vpop.f32.mrf.mxu0
  %v9438 = vadd.f32 0.0, %v9437
  %v9439 = vpop.f32.mrf.mxu0
  %v9440 = vpop.f32.mrf.mxu0
  %v9441 = vadd.f32 0.0, %v9440
  %v9442 = vpop.f32.mrf.mxu0
  %9443 = vmatprep.mubr.bf16.mxu0 0
  %9444 = vmatmul.mubr.bf16.gmra.mxu0 %v9311
  %v9445 = vpop.f32.mrf.mxu0
  %v9446 = vadd.f32 0.0, %v9445
  %v9447 = vpop.f32.mrf.mxu0
  %v9448 = vpop.f32.mrf.mxu0
  %v9449 = vadd.f32 0.0, %v9448
  %v9450 = vpop.f32.mrf.mxu0
  %9451 = vmatprep.mubr.bf16.mxu0 0
  %9452 = vmatmul.mubr.bf16.gmra.mxu0 %v9314
  %v9453 = vpop.f32.mrf.mxu0
  %v9454 = vadd.f32 0.0, %v9453
  %v9455 = vpop.f32.mrf.mxu0
  %v9456 = vpop.f32.mrf.mxu0
  %v9457 = vadd.f32 0.0, %v9456
  %v9458 = vpop.f32.mrf.mxu0
  %9459 = vmatprep.mubr.bf16.mxu0 0
  %9460 = vmatmul.mubr.bf16.gmra.mxu0 %v9317
  %v9461 = vpop.f32.mrf.mxu0
  %v9462 = vadd.f32 0.0, %v9461
  %v9463 = vpop.f32.mrf.mxu0
  %v9464 = vpop.f32.mrf.mxu0
  %v9465 = vadd.f32 0.0, %v9464
  %v9466 = vpop.f32.mrf.mxu0
  %9467 = vmatprep.mubr.bf16.mxu0 0
  %9468 = vmatmul.mubr.bf16.gmra.mxu0 %v9320
  %v9469 = vpop.f32.mrf.mxu0
  %v9470 = vadd.f32 0.0, %v9469
  %v9471 = vpop.f32.mrf.mxu0
  %v9472 = vpop.f32.mrf.mxu0
  %v9473 = vadd.f32 0.0, %v9472
  %v9474 = vpop.f32.mrf.mxu0
  %9475 = vmatprep.mubr.bf16.mxu0 0
  %9476 = vmatmul.mubr.bf16.gmra.mxu0 %v9323
  %v9477 = vpop.f32.mrf.mxu0
  %v9478 = vadd.f32 0.0, %v9477
  %v9479 = vpop.f32.mrf.mxu0
  %v9480 = vpop.f32.mrf.mxu0
  %v9481 = vadd.f32 0.0, %v9480
  %v9482 = vpop.f32.mrf.mxu0
  %9483 = vmatprep.mubr.bf16.mxu0 0
  %9484 = vmatmul.mubr.bf16.gmra.mxu0 %v9326
  %v9485 = vpop.f32.mrf.mxu0
  %v9486 = vadd.f32 0.0, %v9485
  %v9487 = vpop.f32.mrf.mxu0
  %v9488 = vpop.f32.mrf.mxu0
  %v9489 = vadd.f32 0.0, %v9488
  %v9490 = vpop.f32.mrf.mxu0
  %9491 = vdwg.mxu0
  %v9492 = vadd.f32 %v9199, %v9366
  %v9493 = vadd.f32 %v9200, %v9369
  %v9494 = vadd.f32 %v9201, %v9374
  %v9495 = vadd.f32 %v9202, %v9377
  %v9496 = vadd.f32 %v9203, %v9382
  %v9497 = vadd.f32 %v9204, %v9385
  %v9498 = vadd.f32 %v9205, %v9390
  %v9499 = vadd.f32 %v9206, %v9393
  %v9500 = vadd.f32 %v9207, %v9398
  %v9501 = vadd.f32 %v9208, %v9401
  %v9502 = vadd.f32 %v9209, %v9406
  %v9503 = vadd.f32 %v9210, %v9409
  %v9504 = vadd.f32 %v9211, %v9414
  %v9505 = vadd.f32 %v9212, %v9417
  %v9506 = vadd.f32 %v9213, %v9422
  %v9507 = vadd.f32 %v9214, %v9425
  %v9508 = vadd.f32 %v9215, %v9430
  %v9509 = vadd.f32 %v9216, %v9433
  %v9510 = vadd.f32 %v9217, %v9438
  %v9511 = vadd.f32 %v9218, %v9441
  %v9512 = vadd.f32 %v9219, %v9446
  %v9513 = vadd.f32 %v9220, %v9449
  %v9514 = vadd.f32 %v9221, %v9454
  %v9515 = vadd.f32 %v9222, %v9457
  %v9516 = vadd.f32 %v9223, %v9462
  %v9517 = vadd.f32 %v9224, %v9465
  %v9518 = vadd.f32 %v9225, %v9470
  %v9519 = vadd.f32 %v9226, %v9473
  %v9520 = vadd.f32 %v9227, %v9478
  %v9521 = vadd.f32 %v9228, %v9481
  %v9522 = vadd.f32 %v9229, %v9486
  %v9523 = vadd.f32 %v9230, %v9489
  %v9524 = vld [vmem:[%s73 + $0x1] sm:$0xff]
  %v9525 = vld [vmem:[%s73 + $0x9] sm:$0xff]
  %v9526 = vld [vmem:[%s73 + $0x19] sm:$0xff]
  %v9527 = vld [vmem:[%s73 + $0x21] sm:$0xff]
  %v9528 = vld [vmem:[%s73 + $0x31] sm:$0xff]
  %v9529 = vld [vmem:[%s73 + $0x39] sm:$0xff]
  %v9530 = vld [vmem:[%s73 + $0x49] sm:$0xff]
  %v9531 = vld [vmem:[%s73 + $0x51] sm:$0xff]
  %v9532 = vld [vmem:[%s73 + $0x61] sm:$0xff]
  %v9533 = vld [vmem:[%s73 + $0x69] sm:$0xff]
  %v9534 = vld [vmem:[%s73 + $0x79] sm:$0xff]
  %v9535 = vld [vmem:[%s73 + $0x81] sm:$0xff]
  %v9536 = vld [vmem:[%s73 + $0x91] sm:$0xff]
  %v9537 = vld [vmem:[%s73 + $0x99] sm:$0xff]
  %v9538 = vld [vmem:[%s73 + $0xa9] sm:$0xff]
  %v9539 = vld [vmem:[%s73 + $0xb1] sm:$0xff]
  %v9540 = vld [vmem:[%s73 + $0xc1] sm:$0xff]
  %v9541 = vld [vmem:[%s73 + $0xc9] sm:$0xff]
  %v9542 = vld [vmem:[%s73 + $0xd9] sm:$0xff]
  %v9543 = vld [vmem:[%s73 + $0xe1] sm:$0xff]
  %v9544 = vld [vmem:[%s73 + $0xf1] sm:$0xff]
  %v9545 = vld [vmem:[%s73 + $0xf9] sm:$0xff]
  %v9546 = vld [vmem:[%s73 + $0x109] sm:$0xff]
  %v9547 = vld [vmem:[%s73 + $0x111] sm:$0xff]
  %v9548 = vld [vmem:[%s73 + $0x121] sm:$0xff]
  %v9549 = vld [vmem:[%s73 + $0x129] sm:$0xff]
  %v9550 = vld [vmem:[%s73 + $0x139] sm:$0xff]
  %v9551 = vld [vmem:[%s73 + $0x141] sm:$0xff]
  %v9552 = vld [vmem:[%s73 + $0x151] sm:$0xff]
  %v9553 = vld [vmem:[%s73 + $0x159] sm:$0xff]
  %v9554 = vld [vmem:[%s73 + $0x169] sm:$0xff]
  %v9555 = vld [vmem:[%s73 + $0x171] sm:$0xff]
  %v9556 = vpack.c.bf16 %v9525, %v9524
  %v9557 = vpack.c.bf16 %v9527, %v9526
  %v9558 = vpack.c.bf16 %v9529, %v9528
  %v9559 = vpack.c.bf16 %v9531, %v9530
  %v9560 = vpack.c.bf16 %v9533, %v9532
  %v9561 = vpack.c.bf16 %v9535, %v9534
  %v9562 = vpack.c.bf16 %v9537, %v9536
  %v9563 = vpack.c.bf16 %v9539, %v9538
  %v9564 = vpack.c.bf16 %v9541, %v9540
  %v9565 = vpack.c.bf16 %v9543, %v9542
  %v9566 = vpack.c.bf16 %v9545, %v9544
  %v9567 = vpack.c.bf16 %v9547, %v9546
  %v9568 = vpack.c.bf16 %v9549, %v9548
  %v9569 = vpack.c.bf16 %v9551, %v9550
  %v9570 = vpack.c.bf16 %v9553, %v9552
  %v9571 = vpack.c.bf16 %v9555, %v9554
  %v9572 = vld [vmem:[%s4020] sm:$0xf]
  %v9574 = vsel %vm64, %v9556, 0
  %v9577 = vsel %vm64, %v9557, 0
  %v9580 = vsel %vm64, %v9558, 0
  %v9583 = vsel %vm64, %v9559, 0
  %v9586 = vsel %vm64, %v9560, 0
  %v9589 = vsel %vm64, %v9561, 0
  %v9592 = vsel %vm64, %v9562, 0
  %v9595 = vsel %vm64, %v9563, 0
  %v9598 = vsel %vm64, %v9564, 0
  %v9601 = vsel %vm64, %v9565, 0
  %v9604 = vsel %vm64, %v9566, 0
  %v9607 = vsel %vm64, %v9567, 0
  %v9610 = vsel %vm64, %v9568, 0
  %v9613 = vsel %vm64, %v9569, 0
  %v9616 = vsel %vm64, %v9570, 0
  %v9619 = vsel %vm64, %v9571, 0
  %v9622 = vsel %vm3007, %v9572, 0
  %9624 = vmatprep.subr.bf16.mxu0 0
  %9625 = vmatpush1.bf16.msra.mxu0 0
  %9626 = vmatprep.subr.bf16.mxu0 0
  %9627 = vmatpush1.bf16.msra.mxu0 0
  %9628 = vmatprep.subr.bf16.mxu0 0
  %9629 = vmatpush1.bf16.msra.mxu0 0
  %9630 = vmatprep.subr.bf16.mxu0 0
  %9631 = vmatpush1.bf16.msra.mxu0 0
  %9632 = vmatprep.subr.bf16.mxu0 0
  %9633 = vmatpush1.bf16.msra.mxu0 0
  %9634 = vmatprep.subr.bf16.mxu0 0
  %9635 = vmatpush1.bf16.msra.mxu0 0
  %9636 = vmatprep.subr.bf16.mxu0 0
  %9637 = vmatpush1.bf16.msra.mxu0 0
  %9638 = vmatprep.subr.bf16.mxu0 0
  %9639 = vmatpush1.bf16.msra.mxu0 %v9622
  %9640 = vmatprep.subr.bf16.mxu0 0
  %9641 = vmatpush2.bf16.msra.mxu0 0
  %9642 = vmatprep.subr.bf16.mxu0 0
  %9643 = vmatpush2.bf16.msra.mxu0 0
  %9644 = vmatprep.subr.bf16.mxu0 0
  %9645 = vmatpush2.bf16.msra.mxu0 0
  %9646 = vmatprep.subr.bf16.mxu0 0
  %9647 = vmatpush2.bf16.msra.mxu0 0
  %9648 = vmatprep.subr.bf16.mxu0 0
  %9649 = vmatpush2.bf16.msra.mxu0 0
  %9650 = vmatprep.subr.bf16.mxu0 0
  %9651 = vmatpush2.bf16.msra.mxu0 0
  %9652 = vmatprep.subr.bf16.mxu0 0
  %9653 = vmatpush2.bf16.msra.mxu0 0
  %9654 = vmatprep.subr.bf16.mxu0 0
  %9655 = vmatpush2.bf16.msra.mxu0 0
  %9656 = vmatprep.mubr.bf16.mxu0 0
  %9657 = vmatmul.mubr.bf16.gmra.mxu0 %v9574
  %v9658 = vpop.f32.mrf.mxu0
  %v9659 = vadd.f32 0.0, %v9658
  %v9660 = vpop.f32.mrf.mxu0
  %v9661 = vpop.f32.mrf.mxu0
  %v9662 = vadd.f32 0.0, %v9661
  %v9663 = vpop.f32.mrf.mxu0
  %9664 = vmatprep.mubr.bf16.mxu0 0
  %9665 = vmatmul.mubr.bf16.gmra.mxu0 %v9577
  %v9666 = vpop.f32.mrf.mxu0
  %v9667 = vadd.f32 0.0, %v9666
  %v9668 = vpop.f32.mrf.mxu0
  %v9669 = vpop.f32.mrf.mxu0
  %v9670 = vadd.f32 0.0, %v9669
  %v9671 = vpop.f32.mrf.mxu0
  %9672 = vmatprep.mubr.bf16.mxu0 0
  %9673 = vmatmul.mubr.bf16.gmra.mxu0 %v9580
  %v9674 = vpop.f32.mrf.mxu0
  %v9675 = vadd.f32 0.0, %v9674
  %v9676 = vpop.f32.mrf.mxu0
  %v9677 = vpop.f32.mrf.mxu0
  %v9678 = vadd.f32 0.0, %v9677
  %v9679 = vpop.f32.mrf.mxu0
  %9680 = vmatprep.mubr.bf16.mxu0 0
  %9681 = vmatmul.mubr.bf16.gmra.mxu0 %v9583
  %v9682 = vpop.f32.mrf.mxu0
  %v9683 = vadd.f32 0.0, %v9682
  %v9684 = vpop.f32.mrf.mxu0
  %v9685 = vpop.f32.mrf.mxu0
  %v9686 = vadd.f32 0.0, %v9685
  %v9687 = vpop.f32.mrf.mxu0
  %9688 = vmatprep.mubr.bf16.mxu0 0
  %9689 = vmatmul.mubr.bf16.gmra.mxu0 %v9586
  %v9690 = vpop.f32.mrf.mxu0
  %v9691 = vadd.f32 0.0, %v9690
  %v9692 = vpop.f32.mrf.mxu0
  %v9693 = vpop.f32.mrf.mxu0
  %v9694 = vadd.f32 0.0, %v9693
  %v9695 = vpop.f32.mrf.mxu0
  %9696 = vmatprep.mubr.bf16.mxu0 0
  %9697 = vmatmul.mubr.bf16.gmra.mxu0 %v9589
  %v9698 = vpop.f32.mrf.mxu0
  %v9699 = vadd.f32 0.0, %v9698
  %v9700 = vpop.f32.mrf.mxu0
  %v9701 = vpop.f32.mrf.mxu0
  %v9702 = vadd.f32 0.0, %v9701
  %v9703 = vpop.f32.mrf.mxu0
  %9704 = vmatprep.mubr.bf16.mxu0 0
  %9705 = vmatmul.mubr.bf16.gmra.mxu0 %v9592
  %v9706 = vpop.f32.mrf.mxu0
  %v9707 = vadd.f32 0.0, %v9706
  %v9708 = vpop.f32.mrf.mxu0
  %v9709 = vpop.f32.mrf.mxu0
  %v9710 = vadd.f32 0.0, %v9709
  %v9711 = vpop.f32.mrf.mxu0
  %9712 = vmatprep.mubr.bf16.mxu0 0
  %9713 = vmatmul.mubr.bf16.gmra.mxu0 %v9595
  %v9714 = vpop.f32.mrf.mxu0
  %v9715 = vadd.f32 0.0, %v9714
  %v9716 = vpop.f32.mrf.mxu0
  %v9717 = vpop.f32.mrf.mxu0
  %v9718 = vadd.f32 0.0, %v9717
  %v9719 = vpop.f32.mrf.mxu0
  %9720 = vmatprep.mubr.bf16.mxu0 0
  %9721 = vmatmul.mubr.bf16.gmra.mxu0 %v9598
  %v9722 = vpop.f32.mrf.mxu0
  %v9723 = vadd.f32 0.0, %v9722
  %v9724 = vpop.f32.mrf.mxu0
  %v9725 = vpop.f32.mrf.mxu0
  %v9726 = vadd.f32 0.0, %v9725
  %v9727 = vpop.f32.mrf.mxu0
  %9728 = vmatprep.mubr.bf16.mxu0 0
  %9729 = vmatmul.mubr.bf16.gmra.mxu0 %v9601
  %v9730 = vpop.f32.mrf.mxu0
  %v9731 = vadd.f32 0.0, %v9730
  %v9732 = vpop.f32.mrf.mxu0
  %v9733 = vpop.f32.mrf.mxu0
  %v9734 = vadd.f32 0.0, %v9733
  %v9735 = vpop.f32.mrf.mxu0
  %9736 = vmatprep.mubr.bf16.mxu0 0
  %9737 = vmatmul.mubr.bf16.gmra.mxu0 %v9604
  %v9738 = vpop.f32.mrf.mxu0
  %v9739 = vadd.f32 0.0, %v9738
  %v9740 = vpop.f32.mrf.mxu0
  %v9741 = vpop.f32.mrf.mxu0
  %v9742 = vadd.f32 0.0, %v9741
  %v9743 = vpop.f32.mrf.mxu0
  %9744 = vmatprep.mubr.bf16.mxu0 0
  %9745 = vmatmul.mubr.bf16.gmra.mxu0 %v9607
  %v9746 = vpop.f32.mrf.mxu0
  %v9747 = vadd.f32 0.0, %v9746
  %v9748 = vpop.f32.mrf.mxu0
  %v9749 = vpop.f32.mrf.mxu0
  %v9750 = vadd.f32 0.0, %v9749
  %v9751 = vpop.f32.mrf.mxu0
  %9752 = vmatprep.mubr.bf16.mxu0 0
  %9753 = vmatmul.mubr.bf16.gmra.mxu0 %v9610
  %v9754 = vpop.f32.mrf.mxu0
  %v9755 = vadd.f32 0.0, %v9754
  %v9756 = vpop.f32.mrf.mxu0
  %v9757 = vpop.f32.mrf.mxu0
  %v9758 = vadd.f32 0.0, %v9757
  %v9759 = vpop.f32.mrf.mxu0
  %9760 = vmatprep.mubr.bf16.mxu0 0
  %9761 = vmatmul.mubr.bf16.gmra.mxu0 %v9613
  %v9762 = vpop.f32.mrf.mxu0
  %v9763 = vadd.f32 0.0, %v9762
  %v9764 = vpop.f32.mrf.mxu0
  %v9765 = vpop.f32.mrf.mxu0
  %v9766 = vadd.f32 0.0, %v9765
  %v9767 = vpop.f32.mrf.mxu0
  %9768 = vmatprep.mubr.bf16.mxu0 0
  %9769 = vmatmul.mubr.bf16.gmra.mxu0 %v9616
  %v9770 = vpop.f32.mrf.mxu0
  %v9771 = vadd.f32 0.0, %v9770
  %v9772 = vpop.f32.mrf.mxu0
  %v9773 = vpop.f32.mrf.mxu0
  %v9774 = vadd.f32 0.0, %v9773
  %v9775 = vpop.f32.mrf.mxu0
  %9776 = vmatprep.mubr.bf16.mxu0 0
  %9777 = vmatmul.mubr.bf16.gmra.mxu0 %v9619
  %v9778 = vpop.f32.mrf.mxu0
  %v9779 = vadd.f32 0.0, %v9778
  %v9780 = vpop.f32.mrf.mxu0
  %v9781 = vpop.f32.mrf.mxu0
  %v9782 = vadd.f32 0.0, %v9781
  %v9783 = vpop.f32.mrf.mxu0
  %9784 = vdwg.mxu0
  %v9785 = vadd.f32 %v9492, %v9659
  %v9786 = vadd.f32 %v9493, %v9662
  %v9787 = vadd.f32 %v9494, %v9667
  %v9788 = vadd.f32 %v9495, %v9670
  %v9789 = vadd.f32 %v9496, %v9675
  %v9790 = vadd.f32 %v9497, %v9678
  %v9791 = vadd.f32 %v9498, %v9683
  %v9792 = vadd.f32 %v9499, %v9686
  %v9793 = vadd.f32 %v9500, %v9691
  %v9794 = vadd.f32 %v9501, %v9694
  %v9795 = vadd.f32 %v9502, %v9699
  %v9796 = vadd.f32 %v9503, %v9702
  %v9797 = vadd.f32 %v9504, %v9707
  %v9798 = vadd.f32 %v9505, %v9710
  %v9799 = vadd.f32 %v9506, %v9715
  %v9800 = vadd.f32 %v9507, %v9718
  %v9801 = vadd.f32 %v9508, %v9723
  %v9802 = vadd.f32 %v9509, %v9726
  %v9803 = vadd.f32 %v9510, %v9731
  %v9804 = vadd.f32 %v9511, %v9734
  %v9805 = vadd.f32 %v9512, %v9739
  %v9806 = vadd.f32 %v9513, %v9742
  %v9807 = vadd.f32 %v9514, %v9747
  %v9808 = vadd.f32 %v9515, %v9750
  %v9809 = vadd.f32 %v9516, %v9755
  %v9810 = vadd.f32 %v9517, %v9758
  %v9811 = vadd.f32 %v9518, %v9763
  %v9812 = vadd.f32 %v9519, %v9766
  %v9813 = vadd.f32 %v9520, %v9771
  %v9814 = vadd.f32 %v9521, %v9774
  %v9815 = vadd.f32 %v9522, %v9779
  %v9816 = vadd.f32 %v9523, %v9782
  %v9817 = vld [vmem:[%s73 + $0x2] sm:$0xff]
  %v9818 = vld [vmem:[%s73 + $0xa] sm:$0xff]
  %v9819 = vld [vmem:[%s73 + $0x1a] sm:$0xff]
  %v9820 = vld [vmem:[%s73 + $0x22] sm:$0xff]
  %v9821 = vld [vmem:[%s73 + $0x32] sm:$0xff]
  %v9822 = vld [vmem:[%s73 + $0x3a] sm:$0xff]
  %v9823 = vld [vmem:[%s73 + $0x4a] sm:$0xff]
  %v9824 = vld [vmem:[%s73 + $0x52] sm:$0xff]
  %v9825 = vld [vmem:[%s73 + $0x62] sm:$0xff]
  %v9826 = vld [vmem:[%s73 + $0x6a] sm:$0xff]
  %v9827 = vld [vmem:[%s73 + $0x7a] sm:$0xff]
  %v9828 = vld [vmem:[%s73 + $0x82] sm:$0xff]
  %v9829 = vld [vmem:[%s73 + $0x92] sm:$0xff]
  %v9830 = vld [vmem:[%s73 + $0x9a] sm:$0xff]
  %v9831 = vld [vmem:[%s73 + $0xaa] sm:$0xff]
  %v9832 = vld [vmem:[%s73 + $0xb2] sm:$0xff]
  %v9833 = vld [vmem:[%s73 + $0xc2] sm:$0xff]
  %v9834 = vld [vmem:[%s73 + $0xca] sm:$0xff]
  %v9835 = vld [vmem:[%s73 + $0xda] sm:$0xff]
  %v9836 = vld [vmem:[%s73 + $0xe2] sm:$0xff]
  %v9837 = vld [vmem:[%s73 + $0xf2] sm:$0xff]
  %v9838 = vld [vmem:[%s73 + $0xfa] sm:$0xff]
  %v9839 = vld [vmem:[%s73 + $0x10a] sm:$0xff]
  %v9840 = vld [vmem:[%s73 + $0x112] sm:$0xff]
  %v9841 = vld [vmem:[%s73 + $0x122] sm:$0xff]
  %v9842 = vld [vmem:[%s73 + $0x12a] sm:$0xff]
  %v9843 = vld [vmem:[%s73 + $0x13a] sm:$0xff]
  %v9844 = vld [vmem:[%s73 + $0x142] sm:$0xff]
  %v9845 = vld [vmem:[%s73 + $0x152] sm:$0xff]
  %v9846 = vld [vmem:[%s73 + $0x15a] sm:$0xff]
  %v9847 = vld [vmem:[%s73 + $0x16a] sm:$0xff]
  %v9848 = vld [vmem:[%s73 + $0x172] sm:$0xff]
  %v9849 = vpack.c.bf16 %v9818, %v9817
  %v9850 = vpack.c.bf16 %v9820, %v9819
  %v9851 = vpack.c.bf16 %v9822, %v9821
  %v9852 = vpack.c.bf16 %v9824, %v9823
  %v9853 = vpack.c.bf16 %v9826, %v9825
  %v9854 = vpack.c.bf16 %v9828, %v9827
  %v9855 = vpack.c.bf16 %v9830, %v9829
  %v9856 = vpack.c.bf16 %v9832, %v9831
  %v9857 = vpack.c.bf16 %v9834, %v9833
  %v9858 = vpack.c.bf16 %v9836, %v9835
  %v9859 = vpack.c.bf16 %v9838, %v9837
  %v9860 = vpack.c.bf16 %v9840, %v9839
  %v9861 = vpack.c.bf16 %v9842, %v9841
  %v9862 = vpack.c.bf16 %v9844, %v9843
  %v9863 = vpack.c.bf16 %v9846, %v9845
  %v9864 = vpack.c.bf16 %v9848, %v9847
  %v9865 = vld [vmem:[%s4314] sm:$0xf]
  %v9867 = vsel %vm64, %v9849, 0
  %v9870 = vsel %vm64, %v9850, 0
  %v9873 = vsel %vm64, %v9851, 0
  %v9876 = vsel %vm64, %v9852, 0
  %v9879 = vsel %vm64, %v9853, 0
  %v9882 = vsel %vm64, %v9854, 0
  %v9885 = vsel %vm64, %v9855, 0
  %v9888 = vsel %vm64, %v9856, 0
  %v9891 = vsel %vm64, %v9857, 0
  %v9894 = vsel %vm64, %v9858, 0
  %v9897 = vsel %vm64, %v9859, 0
  %v9900 = vsel %vm64, %v9860, 0
  %v9903 = vsel %vm64, %v9861, 0
  %v9906 = vsel %vm64, %v9862, 0
  %v9909 = vsel %vm64, %v9863, 0
  %v9912 = vsel %vm64, %v9864, 0
  %v9915 = vsel %vm3007, %v9865, 0
  %9917 = vmatprep.subr.bf16.mxu0 0
  %9918 = vmatpush1.bf16.msra.mxu0 0
  %9919 = vmatprep.subr.bf16.mxu0 0
  %9920 = vmatpush1.bf16.msra.mxu0 0
  %9921 = vmatprep.subr.bf16.mxu0 0
  %9922 = vmatpush1.bf16.msra.mxu0 0
  %9923 = vmatprep.subr.bf16.mxu0 0
  %9924 = vmatpush1.bf16.msra.mxu0 0
  %9925 = vmatprep.subr.bf16.mxu0 0
  %9926 = vmatpush1.bf16.msra.mxu0 0
  %9927 = vmatprep.subr.bf16.mxu0 0
  %9928 = vmatpush1.bf16.msra.mxu0 0
  %9929 = vmatprep.subr.bf16.mxu0 0
  %9930 = vmatpush1.bf16.msra.mxu0 0
  %9931 = vmatprep.subr.bf16.mxu0 0
  %9932 = vmatpush1.bf16.msra.mxu0 %v9915
  %9933 = vmatprep.subr.bf16.mxu0 0
  %9934 = vmatpush2.bf16.msra.mxu0 0
  %9935 = vmatprep.subr.bf16.mxu0 0
  %9936 = vmatpush2.bf16.msra.mxu0 0
  %9937 = vmatprep.subr.bf16.mxu0 0
  %9938 = vmatpush2.bf16.msra.mxu0 0
  %9939 = vmatprep.subr.bf16.mxu0 0
  %9940 = vmatpush2.bf16.msra.mxu0 0
  %9941 = vmatprep.subr.bf16.mxu0 0
  %9942 = vmatpush2.bf16.msra.mxu0 0
  %9943 = vmatprep.subr.bf16.mxu0 0
  %9944 = vmatpush2.bf16.msra.mxu0 0
  %9945 = vmatprep.subr.bf16.mxu0 0
  %9946 = vmatpush2.bf16.msra.mxu0 0
  %9947 = vmatprep.subr.bf16.mxu0 0
  %9948 = vmatpush2.bf16.msra.mxu0 0
  %9949 = vmatprep.mubr.bf16.mxu0 0
  %9950 = vmatmul.mubr.bf16.gmra.mxu0 %v9867
  %v9951 = vpop.f32.mrf.mxu0
  %v9952 = vadd.f32 0.0, %v9951
  %v9953 = vpop.f32.mrf.mxu0
  %v9954 = vpop.f32.mrf.mxu0
  %v9955 = vadd.f32 0.0, %v9954
  %v9956 = vpop.f32.mrf.mxu0
  %9957 = vmatprep.mubr.bf16.mxu0 0
  %9958 = vmatmul.mubr.bf16.gmra.mxu0 %v9870
  %v9959 = vpop.f32.mrf.mxu0
  %v9960 = vadd.f32 0.0, %v9959
  %v9961 = vpop.f32.mrf.mxu0
  %v9962 = vpop.f32.mrf.mxu0
  %v9963 = vadd.f32 0.0, %v9962
  %v9964 = vpop.f32.mrf.mxu0
  %9965 = vmatprep.mubr.bf16.mxu0 0
  %9966 = vmatmul.mubr.bf16.gmra.mxu0 %v9873
  %v9967 = vpop.f32.mrf.mxu0
  %v9968 = vadd.f32 0.0, %v9967
  %v9969 = vpop.f32.mrf.mxu0
  %v9970 = vpop.f32.mrf.mxu0
  %v9971 = vadd.f32 0.0, %v9970
  %v9972 = vpop.f32.mrf.mxu0
  %9973 = vmatprep.mubr.bf16.mxu0 0
  %9974 = vmatmul.mubr.bf16.gmra.mxu0 %v9876
  %v9975 = vpop.f32.mrf.mxu0
  %v9976 = vadd.f32 0.0, %v9975
  %v9977 = vpop.f32.mrf.mxu0
  %v9978 = vpop.f32.mrf.mxu0
  %v9979 = vadd.f32 0.0, %v9978
  %v9980 = vpop.f32.mrf.mxu0
  %9981 = vmatprep.mubr.bf16.mxu0 0
  %9982 = vmatmul.mubr.bf16.gmra.mxu0 %v9879
  %v9983 = vpop.f32.mrf.mxu0
  %v9984 = vadd.f32 0.0, %v9983
  %v9985 = vpop.f32.mrf.mxu0
  %v9986 = vpop.f32.mrf.mxu0
  %v9987 = vadd.f32 0.0, %v9986
  %v9988 = vpop.f32.mrf.mxu0
  %9989 = vmatprep.mubr.bf16.mxu0 0
  %9990 = vmatmul.mubr.bf16.gmra.mxu0 %v9882
  %v9991 = vpop.f32.mrf.mxu0
  %v9992 = vadd.f32 0.0, %v9991
  %v9993 = vpop.f32.mrf.mxu0
  %v9994 = vpop.f32.mrf.mxu0
  %v9995 = vadd.f32 0.0, %v9994
  %v9996 = vpop.f32.mrf.mxu0
  %9997 = vmatprep.mubr.bf16.mxu0 0
  %9998 = vmatmul.mubr.bf16.gmra.mxu0 %v9885
  %v9999 = vpop.f32.mrf.mxu0
  %v10000 = vadd.f32 0.0, %v9999
  %v10001 = vpop.f32.mrf.mxu0
  %v10002 = vpop.f32.mrf.mxu0
  %v10003 = vadd.f32 0.0, %v10002
  %v10004 = vpop.f32.mrf.mxu0
  %10005 = vmatprep.mubr.bf16.mxu0 0
  %10006 = vmatmul.mubr.bf16.gmra.mxu0 %v9888
  %v10007 = vpop.f32.mrf.mxu0
  %v10008 = vadd.f32 0.0, %v10007
  %v10009 = vpop.f32.mrf.mxu0
  %v10010 = vpop.f32.mrf.mxu0
  %v10011 = vadd.f32 0.0, %v10010
  %v10012 = vpop.f32.mrf.mxu0
  %10013 = vmatprep.mubr.bf16.mxu0 0
  %10014 = vmatmul.mubr.bf16.gmra.mxu0 %v9891
  %v10015 = vpop.f32.mrf.mxu0
  %v10016 = vadd.f32 0.0, %v10015
  %v10017 = vpop.f32.mrf.mxu0
  %v10018 = vpop.f32.mrf.mxu0
  %v10019 = vadd.f32 0.0, %v10018
  %v10020 = vpop.f32.mrf.mxu0
  %10021 = vmatprep.mubr.bf16.mxu0 0
  %10022 = vmatmul.mubr.bf16.gmra.mxu0 %v9894
  %v10023 = vpop.f32.mrf.mxu0
  %v10024 = vadd.f32 0.0, %v10023
  %v10025 = vpop.f32.mrf.mxu0
  %v10026 = vpop.f32.mrf.mxu0
  %v10027 = vadd.f32 0.0, %v10026
  %v10028 = vpop.f32.mrf.mxu0
  %10029 = vmatprep.mubr.bf16.mxu0 0
  %10030 = vmatmul.mubr.bf16.gmra.mxu0 %v9897
  %v10031 = vpop.f32.mrf.mxu0
  %v10032 = vadd.f32 0.0, %v10031
  %v10033 = vpop.f32.mrf.mxu0
  %v10034 = vpop.f32.mrf.mxu0
  %v10035 = vadd.f32 0.0, %v10034
  %v10036 = vpop.f32.mrf.mxu0
  %10037 = vmatprep.mubr.bf16.mxu0 0
  %10038 = vmatmul.mubr.bf16.gmra.mxu0 %v9900
  %v10039 = vpop.f32.mrf.mxu0
  %v10040 = vadd.f32 0.0, %v10039
  %v10041 = vpop.f32.mrf.mxu0
  %v10042 = vpop.f32.mrf.mxu0
  %v10043 = vadd.f32 0.0, %v10042
  %v10044 = vpop.f32.mrf.mxu0
  %10045 = vmatprep.mubr.bf16.mxu0 0
  %10046 = vmatmul.mubr.bf16.gmra.mxu0 %v9903
  %v10047 = vpop.f32.mrf.mxu0
  %v10048 = vadd.f32 0.0, %v10047
  %v10049 = vpop.f32.mrf.mxu0
  %v10050 = vpop.f32.mrf.mxu0
  %v10051 = vadd.f32 0.0, %v10050
  %v10052 = vpop.f32.mrf.mxu0
  %10053 = vmatprep.mubr.bf16.mxu0 0
  %10054 = vmatmul.mubr.bf16.gmra.mxu0 %v9906
  %v10055 = vpop.f32.mrf.mxu0
  %v10056 = vadd.f32 0.0, %v10055
  %v10057 = vpop.f32.mrf.mxu0
  %v10058 = vpop.f32.mrf.mxu0
  %v10059 = vadd.f32 0.0, %v10058
  %v10060 = vpop.f32.mrf.mxu0
  %10061 = vmatprep.mubr.bf16.mxu0 0
  %10062 = vmatmul.mubr.bf16.gmra.mxu0 %v9909
  %v10063 = vpop.f32.mrf.mxu0
  %v10064 = vadd.f32 0.0, %v10063
  %v10065 = vpop.f32.mrf.mxu0
  %v10066 = vpop.f32.mrf.mxu0
  %v10067 = vadd.f32 0.0, %v10066
  %v10068 = vpop.f32.mrf.mxu0
  %10069 = vmatprep.mubr.bf16.mxu0 0
  %10070 = vmatmul.mubr.bf16.gmra.mxu0 %v9912
  %v10071 = vpop.f32.mrf.mxu0
  %v10072 = vadd.f32 0.0, %v10071
  %v10073 = vpop.f32.mrf.mxu0
  %v10074 = vpop.f32.mrf.mxu0
  %v10075 = vadd.f32 0.0, %v10074
  %v10076 = vpop.f32.mrf.mxu0
  %10077 = vdwg.mxu0
  %v10078 = vadd.f32 %v9785, %v9952
  %v10079 = vadd.f32 %v9786, %v9955
  %v10080 = vadd.f32 %v9787, %v9960
  %v10081 = vadd.f32 %v9788, %v9963
  %v10082 = vadd.f32 %v9789, %v9968
  %v10083 = vadd.f32 %v9790, %v9971
  %v10084 = vadd.f32 %v9791, %v9976
  %v10085 = vadd.f32 %v9792, %v9979
  %v10086 = vadd.f32 %v9793, %v9984
  %v10087 = vadd.f32 %v9794, %v9987
  %v10088 = vadd.f32 %v9795, %v9992
  %v10089 = vadd.f32 %v9796, %v9995
  %v10090 = vadd.f32 %v9797, %v10000
  %v10091 = vadd.f32 %v9798, %v10003
  %v10092 = vadd.f32 %v9799, %v10008
  %v10093 = vadd.f32 %v9800, %v10011
  %v10094 = vadd.f32 %v9801, %v10016
  %v10095 = vadd.f32 %v9802, %v10019
  %v10096 = vadd.f32 %v9803, %v10024
  %v10097 = vadd.f32 %v9804, %v10027
  %v10098 = vadd.f32 %v9805, %v10032
  %v10099 = vadd.f32 %v9806, %v10035
  %v10100 = vadd.f32 %v9807, %v10040
  %v10101 = vadd.f32 %v9808, %v10043
  %v10102 = vadd.f32 %v9809, %v10048
  %v10103 = vadd.f32 %v9810, %v10051
  %v10104 = vadd.f32 %v9811, %v10056
  %v10105 = vadd.f32 %v9812, %v10059
  %v10106 = vadd.f32 %v9813, %v10064
  %v10107 = vadd.f32 %v9814, %v10067
  %v10108 = vadd.f32 %v9815, %v10072
  %v10109 = vadd.f32 %v9816, %v10075
  %v10110 = vld [vmem:[%s4560] sm:$0xff]
  %v10111 = vld [vmem:[%s4560 + $0x8] sm:$0xff]
  %v10112 = vld [vmem:[%s4560 + $0x18] sm:$0xff]
  %v10113 = vld [vmem:[%s4560 + $0x20] sm:$0xff]
  %v10114 = vld [vmem:[%s4560 + $0x30] sm:$0xff]
  %v10115 = vld [vmem:[%s4560 + $0x38] sm:$0xff]
  %v10116 = vld [vmem:[%s4560 + $0x48] sm:$0xff]
  %v10117 = vld [vmem:[%s4560 + $0x50] sm:$0xff]
  %v10118 = vld [vmem:[%s4560 + $0x60] sm:$0xff]
  %v10119 = vld [vmem:[%s4560 + $0x68] sm:$0xff]
  %v10120 = vld [vmem:[%s4560 + $0x78] sm:$0xff]
  %v10121 = vld [vmem:[%s4560 + $0x80] sm:$0xff]
  %v10122 = vld [vmem:[%s4560 + $0x90] sm:$0xff]
  %v10123 = vld [vmem:[%s4560 + $0x98] sm:$0xff]
  %v10124 = vld [vmem:[%s4560 + $0xa8] sm:$0xff]
  %v10125 = vld [vmem:[%s4560 + $0xb0] sm:$0xff]
  %v10126 = vld [vmem:[%s4560 + $0xc0] sm:$0xff]
  %v10127 = vld [vmem:[%s4560 + $0xc8] sm:$0xff]
  %v10128 = vld [vmem:[%s4560 + $0xd8] sm:$0xff]
  %v10129 = vld [vmem:[%s4560 + $0xe0] sm:$0xff]
  %v10130 = vld [vmem:[%s4560 + $0xf0] sm:$0xff]
  %v10131 = vld [vmem:[%s4560 + $0xf8] sm:$0xff]
  %v10132 = vld [vmem:[%s4560 + $0x108] sm:$0xff]
  %v10133 = vld [vmem:[%s4560 + $0x110] sm:$0xff]
  %v10134 = vld [vmem:[%s4560 + $0x120] sm:$0xff]
  %v10135 = vld [vmem:[%s4560 + $0x128] sm:$0xff]
  %v10136 = vld [vmem:[%s4560 + $0x138] sm:$0xff]
  %v10137 = vld [vmem:[%s4560 + $0x140] sm:$0xff]
  %v10138 = vld [vmem:[%s4560 + $0x150] sm:$0xff]
  %v10139 = vld [vmem:[%s4560 + $0x158] sm:$0xff]
  %v10140 = vld [vmem:[%s4560 + $0x168] sm:$0xff]
  %v10141 = vld [vmem:[%s4560 + $0x170] sm:$0xff]
  %v10142 = vpack.c.bf16 %v10111, %v10110
  %v10143 = vpack.c.bf16 %v10113, %v10112
  %v10144 = vpack.c.bf16 %v10115, %v10114
  %v10145 = vpack.c.bf16 %v10117, %v10116
  %v10146 = vpack.c.bf16 %v10119, %v10118
  %v10147 = vpack.c.bf16 %v10121, %v10120
  %v10148 = vpack.c.bf16 %v10123, %v10122
  %v10149 = vpack.c.bf16 %v10125, %v10124
  %v10150 = vpack.c.bf16 %v10127, %v10126
  %v10151 = vpack.c.bf16 %v10129, %v10128
  %v10152 = vpack.c.bf16 %v10131, %v10130
  %v10153 = vpack.c.bf16 %v10133, %v10132
  %v10154 = vpack.c.bf16 %v10135, %v10134
  %v10155 = vpack.c.bf16 %v10137, %v10136
  %v10156 = vpack.c.bf16 %v10139, %v10138
  %v10157 = vpack.c.bf16 %v10141, %v10140
  %v10158 = vld [vmem:[%s4609] sm:$0xf]
  %v10160 = vsel %vm64, %v10142, 0
  %v10163 = vsel %vm64, %v10143, 0
  %v10166 = vsel %vm64, %v10144, 0
  %v10169 = vsel %vm64, %v10145, 0
  %v10172 = vsel %vm64, %v10146, 0
  %v10175 = vsel %vm64, %v10147, 0
  %v10178 = vsel %vm64, %v10148, 0
  %v10181 = vsel %vm64, %v10149, 0
  %v10184 = vsel %vm64, %v10150, 0
  %v10187 = vsel %vm64, %v10151, 0
  %v10190 = vsel %vm64, %v10152, 0
  %v10193 = vsel %vm64, %v10153, 0
  %v10196 = vsel %vm64, %v10154, 0
  %v10199 = vsel %vm64, %v10155, 0
  %v10202 = vsel %vm64, %v10156, 0
  %v10205 = vsel %vm64, %v10157, 0
  %v10208 = vsel %vm3007, %v10158, 0
  %10210 = vmatprep.subr.bf16.mxu0 0
  %10211 = vmatpush1.bf16.msra.mxu0 0
  %10212 = vmatprep.subr.bf16.mxu0 0
  %10213 = vmatpush1.bf16.msra.mxu0 0
  %10214 = vmatprep.subr.bf16.mxu0 0
  %10215 = vmatpush1.bf16.msra.mxu0 0
  %10216 = vmatprep.subr.bf16.mxu0 0
  %10217 = vmatpush1.bf16.msra.mxu0 0
  %10218 = vmatprep.subr.bf16.mxu0 0
  %10219 = vmatpush1.bf16.msra.mxu0 0
  %10220 = vmatprep.subr.bf16.mxu0 0
  %10221 = vmatpush1.bf16.msra.mxu0 0
  %10222 = vmatprep.subr.bf16.mxu0 0
  %10223 = vmatpush1.bf16.msra.mxu0 0
  %10224 = vmatprep.subr.bf16.mxu0 0
  %10225 = vmatpush1.bf16.msra.mxu0 %v10208
  %10226 = vmatprep.subr.bf16.mxu0 0
  %10227 = vmatpush2.bf16.msra.mxu0 0
  %10228 = vmatprep.subr.bf16.mxu0 0
  %10229 = vmatpush2.bf16.msra.mxu0 0
  %10230 = vmatprep.subr.bf16.mxu0 0
  %10231 = vmatpush2.bf16.msra.mxu0 0
  %10232 = vmatprep.subr.bf16.mxu0 0
  %10233 = vmatpush2.bf16.msra.mxu0 0
  %10234 = vmatprep.subr.bf16.mxu0 0
  %10235 = vmatpush2.bf16.msra.mxu0 0
  %10236 = vmatprep.subr.bf16.mxu0 0
  %10237 = vmatpush2.bf16.msra.mxu0 0
  %10238 = vmatprep.subr.bf16.mxu0 0
  %10239 = vmatpush2.bf16.msra.mxu0 0
  %10240 = vmatprep.subr.bf16.mxu0 0
  %10241 = vmatpush2.bf16.msra.mxu0 0
  %10242 = vmatprep.mubr.bf16.mxu0 0
  %10243 = vmatmul.mubr.bf16.gmra.mxu0 %v10160
  %v10244 = vpop.f32.mrf.mxu0
  %v10245 = vadd.f32 0.0, %v10244
  %v10246 = vpop.f32.mrf.mxu0
  %v10247 = vpop.f32.mrf.mxu0
  %v10248 = vadd.f32 0.0, %v10247
  %v10249 = vpop.f32.mrf.mxu0
  %10250 = vmatprep.mubr.bf16.mxu0 0
  %10251 = vmatmul.mubr.bf16.gmra.mxu0 %v10163
  %v10252 = vpop.f32.mrf.mxu0
  %v10253 = vadd.f32 0.0, %v10252
  %v10254 = vpop.f32.mrf.mxu0
  %v10255 = vpop.f32.mrf.mxu0
  %v10256 = vadd.f32 0.0, %v10255
  %v10257 = vpop.f32.mrf.mxu0
  %10258 = vmatprep.mubr.bf16.mxu0 0
  %10259 = vmatmul.mubr.bf16.gmra.mxu0 %v10166
  %v10260 = vpop.f32.mrf.mxu0
  %v10261 = vadd.f32 0.0, %v10260
  %v10262 = vpop.f32.mrf.mxu0
  %v10263 = vpop.f32.mrf.mxu0
  %v10264 = vadd.f32 0.0, %v10263
  %v10265 = vpop.f32.mrf.mxu0
  %10266 = vmatprep.mubr.bf16.mxu0 0
  %10267 = vmatmul.mubr.bf16.gmra.mxu0 %v10169
  %v10268 = vpop.f32.mrf.mxu0
  %v10269 = vadd.f32 0.0, %v10268
  %v10270 = vpop.f32.mrf.mxu0
  %v10271 = vpop.f32.mrf.mxu0
  %v10272 = vadd.f32 0.0, %v10271
  %v10273 = vpop.f32.mrf.mxu0
  %10274 = vmatprep.mubr.bf16.mxu0 0
  %10275 = vmatmul.mubr.bf16.gmra.mxu0 %v10172
  %v10276 = vpop.f32.mrf.mxu0
  %v10277 = vadd.f32 0.0, %v10276
  %v10278 = vpop.f32.mrf.mxu0
  %v10279 = vpop.f32.mrf.mxu0
  %v10280 = vadd.f32 0.0, %v10279
  %v10281 = vpop.f32.mrf.mxu0
  %10282 = vmatprep.mubr.bf16.mxu0 0
  %10283 = vmatmul.mubr.bf16.gmra.mxu0 %v10175
  %v10284 = vpop.f32.mrf.mxu0
  %v10285 = vadd.f32 0.0, %v10284
  %v10286 = vpop.f32.mrf.mxu0
  %v10287 = vpop.f32.mrf.mxu0
  %v10288 = vadd.f32 0.0, %v10287
  %v10289 = vpop.f32.mrf.mxu0
  %10290 = vmatprep.mubr.bf16.mxu0 0
  %10291 = vmatmul.mubr.bf16.gmra.mxu0 %v10178
  %v10292 = vpop.f32.mrf.mxu0
  %v10293 = vadd.f32 0.0, %v10292
  %v10294 = vpop.f32.mrf.mxu0
  %v10295 = vpop.f32.mrf.mxu0
  %v10296 = vadd.f32 0.0, %v10295
  %v10297 = vpop.f32.mrf.mxu0
  %10298 = vmatprep.mubr.bf16.mxu0 0
  %10299 = vmatmul.mubr.bf16.gmra.mxu0 %v10181
  %v10300 = vpop.f32.mrf.mxu0
  %v10301 = vadd.f32 0.0, %v10300
  %v10302 = vpop.f32.mrf.mxu0
  %v10303 = vpop.f32.mrf.mxu0
  %v10304 = vadd.f32 0.0, %v10303
  %v10305 = vpop.f32.mrf.mxu0
  %10306 = vmatprep.mubr.bf16.mxu0 0
  %10307 = vmatmul.mubr.bf16.gmra.mxu0 %v10184
  %v10308 = vpop.f32.mrf.mxu0
  %v10309 = vadd.f32 0.0, %v10308
  %v10310 = vpop.f32.mrf.mxu0
  %v10311 = vpop.f32.mrf.mxu0
  %v10312 = vadd.f32 0.0, %v10311
  %v10313 = vpop.f32.mrf.mxu0
  %10314 = vmatprep.mubr.bf16.mxu0 0
  %10315 = vmatmul.mubr.bf16.gmra.mxu0 %v10187
  %v10316 = vpop.f32.mrf.mxu0
  %v10317 = vadd.f32 0.0, %v10316
  %v10318 = vpop.f32.mrf.mxu0
  %v10319 = vpop.f32.mrf.mxu0
  %v10320 = vadd.f32 0.0, %v10319
  %v10321 = vpop.f32.mrf.mxu0
  %10322 = vmatprep.mubr.bf16.mxu0 0
  %10323 = vmatmul.mubr.bf16.gmra.mxu0 %v10190
  %v10324 = vpop.f32.mrf.mxu0
  %v10325 = vadd.f32 0.0, %v10324
  %v10326 = vpop.f32.mrf.mxu0
  %v10327 = vpop.f32.mrf.mxu0
  %v10328 = vadd.f32 0.0, %v10327
  %v10329 = vpop.f32.mrf.mxu0
  %10330 = vmatprep.mubr.bf16.mxu0 0
  %10331 = vmatmul.mubr.bf16.gmra.mxu0 %v10193
  %v10332 = vpop.f32.mrf.mxu0
  %v10333 = vadd.f32 0.0, %v10332
  %v10334 = vpop.f32.mrf.mxu0
  %v10335 = vpop.f32.mrf.mxu0
  %v10336 = vadd.f32 0.0, %v10335
  %v10337 = vpop.f32.mrf.mxu0
  %10338 = vmatprep.mubr.bf16.mxu0 0
  %10339 = vmatmul.mubr.bf16.gmra.mxu0 %v10196
  %v10340 = vpop.f32.mrf.mxu0
  %v10341 = vadd.f32 0.0, %v10340
  %v10342 = vpop.f32.mrf.mxu0
  %v10343 = vpop.f32.mrf.mxu0
  %v10344 = vadd.f32 0.0, %v10343
  %v10345 = vpop.f32.mrf.mxu0
  %10346 = vmatprep.mubr.bf16.mxu0 0
  %10347 = vmatmul.mubr.bf16.gmra.mxu0 %v10199
  %v10348 = vpop.f32.mrf.mxu0
  %v10349 = vadd.f32 0.0, %v10348
  %v10350 = vpop.f32.mrf.mxu0
  %v10351 = vpop.f32.mrf.mxu0
  %v10352 = vadd.f32 0.0, %v10351
  %v10353 = vpop.f32.mrf.mxu0
  %10354 = vmatprep.mubr.bf16.mxu0 0
  %10355 = vmatmul.mubr.bf16.gmra.mxu0 %v10202
  %v10356 = vpop.f32.mrf.mxu0
  %v10357 = vadd.f32 0.0, %v10356
  %v10358 = vpop.f32.mrf.mxu0
  %v10359 = vpop.f32.mrf.mxu0
  %v10360 = vadd.f32 0.0, %v10359
  %v10361 = vpop.f32.mrf.mxu0
  %10362 = vmatprep.mubr.bf16.mxu0 0
  %10363 = vmatmul.mubr.bf16.gmra.mxu0 %v10205
  %v10364 = vpop.f32.mrf.mxu0
  %v10365 = vadd.f32 0.0, %v10364
  %v10366 = vpop.f32.mrf.mxu0
  %v10367 = vpop.f32.mrf.mxu0
  %v10368 = vadd.f32 0.0, %v10367
  %v10369 = vpop.f32.mrf.mxu0
  %10370 = vdwg.mxu0
  %v10371 = vadd.f32 %v10078, %v10245
  %v10372 = vadd.f32 %v10079, %v10248
  %v10373 = vadd.f32 %v10080, %v10253
  %v10374 = vadd.f32 %v10081, %v10256
  %v10375 = vadd.f32 %v10082, %v10261
  %v10376 = vadd.f32 %v10083, %v10264
  %v10377 = vadd.f32 %v10084, %v10269
  %v10378 = vadd.f32 %v10085, %v10272
  %v10379 = vadd.f32 %v10086, %v10277
  %v10380 = vadd.f32 %v10087, %v10280
  %v10381 = vadd.f32 %v10088, %v10285
  %v10382 = vadd.f32 %v10089, %v10288
  %v10383 = vadd.f32 %v10090, %v10293
  %v10384 = vadd.f32 %v10091, %v10296
  %v10385 = vadd.f32 %v10092, %v10301
  %v10386 = vadd.f32 %v10093, %v10304
  %v10387 = vadd.f32 %v10094, %v10309
  %v10388 = vadd.f32 %v10095, %v10312
  %v10389 = vadd.f32 %v10096, %v10317
  %v10390 = vadd.f32 %v10097, %v10320
  %v10391 = vadd.f32 %v10098, %v10325
  %v10392 = vadd.f32 %v10099, %v10328
  %v10393 = vadd.f32 %v10100, %v10333
  %v10394 = vadd.f32 %v10101, %v10336
  %v10395 = vadd.f32 %v10102, %v10341
  %v10396 = vadd.f32 %v10103, %v10344
  %v10397 = vadd.f32 %v10104, %v10349
  %v10398 = vadd.f32 %v10105, %v10352
  %v10399 = vadd.f32 %v10106, %v10357
  %v10400 = vadd.f32 %v10107, %v10360
  %v10401 = vadd.f32 %v10108, %v10365
  %v10402 = vadd.f32 %v10109, %v10368
  %v10403 = vld [vmem:[%s4560 + $0x1] sm:$0xff]
  %v10404 = vld [vmem:[%s4560 + $0x9] sm:$0xff]
  %v10405 = vld [vmem:[%s4560 + $0x19] sm:$0xff]
  %v10406 = vld [vmem:[%s4560 + $0x21] sm:$0xff]
  %v10407 = vld [vmem:[%s4560 + $0x31] sm:$0xff]
  %v10408 = vld [vmem:[%s4560 + $0x39] sm:$0xff]
  %v10409 = vld [vmem:[%s4560 + $0x49] sm:$0xff]
  %v10410 = vld [vmem:[%s4560 + $0x51] sm:$0xff]
  %v10411 = vld [vmem:[%s4560 + $0x61] sm:$0xff]
  %v10412 = vld [vmem:[%s4560 + $0x69] sm:$0xff]
  %v10413 = vld [vmem:[%s4560 + $0x79] sm:$0xff]
  %v10414 = vld [vmem:[%s4560 + $0x81] sm:$0xff]
  %v10415 = vld [vmem:[%s4560 + $0x91] sm:$0xff]
  %v10416 = vld [vmem:[%s4560 + $0x99] sm:$0xff]
  %v10417 = vld [vmem:[%s4560 + $0xa9] sm:$0xff]
  %v10418 = vld [vmem:[%s4560 + $0xb1] sm:$0xff]
  %v10419 = vld [vmem:[%s4560 + $0xc1] sm:$0xff]
  %v10420 = vld [vmem:[%s4560 + $0xc9] sm:$0xff]
  %v10421 = vld [vmem:[%s4560 + $0xd9] sm:$0xff]
  %v10422 = vld [vmem:[%s4560 + $0xe1] sm:$0xff]
  %v10423 = vld [vmem:[%s4560 + $0xf1] sm:$0xff]
  %v10424 = vld [vmem:[%s4560 + $0xf9] sm:$0xff]
  %v10425 = vld [vmem:[%s4560 + $0x109] sm:$0xff]
  %v10426 = vld [vmem:[%s4560 + $0x111] sm:$0xff]
  %v10427 = vld [vmem:[%s4560 + $0x121] sm:$0xff]
  %v10428 = vld [vmem:[%s4560 + $0x129] sm:$0xff]
  %v10429 = vld [vmem:[%s4560 + $0x139] sm:$0xff]
  %v10430 = vld [vmem:[%s4560 + $0x141] sm:$0xff]
  %v10431 = vld [vmem:[%s4560 + $0x151] sm:$0xff]
  %v10432 = vld [vmem:[%s4560 + $0x159] sm:$0xff]
  %v10433 = vld [vmem:[%s4560 + $0x169] sm:$0xff]
  %v10434 = vld [vmem:[%s4560 + $0x171] sm:$0xff]
  %v10435 = vpack.c.bf16 %v10404, %v10403
  %v10436 = vpack.c.bf16 %v10406, %v10405
  %v10437 = vpack.c.bf16 %v10408, %v10407
  %v10438 = vpack.c.bf16 %v10410, %v10409
  %v10439 = vpack.c.bf16 %v10412, %v10411
  %v10440 = vpack.c.bf16 %v10414, %v10413
  %v10441 = vpack.c.bf16 %v10416, %v10415
  %v10442 = vpack.c.bf16 %v10418, %v10417
  %v10443 = vpack.c.bf16 %v10420, %v10419
  %v10444 = vpack.c.bf16 %v10422, %v10421
  %v10445 = vpack.c.bf16 %v10424, %v10423
  %v10446 = vpack.c.bf16 %v10426, %v10425
  %v10447 = vpack.c.bf16 %v10428, %v10427
  %v10448 = vpack.c.bf16 %v10430, %v10429
  %v10449 = vpack.c.bf16 %v10432, %v10431
  %v10450 = vpack.c.bf16 %v10434, %v10433
  %v10451 = vld [vmem:[%s4903] sm:$0xf]
  %v10453 = vsel %vm64, %v10435, 0
  %v10456 = vsel %vm64, %v10436, 0
  %v10459 = vsel %vm64, %v10437, 0
  %v10462 = vsel %vm64, %v10438, 0
  %v10465 = vsel %vm64, %v10439, 0
  %v10468 = vsel %vm64, %v10440, 0
  %v10471 = vsel %vm64, %v10441, 0
  %v10474 = vsel %vm64, %v10442, 0
  %v10477 = vsel %vm64, %v10443, 0
  %v10480 = vsel %vm64, %v10444, 0
  %v10483 = vsel %vm64, %v10445, 0
  %v10486 = vsel %vm64, %v10446, 0
  %v10489 = vsel %vm64, %v10447, 0
  %v10492 = vsel %vm64, %v10448, 0
  %v10495 = vsel %vm64, %v10449, 0
  %v10498 = vsel %vm64, %v10450, 0
  %v10501 = vsel %vm3007, %v10451, 0
  %10503 = vmatprep.subr.bf16.mxu0 0
  %10504 = vmatpush1.bf16.msra.mxu0 0
  %10505 = vmatprep.subr.bf16.mxu0 0
  %10506 = vmatpush1.bf16.msra.mxu0 0
  %10507 = vmatprep.subr.bf16.mxu0 0
  %10508 = vmatpush1.bf16.msra.mxu0 0
  %10509 = vmatprep.subr.bf16.mxu0 0
  %10510 = vmatpush1.bf16.msra.mxu0 0
  %10511 = vmatprep.subr.bf16.mxu0 0
  %10512 = vmatpush1.bf16.msra.mxu0 0
  %10513 = vmatprep.subr.bf16.mxu0 0
  %10514 = vmatpush1.bf16.msra.mxu0 0
  %10515 = vmatprep.subr.bf16.mxu0 0
  %10516 = vmatpush1.bf16.msra.mxu0 0
  %10517 = vmatprep.subr.bf16.mxu0 0
  %10518 = vmatpush1.bf16.msra.mxu0 %v10501
  %10519 = vmatprep.subr.bf16.mxu0 0
  %10520 = vmatpush2.bf16.msra.mxu0 0
  %10521 = vmatprep.subr.bf16.mxu0 0
  %10522 = vmatpush2.bf16.msra.mxu0 0
  %10523 = vmatprep.subr.bf16.mxu0 0
  %10524 = vmatpush2.bf16.msra.mxu0 0
  %10525 = vmatprep.subr.bf16.mxu0 0
  %10526 = vmatpush2.bf16.msra.mxu0 0
  %10527 = vmatprep.subr.bf16.mxu0 0
  %10528 = vmatpush2.bf16.msra.mxu0 0
  %10529 = vmatprep.subr.bf16.mxu0 0
  %10530 = vmatpush2.bf16.msra.mxu0 0
  %10531 = vmatprep.subr.bf16.mxu0 0
  %10532 = vmatpush2.bf16.msra.mxu0 0
  %10533 = vmatprep.subr.bf16.mxu0 0
  %10534 = vmatpush2.bf16.msra.mxu0 0
  %10535 = vmatprep.mubr.bf16.mxu0 0
  %10536 = vmatmul.mubr.bf16.gmra.mxu0 %v10453
  %v10537 = vpop.f32.mrf.mxu0
  %v10538 = vadd.f32 0.0, %v10537
  %v10539 = vpop.f32.mrf.mxu0
  %v10540 = vpop.f32.mrf.mxu0
  %v10541 = vadd.f32 0.0, %v10540
  %v10542 = vpop.f32.mrf.mxu0
  %10543 = vmatprep.mubr.bf16.mxu0 0
  %10544 = vmatmul.mubr.bf16.gmra.mxu0 %v10456
  %v10545 = vpop.f32.mrf.mxu0
  %v10546 = vadd.f32 0.0, %v10545
  %v10547 = vpop.f32.mrf.mxu0
  %v10548 = vpop.f32.mrf.mxu0
  %v10549 = vadd.f32 0.0, %v10548
  %v10550 = vpop.f32.mrf.mxu0
  %10551 = vmatprep.mubr.bf16.mxu0 0
  %10552 = vmatmul.mubr.bf16.gmra.mxu0 %v10459
  %v10553 = vpop.f32.mrf.mxu0
  %v10554 = vadd.f32 0.0, %v10553
  %v10555 = vpop.f32.mrf.mxu0
  %v10556 = vpop.f32.mrf.mxu0
  %v10557 = vadd.f32 0.0, %v10556
  %v10558 = vpop.f32.mrf.mxu0
  %10559 = vmatprep.mubr.bf16.mxu0 0
  %10560 = vmatmul.mubr.bf16.gmra.mxu0 %v10462
  %v10561 = vpop.f32.mrf.mxu0
  %v10562 = vadd.f32 0.0, %v10561
  %v10563 = vpop.f32.mrf.mxu0
  %v10564 = vpop.f32.mrf.mxu0
  %v10565 = vadd.f32 0.0, %v10564
  %v10566 = vpop.f32.mrf.mxu0
  %10567 = vmatprep.mubr.bf16.mxu0 0
  %10568 = vmatmul.mubr.bf16.gmra.mxu0 %v10465
  %v10569 = vpop.f32.mrf.mxu0
  %v10570 = vadd.f32 0.0, %v10569
  %v10571 = vpop.f32.mrf.mxu0
  %v10572 = vpop.f32.mrf.mxu0
  %v10573 = vadd.f32 0.0, %v10572
  %v10574 = vpop.f32.mrf.mxu0
  %10575 = vmatprep.mubr.bf16.mxu0 0
  %10576 = vmatmul.mubr.bf16.gmra.mxu0 %v10468
  %v10577 = vpop.f32.mrf.mxu0
  %v10578 = vadd.f32 0.0, %v10577
  %v10579 = vpop.f32.mrf.mxu0
  %v10580 = vpop.f32.mrf.mxu0
  %v10581 = vadd.f32 0.0, %v10580
  %v10582 = vpop.f32.mrf.mxu0
  %10583 = vmatprep.mubr.bf16.mxu0 0
  %10584 = vmatmul.mubr.bf16.gmra.mxu0 %v10471
  %v10585 = vpop.f32.mrf.mxu0
  %v10586 = vadd.f32 0.0, %v10585
  %v10587 = vpop.f32.mrf.mxu0
  %v10588 = vpop.f32.mrf.mxu0
  %v10589 = vadd.f32 0.0, %v10588
  %v10590 = vpop.f32.mrf.mxu0
  %10591 = vmatprep.mubr.bf16.mxu0 0
  %10592 = vmatmul.mubr.bf16.gmra.mxu0 %v10474
  %v10593 = vpop.f32.mrf.mxu0
  %v10594 = vadd.f32 0.0, %v10593
  %v10595 = vpop.f32.mrf.mxu0
  %v10596 = vpop.f32.mrf.mxu0
  %v10597 = vadd.f32 0.0, %v10596
  %v10598 = vpop.f32.mrf.mxu0
  %10599 = vmatprep.mubr.bf16.mxu0 0
  %10600 = vmatmul.mubr.bf16.gmra.mxu0 %v10477
  %v10601 = vpop.f32.mrf.mxu0
  %v10602 = vadd.f32 0.0, %v10601
  %v10603 = vpop.f32.mrf.mxu0
  %v10604 = vpop.f32.mrf.mxu0
  %v10605 = vadd.f32 0.0, %v10604
  %v10606 = vpop.f32.mrf.mxu0
  %10607 = vmatprep.mubr.bf16.mxu0 0
  %10608 = vmatmul.mubr.bf16.gmra.mxu0 %v10480
  %v10609 = vpop.f32.mrf.mxu0
  %v10610 = vadd.f32 0.0, %v10609
  %v10611 = vpop.f32.mrf.mxu0
  %v10612 = vpop.f32.mrf.mxu0
  %v10613 = vadd.f32 0.0, %v10612
  %v10614 = vpop.f32.mrf.mxu0
  %10615 = vmatprep.mubr.bf16.mxu0 0
  %10616 = vmatmul.mubr.bf16.gmra.mxu0 %v10483
  %v10617 = vpop.f32.mrf.mxu0
  %v10618 = vadd.f32 0.0, %v10617
  %v10619 = vpop.f32.mrf.mxu0
  %v10620 = vpop.f32.mrf.mxu0
  %v10621 = vadd.f32 0.0, %v10620
  %v10622 = vpop.f32.mrf.mxu0
  %10623 = vmatprep.mubr.bf16.mxu0 0
  %10624 = vmatmul.mubr.bf16.gmra.mxu0 %v10486
  %v10625 = vpop.f32.mrf.mxu0
  %v10626 = vadd.f32 0.0, %v10625
  %v10627 = vpop.f32.mrf.mxu0
  %v10628 = vpop.f32.mrf.mxu0
  %v10629 = vadd.f32 0.0, %v10628
  %v10630 = vpop.f32.mrf.mxu0
  %10631 = vmatprep.mubr.bf16.mxu0 0
  %10632 = vmatmul.mubr.bf16.gmra.mxu0 %v10489
  %v10633 = vpop.f32.mrf.mxu0
  %v10634 = vadd.f32 0.0, %v10633
  %v10635 = vpop.f32.mrf.mxu0
  %v10636 = vpop.f32.mrf.mxu0
  %v10637 = vadd.f32 0.0, %v10636
  %v10638 = vpop.f32.mrf.mxu0
  %10639 = vmatprep.mubr.bf16.mxu0 0
  %10640 = vmatmul.mubr.bf16.gmra.mxu0 %v10492
  %v10641 = vpop.f32.mrf.mxu0
  %v10642 = vadd.f32 0.0, %v10641
  %v10643 = vpop.f32.mrf.mxu0
  %v10644 = vpop.f32.mrf.mxu0
  %v10645 = vadd.f32 0.0, %v10644
  %v10646 = vpop.f32.mrf.mxu0
  %10647 = vmatprep.mubr.bf16.mxu0 0
  %10648 = vmatmul.mubr.bf16.gmra.mxu0 %v10495
  %v10649 = vpop.f32.mrf.mxu0
  %v10650 = vadd.f32 0.0, %v10649
  %v10651 = vpop.f32.mrf.mxu0
  %v10652 = vpop.f32.mrf.mxu0
  %v10653 = vadd.f32 0.0, %v10652
  %v10654 = vpop.f32.mrf.mxu0
  %10655 = vmatprep.mubr.bf16.mxu0 0
  %10656 = vmatmul.mubr.bf16.gmra.mxu0 %v10498
  %v10657 = vpop.f32.mrf.mxu0
  %v10658 = vadd.f32 0.0, %v10657
  %v10659 = vpop.f32.mrf.mxu0
  %v10660 = vpop.f32.mrf.mxu0
  %v10661 = vadd.f32 0.0, %v10660
  %v10662 = vpop.f32.mrf.mxu0
  %10663 = vdwg.mxu0
  %v10664 = vadd.f32 %v10371, %v10538
  %v10665 = vadd.f32 %v10372, %v10541
  %v10666 = vadd.f32 %v10373, %v10546
  %v10667 = vadd.f32 %v10374, %v10549
  %v10668 = vadd.f32 %v10375, %v10554
  %v10669 = vadd.f32 %v10376, %v10557
  %v10670 = vadd.f32 %v10377, %v10562
  %v10671 = vadd.f32 %v10378, %v10565
  %v10672 = vadd.f32 %v10379, %v10570
  %v10673 = vadd.f32 %v10380, %v10573
  %v10674 = vadd.f32 %v10381, %v10578
  %v10675 = vadd.f32 %v10382, %v10581
  %v10676 = vadd.f32 %v10383, %v10586
  %v10677 = vadd.f32 %v10384, %v10589
  %v10678 = vadd.f32 %v10385, %v10594
  %v10679 = vadd.f32 %v10386, %v10597
  %v10680 = vadd.f32 %v10387, %v10602
  %v10681 = vadd.f32 %v10388, %v10605
  %v10682 = vadd.f32 %v10389, %v10610
  %v10683 = vadd.f32 %v10390, %v10613
  %v10684 = vadd.f32 %v10391, %v10618
  %v10685 = vadd.f32 %v10392, %v10621
  %v10686 = vadd.f32 %v10393, %v10626
  %v10687 = vadd.f32 %v10394, %v10629
  %v10688 = vadd.f32 %v10395, %v10634
  %v10689 = vadd.f32 %v10396, %v10637
  %v10690 = vadd.f32 %v10397, %v10642
  %v10691 = vadd.f32 %v10398, %v10645
  %v10692 = vadd.f32 %v10399, %v10650
  %v10693 = vadd.f32 %v10400, %v10653
  %v10694 = vadd.f32 %v10401, %v10658
  %v10695 = vadd.f32 %v10402, %v10661
  %v10696 = vld [vmem:[%s4560 + $0x2] sm:$0xff]
  %v10697 = vld [vmem:[%s4560 + $0xa] sm:$0xff]
  %v10698 = vld [vmem:[%s4560 + $0x1a] sm:$0xff]
  %v10699 = vld [vmem:[%s4560 + $0x22] sm:$0xff]
  %v10700 = vld [vmem:[%s4560 + $0x32] sm:$0xff]
  %v10701 = vld [vmem:[%s4560 + $0x3a] sm:$0xff]
  %v10702 = vld [vmem:[%s4560 + $0x4a] sm:$0xff]
  %v10703 = vld [vmem:[%s4560 + $0x52] sm:$0xff]
  %v10704 = vld [vmem:[%s4560 + $0x62] sm:$0xff]
  %v10705 = vld [vmem:[%s4560 + $0x6a] sm:$0xff]
  %v10706 = vld [vmem:[%s4560 + $0x7a] sm:$0xff]
  %v10707 = vld [vmem:[%s4560 + $0x82] sm:$0xff]
  %v10708 = vld [vmem:[%s4560 + $0x92] sm:$0xff]
  %v10709 = vld [vmem:[%s4560 + $0x9a] sm:$0xff]
  %v10710 = vld [vmem:[%s4560 + $0xaa] sm:$0xff]
  %v10711 = vld [vmem:[%s4560 + $0xb2] sm:$0xff]
  %v10712 = vld [vmem:[%s4560 + $0xc2] sm:$0xff]
  %v10713 = vld [vmem:[%s4560 + $0xca] sm:$0xff]
  %v10714 = vld [vmem:[%s4560 + $0xda] sm:$0xff]
  %v10715 = vld [vmem:[%s4560 + $0xe2] sm:$0xff]
  %v10716 = vld [vmem:[%s4560 + $0xf2] sm:$0xff]
  %v10717 = vld [vmem:[%s4560 + $0xfa] sm:$0xff]
  %v10718 = vld [vmem:[%s4560 + $0x10a] sm:$0xff]
  %v10719 = vld [vmem:[%s4560 + $0x112] sm:$0xff]
  %v10720 = vld [vmem:[%s4560 + $0x122] sm:$0xff]
  %v10721 = vld [vmem:[%s4560 + $0x12a] sm:$0xff]
  %v10722 = vld [vmem:[%s4560 + $0x13a] sm:$0xff]
  %v10723 = vld [vmem:[%s4560 + $0x142] sm:$0xff]
  %v10724 = vld [vmem:[%s4560 + $0x152] sm:$0xff]
  %v10725 = vld [vmem:[%s4560 + $0x15a] sm:$0xff]
  %v10726 = vld [vmem:[%s4560 + $0x16a] sm:$0xff]
  %v10727 = vld [vmem:[%s4560 + $0x172] sm:$0xff]
  %v10728 = vpack.c.bf16 %v10697, %v10696
  %v10729 = vpack.c.bf16 %v10699, %v10698
  %v10730 = vpack.c.bf16 %v10701, %v10700
  %v10731 = vpack.c.bf16 %v10703, %v10702
  %v10732 = vpack.c.bf16 %v10705, %v10704
  %v10733 = vpack.c.bf16 %v10707, %v10706
  %v10734 = vpack.c.bf16 %v10709, %v10708
  %v10735 = vpack.c.bf16 %v10711, %v10710
  %v10736 = vpack.c.bf16 %v10713, %v10712
  %v10737 = vpack.c.bf16 %v10715, %v10714
  %v10738 = vpack.c.bf16 %v10717, %v10716
  %v10739 = vpack.c.bf16 %v10719, %v10718
  %v10740 = vpack.c.bf16 %v10721, %v10720
  %v10741 = vpack.c.bf16 %v10723, %v10722
  %v10742 = vpack.c.bf16 %v10725, %v10724
  %v10743 = vpack.c.bf16 %v10727, %v10726
  %v10744 = vld [vmem:[%s5197] sm:$0xf]
  %v10746 = vsel %vm64, %v10728, 0
  %v10749 = vsel %vm64, %v10729, 0
  %v10752 = vsel %vm64, %v10730, 0
  %v10755 = vsel %vm64, %v10731, 0
  %v10758 = vsel %vm64, %v10732, 0
  %v10761 = vsel %vm64, %v10733, 0
  %v10764 = vsel %vm64, %v10734, 0
  %v10767 = vsel %vm64, %v10735, 0
  %v10770 = vsel %vm64, %v10736, 0
  %v10773 = vsel %vm64, %v10737, 0
  %v10776 = vsel %vm64, %v10738, 0
  %v10779 = vsel %vm64, %v10739, 0
  %v10782 = vsel %vm64, %v10740, 0
  %v10785 = vsel %vm64, %v10741, 0
  %v10788 = vsel %vm64, %v10742, 0
  %v10791 = vsel %vm64, %v10743, 0
  %v10794 = vsel %vm3007, %v10744, 0
  %10796 = vmatprep.subr.bf16.mxu0 0
  %10797 = vmatpush1.bf16.msra.mxu0 0
  %10798 = vmatprep.subr.bf16.mxu0 0
  %10799 = vmatpush1.bf16.msra.mxu0 0
  %10800 = vmatprep.subr.bf16.mxu0 0
  %10801 = vmatpush1.bf16.msra.mxu0 0
  %10802 = vmatprep.subr.bf16.mxu0 0
  %10803 = vmatpush1.bf16.msra.mxu0 0
  %10804 = vmatprep.subr.bf16.mxu0 0
  %10805 = vmatpush1.bf16.msra.mxu0 0
  %10806 = vmatprep.subr.bf16.mxu0 0
  %10807 = vmatpush1.bf16.msra.mxu0 0
  %10808 = vmatprep.subr.bf16.mxu0 0
  %10809 = vmatpush1.bf16.msra.mxu0 0
  %10810 = vmatprep.subr.bf16.mxu0 0
  %10811 = vmatpush1.bf16.msra.mxu0 %v10794
  %10812 = vmatprep.subr.bf16.mxu0 0
  %10813 = vmatpush2.bf16.msra.mxu0 0
  %10814 = vmatprep.subr.bf16.mxu0 0
  %10815 = vmatpush2.bf16.msra.mxu0 0
  %10816 = vmatprep.subr.bf16.mxu0 0
  %10817 = vmatpush2.bf16.msra.mxu0 0
  %10818 = vmatprep.subr.bf16.mxu0 0
  %10819 = vmatpush2.bf16.msra.mxu0 0
  %10820 = vmatprep.subr.bf16.mxu0 0
  %10821 = vmatpush2.bf16.msra.mxu0 0
  %10822 = vmatprep.subr.bf16.mxu0 0
  %10823 = vmatpush2.bf16.msra.mxu0 0
  %10824 = vmatprep.subr.bf16.mxu0 0
  %10825 = vmatpush2.bf16.msra.mxu0 0
  %10826 = vmatprep.subr.bf16.mxu0 0
  %10827 = vmatpush2.bf16.msra.mxu0 0
  %10828 = vmatprep.mubr.bf16.mxu0 0
  %10829 = vmatmul.mubr.bf16.gmra.mxu0 %v10746
  %v10830 = vpop.f32.mrf.mxu0
  %v10831 = vadd.f32 0.0, %v10830
  %v10832 = vpop.f32.mrf.mxu0
  %v10833 = vpop.f32.mrf.mxu0
  %v10834 = vadd.f32 0.0, %v10833
  %v10835 = vpop.f32.mrf.mxu0
  %10836 = vmatprep.mubr.bf16.mxu0 0
  %10837 = vmatmul.mubr.bf16.gmra.mxu0 %v10749
  %v10838 = vpop.f32.mrf.mxu0
  %v10839 = vadd.f32 0.0, %v10838
  %v10840 = vpop.f32.mrf.mxu0
  %v10841 = vpop.f32.mrf.mxu0
  %v10842 = vadd.f32 0.0, %v10841
  %v10843 = vpop.f32.mrf.mxu0
  %10844 = vmatprep.mubr.bf16.mxu0 0
  %10845 = vmatmul.mubr.bf16.gmra.mxu0 %v10752
  %v10846 = vpop.f32.mrf.mxu0
  %v10847 = vadd.f32 0.0, %v10846
  %v10848 = vpop.f32.mrf.mxu0
  %v10849 = vpop.f32.mrf.mxu0
  %v10850 = vadd.f32 0.0, %v10849
  %v10851 = vpop.f32.mrf.mxu0
  %10852 = vmatprep.mubr.bf16.mxu0 0
  %10853 = vmatmul.mubr.bf16.gmra.mxu0 %v10755
  %v10854 = vpop.f32.mrf.mxu0
  %v10855 = vadd.f32 0.0, %v10854
  %v10856 = vpop.f32.mrf.mxu0
  %v10857 = vpop.f32.mrf.mxu0
  %v10858 = vadd.f32 0.0, %v10857
  %v10859 = vpop.f32.mrf.mxu0
  %10860 = vmatprep.mubr.bf16.mxu0 0
  %10861 = vmatmul.mubr.bf16.gmra.mxu0 %v10758
  %v10862 = vpop.f32.mrf.mxu0
  %v10863 = vadd.f32 0.0, %v10862
  %v10864 = vpop.f32.mrf.mxu0
  %v10865 = vpop.f32.mrf.mxu0
  %v10866 = vadd.f32 0.0, %v10865
  %v10867 = vpop.f32.mrf.mxu0
  %10868 = vmatprep.mubr.bf16.mxu0 0
  %10869 = vmatmul.mubr.bf16.gmra.mxu0 %v10761
  %v10870 = vpop.f32.mrf.mxu0
  %v10871 = vadd.f32 0.0, %v10870
  %v10872 = vpop.f32.mrf.mxu0
  %v10873 = vpop.f32.mrf.mxu0
  %v10874 = vadd.f32 0.0, %v10873
  %v10875 = vpop.f32.mrf.mxu0
  %10876 = vmatprep.mubr.bf16.mxu0 0
  %10877 = vmatmul.mubr.bf16.gmra.mxu0 %v10764
  %v10878 = vpop.f32.mrf.mxu0
  %v10879 = vadd.f32 0.0, %v10878
  %v10880 = vpop.f32.mrf.mxu0
  %v10881 = vpop.f32.mrf.mxu0
  %v10882 = vadd.f32 0.0, %v10881
  %v10883 = vpop.f32.mrf.mxu0
  %10884 = vmatprep.mubr.bf16.mxu0 0
  %10885 = vmatmul.mubr.bf16.gmra.mxu0 %v10767
  %v10886 = vpop.f32.mrf.mxu0
  %v10887 = vadd.f32 0.0, %v10886
  %v10888 = vpop.f32.mrf.mxu0
  %v10889 = vpop.f32.mrf.mxu0
  %v10890 = vadd.f32 0.0, %v10889
  %v10891 = vpop.f32.mrf.mxu0
  %10892 = vmatprep.mubr.bf16.mxu0 0
  %10893 = vmatmul.mubr.bf16.gmra.mxu0 %v10770
  %v10894 = vpop.f32.mrf.mxu0
  %v10895 = vadd.f32 0.0, %v10894
  %v10896 = vpop.f32.mrf.mxu0
  %v10897 = vpop.f32.mrf.mxu0
  %v10898 = vadd.f32 0.0, %v10897
  %v10899 = vpop.f32.mrf.mxu0
  %10900 = vmatprep.mubr.bf16.mxu0 0
  %10901 = vmatmul.mubr.bf16.gmra.mxu0 %v10773
  %v10902 = vpop.f32.mrf.mxu0
  %v10903 = vadd.f32 0.0, %v10902
  %v10904 = vpop.f32.mrf.mxu0
  %v10905 = vpop.f32.mrf.mxu0
  %v10906 = vadd.f32 0.0, %v10905
  %v10907 = vpop.f32.mrf.mxu0
  %10908 = vmatprep.mubr.bf16.mxu0 0
  %10909 = vmatmul.mubr.bf16.gmra.mxu0 %v10776
  %v10910 = vpop.f32.mrf.mxu0
  %v10911 = vadd.f32 0.0, %v10910
  %v10912 = vpop.f32.mrf.mxu0
  %v10913 = vpop.f32.mrf.mxu0
  %v10914 = vadd.f32 0.0, %v10913
  %v10915 = vpop.f32.mrf.mxu0
  %10916 = vmatprep.mubr.bf16.mxu0 0
  %10917 = vmatmul.mubr.bf16.gmra.mxu0 %v10779
  %v10918 = vpop.f32.mrf.mxu0
  %v10919 = vadd.f32 0.0, %v10918
  %v10920 = vpop.f32.mrf.mxu0
  %v10921 = vpop.f32.mrf.mxu0
  %v10922 = vadd.f32 0.0, %v10921
  %v10923 = vpop.f32.mrf.mxu0
  %10924 = vmatprep.mubr.bf16.mxu0 0
  %10925 = vmatmul.mubr.bf16.gmra.mxu0 %v10782
  %v10926 = vpop.f32.mrf.mxu0
  %v10927 = vadd.f32 0.0, %v10926
  %v10928 = vpop.f32.mrf.mxu0
  %v10929 = vpop.f32.mrf.mxu0
  %v10930 = vadd.f32 0.0, %v10929
  %v10931 = vpop.f32.mrf.mxu0
  %10932 = vmatprep.mubr.bf16.mxu0 0
  %10933 = vmatmul.mubr.bf16.gmra.mxu0 %v10785
  %v10934 = vpop.f32.mrf.mxu0
  %v10935 = vadd.f32 0.0, %v10934
  %v10936 = vpop.f32.mrf.mxu0
  %v10937 = vpop.f32.mrf.mxu0
  %v10938 = vadd.f32 0.0, %v10937
  %v10939 = vpop.f32.mrf.mxu0
  %10940 = vmatprep.mubr.bf16.mxu0 0
  %10941 = vmatmul.mubr.bf16.gmra.mxu0 %v10788
  %v10942 = vpop.f32.mrf.mxu0
  %v10943 = vadd.f32 0.0, %v10942
  %v10944 = vpop.f32.mrf.mxu0
  %v10945 = vpop.f32.mrf.mxu0
  %v10946 = vadd.f32 0.0, %v10945
  %v10947 = vpop.f32.mrf.mxu0
  %10948 = vmatprep.mubr.bf16.mxu0 0
  %10949 = vmatmul.mubr.bf16.gmra.mxu0 %v10791
  %v10950 = vpop.f32.mrf.mxu0
  %v10951 = vadd.f32 0.0, %v10950
  %v10952 = vpop.f32.mrf.mxu0
  %v10953 = vpop.f32.mrf.mxu0
  %v10954 = vadd.f32 0.0, %v10953
  %v10955 = vpop.f32.mrf.mxu0
  %10956 = vdwg.mxu0
  %v10957 = vadd.f32 %v10664, %v10831
  %v10958 = vadd.f32 %v10665, %v10834
  %v10959 = vadd.f32 %v10666, %v10839
  %v10960 = vadd.f32 %v10667, %v10842
  %v10961 = vadd.f32 %v10668, %v10847
  %v10962 = vadd.f32 %v10669, %v10850
  %v10963 = vadd.f32 %v10670, %v10855
  %v10964 = vadd.f32 %v10671, %v10858
  %v10965 = vadd.f32 %v10672, %v10863
  %v10966 = vadd.f32 %v10673, %v10866
  %v10967 = vadd.f32 %v10674, %v10871
  %v10968 = vadd.f32 %v10675, %v10874
  %v10969 = vadd.f32 %v10676, %v10879
  %v10970 = vadd.f32 %v10677, %v10882
  %v10971 = vadd.f32 %v10678, %v10887
  %v10972 = vadd.f32 %v10679, %v10890
  %v10973 = vadd.f32 %v10680, %v10895
  %v10974 = vadd.f32 %v10681, %v10898
  %v10975 = vadd.f32 %v10682, %v10903
  %v10976 = vadd.f32 %v10683, %v10906
  %v10977 = vadd.f32 %v10684, %v10911
  %v10978 = vadd.f32 %v10685, %v10914
  %v10979 = vadd.f32 %v10686, %v10919
  %v10980 = vadd.f32 %v10687, %v10922
  %v10981 = vadd.f32 %v10688, %v10927
  %v10982 = vadd.f32 %v10689, %v10930
  %v10983 = vadd.f32 %v10690, %v10935
  %v10984 = vadd.f32 %v10691, %v10938
  %v10985 = vadd.f32 %v10692, %v10943
  %v10986 = vadd.f32 %v10693, %v10946
  %v10987 = vadd.f32 %v10694, %v10951
  %v10988 = vadd.f32 %v10695, %v10954
  %v10989 = vld [vmem:[%s4] sm:$0x1]
  %v10991 = vlaneseq
  %v10992 = vshrl.u32 %v10991, 7
  %v10993 = vsub.s32 0, %v10992
  %v10994 = vrot.slane %v10989, %v10993
  %v10996 = vadd.f32 %v10957, %v10994
  %v10997 = vadd.f32 %v10958, %v10994
  %v10998 = vadd.f32 %v10959, %v10994
  %v10999 = vadd.f32 %v10960, %v10994
  %v11000 = vadd.f32 %v10961, %v10994
  %v11001 = vadd.f32 %v10962, %v10994
  %v11002 = vadd.f32 %v10963, %v10994
  %v11003 = vadd.f32 %v10964, %v10994
  %v11004 = vadd.f32 %v10965, %v10994
  %v11005 = vadd.f32 %v10966, %v10994
  %v11006 = vadd.f32 %v10967, %v10994
  %v11007 = vadd.f32 %v10968, %v10994
  %v11008 = vadd.f32 %v10969, %v10994
  %v11009 = vadd.f32 %v10970, %v10994
  %v11010 = vadd.f32 %v10971, %v10994
  %v11011 = vadd.f32 %v10972, %v10994
  %v11012 = vadd.f32 %v10973, %v10994
  %v11013 = vadd.f32 %v10974, %v10994
  %v11014 = vadd.f32 %v10975, %v10994
  %v11015 = vadd.f32 %v10976, %v10994
  %v11016 = vadd.f32 %v10977, %v10994
  %v11017 = vadd.f32 %v10978, %v10994
  %v11018 = vadd.f32 %v10979, %v10994
  %v11019 = vadd.f32 %v10980, %v10994
  %v11020 = vadd.f32 %v10981, %v10994
  %v11021 = vadd.f32 %v10982, %v10994
  %v11022 = vadd.f32 %v10983, %v10994
  %v11023 = vadd.f32 %v10984, %v10994
  %v11024 = vadd.f32 %v10985, %v10994
  %v11025 = vadd.f32 %v10986, %v10994
  %v11026 = vadd.f32 %v10987, %v10994
  %v11027 = vadd.f32 %v10988, %v10994
  %v11028 = vmax.f32 %v10996, 0.0
  %v11029 = vmax.f32 %v10997, 0.0
  %v11030 = vmax.f32 %v10998, 0.0
  %v11031 = vmax.f32 %v10999, 0.0
  %v11032 = vmax.f32 %v11000, 0.0
  %v11033 = vmax.f32 %v11001, 0.0
  %v11034 = vmax.f32 %v11002, 0.0
  %v11035 = vmax.f32 %v11003, 0.0
  %v11036 = vmax.f32 %v11004, 0.0
  %v11037 = vmax.f32 %v11005, 0.0
  %v11038 = vmax.f32 %v11006, 0.0
  %v11039 = vmax.f32 %v11007, 0.0
  %v11040 = vmax.f32 %v11008, 0.0
  %v11041 = vmax.f32 %v11009, 0.0
  %v11042 = vmax.f32 %v11010, 0.0
  %v11043 = vmax.f32 %v11011, 0.0
  %v11044 = vmax.f32 %v11012, 0.0
  %v11045 = vmax.f32 %v11013, 0.0
  %v11046 = vmax.f32 %v11014, 0.0
  %v11047 = vmax.f32 %v11015, 0.0
  %v11048 = vmax.f32 %v11016, 0.0
  %v11049 = vmax.f32 %v11017, 0.0
  %v11050 = vmax.f32 %v11018, 0.0
  %v11051 = vmax.f32 %v11019, 0.0
  %v11052 = vmax.f32 %v11020, 0.0
  %v11053 = vmax.f32 %v11021, 0.0
  %v11054 = vmax.f32 %v11022, 0.0
  %v11055 = vmax.f32 %v11023, 0.0
  %v11056 = vmax.f32 %v11024, 0.0
  %v11057 = vmax.f32 %v11025, 0.0
  %v11058 = vmax.f32 %v11026, 0.0
  %v11059 = vmax.f32 %v11027, 0.0
  %v11060 = vpack.c.bf16 %v11029, %v11028
  %v11061 = vpack.c.bf16 %v11031, %v11030
  %v11062 = vpack.c.bf16 %v11033, %v11032
  %v11063 = vpack.c.bf16 %v11035, %v11034
  %v11064 = vpack.c.bf16 %v11037, %v11036
  %v11065 = vpack.c.bf16 %v11039, %v11038
  %v11066 = vpack.c.bf16 %v11041, %v11040
  %v11067 = vpack.c.bf16 %v11043, %v11042
  %v11068 = vpack.c.bf16 %v11045, %v11044
  %v11069 = vpack.c.bf16 %v11047, %v11046
  %v11070 = vpack.c.bf16 %v11049, %v11048
  %v11071 = vpack.c.bf16 %v11051, %v11050
  %v11072 = vpack.c.bf16 %v11053, %v11052
  %v11073 = vpack.c.bf16 %v11055, %v11054
  %v11074 = vpack.c.bf16 %v11057, %v11056
  %v11075 = vpack.c.bf16 %v11059, %v11058
  %v11092 = vunpack.c.l.b16 %v11060
  %v11093 = vunpack.c.h.b16 %v11060
  %v11094 = vunpack.c.l.b16 %v11061
  %v11095 = vunpack.c.h.b16 %v11061
  %v11096 = vunpack.c.l.b16 %v11062
  %v11097 = vunpack.c.h.b16 %v11062
  %v11098 = vunpack.c.l.b16 %v11063
  %v11099 = vunpack.c.h.b16 %v11063
  %v11100 = vunpack.c.l.b16 %v11064
  %v11101 = vunpack.c.h.b16 %v11064
  %v11102 = vunpack.c.l.b16 %v11065
  %v11103 = vunpack.c.h.b16 %v11065
  %v11104 = vunpack.c.l.b16 %v11066
  %v11105 = vunpack.c.h.b16 %v11066
  %v11106 = vunpack.c.l.b16 %v11067
  %v11107 = vunpack.c.h.b16 %v11067
  %v11108 = vunpack.c.l.b16 %v11068
  %v11109 = vunpack.c.h.b16 %v11068
  %v11110 = vunpack.c.l.b16 %v11069
  %v11111 = vunpack.c.h.b16 %v11069
  %v11112 = vunpack.c.l.b16 %v11070
  %v11113 = vunpack.c.h.b16 %v11070
  %v11114 = vunpack.c.l.b16 %v11071
  %v11115 = vunpack.c.h.b16 %v11071
  %v11116 = vunpack.c.l.b16 %v11072
  %v11117 = vunpack.c.h.b16 %v11072
  %v11118 = vunpack.c.l.b16 %v11073
  %v11119 = vunpack.c.h.b16 %v11073
  %v11120 = vunpack.c.l.b16 %v11074
  %v11121 = vunpack.c.h.b16 %v11074
  %v11122 = vunpack.c.l.b16 %v11075
  %v11123 = vunpack.c.h.b16 %v11075
  %v11124 = vpack.c.b16 %v11092, %v11092
  %v11125 = vpack.c.b16 %v11093, %v11093
  %v11126 = vpack.c.b16 %v11094, %v11094
  %v11127 = vpack.c.b16 %v11095, %v11095
  %v11128 = vpack.c.b16 %v11096, %v11096
  %v11129 = vpack.c.b16 %v11097, %v11097
  %v11130 = vpack.c.b16 %v11098, %v11098
  %v11131 = vpack.c.b16 %v11099, %v11099
  %v11132 = vpack.c.b16 %v11100, %v11100
  %v11133 = vpack.c.b16 %v11101, %v11101
  %v11134 = vpack.c.b16 %v11102, %v11102
  %v11135 = vpack.c.b16 %v11103, %v11103
  %v11136 = vpack.c.b16 %v11104, %v11104
  %v11137 = vpack.c.b16 %v11105, %v11105
  %v11138 = vpack.c.b16 %v11106, %v11106
  %v11139 = vpack.c.b16 %v11107, %v11107
  %v11140 = vpack.c.b16 %v11108, %v11108
  %v11141 = vpack.c.b16 %v11109, %v11109
  %v11142 = vpack.c.b16 %v11110, %v11110
  %v11143 = vpack.c.b16 %v11111, %v11111
  %v11144 = vpack.c.b16 %v11112, %v11112
  %v11145 = vpack.c.b16 %v11113, %v11113
  %v11146 = vpack.c.b16 %v11114, %v11114
  %v11147 = vpack.c.b16 %v11115, %v11115
  %v11148 = vpack.c.b16 %v11116, %v11116
  %v11149 = vpack.c.b16 %v11117, %v11117
  %v11150 = vpack.c.b16 %v11118, %v11118
  %v11151 = vpack.c.b16 %v11119, %v11119
  %v11152 = vpack.c.b16 %v11120, %v11120
  %v11153 = vpack.c.b16 %v11121, %v11121
  %v11154 = vpack.c.b16 %v11122, %v11122
  %v11155 = vpack.c.b16 %v11123, %v11123
  %s11188 = scalar_lea.vmem %s5, 128
  %11189 = vst.msk [vmem:[%s11188] sm:$0xf] %vm5642, %v11124
  %11190 = vst.msk [vmem:[%s11188 + $0x4] sm:$0xf] %vm5642, %v11125
  %11191 = vst.msk [vmem:[%s11188 + $0x8] sm:$0xf] %vm5642, %v11126
  %11192 = vst.msk [vmem:[%s11188 + $0xc] sm:$0xf] %vm5642, %v11127
  %11193 = vst.msk [vmem:[%s11188 + $0x10] sm:$0xf] %vm5642, %v11128
  %11194 = vst.msk [vmem:[%s11188 + $0x14] sm:$0xf] %vm5642, %v11129
  %11195 = vst.msk [vmem:[%s11188 + $0x18] sm:$0xf] %vm5642, %v11130
  %11196 = vst.msk [vmem:[%s11188 + $0x1c] sm:$0xf] %vm5642, %v11131
  %11197 = vst.msk [vmem:[%s11188 + $0x20] sm:$0xf] %vm5642, %v11132
  %11198 = vst.msk [vmem:[%s11188 + $0x24] sm:$0xf] %vm5642, %v11133
  %11199 = vst.msk [vmem:[%s11188 + $0x28] sm:$0xf] %vm5642, %v11134
  %11200 = vst.msk [vmem:[%s11188 + $0x2c] sm:$0xf] %vm5642, %v11135
  %11201 = vst.msk [vmem:[%s11188 + $0x30] sm:$0xf] %vm5642, %v11136
  %11202 = vst.msk [vmem:[%s11188 + $0x34] sm:$0xf] %vm5642, %v11137
  %11203 = vst.msk [vmem:[%s11188 + $0x38] sm:$0xf] %vm5642, %v11138
  %11204 = vst.msk [vmem:[%s11188 + $0x3c] sm:$0xf] %vm5642, %v11139
  %11205 = vst.msk [vmem:[%s11188 + $0x40] sm:$0xf] %vm5642, %v11140
  %11206 = vst.msk [vmem:[%s11188 + $0x44] sm:$0xf] %vm5642, %v11141
  %11207 = vst.msk [vmem:[%s11188 + $0x48] sm:$0xf] %vm5642, %v11142
  %11208 = vst.msk [vmem:[%s11188 + $0x4c] sm:$0xf] %vm5642, %v11143
  %11209 = vst.msk [vmem:[%s11188 + $0x50] sm:$0xf] %vm5642, %v11144
  %11210 = vst.msk [vmem:[%s11188 + $0x54] sm:$0xf] %vm5642, %v11145
  %11211 = vst.msk [vmem:[%s11188 + $0x58] sm:$0xf] %vm5642, %v11146
  %11212 = vst.msk [vmem:[%s11188 + $0x5c] sm:$0xf] %vm5642, %v11147
  %11213 = vst.msk [vmem:[%s11188 + $0x60] sm:$0xf] %vm5642, %v11148
  %11214 = vst.msk [vmem:[%s11188 + $0x64] sm:$0xf] %vm5642, %v11149
  %11215 = vst.msk [vmem:[%s11188 + $0x68] sm:$0xf] %vm5642, %v11150
  %11216 = vst.msk [vmem:[%s11188 + $0x6c] sm:$0xf] %vm5642, %v11151
  %11217 = vst.msk [vmem:[%s11188 + $0x70] sm:$0xf] %vm5642, %v11152
  %11218 = vst.msk [vmem:[%s11188 + $0x74] sm:$0xf] %vm5642, %v11153
  %11219 = vst.msk [vmem:[%s11188 + $0x78] sm:$0xf] %vm5642, %v11154
  %11220 = vst.msk [vmem:[%s11188 + $0x7c] sm:$0xf] %vm5642, %v11155
  // Predicated region
  $region22: #{tpu_custom_call.1} parent=0 // pred_check
    _
  $region23: #{tpu_custom_call.1} parent=0 // pred_check_branch
    %11222 = sbr.rel (0) target = $region25
  $region24: #{tpu_custom_call.1} parent=0 // pred_region
    _
  $region25: #{tpu_custom_call.1} parent=0 // pred_fallthru
    _
  // Predicated region
  $region26: #{tpu_custom_call.1} parent=0 // pred_check
    _
  $region27: #{tpu_custom_call.1} parent=0 // pred_check_branch
    %11224 = sbr.rel (0) target = $region29
  $region28: #{tpu_custom_call.1} parent=0 // pred_region
    _
  $region29: #{tpu_custom_call.1} parent=0 // pred_fallthru
    _

</llo_original>
